<compile_context>
chip_gen: v7x
topology: tpu7x:2x2x1
jax: 0.10.0
libtpu: 0.0.40
codegen_flags: <defaults>
</compile_context>

<pallas_src>
import functools

import jax
import jax.numpy as jnp
from jax.experimental import pallas as pl
from jax.experimental.pallas import tpu as pltpu

N_EMBD = 384
HIDDEN = 4 * N_EMBD            # 1536
DROPOUT = 0.2
# Drop iff uniform uint32 < DROPOUT * 2**32  (keep probability 0.8).
DROP_THRESHOLD = int(DROPOUT * (1 << 32)) & 0xFFFFFFFF


def ffwd_kernel(x_ref, w1_ref, b1_ref, w2_ref, b2_ref, bits_ref, o_ref,
                *, apply_dropout):
    # x_ref: (tm, 384) bf16, w1_ref: (384, 1536) bf16, b1_ref: (1, 1536) f32,
    # w2_ref: (1536, 384) bf16, b2_ref: (1, 384) f32, bits_ref: (tm, 384) u32,
    # o_ref: (tm, 384) f32
    h = jnp.dot(x_ref[...], w1_ref[...], preferred_element_type=jnp.float32)
    h = jnp.maximum(h + b1_ref[...], 0.0)                       # ReLU
    y = jnp.dot(h.astype(w2_ref.dtype), w2_ref[...],
                preferred_element_type=jnp.float32) + b2_ref[...]

    if apply_dropout:
        # Inverted dropout: integer-threshold keep mask + single select.
        keep = bits_ref[...] >= jnp.uint32(DROP_THRESHOLD)
        y = jnp.where(keep, y * (1.0 / (1.0 - DROPOUT)), 0.0)

    o_ref[...] = y.astype(o_ref.dtype)


@functools.partial(jax.jit, static_argnames=("tm", "training"))
def feed_forward(x, w1, b1, w2, b2, key, *, tm=256, training=True):
    B, T, C = x.shape
    assert C == N_EMBD
    M = B * T
    Mp = pl.cdiv(M, tm) * tm                  # pad rows up to a full tile

    x2 = x.reshape(M, C)
    if Mp != M:
        x2 = jnp.pad(x2, ((0, Mp - M), (0, 0)))

    # bf16 operands for the MXU; accumulation stays f32 inside the kernel.
    x2 = x2.astype(jnp.bfloat16)
    w1b = w1.astype(jnp.bfloat16)
    w2b = w2.astype(jnp.bfloat16)
    b1_2 = b1.reshape(1, HIDDEN).astype(jnp.float32)
    b2_2 = b2.reshape(1, N_EMBD).astype(jnp.float32)

    # Dropout randomness generated outside the kernel (portable: avoids the
    # TPU-only stateful PRNG primitives); consumed as a uint32 threshold test.
    if training:
        bits = jax.random.bits(key, (Mp, N_EMBD), jnp.uint32)
    else:
        bits = jnp.zeros((Mp, N_EMBD), jnp.uint32)

    kernel = functools.partial(ffwd_kernel, apply_dropout=training)

    out = pl.pallas_call(
        kernel,
        out_shape=jax.ShapeDtypeStruct((Mp, N_EMBD), x.dtype),
        grid=(Mp // tm,),
        in_specs=[
            pl.BlockSpec((tm, N_EMBD), lambda i: (i, 0)),       # x tile
            pl.BlockSpec((N_EMBD, HIDDEN), lambda i: (0, 0)),   # W1 (resident)
            pl.BlockSpec((1, HIDDEN), lambda i: (0, 0)),        # b1
            pl.BlockSpec((HIDDEN, N_EMBD), lambda i: (0, 0)),   # W2 (resident)
            pl.BlockSpec((1, N_EMBD), lambda i: (0, 0)),        # b2
            pl.BlockSpec((tm, N_EMBD), lambda i: (i, 0)),       # dropout bits
        ],
        out_specs=pl.BlockSpec((tm, N_EMBD), lambda i: (i, 0)),
        compiler_params=pltpu.CompilerParams(
            dimension_semantics=("parallel",)),
    )(x2, w1b, b1_2, w2b, b2_2, bits)

    return out[:M].reshape(B, T, C)


def init_params(key):
    # Deterministic init matching nn.Linear's U(-1/sqrt(fan_in), 1/sqrt(fan_in)).
    k1, k2, k3, k4 = jax.random.split(key, 4)
    lim1 = 1.0 / (N_EMBD ** 0.5)
    lim2 = 1.0 / (HIDDEN ** 0.5)
    w1 = jax.random.uniform(k1, (N_EMBD, HIDDEN), jnp.float32, -lim1, lim1)
    b1 = jax.random.uniform(k2, (HIDDEN,), jnp.float32, -lim1, lim1)
    w2 = jax.random.uniform(k3, (HIDDEN, N_EMBD), jnp.float32, -lim2, lim2)
    b2 = jax.random.uniform(k4, (N_EMBD,), jnp.float32, -lim2, lim2)
    return w1, b1, w2, b2


if __name__ == "__main__":
    key = jax.random.PRNGKey(0)
    kp, kx, kd = jax.random.split(key, 3)
    w1, b1, w2, b2 = init_params(kp)

    B, T = 2, 8                               # small (batch, seq); channels fixed at 384
    x = jax.random.normal(kx, (B, T, N_EMBD), jnp.float32)

    y = feed_forward(x, w1, b1, w2, b2, kd, training=True)
    jax.block_until_ready(y)
    assert y.shape == (B, T, N_EMBD)
    print("KERNEL_OK")
</pallas_src>

<mosaic_0001>
module attributes {stable_mosaic.version = 11 : i64} {
  func.func @ffwd_kernel(%arg0: i32, %arg1: memref<256x384xbf16, #tpu.memory_space<vmem>>, %arg2: memref<384x1536xbf16, #tpu.memory_space<vmem>>, %arg3: memref<1x1536xf32, #tpu.memory_space<vmem>>, %arg4: memref<1536x384xbf16, #tpu.memory_space<vmem>>, %arg5: memref<1x384xf32, #tpu.memory_space<vmem>>, %arg6: memref<256x384xi32, #tpu.memory_space<vmem>>, %arg7: memref<256x384xf32, #tpu.memory_space<vmem>>) attributes {dimension_semantics = [#tpu.dimension_semantics<parallel>], iteration_bounds = array<i64: 1>, scalar_prefetch = 0 : i64, scratch_operands = 0 : i64, tpu.core_type = #tpu.core_type<tc>, window_params = [{transform_indices = @transform_0, window_bounds = array<i64: 256, 384>}, {pipeline_mode = #tpu.pipeline_mode<synchronous>, transform_indices = @transform_1, window_bounds = array<i64: 384, 1536>}, {pipeline_mode = #tpu.pipeline_mode<synchronous>, transform_indices = @transform_2, window_bounds = array<i64: 1, 1536>}, {pipeline_mode = #tpu.pipeline_mode<synchronous>, transform_indices = @transform_3, window_bounds = array<i64: 1536, 384>}, {pipeline_mode = #tpu.pipeline_mode<synchronous>, transform_indices = @transform_4, window_bounds = array<i64: 1, 384>}, {transform_indices = @transform_5, window_bounds = array<i64: 256, 384>}, {transform_indices = @transform_6, window_bounds = array<i64: 256, 384>}]} {
    %c0 = arith.constant 0 : index
    %c0_0 = arith.constant 0 : index
    %0 = vector.load %arg1[%c0, %c0_0] : memref<256x384xbf16, #tpu.memory_space<vmem>>, vector<256x384xbf16>
    %c0_1 = arith.constant 0 : index
    %c0_2 = arith.constant 0 : index
    %1 = vector.load %arg2[%c0_1, %c0_2] : memref<384x1536xbf16, #tpu.memory_space<vmem>>, vector<384x1536xbf16>
    %cst = arith.constant dense<0.000000e+00> : vector<256x1536xf32>
    %2 = tpu.matmul %0, %1, %cst {dimension_numbers = #tpu.dot_dimension_numbers<[1], [0], [0], [1], [0, 0, 1, 1], [], []>} : vector<256x384xbf16>, vector<384x1536xbf16>, vector<256x1536xf32> -> vector<256x1536xf32>
    %c0_3 = arith.constant 0 : index
    %c0_4 = arith.constant 0 : index
    %3 = vector.load %arg3[%c0_3, %c0_4] : memref<1x1536xf32, #tpu.memory_space<vmem>>, vector<1x1536xf32>
    %4 = vector.broadcast %3 : vector<1x1536xf32> to vector<256x1536xf32>
    %5 = arith.addf %2, %4 : vector<256x1536xf32>
    %cst_5 = arith.constant 0.000000e+00 : f32
    %6 = vector.broadcast %cst_5 : f32 to vector<256x1536xf32>
    %7 = arith.maximumf %5, %6 : vector<256x1536xf32>
    %8 = arith.truncf %7 : vector<256x1536xf32> to vector<256x1536xbf16>
    %c0_6 = arith.constant 0 : index
    %c0_7 = arith.constant 0 : index
    %9 = vector.load %arg4[%c0_6, %c0_7] : memref<1536x384xbf16, #tpu.memory_space<vmem>>, vector<1536x384xbf16>
    %cst_8 = arith.constant dense<0.000000e+00> : vector<256x384xf32>
    %10 = tpu.matmul %8, %9, %cst_8 {dimension_numbers = #tpu.dot_dimension_numbers<[1], [0], [0], [1], [0, 0, 1, 1], [], []>} : vector<256x1536xbf16>, vector<1536x384xbf16>, vector<256x384xf32> -> vector<256x384xf32>
    %c0_9 = arith.constant 0 : index
    %c0_10 = arith.constant 0 : index
    %11 = vector.load %arg5[%c0_9, %c0_10] : memref<1x384xf32, #tpu.memory_space<vmem>>, vector<1x384xf32>
    %12 = vector.broadcast %11 : vector<1x384xf32> to vector<256x384xf32>
    %13 = arith.addf %10, %12 : vector<256x384xf32>
    %c0_11 = arith.constant 0 : index
    %c0_12 = arith.constant 0 : index
    %14 = vector.load %arg6[%c0_11, %c0_12] : memref<256x384xi32, #tpu.memory_space<vmem>>, vector<256x384xi32>
    %c858993459_i32 = arith.constant 858993459 : i32
    %15 = vector.broadcast %c858993459_i32 : i32 to vector<256x384xi32>
    %16 = arith.cmpi uge, %14, %15 : vector<256x384xi32>
    %cst_13 = arith.constant 1.250000e+00 : f32
    %17 = vector.broadcast %cst_13 : f32 to vector<256x384xf32>
    %18 = arith.mulf %13, %17 : vector<256x384xf32>
    %cst_14 = arith.constant 0.000000e+00 : f32
    %19 = vector.broadcast %cst_14 : f32 to vector<256x384xf32>
    %20 = arith.select %16, %18, %19 : vector<256x384xi1>, vector<256x384xf32>
    %c0_15 = arith.constant 0 : index
    %c0_16 = arith.constant 0 : index
    %21 = vector.load %arg7[%c0_15, %c0_16] : memref<256x384xf32, #tpu.memory_space<vmem>>, vector<256x384xf32>
    tpu.vector_store %arg7[%c0_15, %c0_16], %20 {strides = array<i32>} : memref<256x384xf32, #tpu.memory_space<vmem>>, vector<256x384xf32>,
    return
  }
  func.func @transform_0(%arg0: i32) -> (i32, i32) {
    %c0_i32 = arith.constant 0 : i32
    %c0_i32_0 = arith.constant 0 : i32
    return %arg0, %c0_i32 : i32, i32
  }
  func.func @transform_1(%arg0: i32) -> (i32, i32) {
    %c0_i32 = arith.constant 0 : i32
    %c0_i32_0 = arith.constant 0 : i32
    %c0_i32_1 = arith.constant 0 : i32
    return %c0_i32, %c0_i32_0 : i32, i32
  }
  func.func @transform_2(%arg0: i32) -> (i32, i32) {
    %c0_i32 = arith.constant 0 : i32
    %c0_i32_0 = arith.constant 0 : i32
    %c0_i32_1 = arith.constant 0 : i32
    return %c0_i32, %c0_i32_0 : i32, i32
  }
  func.func @transform_3(%arg0: i32) -> (i32, i32) {
    %c0_i32 = arith.constant 0 : i32
    %c0_i32_0 = arith.constant 0 : i32
    %c0_i32_1 = arith.constant 0 : i32
    return %c0_i32, %c0_i32_0 : i32, i32
  }
  func.func @transform_4(%arg0: i32) -> (i32, i32) {
    %c0_i32 = arith.constant 0 : i32
    %c0_i32_0 = arith.constant 0 : i32
    %c0_i32_1 = arith.constant 0 : i32
    return %c0_i32, %c0_i32_0 : i32, i32
  }
  func.func @transform_5(%arg0: i32) -> (i32, i32) {
    %c0_i32 = arith.constant 0 : i32
    %c0_i32_0 = arith.constant 0 : i32
    return %arg0, %c0_i32 : i32, i32
  }
  func.func @transform_6(%arg0: i32) -> (i32, i32) {
    %c0_i32 = arith.constant 0 : i32
    %c0_i32_0 = arith.constant 0 : i32
    return %arg0, %c0_i32 : i32, i32
  }
}

</mosaic_0001>

<llo_original>
// kernel: feed_forward.1
$region0: #{feed_forward.1}
  #allocation0 [shape = 'u32[]', space=smem, size = 0x4, offset = 0x4, fixed_abs, tag = 'smem constant byte address 0x4 - core index']
  #allocation1 [shape = 'u32[144,128]{1,0:T(1,128)}', space=vmem, size = 0x12000, scoped, tag = 'internal scratch']
  %s0 = inlined_call_operand.vmem [shape: bf16[256,384], index: 0, kind: input, shape index: {}]
  %s1 = inlined_call_operand.vmem [shape: bf16[384,1536], index: 1, kind: input, shape index: {}]
  %s2 = inlined_call_operand.vmem [shape: f32[1,1536], index: 2, kind: input, shape index: {}]
  %s3 = inlined_call_operand.vmem [shape: bf16[1536,384], index: 3, kind: input, shape index: {}]
  %s4 = inlined_call_operand.vmem [shape: f32[1,384], index: 4, kind: input, shape index: {}]
  %s5 = inlined_call_operand.vmem [shape: u32[256,384], index: 5, kind: input, shape index: {}]
  %s6 = inlined_call_operand.vmem [shape: f32[256,384], index: 6, kind: output, shape index: {}]
  %s7 = sld [smem:[#allocation0]]
  $region34: #{feed_forward.1} parent=0
    _
  %s9 = ssub.s32 1, %s7
  %s10 = scalar_select 0, %s9, %s7
  // Predicated region
  $region2: #{feed_forward.1} parent=0 // pred_check
    _
  $region3: #{feed_forward.1} parent=0 // pred_check_branch
    %12 = sbr.rel (0) target = $region5
  $region4: #{feed_forward.1} parent=0 // pred_region
    _
  $region5: #{feed_forward.1} parent=0 // pred_fallthru
    _
  // Predicated region
  $region6: #{feed_forward.1} parent=0 // pred_check
    _
  $region7: #{feed_forward.1} parent=0 // pred_check_branch
    %14 = sbr.rel (0) target = $region9
  $region8: #{feed_forward.1} parent=0 // pred_region
    _
  $region9: #{feed_forward.1} parent=0 // pred_fallthru
    _
  // Predicated region
  $region10: #{feed_forward.1} parent=0 // pred_check
    _
  $region11: #{feed_forward.1} parent=0 // pred_check_branch
    %16 = sbr.rel (0) target = $region13
  $region12: #{feed_forward.1} parent=0 // pred_region
    _
  $region13: #{feed_forward.1} parent=0 // pred_fallthru
    _
  // Predicated region
  $region14: #{feed_forward.1} parent=0 // pred_check
    _
  $region15: #{feed_forward.1} parent=0 // pred_check_branch
    %18 = sbr.rel (0) target = $region17
  $region16: #{feed_forward.1} parent=0 // pred_region
    _
  $region17: #{feed_forward.1} parent=0 // pred_fallthru
    _
  // Predicated region
  $region18: #{feed_forward.1} parent=0 // pred_check
    _
  $region19: #{feed_forward.1} parent=0 // pred_check_branch
    %20 = sbr.rel (0) target = $region21
  $region20: #{feed_forward.1} parent=0 // pred_region
    _
  $region21: #{feed_forward.1} parent=0 // pred_fallthru
    _
  // Predicated region
  $region22: #{feed_forward.1} parent=0 // pred_check
    _
  $region23: #{feed_forward.1} parent=0 // pred_check_branch
    %22 = sbr.rel (0) target = $region25
  $region24: #{feed_forward.1} parent=0 // pred_region
    _
  $region25: #{feed_forward.1} parent=0 // pred_fallthru
    _
  %v24 = vld [vmem:[%s0] sm:$0xff]
  %v25 = vld [vmem:[%s0 + $0x8] sm:$0xf]
  %v26 = vld [vmem:[%s0 + $0xc] sm:$0xff]
  %v27 = vld [vmem:[%s0 + $0x14] sm:$0xf]
  %v28 = vld [vmem:[%s0 + $0x18] sm:$0xff]
  %v29 = vld [vmem:[%s0 + $0x20] sm:$0xf]
  %v30 = vld [vmem:[%s0 + $0x24] sm:$0xff]
  %v31 = vld [vmem:[%s0 + $0x2c] sm:$0xf]
  %v32 = vld [vmem:[%s0 + $0x30] sm:$0xff]
  %v33 = vld [vmem:[%s0 + $0x38] sm:$0xf]
  %v34 = vld [vmem:[%s0 + $0x3c] sm:$0xff]
  %v35 = vld [vmem:[%s0 + $0x44] sm:$0xf]
  %v36 = vld [vmem:[%s0 + $0x48] sm:$0xff]
  %v37 = vld [vmem:[%s0 + $0x50] sm:$0xf]
  %v38 = vld [vmem:[%s0 + $0x54] sm:$0xff]
  %v39 = vld [vmem:[%s0 + $0x5c] sm:$0xf]
  %v40 = vld [vmem:[%s0 + $0x60] sm:$0xff]
  %v41 = vld [vmem:[%s0 + $0x68] sm:$0xf]
  %v42 = vld [vmem:[%s0 + $0x6c] sm:$0xff]
  %v43 = vld [vmem:[%s0 + $0x74] sm:$0xf]
  %v44 = vld [vmem:[%s0 + $0x78] sm:$0xff]
  %v45 = vld [vmem:[%s0 + $0x80] sm:$0xf]
  %v46 = vld [vmem:[%s0 + $0x84] sm:$0xff]
  %v47 = vld [vmem:[%s0 + $0x8c] sm:$0xf]
  %v48 = vld [vmem:[%s0 + $0x90] sm:$0xff]
  %v49 = vld [vmem:[%s0 + $0x98] sm:$0xf]
  %v50 = vld [vmem:[%s0 + $0x9c] sm:$0xff]
  %v51 = vld [vmem:[%s0 + $0xa4] sm:$0xf]
  %v52 = vld [vmem:[%s0 + $0xa8] sm:$0xff]
  %v53 = vld [vmem:[%s0 + $0xb0] sm:$0xf]
  %v54 = vld [vmem:[%s0 + $0xb4] sm:$0xff]
  %v55 = vld [vmem:[%s0 + $0xbc] sm:$0xf]
  %v56 = vld [vmem:[%s0 + $0xc0] sm:$0xff]
  %v57 = vld [vmem:[%s0 + $0xc8] sm:$0xf]
  %v58 = vld [vmem:[%s0 + $0xcc] sm:$0xff]
  %v59 = vld [vmem:[%s0 + $0xd4] sm:$0xf]
  %v60 = vld [vmem:[%s0 + $0xd8] sm:$0xff]
  %v61 = vld [vmem:[%s0 + $0xe0] sm:$0xf]
  %v62 = vld [vmem:[%s0 + $0xe4] sm:$0xff]
  %v63 = vld [vmem:[%s0 + $0xec] sm:$0xf]
  %v64 = vld [vmem:[%s0 + $0xf0] sm:$0xff]
  %v65 = vld [vmem:[%s0 + $0xf8] sm:$0xf]
  %v66 = vld [vmem:[%s0 + $0xfc] sm:$0xff]
  %v67 = vld [vmem:[%s0 + $0x104] sm:$0xf]
  %v68 = vld [vmem:[%s0 + $0x108] sm:$0xff]
  %v69 = vld [vmem:[%s0 + $0x110] sm:$0xf]
  %v70 = vld [vmem:[%s0 + $0x114] sm:$0xff]
  %v71 = vld [vmem:[%s0 + $0x11c] sm:$0xf]
  %v72 = vld [vmem:[%s0 + $0x120] sm:$0xff]
  %v73 = vld [vmem:[%s0 + $0x128] sm:$0xf]
  %v74 = vld [vmem:[%s0 + $0x12c] sm:$0xff]
  %v75 = vld [vmem:[%s0 + $0x134] sm:$0xf]
  %v76 = vld [vmem:[%s0 + $0x138] sm:$0xff]
  %v77 = vld [vmem:[%s0 + $0x140] sm:$0xf]
  %v78 = vld [vmem:[%s0 + $0x144] sm:$0xff]
  %v79 = vld [vmem:[%s0 + $0x14c] sm:$0xf]
  %v80 = vld [vmem:[%s0 + $0x150] sm:$0xff]
  %v81 = vld [vmem:[%s0 + $0x158] sm:$0xf]
  %v82 = vld [vmem:[%s0 + $0x15c] sm:$0xff]
  %v83 = vld [vmem:[%s0 + $0x164] sm:$0xf]
  %v84 = vld [vmem:[%s0 + $0x168] sm:$0xff]
  %v85 = vld [vmem:[%s0 + $0x170] sm:$0xf]
  %v86 = vld [vmem:[%s0 + $0x174] sm:$0xff]
  %v87 = vld [vmem:[%s0 + $0x17c] sm:$0xf]
  %v88 = vld [vmem:[%s1] sm:$0xff]
  %v89 = vld [vmem:[%s1 + $0x8] sm:$0xff]
  %v90 = vld [vmem:[%s1 + $0x10] sm:$0xff]
  %v91 = vld [vmem:[%s1 + $0x18] sm:$0xff]
  %v92 = vld [vmem:[%s1 + $0x20] sm:$0xff]
  %v93 = vld [vmem:[%s1 + $0x28] sm:$0xff]
  %v94 = vld [vmem:[%s1 + $0x30] sm:$0xff]
  %v95 = vld [vmem:[%s1 + $0x38] sm:$0xff]
  %v96 = vld [vmem:[%s1 + $0x40] sm:$0xff]
  %v97 = vld [vmem:[%s1 + $0x48] sm:$0xff]
  %v98 = vld [vmem:[%s1 + $0x50] sm:$0xff]
  %v99 = vld [vmem:[%s1 + $0x58] sm:$0xff]
  %v100 = vld [vmem:[%s1 + $0x60] sm:$0xff]
  %v101 = vld [vmem:[%s1 + $0x68] sm:$0xff]
  %v102 = vld [vmem:[%s1 + $0x70] sm:$0xff]
  %v103 = vld [vmem:[%s1 + $0x78] sm:$0xff]
  %v104 = vld [vmem:[%s1 + $0x80] sm:$0xff]
  %v105 = vld [vmem:[%s1 + $0x88] sm:$0xff]
  %v106 = vld [vmem:[%s1 + $0x90] sm:$0xff]
  %v107 = vld [vmem:[%s1 + $0x98] sm:$0xff]
  %v108 = vld [vmem:[%s1 + $0xa0] sm:$0xff]
  %v109 = vld [vmem:[%s1 + $0xa8] sm:$0xff]
  %v110 = vld [vmem:[%s1 + $0xb0] sm:$0xff]
  %v111 = vld [vmem:[%s1 + $0xb8] sm:$0xff]
  %v112 = vld [vmem:[%s1 + $0xc0] sm:$0xff]
  %v113 = vld [vmem:[%s1 + $0xc8] sm:$0xff]
  %v114 = vld [vmem:[%s1 + $0xd0] sm:$0xff]
  %v115 = vld [vmem:[%s1 + $0xd8] sm:$0xff]
  %v116 = vld [vmem:[%s1 + $0xe0] sm:$0xff]
  %v117 = vld [vmem:[%s1 + $0xe8] sm:$0xff]
  %v118 = vld [vmem:[%s1 + $0xf0] sm:$0xff]
  %v119 = vld [vmem:[%s1 + $0xf8] sm:$0xff]
  %v120 = vld [vmem:[%s1 + $0x100] sm:$0xff]
  %v121 = vld [vmem:[%s1 + $0x108] sm:$0xff]
  %v122 = vld [vmem:[%s1 + $0x110] sm:$0xff]
  %v123 = vld [vmem:[%s1 + $0x118] sm:$0xff]
  %v124 = vld [vmem:[%s1 + $0x120] sm:$0xff]
  %v125 = vld [vmem:[%s1 + $0x128] sm:$0xff]
  %v126 = vld [vmem:[%s1 + $0x130] sm:$0xff]
  %v127 = vld [vmem:[%s1 + $0x138] sm:$0xff]
  %v128 = vld [vmem:[%s1 + $0x140] sm:$0xff]
  %v129 = vld [vmem:[%s1 + $0x148] sm:$0xff]
  %v130 = vld [vmem:[%s1 + $0x150] sm:$0xff]
  %v131 = vld [vmem:[%s1 + $0x158] sm:$0xff]
  %v132 = vld [vmem:[%s1 + $0x160] sm:$0xff]
  %v133 = vld [vmem:[%s1 + $0x168] sm:$0xff]
  %v134 = vld [vmem:[%s1 + $0x170] sm:$0xff]
  %v135 = vld [vmem:[%s1 + $0x178] sm:$0xff]
  %v136 = vld [vmem:[%s1 + $0x180] sm:$0xff]
  %v137 = vld [vmem:[%s1 + $0x188] sm:$0xff]
  %v138 = vld [vmem:[%s1 + $0x190] sm:$0xff]
  %v139 = vld [vmem:[%s1 + $0x198] sm:$0xff]
  %v140 = vld [vmem:[%s1 + $0x1a0] sm:$0xff]
  %v141 = vld [vmem:[%s1 + $0x1a8] sm:$0xff]
  %v142 = vld [vmem:[%s1 + $0x1b0] sm:$0xff]
  %v143 = vld [vmem:[%s1 + $0x1b8] sm:$0xff]
  %v144 = vld [vmem:[%s1 + $0x1c0] sm:$0xff]
  %v145 = vld [vmem:[%s1 + $0x1c8] sm:$0xff]
  %v146 = vld [vmem:[%s1 + $0x1d0] sm:$0xff]
  %v147 = vld [vmem:[%s1 + $0x1d8] sm:$0xff]
  %v148 = vld [vmem:[%s1 + $0x1e0] sm:$0xff]
  %v149 = vld [vmem:[%s1 + $0x1e8] sm:$0xff]
  %v150 = vld [vmem:[%s1 + $0x1f0] sm:$0xff]
  %v151 = vld [vmem:[%s1 + $0x1f8] sm:$0xff]
  %v152 = vld [vmem:[%s1 + $0x200] sm:$0xff]
  %v153 = vld [vmem:[%s1 + $0x208] sm:$0xff]
  %v154 = vld [vmem:[%s1 + $0x210] sm:$0xff]
  %v155 = vld [vmem:[%s1 + $0x218] sm:$0xff]
  %v156 = vld [vmem:[%s1 + $0x220] sm:$0xff]
  %v157 = vld [vmem:[%s1 + $0x228] sm:$0xff]
  %v158 = vld [vmem:[%s1 + $0x230] sm:$0xff]
  %v159 = vld [vmem:[%s1 + $0x238] sm:$0xff]
  %v160 = vld [vmem:[%s1 + $0x240] sm:$0xff]
  %v161 = vld [vmem:[%s1 + $0x248] sm:$0xff]
  %v162 = vld [vmem:[%s1 + $0x250] sm:$0xff]
  %v163 = vld [vmem:[%s1 + $0x258] sm:$0xff]
  %v164 = vld [vmem:[%s1 + $0x260] sm:$0xff]
  %v165 = vld [vmem:[%s1 + $0x268] sm:$0xff]
  %v166 = vld [vmem:[%s1 + $0x270] sm:$0xff]
  %v167 = vld [vmem:[%s1 + $0x278] sm:$0xff]
  %v168 = vld [vmem:[%s1 + $0x280] sm:$0xff]
  %v169 = vld [vmem:[%s1 + $0x288] sm:$0xff]
  %v170 = vld [vmem:[%s1 + $0x290] sm:$0xff]
  %v171 = vld [vmem:[%s1 + $0x298] sm:$0xff]
  %v172 = vld [vmem:[%s1 + $0x2a0] sm:$0xff]
  %v173 = vld [vmem:[%s1 + $0x2a8] sm:$0xff]
  %v174 = vld [vmem:[%s1 + $0x2b0] sm:$0xff]
  %v175 = vld [vmem:[%s1 + $0x2b8] sm:$0xff]
  %v176 = vld [vmem:[%s1 + $0x2c0] sm:$0xff]
  %v177 = vld [vmem:[%s1 + $0x2c8] sm:$0xff]
  %v178 = vld [vmem:[%s1 + $0x2d0] sm:$0xff]
  %v179 = vld [vmem:[%s1 + $0x2d8] sm:$0xff]
  %v180 = vld [vmem:[%s1 + $0x2e0] sm:$0xff]
  %v181 = vld [vmem:[%s1 + $0x2e8] sm:$0xff]
  %v182 = vld [vmem:[%s1 + $0x2f0] sm:$0xff]
  %v183 = vld [vmem:[%s1 + $0x2f8] sm:$0xff]
  %v184 = vld [vmem:[%s1 + $0x300] sm:$0xff]
  %v185 = vld [vmem:[%s1 + $0x308] sm:$0xff]
  %v186 = vld [vmem:[%s1 + $0x310] sm:$0xff]
  %v187 = vld [vmem:[%s1 + $0x318] sm:$0xff]
  %v188 = vld [vmem:[%s1 + $0x320] sm:$0xff]
  %v189 = vld [vmem:[%s1 + $0x328] sm:$0xff]
  %v190 = vld [vmem:[%s1 + $0x330] sm:$0xff]
  %v191 = vld [vmem:[%s1 + $0x338] sm:$0xff]
  %v192 = vld [vmem:[%s1 + $0x340] sm:$0xff]
  %v193 = vld [vmem:[%s1 + $0x348] sm:$0xff]
  %v194 = vld [vmem:[%s1 + $0x350] sm:$0xff]
  %v195 = vld [vmem:[%s1 + $0x358] sm:$0xff]
  %v196 = vld [vmem:[%s1 + $0x360] sm:$0xff]
  %v197 = vld [vmem:[%s1 + $0x368] sm:$0xff]
  %v198 = vld [vmem:[%s1 + $0x370] sm:$0xff]
  %v199 = vld [vmem:[%s1 + $0x378] sm:$0xff]
  %v200 = vld [vmem:[%s1 + $0x380] sm:$0xff]
  %v201 = vld [vmem:[%s1 + $0x388] sm:$0xff]
  %v202 = vld [vmem:[%s1 + $0x390] sm:$0xff]
  %v203 = vld [vmem:[%s1 + $0x398] sm:$0xff]
  %v204 = vld [vmem:[%s1 + $0x3a0] sm:$0xff]
  %v205 = vld [vmem:[%s1 + $0x3a8] sm:$0xff]
  %v206 = vld [vmem:[%s1 + $0x3b0] sm:$0xff]
  %v207 = vld [vmem:[%s1 + $0x3b8] sm:$0xff]
  %v208 = vld [vmem:[%s1 + $0x3c0] sm:$0xff]
  %v209 = vld [vmem:[%s1 + $0x3c8] sm:$0xff]
  %v210 = vld [vmem:[%s1 + $0x3d0] sm:$0xff]
  %v211 = vld [vmem:[%s1 + $0x3d8] sm:$0xff]
  %v212 = vld [vmem:[%s1 + $0x3e0] sm:$0xff]
  %v213 = vld [vmem:[%s1 + $0x3e8] sm:$0xff]
  %v214 = vld [vmem:[%s1 + $0x3f0] sm:$0xff]
  %v215 = vld [vmem:[%s1 + $0x3f8] sm:$0xff]
  %v216 = vld [vmem:[%s1 + $0x400] sm:$0xff]
  %v217 = vld [vmem:[%s1 + $0x408] sm:$0xff]
  %v218 = vld [vmem:[%s1 + $0x410] sm:$0xff]
  %v219 = vld [vmem:[%s1 + $0x418] sm:$0xff]
  %v220 = vld [vmem:[%s1 + $0x420] sm:$0xff]
  %v221 = vld [vmem:[%s1 + $0x428] sm:$0xff]
  %v222 = vld [vmem:[%s1 + $0x430] sm:$0xff]
  %v223 = vld [vmem:[%s1 + $0x438] sm:$0xff]
  %v224 = vld [vmem:[%s1 + $0x440] sm:$0xff]
  %v225 = vld [vmem:[%s1 + $0x448] sm:$0xff]
  %v226 = vld [vmem:[%s1 + $0x450] sm:$0xff]
  %v227 = vld [vmem:[%s1 + $0x458] sm:$0xff]
  %v228 = vld [vmem:[%s1 + $0x460] sm:$0xff]
  %v229 = vld [vmem:[%s1 + $0x468] sm:$0xff]
  %v230 = vld [vmem:[%s1 + $0x470] sm:$0xff]
  %v231 = vld [vmem:[%s1 + $0x478] sm:$0xff]
  %v232 = vld [vmem:[%s1 + $0x480] sm:$0xff]
  %v233 = vld [vmem:[%s1 + $0x488] sm:$0xff]
  %v234 = vld [vmem:[%s1 + $0x490] sm:$0xff]
  %v235 = vld [vmem:[%s1 + $0x498] sm:$0xff]
  %v236 = vld [vmem:[%s1 + $0x4a0] sm:$0xff]
  %v237 = vld [vmem:[%s1 + $0x4a8] sm:$0xff]
  %v238 = vld [vmem:[%s1 + $0x4b0] sm:$0xff]
  %v239 = vld [vmem:[%s1 + $0x4b8] sm:$0xff]
  %v240 = vld [vmem:[%s1 + $0x4c0] sm:$0xff]
  %v241 = vld [vmem:[%s1 + $0x4c8] sm:$0xff]
  %v242 = vld [vmem:[%s1 + $0x4d0] sm:$0xff]
  %v243 = vld [vmem:[%s1 + $0x4d8] sm:$0xff]
  %v244 = vld [vmem:[%s1 + $0x4e0] sm:$0xff]
  %v245 = vld [vmem:[%s1 + $0x4e8] sm:$0xff]
  %v246 = vld [vmem:[%s1 + $0x4f0] sm:$0xff]
  %v247 = vld [vmem:[%s1 + $0x4f8] sm:$0xff]
  %v248 = vld [vmem:[%s1 + $0x500] sm:$0xff]
  %v249 = vld [vmem:[%s1 + $0x508] sm:$0xff]
  %v250 = vld [vmem:[%s1 + $0x510] sm:$0xff]
  %v251 = vld [vmem:[%s1 + $0x518] sm:$0xff]
  %v252 = vld [vmem:[%s1 + $0x520] sm:$0xff]
  %v253 = vld [vmem:[%s1 + $0x528] sm:$0xff]
  %v254 = vld [vmem:[%s1 + $0x530] sm:$0xff]
  %v255 = vld [vmem:[%s1 + $0x538] sm:$0xff]
  %v256 = vld [vmem:[%s1 + $0x540] sm:$0xff]
  %v257 = vld [vmem:[%s1 + $0x548] sm:$0xff]
  %v258 = vld [vmem:[%s1 + $0x550] sm:$0xff]
  %v259 = vld [vmem:[%s1 + $0x558] sm:$0xff]
  %v260 = vld [vmem:[%s1 + $0x560] sm:$0xff]
  %v261 = vld [vmem:[%s1 + $0x568] sm:$0xff]
  %v262 = vld [vmem:[%s1 + $0x570] sm:$0xff]
  %v263 = vld [vmem:[%s1 + $0x578] sm:$0xff]
  %v264 = vld [vmem:[%s1 + $0x580] sm:$0xff]
  %v265 = vld [vmem:[%s1 + $0x588] sm:$0xff]
  %v266 = vld [vmem:[%s1 + $0x590] sm:$0xff]
  %v267 = vld [vmem:[%s1 + $0x598] sm:$0xff]
  %v268 = vld [vmem:[%s1 + $0x5a0] sm:$0xff]
  %v269 = vld [vmem:[%s1 + $0x5a8] sm:$0xff]
  %v270 = vld [vmem:[%s1 + $0x5b0] sm:$0xff]
  %v271 = vld [vmem:[%s1 + $0x5b8] sm:$0xff]
  %v272 = vld [vmem:[%s1 + $0x5c0] sm:$0xff]
  %v273 = vld [vmem:[%s1 + $0x5c8] sm:$0xff]
  %v274 = vld [vmem:[%s1 + $0x5d0] sm:$0xff]
  %v275 = vld [vmem:[%s1 + $0x5d8] sm:$0xff]
  %v276 = vld [vmem:[%s1 + $0x5e0] sm:$0xff]
  %v277 = vld [vmem:[%s1 + $0x5e8] sm:$0xff]
  %v278 = vld [vmem:[%s1 + $0x5f0] sm:$0xff]
  %v279 = vld [vmem:[%s1 + $0x5f8] sm:$0xff]
  %v280 = vld [vmem:[%s1 + $0x600] sm:$0xff]
  %v281 = vld [vmem:[%s1 + $0x608] sm:$0xff]
  %v282 = vld [vmem:[%s1 + $0x610] sm:$0xff]
  %v283 = vld [vmem:[%s1 + $0x618] sm:$0xff]
  %v284 = vld [vmem:[%s1 + $0x620] sm:$0xff]
  %v285 = vld [vmem:[%s1 + $0x628] sm:$0xff]
  %v286 = vld [vmem:[%s1 + $0x630] sm:$0xff]
  %v287 = vld [vmem:[%s1 + $0x638] sm:$0xff]
  %v288 = vld [vmem:[%s1 + $0x640] sm:$0xff]
  %v289 = vld [vmem:[%s1 + $0x648] sm:$0xff]
  %v290 = vld [vmem:[%s1 + $0x650] sm:$0xff]
  %v291 = vld [vmem:[%s1 + $0x658] sm:$0xff]
  %v292 = vld [vmem:[%s1 + $0x660] sm:$0xff]
  %v293 = vld [vmem:[%s1 + $0x668] sm:$0xff]
  %v294 = vld [vmem:[%s1 + $0x670] sm:$0xff]
  %v295 = vld [vmem:[%s1 + $0x678] sm:$0xff]
  %v296 = vld [vmem:[%s1 + $0x680] sm:$0xff]
  %v297 = vld [vmem:[%s1 + $0x688] sm:$0xff]
  %v298 = vld [vmem:[%s1 + $0x690] sm:$0xff]
  %v299 = vld [vmem:[%s1 + $0x698] sm:$0xff]
  %v300 = vld [vmem:[%s1 + $0x6a0] sm:$0xff]
  %v301 = vld [vmem:[%s1 + $0x6a8] sm:$0xff]
  %v302 = vld [vmem:[%s1 + $0x6b0] sm:$0xff]
  %v303 = vld [vmem:[%s1 + $0x6b8] sm:$0xff]
  %v304 = vld [vmem:[%s1 + $0x6c0] sm:$0xff]
  %v305 = vld [vmem:[%s1 + $0x6c8] sm:$0xff]
  %v306 = vld [vmem:[%s1 + $0x6d0] sm:$0xff]
  %v307 = vld [vmem:[%s1 + $0x6d8] sm:$0xff]
  %v308 = vld [vmem:[%s1 + $0x6e0] sm:$0xff]
  %v309 = vld [vmem:[%s1 + $0x6e8] sm:$0xff]
  %v310 = vld [vmem:[%s1 + $0x6f0] sm:$0xff]
  %v311 = vld [vmem:[%s1 + $0x6f8] sm:$0xff]
  %v312 = vld [vmem:[%s1 + $0x700] sm:$0xff]
  %v313 = vld [vmem:[%s1 + $0x708] sm:$0xff]
  %v314 = vld [vmem:[%s1 + $0x710] sm:$0xff]
  %v315 = vld [vmem:[%s1 + $0x718] sm:$0xff]
  %v316 = vld [vmem:[%s1 + $0x720] sm:$0xff]
  %v317 = vld [vmem:[%s1 + $0x728] sm:$0xff]
  %v318 = vld [vmem:[%s1 + $0x730] sm:$0xff]
  %v319 = vld [vmem:[%s1 + $0x738] sm:$0xff]
  %v320 = vld [vmem:[%s1 + $0x740] sm:$0xff]
  %v321 = vld [vmem:[%s1 + $0x748] sm:$0xff]
  %v322 = vld [vmem:[%s1 + $0x750] sm:$0xff]
  %v323 = vld [vmem:[%s1 + $0x758] sm:$0xff]
  %v324 = vld [vmem:[%s1 + $0x760] sm:$0xff]
  %v325 = vld [vmem:[%s1 + $0x768] sm:$0xff]
  %v326 = vld [vmem:[%s1 + $0x770] sm:$0xff]
  %v327 = vld [vmem:[%s1 + $0x778] sm:$0xff]
  %v328 = vld [vmem:[%s1 + $0x780] sm:$0xff]
  %v329 = vld [vmem:[%s1 + $0x788] sm:$0xff]
  %v330 = vld [vmem:[%s1 + $0x790] sm:$0xff]
  %v331 = vld [vmem:[%s1 + $0x798] sm:$0xff]
  %v332 = vld [vmem:[%s1 + $0x7a0] sm:$0xff]
  %v333 = vld [vmem:[%s1 + $0x7a8] sm:$0xff]
  %v334 = vld [vmem:[%s1 + $0x7b0] sm:$0xff]
  %v335 = vld [vmem:[%s1 + $0x7b8] sm:$0xff]
  %v336 = vld [vmem:[%s1 + $0x7c0] sm:$0xff]
  %v337 = vld [vmem:[%s1 + $0x7c8] sm:$0xff]
  %v338 = vld [vmem:[%s1 + $0x7d0] sm:$0xff]
  %v339 = vld [vmem:[%s1 + $0x7d8] sm:$0xff]
  %v340 = vld [vmem:[%s1 + $0x7e0] sm:$0xff]
  %v341 = vld [vmem:[%s1 + $0x7e8] sm:$0xff]
  %v342 = vld [vmem:[%s1 + $0x7f0] sm:$0xff]
  %v343 = vld [vmem:[%s1 + $0x7f8] sm:$0xff]
  %v344 = vld [vmem:[%s1 + $0x800] sm:$0xff]
  %v345 = vld [vmem:[%s1 + $0x808] sm:$0xff]
  %v346 = vld [vmem:[%s1 + $0x810] sm:$0xff]
  %v347 = vld [vmem:[%s1 + $0x818] sm:$0xff]
  %v348 = vld [vmem:[%s1 + $0x820] sm:$0xff]
  %v349 = vld [vmem:[%s1 + $0x828] sm:$0xff]
  %v350 = vld [vmem:[%s1 + $0x830] sm:$0xff]
  %v351 = vld [vmem:[%s1 + $0x838] sm:$0xff]
  %v352 = vld [vmem:[%s1 + $0x840] sm:$0xff]
  %v353 = vld [vmem:[%s1 + $0x848] sm:$0xff]
  %v354 = vld [vmem:[%s1 + $0x850] sm:$0xff]
  %v355 = vld [vmem:[%s1 + $0x858] sm:$0xff]
  %v356 = vld [vmem:[%s1 + $0x860] sm:$0xff]
  %v357 = vld [vmem:[%s1 + $0x868] sm:$0xff]
  %v358 = vld [vmem:[%s1 + $0x870] sm:$0xff]
  %v359 = vld [vmem:[%s1 + $0x878] sm:$0xff]
  %v360 = vld [vmem:[%s1 + $0x880] sm:$0xff]
  %v361 = vld [vmem:[%s1 + $0x888] sm:$0xff]
  %v362 = vld [vmem:[%s1 + $0x890] sm:$0xff]
  %v363 = vld [vmem:[%s1 + $0x898] sm:$0xff]
  %v364 = vld [vmem:[%s1 + $0x8a0] sm:$0xff]
  %v365 = vld [vmem:[%s1 + $0x8a8] sm:$0xff]
  %v366 = vld [vmem:[%s1 + $0x8b0] sm:$0xff]
  %v367 = vld [vmem:[%s1 + $0x8b8] sm:$0xff]
  %v368 = vld [vmem:[%s1 + $0x8c0] sm:$0xff]
  %v369 = vld [vmem:[%s1 + $0x8c8] sm:$0xff]
  %v370 = vld [vmem:[%s1 + $0x8d0] sm:$0xff]
  %v371 = vld [vmem:[%s1 + $0x8d8] sm:$0xff]
  %v372 = vld [vmem:[%s1 + $0x8e0] sm:$0xff]
  %v373 = vld [vmem:[%s1 + $0x8e8] sm:$0xff]
  %v374 = vld [vmem:[%s1 + $0x8f0] sm:$0xff]
  %v375 = vld [vmem:[%s1 + $0x8f8] sm:$0xff]
  %v376 = vld [vmem:[%s2] sm:$0xff]
  %v377 = vld [vmem:[%s2 + $0x8] sm:$0xf]
  %v380 = vlaneseq
  %v381 = vshrl.u32 %v380, 7
  %v382 = vsub.s32 0, %v381
  %v383 = vrot.slane %v376, %v382
  %v384 = vlaneseq
  %v385 = vshrl.u32 %v384, 7
  %v386 = vsub.s32 1, %v385
  %v387 = vrot.slane %v376, %v386
  %v388 = vlaneseq
  %v389 = vshrl.u32 %v388, 7
  %v390 = vsub.s32 2, %v389
  %v391 = vrot.slane %v376, %v390
  %v392 = vlaneseq
  %v393 = vshrl.u32 %v392, 7
  %v394 = vsub.s32 3, %v393
  %v395 = vrot.slane %v376, %v394
  %v396 = vlaneseq
  %v397 = vshrl.u32 %v396, 7
  %v398 = vsub.s32 4, %v397
  %v399 = vrot.slane %v376, %v398
  %v400 = vlaneseq
  %v401 = vshrl.u32 %v400, 7
  %v402 = vsub.s32 5, %v401
  %v403 = vrot.slane %v376, %v402
  %v404 = vlaneseq
  %v405 = vshrl.u32 %v404, 7
  %v406 = vsub.s32 6, %v405
  %v407 = vrot.slane %v376, %v406
  %v408 = vlaneseq
  %v409 = vshrl.u32 %v408, 7
  %v410 = vsub.s32 7, %v409
  %v411 = vrot.slane %v376, %v410
  %v412 = vlaneseq
  %v413 = vshrl.u32 %v412, 7
  %v414 = vsub.s32 0, %v413
  %v415 = vrot.slane %v377, %v414
  %v416 = vlaneseq
  %v417 = vshrl.u32 %v416, 7
  %v418 = vsub.s32 1, %v417
  %v419 = vrot.slane %v377, %v418
  %v420 = vlaneseq
  %v421 = vshrl.u32 %v420, 7
  %v422 = vsub.s32 2, %v421
  %v423 = vrot.slane %v377, %v422
  %v424 = vlaneseq
  %v425 = vshrl.u32 %v424, 7
  %v426 = vsub.s32 3, %v425
  %v427 = vrot.slane %v377, %v426
  %v504 = vunpack.c.l.b16 %v24
  %v505 = vunpack.c.h.b16 %v24
  %v506 = vunpack.c.l.b16 %v25
  %v507 = vunpack.c.l.b16 %v26
  %v508 = vunpack.c.h.b16 %v26
  %v509 = vunpack.c.l.b16 %v27
  %v510 = vunpack.c.l.b16 %v28
  %v511 = vunpack.c.h.b16 %v28
  %v512 = vunpack.c.l.b16 %v29
  %v513 = vunpack.c.l.b16 %v30
  %v514 = vunpack.c.h.b16 %v30
  %v515 = vunpack.c.l.b16 %v31
  %v516 = vunpack.c.l.b16 %v32
  %v517 = vunpack.c.h.b16 %v32
  %v518 = vunpack.c.l.b16 %v33
  %v519 = vunpack.c.l.b16 %v34
  %v520 = vunpack.c.h.b16 %v34
  %v521 = vunpack.c.l.b16 %v35
  %v522 = vunpack.c.l.b16 %v36
  %v523 = vunpack.c.h.b16 %v36
  %v524 = vunpack.c.l.b16 %v37
  %v525 = vunpack.c.l.b16 %v38
  %v526 = vunpack.c.h.b16 %v38
  %v527 = vunpack.c.l.b16 %v39
  %v528 = vunpack.c.l.b16 %v40
  %v529 = vunpack.c.h.b16 %v40
  %v530 = vunpack.c.l.b16 %v41
  %v531 = vunpack.c.l.b16 %v42
  %v532 = vunpack.c.h.b16 %v42
  %v533 = vunpack.c.l.b16 %v43
  %v534 = vunpack.c.l.b16 %v44
  %v535 = vunpack.c.h.b16 %v44
  %v536 = vunpack.c.l.b16 %v45
  %v537 = vunpack.c.l.b16 %v46
  %v538 = vunpack.c.h.b16 %v46
  %v539 = vunpack.c.l.b16 %v47
  %v540 = vunpack.c.l.b16 %v48
  %v541 = vunpack.c.h.b16 %v48
  %v542 = vunpack.c.l.b16 %v49
  %v543 = vunpack.c.l.b16 %v50
  %v544 = vunpack.c.h.b16 %v50
  %v545 = vunpack.c.l.b16 %v51
  %v546 = vunpack.c.l.b16 %v52
  %v547 = vunpack.c.h.b16 %v52
  %v548 = vunpack.c.l.b16 %v53
  %v549 = vunpack.c.l.b16 %v54
  %v550 = vunpack.c.h.b16 %v54
  %v551 = vunpack.c.l.b16 %v55
  %v552 = vunpack.c.l.b16 %v56
  %v553 = vunpack.c.h.b16 %v56
  %v554 = vunpack.c.l.b16 %v57
  %v555 = vunpack.c.l.b16 %v58
  %v556 = vunpack.c.h.b16 %v58
  %v557 = vunpack.c.l.b16 %v59
  %v558 = vunpack.c.l.b16 %v60
  %v559 = vunpack.c.h.b16 %v60
  %v560 = vunpack.c.l.b16 %v61
  %v561 = vunpack.c.l.b16 %v62
  %v562 = vunpack.c.h.b16 %v62
  %v563 = vunpack.c.l.b16 %v63
  %v564 = vunpack.c.l.b16 %v64
  %v565 = vunpack.c.h.b16 %v64
  %v566 = vunpack.c.l.b16 %v65
  %v567 = vunpack.c.l.b16 %v66
  %v568 = vunpack.c.h.b16 %v66
  %v569 = vunpack.c.l.b16 %v67
  %v570 = vunpack.c.l.b16 %v68
  %v571 = vunpack.c.h.b16 %v68
  %v572 = vunpack.c.l.b16 %v69
  %v573 = vunpack.c.l.b16 %v70
  %v574 = vunpack.c.h.b16 %v70
  %v575 = vunpack.c.l.b16 %v71
  %v576 = vunpack.c.l.b16 %v72
  %v577 = vunpack.c.h.b16 %v72
  %v578 = vunpack.c.l.b16 %v73
  %v579 = vunpack.c.l.b16 %v74
  %v580 = vunpack.c.h.b16 %v74
  %v581 = vunpack.c.l.b16 %v75
  %v582 = vunpack.c.l.b16 %v76
  %v583 = vunpack.c.h.b16 %v76
  %v584 = vunpack.c.l.b16 %v77
  %v585 = vunpack.c.l.b16 %v78
  %v586 = vunpack.c.h.b16 %v78
  %v587 = vunpack.c.l.b16 %v79
  %v588 = vunpack.c.l.b16 %v80
  %v589 = vunpack.c.h.b16 %v80
  %v590 = vunpack.c.l.b16 %v81
  %v591 = vunpack.c.l.b16 %v82
  %v592 = vunpack.c.h.b16 %v82
  %v593 = vunpack.c.l.b16 %v83
  %v594 = vunpack.c.l.b16 %v84
  %v595 = vunpack.c.h.b16 %v84
  %v596 = vunpack.c.l.b16 %v85
  %v597 = vunpack.c.l.b16 %v86
  %v598 = vunpack.c.h.b16 %v86
  %v599 = vunpack.c.l.b16 %v87
  %v600 = vpack.c.b16 %v507, %v504
  %v601 = vpack.c.b16 %v508, %v505
  %v602 = vpack.c.b16 %v509, %v506
  %v603 = vpack.c.b16 %v513, %v510
  %v604 = vpack.c.b16 %v514, %v511
  %v605 = vpack.c.b16 %v515, %v512
  %v606 = vpack.c.b16 %v519, %v516
  %v607 = vpack.c.b16 %v520, %v517
  %v608 = vpack.c.b16 %v521, %v518
  %v609 = vpack.c.b16 %v525, %v522
  %v610 = vpack.c.b16 %v526, %v523
  %v611 = vpack.c.b16 %v527, %v524
  %v612 = vpack.c.b16 %v531, %v528
  %v613 = vpack.c.b16 %v532, %v529
  %v614 = vpack.c.b16 %v533, %v530
  %v615 = vpack.c.b16 %v537, %v534
  %v616 = vpack.c.b16 %v538, %v535
  %v617 = vpack.c.b16 %v539, %v536
  %v618 = vpack.c.b16 %v543, %v540
  %v619 = vpack.c.b16 %v544, %v541
  %v620 = vpack.c.b16 %v545, %v542
  %v621 = vpack.c.b16 %v549, %v546
  %v622 = vpack.c.b16 %v550, %v547
  %v623 = vpack.c.b16 %v551, %v548
  %v624 = vpack.c.b16 %v555, %v552
  %v625 = vpack.c.b16 %v556, %v553
  %v626 = vpack.c.b16 %v557, %v554
  %v627 = vpack.c.b16 %v561, %v558
  %v628 = vpack.c.b16 %v562, %v559
  %v629 = vpack.c.b16 %v563, %v560
  %v630 = vpack.c.b16 %v567, %v564
  %v631 = vpack.c.b16 %v568, %v565
  %v632 = vpack.c.b16 %v569, %v566
  %v633 = vpack.c.b16 %v573, %v570
  %v634 = vpack.c.b16 %v574, %v571
  %v635 = vpack.c.b16 %v575, %v572
  %v636 = vpack.c.b16 %v579, %v576
  %v637 = vpack.c.b16 %v580, %v577
  %v638 = vpack.c.b16 %v581, %v578
  %v639 = vpack.c.b16 %v585, %v582
  %v640 = vpack.c.b16 %v586, %v583
  %v641 = vpack.c.b16 %v587, %v584
  %v642 = vpack.c.b16 %v591, %v588
  %v643 = vpack.c.b16 %v592, %v589
  %v644 = vpack.c.b16 %v593, %v590
  %v645 = vpack.c.b16 %v597, %v594
  %v646 = vpack.c.b16 %v598, %v595
  %v647 = vpack.c.b16 %v599, %v596
  %v984 = vunpack.c.l.b16 %v88
  %v985 = vunpack.c.h.b16 %v88
  %v986 = vunpack.c.l.b16 %v89
  %v987 = vunpack.c.h.b16 %v89
  %v988 = vunpack.c.l.b16 %v90
  %v989 = vunpack.c.h.b16 %v90
  %v990 = vunpack.c.l.b16 %v91
  %v991 = vunpack.c.h.b16 %v91
  %v992 = vunpack.c.l.b16 %v92
  %v993 = vunpack.c.h.b16 %v92
  %v994 = vunpack.c.l.b16 %v93
  %v995 = vunpack.c.h.b16 %v93
  %v996 = vunpack.c.l.b16 %v94
  %v997 = vunpack.c.h.b16 %v94
  %v998 = vunpack.c.l.b16 %v95
  %v999 = vunpack.c.h.b16 %v95
  %v1000 = vunpack.c.l.b16 %v96
  %v1001 = vunpack.c.h.b16 %v96
  %v1002 = vunpack.c.l.b16 %v97
  %v1003 = vunpack.c.h.b16 %v97
  %v1004 = vunpack.c.l.b16 %v98
  %v1005 = vunpack.c.h.b16 %v98
  %v1006 = vunpack.c.l.b16 %v99
  %v1007 = vunpack.c.h.b16 %v99
  %v1008 = vunpack.c.l.b16 %v100
  %v1009 = vunpack.c.h.b16 %v100
  %v1010 = vunpack.c.l.b16 %v101
  %v1011 = vunpack.c.h.b16 %v101
  %v1012 = vunpack.c.l.b16 %v102
  %v1013 = vunpack.c.h.b16 %v102
  %v1014 = vunpack.c.l.b16 %v103
  %v1015 = vunpack.c.h.b16 %v103
  %v1016 = vunpack.c.l.b16 %v104
  %v1017 = vunpack.c.h.b16 %v104
  %v1018 = vunpack.c.l.b16 %v105
  %v1019 = vunpack.c.h.b16 %v105
  %v1020 = vunpack.c.l.b16 %v106
  %v1021 = vunpack.c.h.b16 %v106
  %v1022 = vunpack.c.l.b16 %v107
  %v1023 = vunpack.c.h.b16 %v107
  %v1024 = vunpack.c.l.b16 %v108
  %v1025 = vunpack.c.h.b16 %v108
  %v1026 = vunpack.c.l.b16 %v109
  %v1027 = vunpack.c.h.b16 %v109
  %v1028 = vunpack.c.l.b16 %v110
  %v1029 = vunpack.c.h.b16 %v110
  %v1030 = vunpack.c.l.b16 %v111
  %v1031 = vunpack.c.h.b16 %v111
  %v1032 = vunpack.c.l.b16 %v112
  %v1033 = vunpack.c.h.b16 %v112
  %v1034 = vunpack.c.l.b16 %v113
  %v1035 = vunpack.c.h.b16 %v113
  %v1036 = vunpack.c.l.b16 %v114
  %v1037 = vunpack.c.h.b16 %v114
  %v1038 = vunpack.c.l.b16 %v115
  %v1039 = vunpack.c.h.b16 %v115
  %v1040 = vunpack.c.l.b16 %v116
  %v1041 = vunpack.c.h.b16 %v116
  %v1042 = vunpack.c.l.b16 %v117
  %v1043 = vunpack.c.h.b16 %v117
  %v1044 = vunpack.c.l.b16 %v118
  %v1045 = vunpack.c.h.b16 %v118
  %v1046 = vunpack.c.l.b16 %v119
  %v1047 = vunpack.c.h.b16 %v119
  %v1048 = vunpack.c.l.b16 %v120
  %v1049 = vunpack.c.h.b16 %v120
  %v1050 = vunpack.c.l.b16 %v121
  %v1051 = vunpack.c.h.b16 %v121
  %v1052 = vunpack.c.l.b16 %v122
  %v1053 = vunpack.c.h.b16 %v122
  %v1054 = vunpack.c.l.b16 %v123
  %v1055 = vunpack.c.h.b16 %v123
  %v1056 = vunpack.c.l.b16 %v124
  %v1057 = vunpack.c.h.b16 %v124
  %v1058 = vunpack.c.l.b16 %v125
  %v1059 = vunpack.c.h.b16 %v125
  %v1060 = vunpack.c.l.b16 %v126
  %v1061 = vunpack.c.h.b16 %v126
  %v1062 = vunpack.c.l.b16 %v127
  %v1063 = vunpack.c.h.b16 %v127
  %v1064 = vunpack.c.l.b16 %v128
  %v1065 = vunpack.c.h.b16 %v128
  %v1066 = vunpack.c.l.b16 %v129
  %v1067 = vunpack.c.h.b16 %v129
  %v1068 = vunpack.c.l.b16 %v130
  %v1069 = vunpack.c.h.b16 %v130
  %v1070 = vunpack.c.l.b16 %v131
  %v1071 = vunpack.c.h.b16 %v131
  %v1072 = vunpack.c.l.b16 %v132
  %v1073 = vunpack.c.h.b16 %v132
  %v1074 = vunpack.c.l.b16 %v133
  %v1075 = vunpack.c.h.b16 %v133
  %v1076 = vunpack.c.l.b16 %v134
  %v1077 = vunpack.c.h.b16 %v134
  %v1078 = vunpack.c.l.b16 %v135
  %v1079 = vunpack.c.h.b16 %v135
  %v1080 = vunpack.c.l.b16 %v136
  %v1081 = vunpack.c.h.b16 %v136
  %v1082 = vunpack.c.l.b16 %v137
  %v1083 = vunpack.c.h.b16 %v137
  %v1084 = vunpack.c.l.b16 %v138
  %v1085 = vunpack.c.h.b16 %v138
  %v1086 = vunpack.c.l.b16 %v139
  %v1087 = vunpack.c.h.b16 %v139
  %v1088 = vunpack.c.l.b16 %v140
  %v1089 = vunpack.c.h.b16 %v140
  %v1090 = vunpack.c.l.b16 %v141
  %v1091 = vunpack.c.h.b16 %v141
  %v1092 = vunpack.c.l.b16 %v142
  %v1093 = vunpack.c.h.b16 %v142
  %v1094 = vunpack.c.l.b16 %v143
  %v1095 = vunpack.c.h.b16 %v143
  %v1096 = vunpack.c.l.b16 %v144
  %v1097 = vunpack.c.h.b16 %v144
  %v1098 = vunpack.c.l.b16 %v145
  %v1099 = vunpack.c.h.b16 %v145
  %v1100 = vunpack.c.l.b16 %v146
  %v1101 = vunpack.c.h.b16 %v146
  %v1102 = vunpack.c.l.b16 %v147
  %v1103 = vunpack.c.h.b16 %v147
  %v1104 = vunpack.c.l.b16 %v148
  %v1105 = vunpack.c.h.b16 %v148
  %v1106 = vunpack.c.l.b16 %v149
  %v1107 = vunpack.c.h.b16 %v149
  %v1108 = vunpack.c.l.b16 %v150
  %v1109 = vunpack.c.h.b16 %v150
  %v1110 = vunpack.c.l.b16 %v151
  %v1111 = vunpack.c.h.b16 %v151
  %v1112 = vunpack.c.l.b16 %v152
  %v1113 = vunpack.c.h.b16 %v152
  %v1114 = vunpack.c.l.b16 %v153
  %v1115 = vunpack.c.h.b16 %v153
  %v1116 = vunpack.c.l.b16 %v154
  %v1117 = vunpack.c.h.b16 %v154
  %v1118 = vunpack.c.l.b16 %v155
  %v1119 = vunpack.c.h.b16 %v155
  %v1120 = vunpack.c.l.b16 %v156
  %v1121 = vunpack.c.h.b16 %v156
  %v1122 = vunpack.c.l.b16 %v157
  %v1123 = vunpack.c.h.b16 %v157
  %v1124 = vunpack.c.l.b16 %v158
  %v1125 = vunpack.c.h.b16 %v158
  %v1126 = vunpack.c.l.b16 %v159
  %v1127 = vunpack.c.h.b16 %v159
  %v1128 = vunpack.c.l.b16 %v160
  %v1129 = vunpack.c.h.b16 %v160
  %v1130 = vunpack.c.l.b16 %v161
  %v1131 = vunpack.c.h.b16 %v161
  %v1132 = vunpack.c.l.b16 %v162
  %v1133 = vunpack.c.h.b16 %v162
  %v1134 = vunpack.c.l.b16 %v163
  %v1135 = vunpack.c.h.b16 %v163
  %v1136 = vunpack.c.l.b16 %v164
  %v1137 = vunpack.c.h.b16 %v164
  %v1138 = vunpack.c.l.b16 %v165
  %v1139 = vunpack.c.h.b16 %v165
  %v1140 = vunpack.c.l.b16 %v166
  %v1141 = vunpack.c.h.b16 %v166
  %v1142 = vunpack.c.l.b16 %v167
  %v1143 = vunpack.c.h.b16 %v167
  %v1144 = vunpack.c.l.b16 %v168
  %v1145 = vunpack.c.h.b16 %v168
  %v1146 = vunpack.c.l.b16 %v169
  %v1147 = vunpack.c.h.b16 %v169
  %v1148 = vunpack.c.l.b16 %v170
  %v1149 = vunpack.c.h.b16 %v170
  %v1150 = vunpack.c.l.b16 %v171
  %v1151 = vunpack.c.h.b16 %v171
  %v1152 = vunpack.c.l.b16 %v172
  %v1153 = vunpack.c.h.b16 %v172
  %v1154 = vunpack.c.l.b16 %v173
  %v1155 = vunpack.c.h.b16 %v173
  %v1156 = vunpack.c.l.b16 %v174
  %v1157 = vunpack.c.h.b16 %v174
  %v1158 = vunpack.c.l.b16 %v175
  %v1159 = vunpack.c.h.b16 %v175
  %v1160 = vunpack.c.l.b16 %v176
  %v1161 = vunpack.c.h.b16 %v176
  %v1162 = vunpack.c.l.b16 %v177
  %v1163 = vunpack.c.h.b16 %v177
  %v1164 = vunpack.c.l.b16 %v178
  %v1165 = vunpack.c.h.b16 %v178
  %v1166 = vunpack.c.l.b16 %v179
  %v1167 = vunpack.c.h.b16 %v179
  %v1168 = vunpack.c.l.b16 %v180
  %v1169 = vunpack.c.h.b16 %v180
  %v1170 = vunpack.c.l.b16 %v181
  %v1171 = vunpack.c.h.b16 %v181
  %v1172 = vunpack.c.l.b16 %v182
  %v1173 = vunpack.c.h.b16 %v182
  %v1174 = vunpack.c.l.b16 %v183
  %v1175 = vunpack.c.h.b16 %v183
  %v1176 = vunpack.c.l.b16 %v184
  %v1177 = vunpack.c.h.b16 %v184
  %v1178 = vunpack.c.l.b16 %v185
  %v1179 = vunpack.c.h.b16 %v185
  %v1180 = vunpack.c.l.b16 %v186
  %v1181 = vunpack.c.h.b16 %v186
  %v1182 = vunpack.c.l.b16 %v187
  %v1183 = vunpack.c.h.b16 %v187
  %v1184 = vunpack.c.l.b16 %v188
  %v1185 = vunpack.c.h.b16 %v188
  %v1186 = vunpack.c.l.b16 %v189
  %v1187 = vunpack.c.h.b16 %v189
  %v1188 = vunpack.c.l.b16 %v190
  %v1189 = vunpack.c.h.b16 %v190
  %v1190 = vunpack.c.l.b16 %v191
  %v1191 = vunpack.c.h.b16 %v191
  %v1192 = vunpack.c.l.b16 %v192
  %v1193 = vunpack.c.h.b16 %v192
  %v1194 = vunpack.c.l.b16 %v193
  %v1195 = vunpack.c.h.b16 %v193
  %v1196 = vunpack.c.l.b16 %v194
  %v1197 = vunpack.c.h.b16 %v194
  %v1198 = vunpack.c.l.b16 %v195
  %v1199 = vunpack.c.h.b16 %v195
  %v1200 = vunpack.c.l.b16 %v196
  %v1201 = vunpack.c.h.b16 %v196
  %v1202 = vunpack.c.l.b16 %v197
  %v1203 = vunpack.c.h.b16 %v197
  %v1204 = vunpack.c.l.b16 %v198
  %v1205 = vunpack.c.h.b16 %v198
  %v1206 = vunpack.c.l.b16 %v199
  %v1207 = vunpack.c.h.b16 %v199
  %v1208 = vunpack.c.l.b16 %v200
  %v1209 = vunpack.c.h.b16 %v200
  %v1210 = vunpack.c.l.b16 %v201
  %v1211 = vunpack.c.h.b16 %v201
  %v1212 = vunpack.c.l.b16 %v202
  %v1213 = vunpack.c.h.b16 %v202
  %v1214 = vunpack.c.l.b16 %v203
  %v1215 = vunpack.c.h.b16 %v203
  %v1216 = vunpack.c.l.b16 %v204
  %v1217 = vunpack.c.h.b16 %v204
  %v1218 = vunpack.c.l.b16 %v205
  %v1219 = vunpack.c.h.b16 %v205
  %v1220 = vunpack.c.l.b16 %v206
  %v1221 = vunpack.c.h.b16 %v206
  %v1222 = vunpack.c.l.b16 %v207
  %v1223 = vunpack.c.h.b16 %v207
  %v1224 = vunpack.c.l.b16 %v208
  %v1225 = vunpack.c.h.b16 %v208
  %v1226 = vunpack.c.l.b16 %v209
  %v1227 = vunpack.c.h.b16 %v209
  %v1228 = vunpack.c.l.b16 %v210
  %v1229 = vunpack.c.h.b16 %v210
  %v1230 = vunpack.c.l.b16 %v211
  %v1231 = vunpack.c.h.b16 %v211
  %v1232 = vunpack.c.l.b16 %v212
  %v1233 = vunpack.c.h.b16 %v212
  %v1234 = vunpack.c.l.b16 %v213
  %v1235 = vunpack.c.h.b16 %v213
  %v1236 = vunpack.c.l.b16 %v214
  %v1237 = vunpack.c.h.b16 %v214
  %v1238 = vunpack.c.l.b16 %v215
  %v1239 = vunpack.c.h.b16 %v215
  %v1240 = vunpack.c.l.b16 %v216
  %v1241 = vunpack.c.h.b16 %v216
  %v1242 = vunpack.c.l.b16 %v217
  %v1243 = vunpack.c.h.b16 %v217
  %v1244 = vunpack.c.l.b16 %v218
  %v1245 = vunpack.c.h.b16 %v218
  %v1246 = vunpack.c.l.b16 %v219
  %v1247 = vunpack.c.h.b16 %v219
  %v1248 = vunpack.c.l.b16 %v220
  %v1249 = vunpack.c.h.b16 %v220
  %v1250 = vunpack.c.l.b16 %v221
  %v1251 = vunpack.c.h.b16 %v221
  %v1252 = vunpack.c.l.b16 %v222
  %v1253 = vunpack.c.h.b16 %v222
  %v1254 = vunpack.c.l.b16 %v223
  %v1255 = vunpack.c.h.b16 %v223
  %v1256 = vunpack.c.l.b16 %v224
  %v1257 = vunpack.c.h.b16 %v224
  %v1258 = vunpack.c.l.b16 %v225
  %v1259 = vunpack.c.h.b16 %v225
  %v1260 = vunpack.c.l.b16 %v226
  %v1261 = vunpack.c.h.b16 %v226
  %v1262 = vunpack.c.l.b16 %v227
  %v1263 = vunpack.c.h.b16 %v227
  %v1264 = vunpack.c.l.b16 %v228
  %v1265 = vunpack.c.h.b16 %v228
  %v1266 = vunpack.c.l.b16 %v229
  %v1267 = vunpack.c.h.b16 %v229
  %v1268 = vunpack.c.l.b16 %v230
  %v1269 = vunpack.c.h.b16 %v230
  %v1270 = vunpack.c.l.b16 %v231
  %v1271 = vunpack.c.h.b16 %v231
  %v1272 = vunpack.c.l.b16 %v232
  %v1273 = vunpack.c.h.b16 %v232
  %v1274 = vunpack.c.l.b16 %v233
  %v1275 = vunpack.c.h.b16 %v233
  %v1276 = vunpack.c.l.b16 %v234
  %v1277 = vunpack.c.h.b16 %v234
  %v1278 = vunpack.c.l.b16 %v235
  %v1279 = vunpack.c.h.b16 %v235
  %v1280 = vunpack.c.l.b16 %v236
  %v1281 = vunpack.c.h.b16 %v236
  %v1282 = vunpack.c.l.b16 %v237
  %v1283 = vunpack.c.h.b16 %v237
  %v1284 = vunpack.c.l.b16 %v238
  %v1285 = vunpack.c.h.b16 %v238
  %v1286 = vunpack.c.l.b16 %v239
  %v1287 = vunpack.c.h.b16 %v239
  %v1288 = vunpack.c.l.b16 %v240
  %v1289 = vunpack.c.h.b16 %v240
  %v1290 = vunpack.c.l.b16 %v241
  %v1291 = vunpack.c.h.b16 %v241
  %v1292 = vunpack.c.l.b16 %v242
  %v1293 = vunpack.c.h.b16 %v242
  %v1294 = vunpack.c.l.b16 %v243
  %v1295 = vunpack.c.h.b16 %v243
  %v1296 = vunpack.c.l.b16 %v244
  %v1297 = vunpack.c.h.b16 %v244
  %v1298 = vunpack.c.l.b16 %v245
  %v1299 = vunpack.c.h.b16 %v245
  %v1300 = vunpack.c.l.b16 %v246
  %v1301 = vunpack.c.h.b16 %v246
  %v1302 = vunpack.c.l.b16 %v247
  %v1303 = vunpack.c.h.b16 %v247
  %v1304 = vunpack.c.l.b16 %v248
  %v1305 = vunpack.c.h.b16 %v248
  %v1306 = vunpack.c.l.b16 %v249
  %v1307 = vunpack.c.h.b16 %v249
  %v1308 = vunpack.c.l.b16 %v250
  %v1309 = vunpack.c.h.b16 %v250
  %v1310 = vunpack.c.l.b16 %v251
  %v1311 = vunpack.c.h.b16 %v251
  %v1312 = vunpack.c.l.b16 %v252
  %v1313 = vunpack.c.h.b16 %v252
  %v1314 = vunpack.c.l.b16 %v253
  %v1315 = vunpack.c.h.b16 %v253
  %v1316 = vunpack.c.l.b16 %v254
  %v1317 = vunpack.c.h.b16 %v254
  %v1318 = vunpack.c.l.b16 %v255
  %v1319 = vunpack.c.h.b16 %v255
  %v1320 = vunpack.c.l.b16 %v256
  %v1321 = vunpack.c.h.b16 %v256
  %v1322 = vunpack.c.l.b16 %v257
  %v1323 = vunpack.c.h.b16 %v257
  %v1324 = vunpack.c.l.b16 %v258
  %v1325 = vunpack.c.h.b16 %v258
  %v1326 = vunpack.c.l.b16 %v259
  %v1327 = vunpack.c.h.b16 %v259
  %v1328 = vunpack.c.l.b16 %v260
  %v1329 = vunpack.c.h.b16 %v260
  %v1330 = vunpack.c.l.b16 %v261
  %v1331 = vunpack.c.h.b16 %v261
  %v1332 = vunpack.c.l.b16 %v262
  %v1333 = vunpack.c.h.b16 %v262
  %v1334 = vunpack.c.l.b16 %v263
  %v1335 = vunpack.c.h.b16 %v263
  %v1336 = vunpack.c.l.b16 %v264
  %v1337 = vunpack.c.h.b16 %v264
  %v1338 = vunpack.c.l.b16 %v265
  %v1339 = vunpack.c.h.b16 %v265
  %v1340 = vunpack.c.l.b16 %v266
  %v1341 = vunpack.c.h.b16 %v266
  %v1342 = vunpack.c.l.b16 %v267
  %v1343 = vunpack.c.h.b16 %v267
  %v1344 = vunpack.c.l.b16 %v268
  %v1345 = vunpack.c.h.b16 %v268
  %v1346 = vunpack.c.l.b16 %v269
  %v1347 = vunpack.c.h.b16 %v269
  %v1348 = vunpack.c.l.b16 %v270
  %v1349 = vunpack.c.h.b16 %v270
  %v1350 = vunpack.c.l.b16 %v271
  %v1351 = vunpack.c.h.b16 %v271
  %v1352 = vunpack.c.l.b16 %v272
  %v1353 = vunpack.c.h.b16 %v272
  %v1354 = vunpack.c.l.b16 %v273
  %v1355 = vunpack.c.h.b16 %v273
  %v1356 = vunpack.c.l.b16 %v274
  %v1357 = vunpack.c.h.b16 %v274
  %v1358 = vunpack.c.l.b16 %v275
  %v1359 = vunpack.c.h.b16 %v275
  %v1360 = vunpack.c.l.b16 %v276
  %v1361 = vunpack.c.h.b16 %v276
  %v1362 = vunpack.c.l.b16 %v277
  %v1363 = vunpack.c.h.b16 %v277
  %v1364 = vunpack.c.l.b16 %v278
  %v1365 = vunpack.c.h.b16 %v278
  %v1366 = vunpack.c.l.b16 %v279
  %v1367 = vunpack.c.h.b16 %v279
  %v1368 = vunpack.c.l.b16 %v280
  %v1369 = vunpack.c.h.b16 %v280
  %v1370 = vunpack.c.l.b16 %v281
  %v1371 = vunpack.c.h.b16 %v281
  %v1372 = vunpack.c.l.b16 %v282
  %v1373 = vunpack.c.h.b16 %v282
  %v1374 = vunpack.c.l.b16 %v283
  %v1375 = vunpack.c.h.b16 %v283
  %v1376 = vunpack.c.l.b16 %v284
  %v1377 = vunpack.c.h.b16 %v284
  %v1378 = vunpack.c.l.b16 %v285
  %v1379 = vunpack.c.h.b16 %v285
  %v1380 = vunpack.c.l.b16 %v286
  %v1381 = vunpack.c.h.b16 %v286
  %v1382 = vunpack.c.l.b16 %v287
  %v1383 = vunpack.c.h.b16 %v287
  %v1384 = vunpack.c.l.b16 %v288
  %v1385 = vunpack.c.h.b16 %v288
  %v1386 = vunpack.c.l.b16 %v289
  %v1387 = vunpack.c.h.b16 %v289
  %v1388 = vunpack.c.l.b16 %v290
  %v1389 = vunpack.c.h.b16 %v290
  %v1390 = vunpack.c.l.b16 %v291
  %v1391 = vunpack.c.h.b16 %v291
  %v1392 = vunpack.c.l.b16 %v292
  %v1393 = vunpack.c.h.b16 %v292
  %v1394 = vunpack.c.l.b16 %v293
  %v1395 = vunpack.c.h.b16 %v293
  %v1396 = vunpack.c.l.b16 %v294
  %v1397 = vunpack.c.h.b16 %v294
  %v1398 = vunpack.c.l.b16 %v295
  %v1399 = vunpack.c.h.b16 %v295
  %v1400 = vunpack.c.l.b16 %v296
  %v1401 = vunpack.c.h.b16 %v296
  %v1402 = vunpack.c.l.b16 %v297
  %v1403 = vunpack.c.h.b16 %v297
  %v1404 = vunpack.c.l.b16 %v298
  %v1405 = vunpack.c.h.b16 %v298
  %v1406 = vunpack.c.l.b16 %v299
  %v1407 = vunpack.c.h.b16 %v299
  %v1408 = vunpack.c.l.b16 %v300
  %v1409 = vunpack.c.h.b16 %v300
  %v1410 = vunpack.c.l.b16 %v301
  %v1411 = vunpack.c.h.b16 %v301
  %v1412 = vunpack.c.l.b16 %v302
  %v1413 = vunpack.c.h.b16 %v302
  %v1414 = vunpack.c.l.b16 %v303
  %v1415 = vunpack.c.h.b16 %v303
  %v1416 = vunpack.c.l.b16 %v304
  %v1417 = vunpack.c.h.b16 %v304
  %v1418 = vunpack.c.l.b16 %v305
  %v1419 = vunpack.c.h.b16 %v305
  %v1420 = vunpack.c.l.b16 %v306
  %v1421 = vunpack.c.h.b16 %v306
  %v1422 = vunpack.c.l.b16 %v307
  %v1423 = vunpack.c.h.b16 %v307
  %v1424 = vunpack.c.l.b16 %v308
  %v1425 = vunpack.c.h.b16 %v308
  %v1426 = vunpack.c.l.b16 %v309
  %v1427 = vunpack.c.h.b16 %v309
  %v1428 = vunpack.c.l.b16 %v310
  %v1429 = vunpack.c.h.b16 %v310
  %v1430 = vunpack.c.l.b16 %v311
  %v1431 = vunpack.c.h.b16 %v311
  %v1432 = vunpack.c.l.b16 %v312
  %v1433 = vunpack.c.h.b16 %v312
  %v1434 = vunpack.c.l.b16 %v313
  %v1435 = vunpack.c.h.b16 %v313
  %v1436 = vunpack.c.l.b16 %v314
  %v1437 = vunpack.c.h.b16 %v314
  %v1438 = vunpack.c.l.b16 %v315
  %v1439 = vunpack.c.h.b16 %v315
  %v1440 = vunpack.c.l.b16 %v316
  %v1441 = vunpack.c.h.b16 %v316
  %v1442 = vunpack.c.l.b16 %v317
  %v1443 = vunpack.c.h.b16 %v317
  %v1444 = vunpack.c.l.b16 %v318
  %v1445 = vunpack.c.h.b16 %v318
  %v1446 = vunpack.c.l.b16 %v319
  %v1447 = vunpack.c.h.b16 %v319
  %v1448 = vunpack.c.l.b16 %v320
  %v1449 = vunpack.c.h.b16 %v320
  %v1450 = vunpack.c.l.b16 %v321
  %v1451 = vunpack.c.h.b16 %v321
  %v1452 = vunpack.c.l.b16 %v322
  %v1453 = vunpack.c.h.b16 %v322
  %v1454 = vunpack.c.l.b16 %v323
  %v1455 = vunpack.c.h.b16 %v323
  %v1456 = vunpack.c.l.b16 %v324
  %v1457 = vunpack.c.h.b16 %v324
  %v1458 = vunpack.c.l.b16 %v325
  %v1459 = vunpack.c.h.b16 %v325
  %v1460 = vunpack.c.l.b16 %v326
  %v1461 = vunpack.c.h.b16 %v326
  %v1462 = vunpack.c.l.b16 %v327
  %v1463 = vunpack.c.h.b16 %v327
  %v1464 = vunpack.c.l.b16 %v328
  %v1465 = vunpack.c.h.b16 %v328
  %v1466 = vunpack.c.l.b16 %v329
  %v1467 = vunpack.c.h.b16 %v329
  %v1468 = vunpack.c.l.b16 %v330
  %v1469 = vunpack.c.h.b16 %v330
  %v1470 = vunpack.c.l.b16 %v331
  %v1471 = vunpack.c.h.b16 %v331
  %v1472 = vunpack.c.l.b16 %v332
  %v1473 = vunpack.c.h.b16 %v332
  %v1474 = vunpack.c.l.b16 %v333
  %v1475 = vunpack.c.h.b16 %v333
  %v1476 = vunpack.c.l.b16 %v334
  %v1477 = vunpack.c.h.b16 %v334
  %v1478 = vunpack.c.l.b16 %v335
  %v1479 = vunpack.c.h.b16 %v335
  %v1480 = vunpack.c.l.b16 %v336
  %v1481 = vunpack.c.h.b16 %v336
  %v1482 = vunpack.c.l.b16 %v337
  %v1483 = vunpack.c.h.b16 %v337
  %v1484 = vunpack.c.l.b16 %v338
  %v1485 = vunpack.c.h.b16 %v338
  %v1486 = vunpack.c.l.b16 %v339
  %v1487 = vunpack.c.h.b16 %v339
  %v1488 = vunpack.c.l.b16 %v340
  %v1489 = vunpack.c.h.b16 %v340
  %v1490 = vunpack.c.l.b16 %v341
  %v1491 = vunpack.c.h.b16 %v341
  %v1492 = vunpack.c.l.b16 %v342
  %v1493 = vunpack.c.h.b16 %v342
  %v1494 = vunpack.c.l.b16 %v343
  %v1495 = vunpack.c.h.b16 %v343
  %v1496 = vunpack.c.l.b16 %v344
  %v1497 = vunpack.c.h.b16 %v344
  %v1498 = vunpack.c.l.b16 %v345
  %v1499 = vunpack.c.h.b16 %v345
  %v1500 = vunpack.c.l.b16 %v346
  %v1501 = vunpack.c.h.b16 %v346
  %v1502 = vunpack.c.l.b16 %v347
  %v1503 = vunpack.c.h.b16 %v347
  %v1504 = vunpack.c.l.b16 %v348
  %v1505 = vunpack.c.h.b16 %v348
  %v1506 = vunpack.c.l.b16 %v349
  %v1507 = vunpack.c.h.b16 %v349
  %v1508 = vunpack.c.l.b16 %v350
  %v1509 = vunpack.c.h.b16 %v350
  %v1510 = vunpack.c.l.b16 %v351
  %v1511 = vunpack.c.h.b16 %v351
  %v1512 = vunpack.c.l.b16 %v352
  %v1513 = vunpack.c.h.b16 %v352
  %v1514 = vunpack.c.l.b16 %v353
  %v1515 = vunpack.c.h.b16 %v353
  %v1516 = vunpack.c.l.b16 %v354
  %v1517 = vunpack.c.h.b16 %v354
  %v1518 = vunpack.c.l.b16 %v355
  %v1519 = vunpack.c.h.b16 %v355
  %v1520 = vunpack.c.l.b16 %v356
  %v1521 = vunpack.c.h.b16 %v356
  %v1522 = vunpack.c.l.b16 %v357
  %v1523 = vunpack.c.h.b16 %v357
  %v1524 = vunpack.c.l.b16 %v358
  %v1525 = vunpack.c.h.b16 %v358
  %v1526 = vunpack.c.l.b16 %v359
  %v1527 = vunpack.c.h.b16 %v359
  %v1528 = vunpack.c.l.b16 %v360
  %v1529 = vunpack.c.h.b16 %v360
  %v1530 = vunpack.c.l.b16 %v361
  %v1531 = vunpack.c.h.b16 %v361
  %v1532 = vunpack.c.l.b16 %v362
  %v1533 = vunpack.c.h.b16 %v362
  %v1534 = vunpack.c.l.b16 %v363
  %v1535 = vunpack.c.h.b16 %v363
  %v1536 = vunpack.c.l.b16 %v364
  %v1537 = vunpack.c.h.b16 %v364
  %v1538 = vunpack.c.l.b16 %v365
  %v1539 = vunpack.c.h.b16 %v365
  %v1540 = vunpack.c.l.b16 %v366
  %v1541 = vunpack.c.h.b16 %v366
  %v1542 = vunpack.c.l.b16 %v367
  %v1543 = vunpack.c.h.b16 %v367
  %v1544 = vunpack.c.l.b16 %v368
  %v1545 = vunpack.c.h.b16 %v368
  %v1546 = vunpack.c.l.b16 %v369
  %v1547 = vunpack.c.h.b16 %v369
  %v1548 = vunpack.c.l.b16 %v370
  %v1549 = vunpack.c.h.b16 %v370
  %v1550 = vunpack.c.l.b16 %v371
  %v1551 = vunpack.c.h.b16 %v371
  %v1552 = vunpack.c.l.b16 %v372
  %v1553 = vunpack.c.h.b16 %v372
  %v1554 = vunpack.c.l.b16 %v373
  %v1555 = vunpack.c.h.b16 %v373
  %v1556 = vunpack.c.l.b16 %v374
  %v1557 = vunpack.c.h.b16 %v374
  %v1558 = vunpack.c.l.b16 %v375
  %v1559 = vunpack.c.h.b16 %v375
  %v1560 = vpack.c.b16 %v996, %v984
  %v1561 = vpack.c.b16 %v997, %v985
  %v1562 = vpack.c.b16 %v998, %v986
  %v1563 = vpack.c.b16 %v999, %v987
  %v1564 = vpack.c.b16 %v1000, %v988
  %v1565 = vpack.c.b16 %v1001, %v989
  %v1566 = vpack.c.b16 %v1002, %v990
  %v1567 = vpack.c.b16 %v1003, %v991
  %v1568 = vpack.c.b16 %v1004, %v992
  %v1569 = vpack.c.b16 %v1005, %v993
  %v1570 = vpack.c.b16 %v1006, %v994
  %v1571 = vpack.c.b16 %v1007, %v995
  %v1572 = vpack.c.b16 %v1020, %v1008
  %v1573 = vpack.c.b16 %v1021, %v1009
  %v1574 = vpack.c.b16 %v1022, %v1010
  %v1575 = vpack.c.b16 %v1023, %v1011
  %v1576 = vpack.c.b16 %v1024, %v1012
  %v1577 = vpack.c.b16 %v1025, %v1013
  %v1578 = vpack.c.b16 %v1026, %v1014
  %v1579 = vpack.c.b16 %v1027, %v1015
  %v1580 = vpack.c.b16 %v1028, %v1016
  %v1581 = vpack.c.b16 %v1029, %v1017
  %v1582 = vpack.c.b16 %v1030, %v1018
  %v1583 = vpack.c.b16 %v1031, %v1019
  %v1584 = vpack.c.b16 %v1044, %v1032
  %v1585 = vpack.c.b16 %v1045, %v1033
  %v1586 = vpack.c.b16 %v1046, %v1034
  %v1587 = vpack.c.b16 %v1047, %v1035
  %v1588 = vpack.c.b16 %v1048, %v1036
  %v1589 = vpack.c.b16 %v1049, %v1037
  %v1590 = vpack.c.b16 %v1050, %v1038
  %v1591 = vpack.c.b16 %v1051, %v1039
  %v1592 = vpack.c.b16 %v1052, %v1040
  %v1593 = vpack.c.b16 %v1053, %v1041
  %v1594 = vpack.c.b16 %v1054, %v1042
  %v1595 = vpack.c.b16 %v1055, %v1043
  %v1596 = vpack.c.b16 %v1068, %v1056
  %v1597 = vpack.c.b16 %v1069, %v1057
  %v1598 = vpack.c.b16 %v1070, %v1058
  %v1599 = vpack.c.b16 %v1071, %v1059
  %v1600 = vpack.c.b16 %v1072, %v1060
  %v1601 = vpack.c.b16 %v1073, %v1061
  %v1602 = vpack.c.b16 %v1074, %v1062
  %v1603 = vpack.c.b16 %v1075, %v1063
  %v1604 = vpack.c.b16 %v1076, %v1064
  %v1605 = vpack.c.b16 %v1077, %v1065
  %v1606 = vpack.c.b16 %v1078, %v1066
  %v1607 = vpack.c.b16 %v1079, %v1067
  %v1608 = vpack.c.b16 %v1092, %v1080
  %v1609 = vpack.c.b16 %v1093, %v1081
  %v1610 = vpack.c.b16 %v1094, %v1082
  %v1611 = vpack.c.b16 %v1095, %v1083
  %v1612 = vpack.c.b16 %v1096, %v1084
  %v1613 = vpack.c.b16 %v1097, %v1085
  %v1614 = vpack.c.b16 %v1098, %v1086
  %v1615 = vpack.c.b16 %v1099, %v1087
  %v1616 = vpack.c.b16 %v1100, %v1088
  %v1617 = vpack.c.b16 %v1101, %v1089
  %v1618 = vpack.c.b16 %v1102, %v1090
  %v1619 = vpack.c.b16 %v1103, %v1091
  %v1620 = vpack.c.b16 %v1116, %v1104
  %v1621 = vpack.c.b16 %v1117, %v1105
  %v1622 = vpack.c.b16 %v1118, %v1106
  %v1623 = vpack.c.b16 %v1119, %v1107
  %v1624 = vpack.c.b16 %v1120, %v1108
  %v1625 = vpack.c.b16 %v1121, %v1109
  %v1626 = vpack.c.b16 %v1122, %v1110
  %v1627 = vpack.c.b16 %v1123, %v1111
  %v1628 = vpack.c.b16 %v1124, %v1112
  %v1629 = vpack.c.b16 %v1125, %v1113
  %v1630 = vpack.c.b16 %v1126, %v1114
  %v1631 = vpack.c.b16 %v1127, %v1115
  %v1632 = vpack.c.b16 %v1140, %v1128
  %v1633 = vpack.c.b16 %v1141, %v1129
  %v1634 = vpack.c.b16 %v1142, %v1130
  %v1635 = vpack.c.b16 %v1143, %v1131
  %v1636 = vpack.c.b16 %v1144, %v1132
  %v1637 = vpack.c.b16 %v1145, %v1133
  %v1638 = vpack.c.b16 %v1146, %v1134
  %v1639 = vpack.c.b16 %v1147, %v1135
  %v1640 = vpack.c.b16 %v1148, %v1136
  %v1641 = vpack.c.b16 %v1149, %v1137
  %v1642 = vpack.c.b16 %v1150, %v1138
  %v1643 = vpack.c.b16 %v1151, %v1139
  %v1644 = vpack.c.b16 %v1164, %v1152
  %v1645 = vpack.c.b16 %v1165, %v1153
  %v1646 = vpack.c.b16 %v1166, %v1154
  %v1647 = vpack.c.b16 %v1167, %v1155
  %v1648 = vpack.c.b16 %v1168, %v1156
  %v1649 = vpack.c.b16 %v1169, %v1157
  %v1650 = vpack.c.b16 %v1170, %v1158
  %v1651 = vpack.c.b16 %v1171, %v1159
  %v1652 = vpack.c.b16 %v1172, %v1160
  %v1653 = vpack.c.b16 %v1173, %v1161
  %v1654 = vpack.c.b16 %v1174, %v1162
  %v1655 = vpack.c.b16 %v1175, %v1163
  %v1656 = vpack.c.b16 %v1188, %v1176
  %v1657 = vpack.c.b16 %v1189, %v1177
  %v1658 = vpack.c.b16 %v1190, %v1178
  %v1659 = vpack.c.b16 %v1191, %v1179
  %v1660 = vpack.c.b16 %v1192, %v1180
  %v1661 = vpack.c.b16 %v1193, %v1181
  %v1662 = vpack.c.b16 %v1194, %v1182
  %v1663 = vpack.c.b16 %v1195, %v1183
  %v1664 = vpack.c.b16 %v1196, %v1184
  %v1665 = vpack.c.b16 %v1197, %v1185
  %v1666 = vpack.c.b16 %v1198, %v1186
  %v1667 = vpack.c.b16 %v1199, %v1187
  %v1668 = vpack.c.b16 %v1212, %v1200
  %v1669 = vpack.c.b16 %v1213, %v1201
  %v1670 = vpack.c.b16 %v1214, %v1202
  %v1671 = vpack.c.b16 %v1215, %v1203
  %v1672 = vpack.c.b16 %v1216, %v1204
  %v1673 = vpack.c.b16 %v1217, %v1205
  %v1674 = vpack.c.b16 %v1218, %v1206
  %v1675 = vpack.c.b16 %v1219, %v1207
  %v1676 = vpack.c.b16 %v1220, %v1208
  %v1677 = vpack.c.b16 %v1221, %v1209
  %v1678 = vpack.c.b16 %v1222, %v1210
  %v1679 = vpack.c.b16 %v1223, %v1211
  %v1680 = vpack.c.b16 %v1236, %v1224
  %v1681 = vpack.c.b16 %v1237, %v1225
  %v1682 = vpack.c.b16 %v1238, %v1226
  %v1683 = vpack.c.b16 %v1239, %v1227
  %v1684 = vpack.c.b16 %v1240, %v1228
  %v1685 = vpack.c.b16 %v1241, %v1229
  %v1686 = vpack.c.b16 %v1242, %v1230
  %v1687 = vpack.c.b16 %v1243, %v1231
  %v1688 = vpack.c.b16 %v1244, %v1232
  %v1689 = vpack.c.b16 %v1245, %v1233
  %v1690 = vpack.c.b16 %v1246, %v1234
  %v1691 = vpack.c.b16 %v1247, %v1235
  %v1692 = vpack.c.b16 %v1260, %v1248
  %v1693 = vpack.c.b16 %v1261, %v1249
  %v1694 = vpack.c.b16 %v1262, %v1250
  %v1695 = vpack.c.b16 %v1263, %v1251
  %v1696 = vpack.c.b16 %v1264, %v1252
  %v1697 = vpack.c.b16 %v1265, %v1253
  %v1698 = vpack.c.b16 %v1266, %v1254
  %v1699 = vpack.c.b16 %v1267, %v1255
  %v1700 = vpack.c.b16 %v1268, %v1256
  %v1701 = vpack.c.b16 %v1269, %v1257
  %v1702 = vpack.c.b16 %v1270, %v1258
  %v1703 = vpack.c.b16 %v1271, %v1259
  %v1704 = vpack.c.b16 %v1284, %v1272
  %v1705 = vpack.c.b16 %v1285, %v1273
  %v1706 = vpack.c.b16 %v1286, %v1274
  %v1707 = vpack.c.b16 %v1287, %v1275
  %v1708 = vpack.c.b16 %v1288, %v1276
  %v1709 = vpack.c.b16 %v1289, %v1277
  %v1710 = vpack.c.b16 %v1290, %v1278
  %v1711 = vpack.c.b16 %v1291, %v1279
  %v1712 = vpack.c.b16 %v1292, %v1280
  %v1713 = vpack.c.b16 %v1293, %v1281
  %v1714 = vpack.c.b16 %v1294, %v1282
  %v1715 = vpack.c.b16 %v1295, %v1283
  %v1716 = vpack.c.b16 %v1308, %v1296
  %v1717 = vpack.c.b16 %v1309, %v1297
  %v1718 = vpack.c.b16 %v1310, %v1298
  %v1719 = vpack.c.b16 %v1311, %v1299
  %v1720 = vpack.c.b16 %v1312, %v1300
  %v1721 = vpack.c.b16 %v1313, %v1301
  %v1722 = vpack.c.b16 %v1314, %v1302
  %v1723 = vpack.c.b16 %v1315, %v1303
  %v1724 = vpack.c.b16 %v1316, %v1304
  %v1725 = vpack.c.b16 %v1317, %v1305
  %v1726 = vpack.c.b16 %v1318, %v1306
  %v1727 = vpack.c.b16 %v1319, %v1307
  %v1728 = vpack.c.b16 %v1332, %v1320
  %v1729 = vpack.c.b16 %v1333, %v1321
  %v1730 = vpack.c.b16 %v1334, %v1322
  %v1731 = vpack.c.b16 %v1335, %v1323
  %v1732 = vpack.c.b16 %v1336, %v1324
  %v1733 = vpack.c.b16 %v1337, %v1325
  %v1734 = vpack.c.b16 %v1338, %v1326
  %v1735 = vpack.c.b16 %v1339, %v1327
  %v1736 = vpack.c.b16 %v1340, %v1328
  %v1737 = vpack.c.b16 %v1341, %v1329
  %v1738 = vpack.c.b16 %v1342, %v1330
  %v1739 = vpack.c.b16 %v1343, %v1331
  %v1740 = vpack.c.b16 %v1356, %v1344
  %v1741 = vpack.c.b16 %v1357, %v1345
  %v1742 = vpack.c.b16 %v1358, %v1346
  %v1743 = vpack.c.b16 %v1359, %v1347
  %v1744 = vpack.c.b16 %v1360, %v1348
  %v1745 = vpack.c.b16 %v1361, %v1349
  %v1746 = vpack.c.b16 %v1362, %v1350
  %v1747 = vpack.c.b16 %v1363, %v1351
  %v1748 = vpack.c.b16 %v1364, %v1352
  %v1749 = vpack.c.b16 %v1365, %v1353
  %v1750 = vpack.c.b16 %v1366, %v1354
  %v1751 = vpack.c.b16 %v1367, %v1355
  %v1752 = vpack.c.b16 %v1380, %v1368
  %v1753 = vpack.c.b16 %v1381, %v1369
  %v1754 = vpack.c.b16 %v1382, %v1370
  %v1755 = vpack.c.b16 %v1383, %v1371
  %v1756 = vpack.c.b16 %v1384, %v1372
  %v1757 = vpack.c.b16 %v1385, %v1373
  %v1758 = vpack.c.b16 %v1386, %v1374
  %v1759 = vpack.c.b16 %v1387, %v1375
  %v1760 = vpack.c.b16 %v1388, %v1376
  %v1761 = vpack.c.b16 %v1389, %v1377
  %v1762 = vpack.c.b16 %v1390, %v1378
  %v1763 = vpack.c.b16 %v1391, %v1379
  %v1764 = vpack.c.b16 %v1404, %v1392
  %v1765 = vpack.c.b16 %v1405, %v1393
  %v1766 = vpack.c.b16 %v1406, %v1394
  %v1767 = vpack.c.b16 %v1407, %v1395
  %v1768 = vpack.c.b16 %v1408, %v1396
  %v1769 = vpack.c.b16 %v1409, %v1397
  %v1770 = vpack.c.b16 %v1410, %v1398
  %v1771 = vpack.c.b16 %v1411, %v1399
  %v1772 = vpack.c.b16 %v1412, %v1400
  %v1773 = vpack.c.b16 %v1413, %v1401
  %v1774 = vpack.c.b16 %v1414, %v1402
  %v1775 = vpack.c.b16 %v1415, %v1403
  %v1776 = vpack.c.b16 %v1428, %v1416
  %v1777 = vpack.c.b16 %v1429, %v1417
  %v1778 = vpack.c.b16 %v1430, %v1418
  %v1779 = vpack.c.b16 %v1431, %v1419
  %v1780 = vpack.c.b16 %v1432, %v1420
  %v1781 = vpack.c.b16 %v1433, %v1421
  %v1782 = vpack.c.b16 %v1434, %v1422
  %v1783 = vpack.c.b16 %v1435, %v1423
  %v1784 = vpack.c.b16 %v1436, %v1424
  %v1785 = vpack.c.b16 %v1437, %v1425
  %v1786 = vpack.c.b16 %v1438, %v1426
  %v1787 = vpack.c.b16 %v1439, %v1427
  %v1788 = vpack.c.b16 %v1452, %v1440
  %v1789 = vpack.c.b16 %v1453, %v1441
  %v1790 = vpack.c.b16 %v1454, %v1442
  %v1791 = vpack.c.b16 %v1455, %v1443
  %v1792 = vpack.c.b16 %v1456, %v1444
  %v1793 = vpack.c.b16 %v1457, %v1445
  %v1794 = vpack.c.b16 %v1458, %v1446
  %v1795 = vpack.c.b16 %v1459, %v1447
  %v1796 = vpack.c.b16 %v1460, %v1448
  %v1797 = vpack.c.b16 %v1461, %v1449
  %v1798 = vpack.c.b16 %v1462, %v1450
  %v1799 = vpack.c.b16 %v1463, %v1451
  %v1800 = vpack.c.b16 %v1476, %v1464
  %v1801 = vpack.c.b16 %v1477, %v1465
  %v1802 = vpack.c.b16 %v1478, %v1466
  %v1803 = vpack.c.b16 %v1479, %v1467
  %v1804 = vpack.c.b16 %v1480, %v1468
  %v1805 = vpack.c.b16 %v1481, %v1469
  %v1806 = vpack.c.b16 %v1482, %v1470
  %v1807 = vpack.c.b16 %v1483, %v1471
  %v1808 = vpack.c.b16 %v1484, %v1472
  %v1809 = vpack.c.b16 %v1485, %v1473
  %v1810 = vpack.c.b16 %v1486, %v1474
  %v1811 = vpack.c.b16 %v1487, %v1475
  %v1812 = vpack.c.b16 %v1500, %v1488
  %v1813 = vpack.c.b16 %v1501, %v1489
  %v1814 = vpack.c.b16 %v1502, %v1490
  %v1815 = vpack.c.b16 %v1503, %v1491
  %v1816 = vpack.c.b16 %v1504, %v1492
  %v1817 = vpack.c.b16 %v1505, %v1493
  %v1818 = vpack.c.b16 %v1506, %v1494
  %v1819 = vpack.c.b16 %v1507, %v1495
  %v1820 = vpack.c.b16 %v1508, %v1496
  %v1821 = vpack.c.b16 %v1509, %v1497
  %v1822 = vpack.c.b16 %v1510, %v1498
  %v1823 = vpack.c.b16 %v1511, %v1499
  %v1824 = vpack.c.b16 %v1524, %v1512
  %v1825 = vpack.c.b16 %v1525, %v1513
  %v1826 = vpack.c.b16 %v1526, %v1514
  %v1827 = vpack.c.b16 %v1527, %v1515
  %v1828 = vpack.c.b16 %v1528, %v1516
  %v1829 = vpack.c.b16 %v1529, %v1517
  %v1830 = vpack.c.b16 %v1530, %v1518
  %v1831 = vpack.c.b16 %v1531, %v1519
  %v1832 = vpack.c.b16 %v1532, %v1520
  %v1833 = vpack.c.b16 %v1533, %v1521
  %v1834 = vpack.c.b16 %v1534, %v1522
  %v1835 = vpack.c.b16 %v1535, %v1523
  %v1836 = vpack.c.b16 %v1548, %v1536
  %v1837 = vpack.c.b16 %v1549, %v1537
  %v1838 = vpack.c.b16 %v1550, %v1538
  %v1839 = vpack.c.b16 %v1551, %v1539
  %v1840 = vpack.c.b16 %v1552, %v1540
  %v1841 = vpack.c.b16 %v1553, %v1541
  %v1842 = vpack.c.b16 %v1554, %v1542
  %v1843 = vpack.c.b16 %v1555, %v1543
  %v1844 = vpack.c.b16 %v1556, %v1544
  %v1845 = vpack.c.b16 %v1557, %v1545
  %v1846 = vpack.c.b16 %v1558, %v1546
  %v1847 = vpack.c.b16 %v1559, %v1547
  %2136 = vmatprep.subr.bf16.mxu0 %v1561
  %2137 = vmatpush1.bf16.msra.mxu0 %v1560
  %2138 = vmatprep.subr.bf16.mxu0 %v1573
  %2139 = vmatpush1.bf16.msra.mxu0 %v1572
  %2140 = vmatprep.subr.bf16.mxu0 %v1585
  %2141 = vmatpush1.bf16.msra.mxu0 %v1584
  %2142 = vmatprep.subr.bf16.mxu0 %v1597
  %2143 = vmatpush1.bf16.msra.mxu0 %v1596
  %2144 = vmatprep.subr.bf16.mxu0 %v1609
  %2145 = vmatpush1.bf16.msra.mxu0 %v1608
  %2146 = vmatprep.subr.bf16.mxu0 %v1621
  %2147 = vmatpush1.bf16.msra.mxu0 %v1620
  %2148 = vmatprep.subr.bf16.mxu0 %v1633
  %2149 = vmatpush1.bf16.msra.mxu0 %v1632
  %2150 = vmatprep.subr.bf16.mxu0 %v1645
  %2151 = vmatpush1.bf16.msra.mxu0 %v1644
  %2152 = vmatprep.subr.bf16.mxu0 %v1657
  %2153 = vmatpush1.bf16.msra.mxu0 %v1656
  %2154 = vmatprep.subr.bf16.mxu0 %v1669
  %2155 = vmatpush1.bf16.msra.mxu0 %v1668
  %2156 = vmatprep.subr.bf16.mxu0 %v1681
  %2157 = vmatpush1.bf16.msra.mxu0 %v1680
  %2158 = vmatprep.subr.bf16.mxu0 %v1693
  %2159 = vmatpush1.bf16.msra.mxu0 %v1692
  %2160 = vmatprep.subr.bf16.mxu0 %v1705
  %2161 = vmatpush1.bf16.msra.mxu0 %v1704
  %2162 = vmatprep.subr.bf16.mxu0 %v1717
  %2163 = vmatpush1.bf16.msra.mxu0 %v1716
  %2164 = vmatprep.subr.bf16.mxu0 %v1729
  %2165 = vmatpush1.bf16.msra.mxu0 %v1728
  %2166 = vmatprep.subr.bf16.mxu0 %v1741
  %2167 = vmatpush1.bf16.msra.mxu0 %v1740
  %2168 = vmatprep.mubr.bf16.mxu0 %v601
  %2169 = vmatmul.mubr.bf16.gmra.mrb[0].mxu0 %v600
  %v2170 = vpop.f32.mrb[0].mxu0
  %v2171 = vadd.f32 %v383, %v2170
  %v2172 = vpop.f32.mrb[0].mxu0
  %v2173 = vadd.f32 %v387, %v2172
  %v2174 = vpop.f32.mrb[0].mxu0
  %v2175 = vadd.f32 %v383, %v2174
  %v2176 = vpop.f32.mrb[0].mxu0
  %v2177 = vadd.f32 %v387, %v2176
  %2178 = vmatprep.mubr.bf16.mxu0 %v604
  %2179 = vmatmul.mubr.bf16.gmra.mrb[0].mxu0 %v603
  %v2180 = vpop.f32.mrb[0].mxu0
  %v2181 = vadd.f32 %v383, %v2180
  %v2182 = vpop.f32.mrb[0].mxu0
  %v2183 = vadd.f32 %v387, %v2182
  %v2184 = vpop.f32.mrb[0].mxu0
  %v2185 = vadd.f32 %v383, %v2184
  %v2186 = vpop.f32.mrb[0].mxu0
  %v2187 = vadd.f32 %v387, %v2186
  %2188 = vmatprep.mubr.bf16.mxu0 %v607
  %2189 = vmatmul.mubr.bf16.gmra.mrb[0].mxu0 %v606
  %v2190 = vpop.f32.mrb[0].mxu0
  %v2191 = vadd.f32 %v383, %v2190
  %v2192 = vpop.f32.mrb[0].mxu0
  %v2193 = vadd.f32 %v387, %v2192
  %v2194 = vpop.f32.mrb[0].mxu0
  %v2195 = vadd.f32 %v383, %v2194
  %v2196 = vpop.f32.mrb[0].mxu0
  %v2197 = vadd.f32 %v387, %v2196
  %2198 = vmatprep.mubr.bf16.mxu0 %v610
  %2199 = vmatmul.mubr.bf16.gmra.mrb[0].mxu0 %v609
  %v2200 = vpop.f32.mrb[0].mxu0
  %v2201 = vadd.f32 %v383, %v2200
  %v2202 = vpop.f32.mrb[0].mxu0
  %v2203 = vadd.f32 %v387, %v2202
  %v2204 = vpop.f32.mrb[0].mxu0
  %v2205 = vadd.f32 %v383, %v2204
  %v2206 = vpop.f32.mrb[0].mxu0
  %v2207 = vadd.f32 %v387, %v2206
  %2208 = vmatprep.mubr.bf16.mxu0 %v613
  %2209 = vmatmul.mubr.bf16.gmra.mrb[0].mxu0 %v612
  %v2210 = vpop.f32.mrb[0].mxu0
  %v2211 = vadd.f32 %v383, %v2210
  %v2212 = vpop.f32.mrb[0].mxu0
  %v2213 = vadd.f32 %v387, %v2212
  %v2214 = vpop.f32.mrb[0].mxu0
  %v2215 = vadd.f32 %v383, %v2214
  %v2216 = vpop.f32.mrb[0].mxu0
  %v2217 = vadd.f32 %v387, %v2216
  %2218 = vmatprep.mubr.bf16.mxu0 %v616
  %2219 = vmatmul.mubr.bf16.gmra.mrb[0].mxu0 %v615
  %v2220 = vpop.f32.mrb[0].mxu0
  %v2221 = vadd.f32 %v383, %v2220
  %v2222 = vpop.f32.mrb[0].mxu0
  %v2223 = vadd.f32 %v387, %v2222
  %v2224 = vpop.f32.mrb[0].mxu0
  %v2225 = vadd.f32 %v383, %v2224
  %v2226 = vpop.f32.mrb[0].mxu0
  %v2227 = vadd.f32 %v387, %v2226
  %2228 = vmatprep.mubr.bf16.mxu0 %v619
  %2229 = vmatmul.mubr.bf16.gmra.mrb[0].mxu0 %v618
  %v2230 = vpop.f32.mrb[0].mxu0
  %v2231 = vadd.f32 %v383, %v2230
  %v2232 = vpop.f32.mrb[0].mxu0
  %v2233 = vadd.f32 %v387, %v2232
  %v2234 = vpop.f32.mrb[0].mxu0
  %v2235 = vadd.f32 %v383, %v2234
  %v2236 = vpop.f32.mrb[0].mxu0
  %v2237 = vadd.f32 %v387, %v2236
  %2238 = vmatprep.mubr.bf16.mxu0 %v622
  %2239 = vmatmul.mubr.bf16.gmra.mrb[0].mxu0 %v621
  %v2240 = vpop.f32.mrb[0].mxu0
  %v2241 = vadd.f32 %v383, %v2240
  %v2242 = vpop.f32.mrb[0].mxu0
  %v2243 = vadd.f32 %v387, %v2242
  %v2244 = vpop.f32.mrb[0].mxu0
  %v2245 = vadd.f32 %v383, %v2244
  %v2246 = vpop.f32.mrb[0].mxu0
  %v2247 = vadd.f32 %v387, %v2246
  %2248 = vmatprep.mubr.bf16.mxu0 %v625
  %2249 = vmatmul.mubr.bf16.gmra.mrb[0].mxu0 %v624
  %v2250 = vpop.f32.mrb[0].mxu0
  %v2251 = vadd.f32 %v383, %v2250
  %v2252 = vpop.f32.mrb[0].mxu0
  %v2253 = vadd.f32 %v387, %v2252
  %v2254 = vpop.f32.mrb[0].mxu0
  %v2255 = vadd.f32 %v383, %v2254
  %v2256 = vpop.f32.mrb[0].mxu0
  %v2257 = vadd.f32 %v387, %v2256
  %2258 = vmatprep.mubr.bf16.mxu0 %v628
  %2259 = vmatmul.mubr.bf16.gmra.mrb[0].mxu0 %v627
  %v2260 = vpop.f32.mrb[0].mxu0
  %v2261 = vadd.f32 %v383, %v2260
  %v2262 = vpop.f32.mrb[0].mxu0
  %v2263 = vadd.f32 %v387, %v2262
  %v2264 = vpop.f32.mrb[0].mxu0
  %v2265 = vadd.f32 %v383, %v2264
  %v2266 = vpop.f32.mrb[0].mxu0
  %v2267 = vadd.f32 %v387, %v2266
  %2268 = vmatprep.mubr.bf16.mxu0 %v631
  %2269 = vmatmul.mubr.bf16.gmra.mrb[0].mxu0 %v630
  %v2270 = vpop.f32.mrb[0].mxu0
  %v2271 = vadd.f32 %v383, %v2270
  %v2272 = vpop.f32.mrb[0].mxu0
  %v2273 = vadd.f32 %v387, %v2272
  %v2274 = vpop.f32.mrb[0].mxu0
  %v2275 = vadd.f32 %v383, %v2274
  %v2276 = vpop.f32.mrb[0].mxu0
  %v2277 = vadd.f32 %v387, %v2276
  %2278 = vmatprep.mubr.bf16.mxu0 %v634
  %2279 = vmatmul.mubr.bf16.gmra.mrb[0].mxu0 %v633
  %v2280 = vpop.f32.mrb[0].mxu0
  %v2281 = vadd.f32 %v383, %v2280
  %v2282 = vpop.f32.mrb[0].mxu0
  %v2283 = vadd.f32 %v387, %v2282
  %v2284 = vpop.f32.mrb[0].mxu0
  %v2285 = vadd.f32 %v383, %v2284
  %v2286 = vpop.f32.mrb[0].mxu0
  %v2287 = vadd.f32 %v387, %v2286
  %2288 = vmatprep.mubr.bf16.mxu0 %v637
  %2289 = vmatmul.mubr.bf16.gmra.mrb[0].mxu0 %v636
  %v2290 = vpop.f32.mrb[0].mxu0
  %v2291 = vadd.f32 %v383, %v2290
  %v2292 = vpop.f32.mrb[0].mxu0
  %v2293 = vadd.f32 %v387, %v2292
  %v2294 = vpop.f32.mrb[0].mxu0
  %v2295 = vadd.f32 %v383, %v2294
  %v2296 = vpop.f32.mrb[0].mxu0
  %v2297 = vadd.f32 %v387, %v2296
  %2298 = vmatprep.mubr.bf16.mxu0 %v640
  %2299 = vmatmul.mubr.bf16.gmra.mrb[0].mxu0 %v639
  %v2300 = vpop.f32.mrb[0].mxu0
  %v2301 = vadd.f32 %v383, %v2300
  %v2302 = vpop.f32.mrb[0].mxu0
  %v2303 = vadd.f32 %v387, %v2302
  %v2304 = vpop.f32.mrb[0].mxu0
  %v2305 = vadd.f32 %v383, %v2304
  %v2306 = vpop.f32.mrb[0].mxu0
  %v2307 = vadd.f32 %v387, %v2306
  %2308 = vmatprep.mubr.bf16.mxu0 %v643
  %2309 = vmatmul.mubr.bf16.gmra.mrb[0].mxu0 %v642
  %v2310 = vpop.f32.mrb[0].mxu0
  %v2311 = vadd.f32 %v383, %v2310
  %v2312 = vpop.f32.mrb[0].mxu0
  %v2313 = vadd.f32 %v387, %v2312
  %v2314 = vpop.f32.mrb[0].mxu0
  %v2315 = vadd.f32 %v383, %v2314
  %v2316 = vpop.f32.mrb[0].mxu0
  %v2317 = vadd.f32 %v387, %v2316
  %2318 = vmatprep.mubr.bf16.mxu0 %v646
  %2319 = vmatmul.mubr.bf16.gmra.mrb[0].mxu0 %v645
  %v2320 = vpop.f32.mrb[0].mxu0
  %v2321 = vadd.f32 %v383, %v2320
  %v2322 = vpop.f32.mrb[0].mxu0
  %v2323 = vadd.f32 %v387, %v2322
  %v2324 = vpop.f32.mrb[0].mxu0
  %v2325 = vadd.f32 %v383, %v2324
  %v2326 = vpop.f32.mrb[0].mxu0
  %v2327 = vadd.f32 %v387, %v2326
  %2328 = vdwg.mxu0
  %2329 = vmatprep.subr.bf16.mxu0 %v1753
  %2330 = vmatpush1.bf16.msra.mxu0 %v1752
  %2331 = vmatprep.subr.bf16.mxu0 %v1765
  %2332 = vmatpush1.bf16.msra.mxu0 %v1764
  %2333 = vmatprep.subr.bf16.mxu0 %v1777
  %2334 = vmatpush1.bf16.msra.mxu0 %v1776
  %2335 = vmatprep.subr.bf16.mxu0 %v1789
  %2336 = vmatpush1.bf16.msra.mxu0 %v1788
  %2337 = vmatprep.subr.bf16.mxu0 %v1801
  %2338 = vmatpush1.bf16.msra.mxu0 %v1800
  %2339 = vmatprep.subr.bf16.mxu0 %v1813
  %2340 = vmatpush1.bf16.msra.mxu0 %v1812
  %2341 = vmatprep.subr.bf16.mxu0 %v1825
  %2342 = vmatpush1.bf16.msra.mxu0 %v1824
  %2343 = vmatprep.subr.bf16.mxu0 %v1837
  %2344 = vmatpush1.bf16.msra.mxu0 %v1836
  %2345 = vmatprep.subr.bf16.mxu0 0
  %2346 = vmatpush1.bf16.msra.mxu0 0
  %2347 = vmatprep.subr.bf16.mxu0 0
  %2348 = vmatpush1.bf16.msra.mxu0 0
  %2349 = vmatprep.subr.bf16.mxu0 0
  %2350 = vmatpush1.bf16.msra.mxu0 0
  %2351 = vmatprep.subr.bf16.mxu0 0
  %2352 = vmatpush1.bf16.msra.mxu0 0
  %2353 = vmatprep.subr.bf16.mxu0 0
  %2354 = vmatpush1.bf16.msra.mxu0 0
  %2355 = vmatprep.subr.bf16.mxu0 0
  %2356 = vmatpush1.bf16.msra.mxu0 0
  %2357 = vmatprep.subr.bf16.mxu0 0
  %2358 = vmatpush1.bf16.msra.mxu0 0
  %2359 = vmatprep.subr.bf16.mxu0 0
  %2360 = vmatpush1.bf16.msra.mxu0 0
  %2361 = vmatprep.mubr.bf16.mxu0 0
  %2362 = vmatmul.mubr.bf16.gmra.mrb[0].mxu0 %v602
  %v2363 = vpop.f32.mrb[0].mxu0
  %v2364 = vadd.f32 %v2171, %v2363
  %v2365 = vpop.f32.mrb[0].mxu0
  %v2366 = vadd.f32 %v2173, %v2365
  %v2367 = vpop.f32.mrb[0].mxu0
  %v2368 = vadd.f32 %v2175, %v2367
  %v2369 = vpop.f32.mrb[0].mxu0
  %v2370 = vadd.f32 %v2177, %v2369
  %2371 = vmatprep.mubr.bf16.mxu0 0
  %2372 = vmatmul.mubr.bf16.gmra.mrb[0].mxu0 %v605
  %v2373 = vpop.f32.mrb[0].mxu0
  %v2374 = vadd.f32 %v2181, %v2373
  %v2375 = vpop.f32.mrb[0].mxu0
  %v2376 = vadd.f32 %v2183, %v2375
  %v2377 = vpop.f32.mrb[0].mxu0
  %v2378 = vadd.f32 %v2185, %v2377
  %v2379 = vpop.f32.mrb[0].mxu0
  %v2380 = vadd.f32 %v2187, %v2379
  %2381 = vmatprep.mubr.bf16.mxu0 0
  %2382 = vmatmul.mubr.bf16.gmra.mrb[0].mxu0 %v608
  %v2383 = vpop.f32.mrb[0].mxu0
  %v2384 = vadd.f32 %v2191, %v2383
  %v2385 = vpop.f32.mrb[0].mxu0
  %v2386 = vadd.f32 %v2193, %v2385
  %v2387 = vpop.f32.mrb[0].mxu0
  %v2388 = vadd.f32 %v2195, %v2387
  %v2389 = vpop.f32.mrb[0].mxu0
  %v2390 = vadd.f32 %v2197, %v2389
  %2391 = vmatprep.mubr.bf16.mxu0 0
  %2392 = vmatmul.mubr.bf16.gmra.mrb[0].mxu0 %v611
  %v2393 = vpop.f32.mrb[0].mxu0
  %v2394 = vadd.f32 %v2201, %v2393
  %v2395 = vpop.f32.mrb[0].mxu0
  %v2396 = vadd.f32 %v2203, %v2395
  %v2397 = vpop.f32.mrb[0].mxu0
  %v2398 = vadd.f32 %v2205, %v2397
  %v2399 = vpop.f32.mrb[0].mxu0
  %v2400 = vadd.f32 %v2207, %v2399
  %2401 = vmatprep.mubr.bf16.mxu0 0
  %2402 = vmatmul.mubr.bf16.gmra.mrb[0].mxu0 %v614
  %v2403 = vpop.f32.mrb[0].mxu0
  %v2404 = vadd.f32 %v2211, %v2403
  %v2405 = vpop.f32.mrb[0].mxu0
  %v2406 = vadd.f32 %v2213, %v2405
  %v2407 = vpop.f32.mrb[0].mxu0
  %v2408 = vadd.f32 %v2215, %v2407
  %v2409 = vpop.f32.mrb[0].mxu0
  %v2410 = vadd.f32 %v2217, %v2409
  %2411 = vmatprep.mubr.bf16.mxu0 0
  %2412 = vmatmul.mubr.bf16.gmra.mrb[0].mxu0 %v617
  %v2413 = vpop.f32.mrb[0].mxu0
  %v2414 = vadd.f32 %v2221, %v2413
  %v2415 = vpop.f32.mrb[0].mxu0
  %v2416 = vadd.f32 %v2223, %v2415
  %v2417 = vpop.f32.mrb[0].mxu0
  %v2418 = vadd.f32 %v2225, %v2417
  %v2419 = vpop.f32.mrb[0].mxu0
  %v2420 = vadd.f32 %v2227, %v2419
  %2421 = vmatprep.mubr.bf16.mxu0 0
  %2422 = vmatmul.mubr.bf16.gmra.mrb[0].mxu0 %v620
  %v2423 = vpop.f32.mrb[0].mxu0
  %v2424 = vadd.f32 %v2231, %v2423
  %v2425 = vpop.f32.mrb[0].mxu0
  %v2426 = vadd.f32 %v2233, %v2425
  %v2427 = vpop.f32.mrb[0].mxu0
  %v2428 = vadd.f32 %v2235, %v2427
  %v2429 = vpop.f32.mrb[0].mxu0
  %v2430 = vadd.f32 %v2237, %v2429
  %2431 = vmatprep.mubr.bf16.mxu0 0
  %2432 = vmatmul.mubr.bf16.gmra.mrb[0].mxu0 %v623
  %v2433 = vpop.f32.mrb[0].mxu0
  %v2434 = vadd.f32 %v2241, %v2433
  %v2435 = vpop.f32.mrb[0].mxu0
  %v2436 = vadd.f32 %v2243, %v2435
  %v2437 = vpop.f32.mrb[0].mxu0
  %v2438 = vadd.f32 %v2245, %v2437
  %v2439 = vpop.f32.mrb[0].mxu0
  %v2440 = vadd.f32 %v2247, %v2439
  %2441 = vmatprep.mubr.bf16.mxu0 0
  %2442 = vmatmul.mubr.bf16.gmra.mrb[0].mxu0 %v626
  %v2443 = vpop.f32.mrb[0].mxu0
  %v2444 = vadd.f32 %v2251, %v2443
  %v2445 = vpop.f32.mrb[0].mxu0
  %v2446 = vadd.f32 %v2253, %v2445
  %v2447 = vpop.f32.mrb[0].mxu0
  %v2448 = vadd.f32 %v2255, %v2447
  %v2449 = vpop.f32.mrb[0].mxu0
  %v2450 = vadd.f32 %v2257, %v2449
  %2451 = vmatprep.mubr.bf16.mxu0 0
  %2452 = vmatmul.mubr.bf16.gmra.mrb[0].mxu0 %v629
  %v2453 = vpop.f32.mrb[0].mxu0
  %v2454 = vadd.f32 %v2261, %v2453
  %v2455 = vpop.f32.mrb[0].mxu0
  %v2456 = vadd.f32 %v2263, %v2455
  %v2457 = vpop.f32.mrb[0].mxu0
  %v2458 = vadd.f32 %v2265, %v2457
  %v2459 = vpop.f32.mrb[0].mxu0
  %v2460 = vadd.f32 %v2267, %v2459
  %2461 = vmatprep.mubr.bf16.mxu0 0
  %2462 = vmatmul.mubr.bf16.gmra.mrb[0].mxu0 %v632
  %v2463 = vpop.f32.mrb[0].mxu0
  %v2464 = vadd.f32 %v2271, %v2463
  %v2465 = vpop.f32.mrb[0].mxu0
  %v2466 = vadd.f32 %v2273, %v2465
  %v2467 = vpop.f32.mrb[0].mxu0
  %v2468 = vadd.f32 %v2275, %v2467
  %v2469 = vpop.f32.mrb[0].mxu0
  %v2470 = vadd.f32 %v2277, %v2469
  %2471 = vmatprep.mubr.bf16.mxu0 0
  %2472 = vmatmul.mubr.bf16.gmra.mrb[0].mxu0 %v635
  %v2473 = vpop.f32.mrb[0].mxu0
  %v2474 = vadd.f32 %v2281, %v2473
  %v2475 = vpop.f32.mrb[0].mxu0
  %v2476 = vadd.f32 %v2283, %v2475
  %v2477 = vpop.f32.mrb[0].mxu0
  %v2478 = vadd.f32 %v2285, %v2477
  %v2479 = vpop.f32.mrb[0].mxu0
  %v2480 = vadd.f32 %v2287, %v2479
  %2481 = vmatprep.mubr.bf16.mxu0 0
  %2482 = vmatmul.mubr.bf16.gmra.mrb[0].mxu0 %v638
  %v2483 = vpop.f32.mrb[0].mxu0
  %v2484 = vadd.f32 %v2291, %v2483
  %v2485 = vpop.f32.mrb[0].mxu0
  %v2486 = vadd.f32 %v2293, %v2485
  %v2487 = vpop.f32.mrb[0].mxu0
  %v2488 = vadd.f32 %v2295, %v2487
  %v2489 = vpop.f32.mrb[0].mxu0
  %v2490 = vadd.f32 %v2297, %v2489
  %2491 = vmatprep.mubr.bf16.mxu0 0
  %2492 = vmatmul.mubr.bf16.gmra.mrb[0].mxu0 %v641
  %v2493 = vpop.f32.mrb[0].mxu0
  %v2494 = vadd.f32 %v2301, %v2493
  %v2495 = vpop.f32.mrb[0].mxu0
  %v2496 = vadd.f32 %v2303, %v2495
  %v2497 = vpop.f32.mrb[0].mxu0
  %v2498 = vadd.f32 %v2305, %v2497
  %v2499 = vpop.f32.mrb[0].mxu0
  %v2500 = vadd.f32 %v2307, %v2499
  %2501 = vmatprep.mubr.bf16.mxu0 0
  %2502 = vmatmul.mubr.bf16.gmra.mrb[0].mxu0 %v644
  %v2503 = vpop.f32.mrb[0].mxu0
  %v2504 = vadd.f32 %v2311, %v2503
  %v2505 = vpop.f32.mrb[0].mxu0
  %v2506 = vadd.f32 %v2313, %v2505
  %v2507 = vpop.f32.mrb[0].mxu0
  %v2508 = vadd.f32 %v2315, %v2507
  %v2509 = vpop.f32.mrb[0].mxu0
  %v2510 = vadd.f32 %v2317, %v2509
  %2511 = vmatprep.mubr.bf16.mxu0 0
  %2512 = vmatmul.mubr.bf16.gmra.mrb[0].mxu0 %v647
  %v2513 = vpop.f32.mrb[0].mxu0
  %v2514 = vadd.f32 %v2321, %v2513
  %v2515 = vpop.f32.mrb[0].mxu0
  %v2516 = vadd.f32 %v2323, %v2515
  %v2517 = vpop.f32.mrb[0].mxu0
  %v2518 = vadd.f32 %v2325, %v2517
  %v2519 = vpop.f32.mrb[0].mxu0
  %v2520 = vadd.f32 %v2327, %v2519
  %2521 = vdwg.mxu0
  %2522 = vmatprep.subr.bf16.mxu0 %v1563
  %2523 = vmatpush1.bf16.msra.mxu0 %v1562
  %2524 = vmatprep.subr.bf16.mxu0 %v1575
  %2525 = vmatpush1.bf16.msra.mxu0 %v1574
  %2526 = vmatprep.subr.bf16.mxu0 %v1587
  %2527 = vmatpush1.bf16.msra.mxu0 %v1586
  %2528 = vmatprep.subr.bf16.mxu0 %v1599
  %2529 = vmatpush1.bf16.msra.mxu0 %v1598
  %2530 = vmatprep.subr.bf16.mxu0 %v1611
  %2531 = vmatpush1.bf16.msra.mxu0 %v1610
  %2532 = vmatprep.subr.bf16.mxu0 %v1623
  %2533 = vmatpush1.bf16.msra.mxu0 %v1622
  %2534 = vmatprep.subr.bf16.mxu0 %v1635
  %2535 = vmatpush1.bf16.msra.mxu0 %v1634
  %2536 = vmatprep.subr.bf16.mxu0 %v1647
  %2537 = vmatpush1.bf16.msra.mxu0 %v1646
  %2538 = vmatprep.subr.bf16.mxu0 %v1659
  %2539 = vmatpush1.bf16.msra.mxu0 %v1658
  %2540 = vmatprep.subr.bf16.mxu0 %v1671
  %2541 = vmatpush1.bf16.msra.mxu0 %v1670
  %2542 = vmatprep.subr.bf16.mxu0 %v1683
  %2543 = vmatpush1.bf16.msra.mxu0 %v1682
  %2544 = vmatprep.subr.bf16.mxu0 %v1695
  %2545 = vmatpush1.bf16.msra.mxu0 %v1694
  %2546 = vmatprep.subr.bf16.mxu0 %v1707
  %2547 = vmatpush1.bf16.msra.mxu0 %v1706
  %2548 = vmatprep.subr.bf16.mxu0 %v1719
  %2549 = vmatpush1.bf16.msra.mxu0 %v1718
  %2550 = vmatprep.subr.bf16.mxu0 %v1731
  %2551 = vmatpush1.bf16.msra.mxu0 %v1730
  %2552 = vmatprep.subr.bf16.mxu0 %v1743
  %2553 = vmatpush1.bf16.msra.mxu0 %v1742
  %2554 = vmatprep.mubr.bf16.mxu0 %v601
  %2555 = vmatmul.mubr.bf16.gmra.mrb[0].mxu0 %v600
  %v2556 = vpop.f32.mrb[0].mxu0
  %v2557 = vadd.f32 %v391, %v2556
  %v2558 = vpop.f32.mrb[0].mxu0
  %v2559 = vadd.f32 %v395, %v2558
  %v2560 = vpop.f32.mrb[0].mxu0
  %v2561 = vadd.f32 %v391, %v2560
  %v2562 = vpop.f32.mrb[0].mxu0
  %v2563 = vadd.f32 %v395, %v2562
  %2564 = vmatprep.mubr.bf16.mxu0 %v604
  %2565 = vmatmul.mubr.bf16.gmra.mrb[0].mxu0 %v603
  %v2566 = vpop.f32.mrb[0].mxu0
  %v2567 = vadd.f32 %v391, %v2566
  %v2568 = vpop.f32.mrb[0].mxu0
  %v2569 = vadd.f32 %v395, %v2568
  %v2570 = vpop.f32.mrb[0].mxu0
  %v2571 = vadd.f32 %v391, %v2570
  %v2572 = vpop.f32.mrb[0].mxu0
  %v2573 = vadd.f32 %v395, %v2572
  %2574 = vmatprep.mubr.bf16.mxu0 %v607
  %2575 = vmatmul.mubr.bf16.gmra.mrb[0].mxu0 %v606
  %v2576 = vpop.f32.mrb[0].mxu0
  %v2577 = vadd.f32 %v391, %v2576
  %v2578 = vpop.f32.mrb[0].mxu0
  %v2579 = vadd.f32 %v395, %v2578
  %v2580 = vpop.f32.mrb[0].mxu0
  %v2581 = vadd.f32 %v391, %v2580
  %v2582 = vpop.f32.mrb[0].mxu0
  %v2583 = vadd.f32 %v395, %v2582
  %2584 = vmatprep.mubr.bf16.mxu0 %v610
  %2585 = vmatmul.mubr.bf16.gmra.mrb[0].mxu0 %v609
  %v2586 = vpop.f32.mrb[0].mxu0
  %v2587 = vadd.f32 %v391, %v2586
  %v2588 = vpop.f32.mrb[0].mxu0
  %v2589 = vadd.f32 %v395, %v2588
  %v2590 = vpop.f32.mrb[0].mxu0
  %v2591 = vadd.f32 %v391, %v2590
  %v2592 = vpop.f32.mrb[0].mxu0
  %v2593 = vadd.f32 %v395, %v2592
  %2594 = vmatprep.mubr.bf16.mxu0 %v613
  %2595 = vmatmul.mubr.bf16.gmra.mrb[0].mxu0 %v612
  %v2596 = vpop.f32.mrb[0].mxu0
  %v2597 = vadd.f32 %v391, %v2596
  %v2598 = vpop.f32.mrb[0].mxu0
  %v2599 = vadd.f32 %v395, %v2598
  %v2600 = vpop.f32.mrb[0].mxu0
  %v2601 = vadd.f32 %v391, %v2600
  %v2602 = vpop.f32.mrb[0].mxu0
  %v2603 = vadd.f32 %v395, %v2602
  %2604 = vmatprep.mubr.bf16.mxu0 %v616
  %2605 = vmatmul.mubr.bf16.gmra.mrb[0].mxu0 %v615
  %v2606 = vpop.f32.mrb[0].mxu0
  %v2607 = vadd.f32 %v391, %v2606
  %v2608 = vpop.f32.mrb[0].mxu0
  %v2609 = vadd.f32 %v395, %v2608
  %v2610 = vpop.f32.mrb[0].mxu0
  %v2611 = vadd.f32 %v391, %v2610
  %v2612 = vpop.f32.mrb[0].mxu0
  %v2613 = vadd.f32 %v395, %v2612
  %2614 = vmatprep.mubr.bf16.mxu0 %v619
  %2615 = vmatmul.mubr.bf16.gmra.mrb[0].mxu0 %v618
  %v2616 = vpop.f32.mrb[0].mxu0
  %v2617 = vadd.f32 %v391, %v2616
  %v2618 = vpop.f32.mrb[0].mxu0
  %v2619 = vadd.f32 %v395, %v2618
  %v2620 = vpop.f32.mrb[0].mxu0
  %v2621 = vadd.f32 %v391, %v2620
  %v2622 = vpop.f32.mrb[0].mxu0
  %v2623 = vadd.f32 %v395, %v2622
  %2624 = vmatprep.mubr.bf16.mxu0 %v622
  %2625 = vmatmul.mubr.bf16.gmra.mrb[0].mxu0 %v621
  %v2626 = vpop.f32.mrb[0].mxu0
  %v2627 = vadd.f32 %v391, %v2626
  %v2628 = vpop.f32.mrb[0].mxu0
  %v2629 = vadd.f32 %v395, %v2628
  %v2630 = vpop.f32.mrb[0].mxu0
  %v2631 = vadd.f32 %v391, %v2630
  %v2632 = vpop.f32.mrb[0].mxu0
  %v2633 = vadd.f32 %v395, %v2632
  %2634 = vmatprep.mubr.bf16.mxu0 %v625
  %2635 = vmatmul.mubr.bf16.gmra.mrb[0].mxu0 %v624
  %v2636 = vpop.f32.mrb[0].mxu0
  %v2637 = vadd.f32 %v391, %v2636
  %v2638 = vpop.f32.mrb[0].mxu0
  %v2639 = vadd.f32 %v395, %v2638
  %v2640 = vpop.f32.mrb[0].mxu0
  %v2641 = vadd.f32 %v391, %v2640
  %v2642 = vpop.f32.mrb[0].mxu0
  %v2643 = vadd.f32 %v395, %v2642
  %2644 = vmatprep.mubr.bf16.mxu0 %v628
  %2645 = vmatmul.mubr.bf16.gmra.mrb[0].mxu0 %v627
  %v2646 = vpop.f32.mrb[0].mxu0
  %v2647 = vadd.f32 %v391, %v2646
  %v2648 = vpop.f32.mrb[0].mxu0
  %v2649 = vadd.f32 %v395, %v2648
  %v2650 = vpop.f32.mrb[0].mxu0
  %v2651 = vadd.f32 %v391, %v2650
  %v2652 = vpop.f32.mrb[0].mxu0
  %v2653 = vadd.f32 %v395, %v2652
  %2654 = vmatprep.mubr.bf16.mxu0 %v631
  %2655 = vmatmul.mubr.bf16.gmra.mrb[0].mxu0 %v630
  %v2656 = vpop.f32.mrb[0].mxu0
  %v2657 = vadd.f32 %v391, %v2656
  %v2658 = vpop.f32.mrb[0].mxu0
  %v2659 = vadd.f32 %v395, %v2658
  %v2660 = vpop.f32.mrb[0].mxu0
  %v2661 = vadd.f32 %v391, %v2660
  %v2662 = vpop.f32.mrb[0].mxu0
  %v2663 = vadd.f32 %v395, %v2662
  %2664 = vmatprep.mubr.bf16.mxu0 %v634
  %2665 = vmatmul.mubr.bf16.gmra.mrb[0].mxu0 %v633
  %v2666 = vpop.f32.mrb[0].mxu0
  %v2667 = vadd.f32 %v391, %v2666
  %v2668 = vpop.f32.mrb[0].mxu0
  %v2669 = vadd.f32 %v395, %v2668
  %v2670 = vpop.f32.mrb[0].mxu0
  %v2671 = vadd.f32 %v391, %v2670
  %v2672 = vpop.f32.mrb[0].mxu0
  %v2673 = vadd.f32 %v395, %v2672
  %2674 = vmatprep.mubr.bf16.mxu0 %v637
  %2675 = vmatmul.mubr.bf16.gmra.mrb[0].mxu0 %v636
  %v2676 = vpop.f32.mrb[0].mxu0
  %v2677 = vadd.f32 %v391, %v2676
  %v2678 = vpop.f32.mrb[0].mxu0
  %v2679 = vadd.f32 %v395, %v2678
  %v2680 = vpop.f32.mrb[0].mxu0
  %v2681 = vadd.f32 %v391, %v2680
  %v2682 = vpop.f32.mrb[0].mxu0
  %v2683 = vadd.f32 %v395, %v2682
  %2684 = vmatprep.mubr.bf16.mxu0 %v640
  %2685 = vmatmul.mubr.bf16.gmra.mrb[0].mxu0 %v639
  %v2686 = vpop.f32.mrb[0].mxu0
  %v2687 = vadd.f32 %v391, %v2686
  %v2688 = vpop.f32.mrb[0].mxu0
  %v2689 = vadd.f32 %v395, %v2688
  %v2690 = vpop.f32.mrb[0].mxu0
  %v2691 = vadd.f32 %v391, %v2690
  %v2692 = vpop.f32.mrb[0].mxu0
  %v2693 = vadd.f32 %v395, %v2692
  %2694 = vmatprep.mubr.bf16.mxu0 %v643
  %2695 = vmatmul.mubr.bf16.gmra.mrb[0].mxu0 %v642
  %v2696 = vpop.f32.mrb[0].mxu0
  %v2697 = vadd.f32 %v391, %v2696
  %v2698 = vpop.f32.mrb[0].mxu0
  %v2699 = vadd.f32 %v395, %v2698
  %v2700 = vpop.f32.mrb[0].mxu0
  %v2701 = vadd.f32 %v391, %v2700
  %v2702 = vpop.f32.mrb[0].mxu0
  %v2703 = vadd.f32 %v395, %v2702
  %2704 = vmatprep.mubr.bf16.mxu0 %v646
  %2705 = vmatmul.mubr.bf16.gmra.mrb[0].mxu0 %v645
  %v2706 = vpop.f32.mrb[0].mxu0
  %v2707 = vadd.f32 %v391, %v2706
  %v2708 = vpop.f32.mrb[0].mxu0
  %v2709 = vadd.f32 %v395, %v2708
  %v2710 = vpop.f32.mrb[0].mxu0
  %v2711 = vadd.f32 %v391, %v2710
  %v2712 = vpop.f32.mrb[0].mxu0
  %v2713 = vadd.f32 %v395, %v2712
  %2714 = vdwg.mxu0
  %2715 = vmatprep.subr.bf16.mxu0 %v1755
  %2716 = vmatpush1.bf16.msra.mxu0 %v1754
  %2717 = vmatprep.subr.bf16.mxu0 %v1767
  %2718 = vmatpush1.bf16.msra.mxu0 %v1766
  %2719 = vmatprep.subr.bf16.mxu0 %v1779
  %2720 = vmatpush1.bf16.msra.mxu0 %v1778
  %2721 = vmatprep.subr.bf16.mxu0 %v1791
  %2722 = vmatpush1.bf16.msra.mxu0 %v1790
  %2723 = vmatprep.subr.bf16.mxu0 %v1803
  %2724 = vmatpush1.bf16.msra.mxu0 %v1802
  %2725 = vmatprep.subr.bf16.mxu0 %v1815
  %2726 = vmatpush1.bf16.msra.mxu0 %v1814
  %2727 = vmatprep.subr.bf16.mxu0 %v1827
  %2728 = vmatpush1.bf16.msra.mxu0 %v1826
  %2729 = vmatprep.subr.bf16.mxu0 %v1839
  %2730 = vmatpush1.bf16.msra.mxu0 %v1838
  %2731 = vmatprep.subr.bf16.mxu0 0
  %2732 = vmatpush1.bf16.msra.mxu0 0
  %2733 = vmatprep.subr.bf16.mxu0 0
  %2734 = vmatpush1.bf16.msra.mxu0 0
  %2735 = vmatprep.subr.bf16.mxu0 0
  %2736 = vmatpush1.bf16.msra.mxu0 0
  %2737 = vmatprep.subr.bf16.mxu0 0
  %2738 = vmatpush1.bf16.msra.mxu0 0
  %2739 = vmatprep.subr.bf16.mxu0 0
  %2740 = vmatpush1.bf16.msra.mxu0 0
  %2741 = vmatprep.subr.bf16.mxu0 0
  %2742 = vmatpush1.bf16.msra.mxu0 0
  %2743 = vmatprep.subr.bf16.mxu0 0
  %2744 = vmatpush1.bf16.msra.mxu0 0
  %2745 = vmatprep.subr.bf16.mxu0 0
  %2746 = vmatpush1.bf16.msra.mxu0 0
  %2747 = vmatprep.mubr.bf16.mxu0 0
  %2748 = vmatmul.mubr.bf16.gmra.mrb[0].mxu0 %v602
  %v2749 = vpop.f32.mrb[0].mxu0
  %v2750 = vadd.f32 %v2557, %v2749
  %v2751 = vpop.f32.mrb[0].mxu0
  %v2752 = vadd.f32 %v2559, %v2751
  %v2753 = vpop.f32.mrb[0].mxu0
  %v2754 = vadd.f32 %v2561, %v2753
  %v2755 = vpop.f32.mrb[0].mxu0
  %v2756 = vadd.f32 %v2563, %v2755
  %2757 = vmatprep.mubr.bf16.mxu0 0
  %2758 = vmatmul.mubr.bf16.gmra.mrb[0].mxu0 %v605
  %v2759 = vpop.f32.mrb[0].mxu0
  %v2760 = vadd.f32 %v2567, %v2759
  %v2761 = vpop.f32.mrb[0].mxu0
  %v2762 = vadd.f32 %v2569, %v2761
  %v2763 = vpop.f32.mrb[0].mxu0
  %v2764 = vadd.f32 %v2571, %v2763
  %v2765 = vpop.f32.mrb[0].mxu0
  %v2766 = vadd.f32 %v2573, %v2765
  %2767 = vmatprep.mubr.bf16.mxu0 0
  %2768 = vmatmul.mubr.bf16.gmra.mrb[0].mxu0 %v608
  %v2769 = vpop.f32.mrb[0].mxu0
  %v2770 = vadd.f32 %v2577, %v2769
  %v2771 = vpop.f32.mrb[0].mxu0
  %v2772 = vadd.f32 %v2579, %v2771
  %v2773 = vpop.f32.mrb[0].mxu0
  %v2774 = vadd.f32 %v2581, %v2773
  %v2775 = vpop.f32.mrb[0].mxu0
  %v2776 = vadd.f32 %v2583, %v2775
  %2777 = vmatprep.mubr.bf16.mxu0 0
  %2778 = vmatmul.mubr.bf16.gmra.mrb[0].mxu0 %v611
  %v2779 = vpop.f32.mrb[0].mxu0
  %v2780 = vadd.f32 %v2587, %v2779
  %v2781 = vpop.f32.mrb[0].mxu0
  %v2782 = vadd.f32 %v2589, %v2781
  %v2783 = vpop.f32.mrb[0].mxu0
  %v2784 = vadd.f32 %v2591, %v2783
  %v2785 = vpop.f32.mrb[0].mxu0
  %v2786 = vadd.f32 %v2593, %v2785
  %2787 = vmatprep.mubr.bf16.mxu0 0
  %2788 = vmatmul.mubr.bf16.gmra.mrb[0].mxu0 %v614
  %v2789 = vpop.f32.mrb[0].mxu0
  %v2790 = vadd.f32 %v2597, %v2789
  %v2791 = vpop.f32.mrb[0].mxu0
  %v2792 = vadd.f32 %v2599, %v2791
  %v2793 = vpop.f32.mrb[0].mxu0
  %v2794 = vadd.f32 %v2601, %v2793
  %v2795 = vpop.f32.mrb[0].mxu0
  %v2796 = vadd.f32 %v2603, %v2795
  %2797 = vmatprep.mubr.bf16.mxu0 0
  %2798 = vmatmul.mubr.bf16.gmra.mrb[0].mxu0 %v617
  %v2799 = vpop.f32.mrb[0].mxu0
  %v2800 = vadd.f32 %v2607, %v2799
  %v2801 = vpop.f32.mrb[0].mxu0
  %v2802 = vadd.f32 %v2609, %v2801
  %v2803 = vpop.f32.mrb[0].mxu0
  %v2804 = vadd.f32 %v2611, %v2803
  %v2805 = vpop.f32.mrb[0].mxu0
  %v2806 = vadd.f32 %v2613, %v2805
  %2807 = vmatprep.mubr.bf16.mxu0 0
  %2808 = vmatmul.mubr.bf16.gmra.mrb[0].mxu0 %v620
  %v2809 = vpop.f32.mrb[0].mxu0
  %v2810 = vadd.f32 %v2617, %v2809
  %v2811 = vpop.f32.mrb[0].mxu0
  %v2812 = vadd.f32 %v2619, %v2811
  %v2813 = vpop.f32.mrb[0].mxu0
  %v2814 = vadd.f32 %v2621, %v2813
  %v2815 = vpop.f32.mrb[0].mxu0
  %v2816 = vadd.f32 %v2623, %v2815
  %2817 = vmatprep.mubr.bf16.mxu0 0
  %2818 = vmatmul.mubr.bf16.gmra.mrb[0].mxu0 %v623
  %v2819 = vpop.f32.mrb[0].mxu0
  %v2820 = vadd.f32 %v2627, %v2819
  %v2821 = vpop.f32.mrb[0].mxu0
  %v2822 = vadd.f32 %v2629, %v2821
  %v2823 = vpop.f32.mrb[0].mxu0
  %v2824 = vadd.f32 %v2631, %v2823
  %v2825 = vpop.f32.mrb[0].mxu0
  %v2826 = vadd.f32 %v2633, %v2825
  %2827 = vmatprep.mubr.bf16.mxu0 0
  %2828 = vmatmul.mubr.bf16.gmra.mrb[0].mxu0 %v626
  %v2829 = vpop.f32.mrb[0].mxu0
  %v2830 = vadd.f32 %v2637, %v2829
  %v2831 = vpop.f32.mrb[0].mxu0
  %v2832 = vadd.f32 %v2639, %v2831
  %v2833 = vpop.f32.mrb[0].mxu0
  %v2834 = vadd.f32 %v2641, %v2833
  %v2835 = vpop.f32.mrb[0].mxu0
  %v2836 = vadd.f32 %v2643, %v2835
  %2837 = vmatprep.mubr.bf16.mxu0 0
  %2838 = vmatmul.mubr.bf16.gmra.mrb[0].mxu0 %v629
  %v2839 = vpop.f32.mrb[0].mxu0
  %v2840 = vadd.f32 %v2647, %v2839
  %v2841 = vpop.f32.mrb[0].mxu0
  %v2842 = vadd.f32 %v2649, %v2841
  %v2843 = vpop.f32.mrb[0].mxu0
  %v2844 = vadd.f32 %v2651, %v2843
  %v2845 = vpop.f32.mrb[0].mxu0
  %v2846 = vadd.f32 %v2653, %v2845
  %2847 = vmatprep.mubr.bf16.mxu0 0
  %2848 = vmatmul.mubr.bf16.gmra.mrb[0].mxu0 %v632
  %v2849 = vpop.f32.mrb[0].mxu0
  %v2850 = vadd.f32 %v2657, %v2849
  %v2851 = vpop.f32.mrb[0].mxu0
  %v2852 = vadd.f32 %v2659, %v2851
  %v2853 = vpop.f32.mrb[0].mxu0
  %v2854 = vadd.f32 %v2661, %v2853
  %v2855 = vpop.f32.mrb[0].mxu0
  %v2856 = vadd.f32 %v2663, %v2855
  %2857 = vmatprep.mubr.bf16.mxu0 0
  %2858 = vmatmul.mubr.bf16.gmra.mrb[0].mxu0 %v635
  %v2859 = vpop.f32.mrb[0].mxu0
  %v2860 = vadd.f32 %v2667, %v2859
  %v2861 = vpop.f32.mrb[0].mxu0
  %v2862 = vadd.f32 %v2669, %v2861
  %v2863 = vpop.f32.mrb[0].mxu0
  %v2864 = vadd.f32 %v2671, %v2863
  %v2865 = vpop.f32.mrb[0].mxu0
  %v2866 = vadd.f32 %v2673, %v2865
  %2867 = vmatprep.mubr.bf16.mxu0 0
  %2868 = vmatmul.mubr.bf16.gmra.mrb[0].mxu0 %v638
  %v2869 = vpop.f32.mrb[0].mxu0
  %v2870 = vadd.f32 %v2677, %v2869
  %v2871 = vpop.f32.mrb[0].mxu0
  %v2872 = vadd.f32 %v2679, %v2871
  %v2873 = vpop.f32.mrb[0].mxu0
  %v2874 = vadd.f32 %v2681, %v2873
  %v2875 = vpop.f32.mrb[0].mxu0
  %v2876 = vadd.f32 %v2683, %v2875
  %2877 = vmatprep.mubr.bf16.mxu0 0
  %2878 = vmatmul.mubr.bf16.gmra.mrb[0].mxu0 %v641
  %v2879 = vpop.f32.mrb[0].mxu0
  %v2880 = vadd.f32 %v2687, %v2879
  %v2881 = vpop.f32.mrb[0].mxu0
  %v2882 = vadd.f32 %v2689, %v2881
  %v2883 = vpop.f32.mrb[0].mxu0
  %v2884 = vadd.f32 %v2691, %v2883
  %v2885 = vpop.f32.mrb[0].mxu0
  %v2886 = vadd.f32 %v2693, %v2885
  %2887 = vmatprep.mubr.bf16.mxu0 0
  %2888 = vmatmul.mubr.bf16.gmra.mrb[0].mxu0 %v644
  %v2889 = vpop.f32.mrb[0].mxu0
  %v2890 = vadd.f32 %v2697, %v2889
  %v2891 = vpop.f32.mrb[0].mxu0
  %v2892 = vadd.f32 %v2699, %v2891
  %v2893 = vpop.f32.mrb[0].mxu0
  %v2894 = vadd.f32 %v2701, %v2893
  %v2895 = vpop.f32.mrb[0].mxu0
  %v2896 = vadd.f32 %v2703, %v2895
  %2897 = vmatprep.mubr.bf16.mxu0 0
  %2898 = vmatmul.mubr.bf16.gmra.mrb[0].mxu0 %v647
  %v2899 = vpop.f32.mrb[0].mxu0
  %v2900 = vadd.f32 %v2707, %v2899
  %v2901 = vpop.f32.mrb[0].mxu0
  %v2902 = vadd.f32 %v2709, %v2901
  %v2903 = vpop.f32.mrb[0].mxu0
  %v2904 = vadd.f32 %v2711, %v2903
  %v2905 = vpop.f32.mrb[0].mxu0
  %v2906 = vadd.f32 %v2713, %v2905
  %2907 = vdwg.mxu0
  %2908 = vmatprep.subr.bf16.mxu0 %v1565
  %2909 = vmatpush1.bf16.msra.mxu0 %v1564
  %2910 = vmatprep.subr.bf16.mxu0 %v1577
  %2911 = vmatpush1.bf16.msra.mxu0 %v1576
  %2912 = vmatprep.subr.bf16.mxu0 %v1589
  %2913 = vmatpush1.bf16.msra.mxu0 %v1588
  %2914 = vmatprep.subr.bf16.mxu0 %v1601
  %2915 = vmatpush1.bf16.msra.mxu0 %v1600
  %2916 = vmatprep.subr.bf16.mxu0 %v1613
  %2917 = vmatpush1.bf16.msra.mxu0 %v1612
  %2918 = vmatprep.subr.bf16.mxu0 %v1625
  %2919 = vmatpush1.bf16.msra.mxu0 %v1624
  %2920 = vmatprep.subr.bf16.mxu0 %v1637
  %2921 = vmatpush1.bf16.msra.mxu0 %v1636
  %2922 = vmatprep.subr.bf16.mxu0 %v1649
  %2923 = vmatpush1.bf16.msra.mxu0 %v1648
  %2924 = vmatprep.subr.bf16.mxu0 %v1661
  %2925 = vmatpush1.bf16.msra.mxu0 %v1660
  %2926 = vmatprep.subr.bf16.mxu0 %v1673
  %2927 = vmatpush1.bf16.msra.mxu0 %v1672
  %2928 = vmatprep.subr.bf16.mxu0 %v1685
  %2929 = vmatpush1.bf16.msra.mxu0 %v1684
  %2930 = vmatprep.subr.bf16.mxu0 %v1697
  %2931 = vmatpush1.bf16.msra.mxu0 %v1696
  %2932 = vmatprep.subr.bf16.mxu0 %v1709
  %2933 = vmatpush1.bf16.msra.mxu0 %v1708
  %2934 = vmatprep.subr.bf16.mxu0 %v1721
  %2935 = vmatpush1.bf16.msra.mxu0 %v1720
  %2936 = vmatprep.subr.bf16.mxu0 %v1733
  %2937 = vmatpush1.bf16.msra.mxu0 %v1732
  %2938 = vmatprep.subr.bf16.mxu0 %v1745
  %2939 = vmatpush1.bf16.msra.mxu0 %v1744
  %2940 = vmatprep.mubr.bf16.mxu0 %v601
  %2941 = vmatmul.mubr.bf16.gmra.mrb[0].mxu0 %v600
  %v2942 = vpop.f32.mrb[0].mxu0
  %v2943 = vadd.f32 %v399, %v2942
  %v2944 = vpop.f32.mrb[0].mxu0
  %v2945 = vadd.f32 %v403, %v2944
  %v2946 = vpop.f32.mrb[0].mxu0
  %v2947 = vadd.f32 %v399, %v2946
  %v2948 = vpop.f32.mrb[0].mxu0
  %v2949 = vadd.f32 %v403, %v2948
  %2950 = vmatprep.mubr.bf16.mxu0 %v604
  %2951 = vmatmul.mubr.bf16.gmra.mrb[0].mxu0 %v603
  %v2952 = vpop.f32.mrb[0].mxu0
  %v2953 = vadd.f32 %v399, %v2952
  %v2954 = vpop.f32.mrb[0].mxu0
  %v2955 = vadd.f32 %v403, %v2954
  %v2956 = vpop.f32.mrb[0].mxu0
  %v2957 = vadd.f32 %v399, %v2956
  %v2958 = vpop.f32.mrb[0].mxu0
  %v2959 = vadd.f32 %v403, %v2958
  %2960 = vmatprep.mubr.bf16.mxu0 %v607
  %2961 = vmatmul.mubr.bf16.gmra.mrb[0].mxu0 %v606
  %v2962 = vpop.f32.mrb[0].mxu0
  %v2963 = vadd.f32 %v399, %v2962
  %v2964 = vpop.f32.mrb[0].mxu0
  %v2965 = vadd.f32 %v403, %v2964
  %v2966 = vpop.f32.mrb[0].mxu0
  %v2967 = vadd.f32 %v399, %v2966
  %v2968 = vpop.f32.mrb[0].mxu0
  %v2969 = vadd.f32 %v403, %v2968
  %2970 = vmatprep.mubr.bf16.mxu0 %v610
  %2971 = vmatmul.mubr.bf16.gmra.mrb[0].mxu0 %v609
  %v2972 = vpop.f32.mrb[0].mxu0
  %v2973 = vadd.f32 %v399, %v2972
  %v2974 = vpop.f32.mrb[0].mxu0
  %v2975 = vadd.f32 %v403, %v2974
  %v2976 = vpop.f32.mrb[0].mxu0
  %v2977 = vadd.f32 %v399, %v2976
  %v2978 = vpop.f32.mrb[0].mxu0
  %v2979 = vadd.f32 %v403, %v2978
  %2980 = vmatprep.mubr.bf16.mxu0 %v613
  %2981 = vmatmul.mubr.bf16.gmra.mrb[0].mxu0 %v612
  %v2982 = vpop.f32.mrb[0].mxu0
  %v2983 = vadd.f32 %v399, %v2982
  %v2984 = vpop.f32.mrb[0].mxu0
  %v2985 = vadd.f32 %v403, %v2984
  %v2986 = vpop.f32.mrb[0].mxu0
  %v2987 = vadd.f32 %v399, %v2986
  %v2988 = vpop.f32.mrb[0].mxu0
  %v2989 = vadd.f32 %v403, %v2988
  %2990 = vmatprep.mubr.bf16.mxu0 %v616
  %2991 = vmatmul.mubr.bf16.gmra.mrb[0].mxu0 %v615
  %v2992 = vpop.f32.mrb[0].mxu0
  %v2993 = vadd.f32 %v399, %v2992
  %v2994 = vpop.f32.mrb[0].mxu0
  %v2995 = vadd.f32 %v403, %v2994
  %v2996 = vpop.f32.mrb[0].mxu0
  %v2997 = vadd.f32 %v399, %v2996
  %v2998 = vpop.f32.mrb[0].mxu0
  %v2999 = vadd.f32 %v403, %v2998
  %3000 = vmatprep.mubr.bf16.mxu0 %v619
  %3001 = vmatmul.mubr.bf16.gmra.mrb[0].mxu0 %v618
  %v3002 = vpop.f32.mrb[0].mxu0
  %v3003 = vadd.f32 %v399, %v3002
  %v3004 = vpop.f32.mrb[0].mxu0
  %v3005 = vadd.f32 %v403, %v3004
  %v3006 = vpop.f32.mrb[0].mxu0
  %v3007 = vadd.f32 %v399, %v3006
  %v3008 = vpop.f32.mrb[0].mxu0
  %v3009 = vadd.f32 %v403, %v3008
  %3010 = vmatprep.mubr.bf16.mxu0 %v622
  %3011 = vmatmul.mubr.bf16.gmra.mrb[0].mxu0 %v621
  %v3012 = vpop.f32.mrb[0].mxu0
  %v3013 = vadd.f32 %v399, %v3012
  %v3014 = vpop.f32.mrb[0].mxu0
  %v3015 = vadd.f32 %v403, %v3014
  %v3016 = vpop.f32.mrb[0].mxu0
  %v3017 = vadd.f32 %v399, %v3016
  %v3018 = vpop.f32.mrb[0].mxu0
  %v3019 = vadd.f32 %v403, %v3018
  %3020 = vmatprep.mubr.bf16.mxu0 %v625
  %3021 = vmatmul.mubr.bf16.gmra.mrb[0].mxu0 %v624
  %v3022 = vpop.f32.mrb[0].mxu0
  %v3023 = vadd.f32 %v399, %v3022
  %v3024 = vpop.f32.mrb[0].mxu0
  %v3025 = vadd.f32 %v403, %v3024
  %v3026 = vpop.f32.mrb[0].mxu0
  %v3027 = vadd.f32 %v399, %v3026
  %v3028 = vpop.f32.mrb[0].mxu0
  %v3029 = vadd.f32 %v403, %v3028
  %3030 = vmatprep.mubr.bf16.mxu0 %v628
  %3031 = vmatmul.mubr.bf16.gmra.mrb[0].mxu0 %v627
  %v3032 = vpop.f32.mrb[0].mxu0
  %v3033 = vadd.f32 %v399, %v3032
  %v3034 = vpop.f32.mrb[0].mxu0
  %v3035 = vadd.f32 %v403, %v3034
  %v3036 = vpop.f32.mrb[0].mxu0
  %v3037 = vadd.f32 %v399, %v3036
  %v3038 = vpop.f32.mrb[0].mxu0
  %v3039 = vadd.f32 %v403, %v3038
  %3040 = vmatprep.mubr.bf16.mxu0 %v631
  %3041 = vmatmul.mubr.bf16.gmra.mrb[0].mxu0 %v630
  %v3042 = vpop.f32.mrb[0].mxu0
  %v3043 = vadd.f32 %v399, %v3042
  %v3044 = vpop.f32.mrb[0].mxu0
  %v3045 = vadd.f32 %v403, %v3044
  %v3046 = vpop.f32.mrb[0].mxu0
  %v3047 = vadd.f32 %v399, %v3046
  %v3048 = vpop.f32.mrb[0].mxu0
  %v3049 = vadd.f32 %v403, %v3048
  %3050 = vmatprep.mubr.bf16.mxu0 %v634
  %3051 = vmatmul.mubr.bf16.gmra.mrb[0].mxu0 %v633
  %v3052 = vpop.f32.mrb[0].mxu0
  %v3053 = vadd.f32 %v399, %v3052
  %v3054 = vpop.f32.mrb[0].mxu0
  %v3055 = vadd.f32 %v403, %v3054
  %v3056 = vpop.f32.mrb[0].mxu0
  %v3057 = vadd.f32 %v399, %v3056
  %v3058 = vpop.f32.mrb[0].mxu0
  %v3059 = vadd.f32 %v403, %v3058
  %3060 = vmatprep.mubr.bf16.mxu0 %v637
  %3061 = vmatmul.mubr.bf16.gmra.mrb[0].mxu0 %v636
  %v3062 = vpop.f32.mrb[0].mxu0
  %v3063 = vadd.f32 %v399, %v3062
  %v3064 = vpop.f32.mrb[0].mxu0
  %v3065 = vadd.f32 %v403, %v3064
  %v3066 = vpop.f32.mrb[0].mxu0
  %v3067 = vadd.f32 %v399, %v3066
  %v3068 = vpop.f32.mrb[0].mxu0
  %v3069 = vadd.f32 %v403, %v3068
  %3070 = vmatprep.mubr.bf16.mxu0 %v640
  %3071 = vmatmul.mubr.bf16.gmra.mrb[0].mxu0 %v639
  %v3072 = vpop.f32.mrb[0].mxu0
  %v3073 = vadd.f32 %v399, %v3072
  %v3074 = vpop.f32.mrb[0].mxu0
  %v3075 = vadd.f32 %v403, %v3074
  %v3076 = vpop.f32.mrb[0].mxu0
  %v3077 = vadd.f32 %v399, %v3076
  %v3078 = vpop.f32.mrb[0].mxu0
  %v3079 = vadd.f32 %v403, %v3078
  %3080 = vmatprep.mubr.bf16.mxu0 %v643
  %3081 = vmatmul.mubr.bf16.gmra.mrb[0].mxu0 %v642
  %v3082 = vpop.f32.mrb[0].mxu0
  %v3083 = vadd.f32 %v399, %v3082
  %v3084 = vpop.f32.mrb[0].mxu0
  %v3085 = vadd.f32 %v403, %v3084
  %v3086 = vpop.f32.mrb[0].mxu0
  %v3087 = vadd.f32 %v399, %v3086
  %v3088 = vpop.f32.mrb[0].mxu0
  %v3089 = vadd.f32 %v403, %v3088
  %3090 = vmatprep.mubr.bf16.mxu0 %v646
  %3091 = vmatmul.mubr.bf16.gmra.mrb[0].mxu0 %v645
  %v3092 = vpop.f32.mrb[0].mxu0
  %v3093 = vadd.f32 %v399, %v3092
  %v3094 = vpop.f32.mrb[0].mxu0
  %v3095 = vadd.f32 %v403, %v3094
  %v3096 = vpop.f32.mrb[0].mxu0
  %v3097 = vadd.f32 %v399, %v3096
  %v3098 = vpop.f32.mrb[0].mxu0
  %v3099 = vadd.f32 %v403, %v3098
  %3100 = vdwg.mxu0
  %3101 = vmatprep.subr.bf16.mxu0 %v1757
  %3102 = vmatpush1.bf16.msra.mxu0 %v1756
  %3103 = vmatprep.subr.bf16.mxu0 %v1769
  %3104 = vmatpush1.bf16.msra.mxu0 %v1768
  %3105 = vmatprep.subr.bf16.mxu0 %v1781
  %3106 = vmatpush1.bf16.msra.mxu0 %v1780
  %3107 = vmatprep.subr.bf16.mxu0 %v1793
  %3108 = vmatpush1.bf16.msra.mxu0 %v1792
  %3109 = vmatprep.subr.bf16.mxu0 %v1805
  %3110 = vmatpush1.bf16.msra.mxu0 %v1804
  %3111 = vmatprep.subr.bf16.mxu0 %v1817
  %3112 = vmatpush1.bf16.msra.mxu0 %v1816
  %3113 = vmatprep.subr.bf16.mxu0 %v1829
  %3114 = vmatpush1.bf16.msra.mxu0 %v1828
  %3115 = vmatprep.subr.bf16.mxu0 %v1841
  %3116 = vmatpush1.bf16.msra.mxu0 %v1840
  %3117 = vmatprep.subr.bf16.mxu0 0
  %3118 = vmatpush1.bf16.msra.mxu0 0
  %3119 = vmatprep.subr.bf16.mxu0 0
  %3120 = vmatpush1.bf16.msra.mxu0 0
  %3121 = vmatprep.subr.bf16.mxu0 0
  %3122 = vmatpush1.bf16.msra.mxu0 0
  %3123 = vmatprep.subr.bf16.mxu0 0
  %3124 = vmatpush1.bf16.msra.mxu0 0
  %3125 = vmatprep.subr.bf16.mxu0 0
  %3126 = vmatpush1.bf16.msra.mxu0 0
  %3127 = vmatprep.subr.bf16.mxu0 0
  %3128 = vmatpush1.bf16.msra.mxu0 0
  %3129 = vmatprep.subr.bf16.mxu0 0
  %3130 = vmatpush1.bf16.msra.mxu0 0
  %3131 = vmatprep.subr.bf16.mxu0 0
  %3132 = vmatpush1.bf16.msra.mxu0 0
  %3133 = vmatprep.mubr.bf16.mxu0 0
  %3134 = vmatmul.mubr.bf16.gmra.mrb[0].mxu0 %v602
  %v3135 = vpop.f32.mrb[0].mxu0
  %v3136 = vadd.f32 %v2943, %v3135
  %v3137 = vpop.f32.mrb[0].mxu0
  %v3138 = vadd.f32 %v2945, %v3137
  %v3139 = vpop.f32.mrb[0].mxu0
  %v3140 = vadd.f32 %v2947, %v3139
  %v3141 = vpop.f32.mrb[0].mxu0
  %v3142 = vadd.f32 %v2949, %v3141
  %3143 = vmatprep.mubr.bf16.mxu0 0
  %3144 = vmatmul.mubr.bf16.gmra.mrb[0].mxu0 %v605
  %v3145 = vpop.f32.mrb[0].mxu0
  %v3146 = vadd.f32 %v2953, %v3145
  %v3147 = vpop.f32.mrb[0].mxu0
  %v3148 = vadd.f32 %v2955, %v3147
  %v3149 = vpop.f32.mrb[0].mxu0
  %v3150 = vadd.f32 %v2957, %v3149
  %v3151 = vpop.f32.mrb[0].mxu0
  %v3152 = vadd.f32 %v2959, %v3151
  %3153 = vmatprep.mubr.bf16.mxu0 0
  %3154 = vmatmul.mubr.bf16.gmra.mrb[0].mxu0 %v608
  %v3155 = vpop.f32.mrb[0].mxu0
  %v3156 = vadd.f32 %v2963, %v3155
  %v3157 = vpop.f32.mrb[0].mxu0
  %v3158 = vadd.f32 %v2965, %v3157
  %v3159 = vpop.f32.mrb[0].mxu0
  %v3160 = vadd.f32 %v2967, %v3159
  %v3161 = vpop.f32.mrb[0].mxu0
  %v3162 = vadd.f32 %v2969, %v3161
  %3163 = vmatprep.mubr.bf16.mxu0 0
  %3164 = vmatmul.mubr.bf16.gmra.mrb[0].mxu0 %v611
  %v3165 = vpop.f32.mrb[0].mxu0
  %v3166 = vadd.f32 %v2973, %v3165
  %v3167 = vpop.f32.mrb[0].mxu0
  %v3168 = vadd.f32 %v2975, %v3167
  %v3169 = vpop.f32.mrb[0].mxu0
  %v3170 = vadd.f32 %v2977, %v3169
  %v3171 = vpop.f32.mrb[0].mxu0
  %v3172 = vadd.f32 %v2979, %v3171
  %3173 = vmatprep.mubr.bf16.mxu0 0
  %3174 = vmatmul.mubr.bf16.gmra.mrb[0].mxu0 %v614
  %v3175 = vpop.f32.mrb[0].mxu0
  %v3176 = vadd.f32 %v2983, %v3175
  %v3177 = vpop.f32.mrb[0].mxu0
  %v3178 = vadd.f32 %v2985, %v3177
  %v3179 = vpop.f32.mrb[0].mxu0
  %v3180 = vadd.f32 %v2987, %v3179
  %v3181 = vpop.f32.mrb[0].mxu0
  %v3182 = vadd.f32 %v2989, %v3181
  %3183 = vmatprep.mubr.bf16.mxu0 0
  %3184 = vmatmul.mubr.bf16.gmra.mrb[0].mxu0 %v617
  %v3185 = vpop.f32.mrb[0].mxu0
  %v3186 = vadd.f32 %v2993, %v3185
  %v3187 = vpop.f32.mrb[0].mxu0
  %v3188 = vadd.f32 %v2995, %v3187
  %v3189 = vpop.f32.mrb[0].mxu0
  %v3190 = vadd.f32 %v2997, %v3189
  %v3191 = vpop.f32.mrb[0].mxu0
  %v3192 = vadd.f32 %v2999, %v3191
  %3193 = vmatprep.mubr.bf16.mxu0 0
  %3194 = vmatmul.mubr.bf16.gmra.mrb[0].mxu0 %v620
  %v3195 = vpop.f32.mrb[0].mxu0
  %v3196 = vadd.f32 %v3003, %v3195
  %v3197 = vpop.f32.mrb[0].mxu0
  %v3198 = vadd.f32 %v3005, %v3197
  %v3199 = vpop.f32.mrb[0].mxu0
  %v3200 = vadd.f32 %v3007, %v3199
  %v3201 = vpop.f32.mrb[0].mxu0
  %v3202 = vadd.f32 %v3009, %v3201
  %3203 = vmatprep.mubr.bf16.mxu0 0
  %3204 = vmatmul.mubr.bf16.gmra.mrb[0].mxu0 %v623
  %v3205 = vpop.f32.mrb[0].mxu0
  %v3206 = vadd.f32 %v3013, %v3205
  %v3207 = vpop.f32.mrb[0].mxu0
  %v3208 = vadd.f32 %v3015, %v3207
  %v3209 = vpop.f32.mrb[0].mxu0
  %v3210 = vadd.f32 %v3017, %v3209
  %v3211 = vpop.f32.mrb[0].mxu0
  %v3212 = vadd.f32 %v3019, %v3211
  %3213 = vmatprep.mubr.bf16.mxu0 0
  %3214 = vmatmul.mubr.bf16.gmra.mrb[0].mxu0 %v626
  %v3215 = vpop.f32.mrb[0].mxu0
  %v3216 = vadd.f32 %v3023, %v3215
  %v3217 = vpop.f32.mrb[0].mxu0
  %v3218 = vadd.f32 %v3025, %v3217
  %v3219 = vpop.f32.mrb[0].mxu0
  %v3220 = vadd.f32 %v3027, %v3219
  %v3221 = vpop.f32.mrb[0].mxu0
  %v3222 = vadd.f32 %v3029, %v3221
  %3223 = vmatprep.mubr.bf16.mxu0 0
  %3224 = vmatmul.mubr.bf16.gmra.mrb[0].mxu0 %v629
  %v3225 = vpop.f32.mrb[0].mxu0
  %v3226 = vadd.f32 %v3033, %v3225
  %v3227 = vpop.f32.mrb[0].mxu0
  %v3228 = vadd.f32 %v3035, %v3227
  %v3229 = vpop.f32.mrb[0].mxu0
  %v3230 = vadd.f32 %v3037, %v3229
  %v3231 = vpop.f32.mrb[0].mxu0
  %v3232 = vadd.f32 %v3039, %v3231
  %3233 = vmatprep.mubr.bf16.mxu0 0
  %3234 = vmatmul.mubr.bf16.gmra.mrb[0].mxu0 %v632
  %v3235 = vpop.f32.mrb[0].mxu0
  %v3236 = vadd.f32 %v3043, %v3235
  %v3237 = vpop.f32.mrb[0].mxu0
  %v3238 = vadd.f32 %v3045, %v3237
  %v3239 = vpop.f32.mrb[0].mxu0
  %v3240 = vadd.f32 %v3047, %v3239
  %v3241 = vpop.f32.mrb[0].mxu0
  %v3242 = vadd.f32 %v3049, %v3241
  %3243 = vmatprep.mubr.bf16.mxu0 0
  %3244 = vmatmul.mubr.bf16.gmra.mrb[0].mxu0 %v635
  %v3245 = vpop.f32.mrb[0].mxu0
  %v3246 = vadd.f32 %v3053, %v3245
  %v3247 = vpop.f32.mrb[0].mxu0
  %v3248 = vadd.f32 %v3055, %v3247
  %v3249 = vpop.f32.mrb[0].mxu0
  %v3250 = vadd.f32 %v3057, %v3249
  %v3251 = vpop.f32.mrb[0].mxu0
  %v3252 = vadd.f32 %v3059, %v3251
  %3253 = vmatprep.mubr.bf16.mxu0 0
  %3254 = vmatmul.mubr.bf16.gmra.mrb[0].mxu0 %v638
  %v3255 = vpop.f32.mrb[0].mxu0
  %v3256 = vadd.f32 %v3063, %v3255
  %v3257 = vpop.f32.mrb[0].mxu0
  %v3258 = vadd.f32 %v3065, %v3257
  %v3259 = vpop.f32.mrb[0].mxu0
  %v3260 = vadd.f32 %v3067, %v3259
  %v3261 = vpop.f32.mrb[0].mxu0
  %v3262 = vadd.f32 %v3069, %v3261
  %3263 = vmatprep.mubr.bf16.mxu0 0
  %3264 = vmatmul.mubr.bf16.gmra.mrb[0].mxu0 %v641
  %v3265 = vpop.f32.mrb[0].mxu0
  %v3266 = vadd.f32 %v3073, %v3265
  %v3267 = vpop.f32.mrb[0].mxu0
  %v3268 = vadd.f32 %v3075, %v3267
  %v3269 = vpop.f32.mrb[0].mxu0
  %v3270 = vadd.f32 %v3077, %v3269
  %v3271 = vpop.f32.mrb[0].mxu0
  %v3272 = vadd.f32 %v3079, %v3271
  %3273 = vmatprep.mubr.bf16.mxu0 0
  %3274 = vmatmul.mubr.bf16.gmra.mrb[0].mxu0 %v644
  %v3275 = vpop.f32.mrb[0].mxu0
  %v3276 = vadd.f32 %v3083, %v3275
  %v3277 = vpop.f32.mrb[0].mxu0
  %v3278 = vadd.f32 %v3085, %v3277
  %v3279 = vpop.f32.mrb[0].mxu0
  %v3280 = vadd.f32 %v3087, %v3279
  %v3281 = vpop.f32.mrb[0].mxu0
  %v3282 = vadd.f32 %v3089, %v3281
  %3283 = vmatprep.mubr.bf16.mxu0 0
  %3284 = vmatmul.mubr.bf16.gmra.mrb[0].mxu0 %v647
  %v3285 = vpop.f32.mrb[0].mxu0
  %v3286 = vadd.f32 %v3093, %v3285
  %v3287 = vpop.f32.mrb[0].mxu0
  %v3288 = vadd.f32 %v3095, %v3287
  %v3289 = vpop.f32.mrb[0].mxu0
  %v3290 = vadd.f32 %v3097, %v3289
  %v3291 = vpop.f32.mrb[0].mxu0
  %v3292 = vadd.f32 %v3099, %v3291
  %3293 = vdwg.mxu0
  %3294 = vmatprep.subr.bf16.mxu0 %v1567
  %3295 = vmatpush1.bf16.msra.mxu0 %v1566
  %3296 = vmatprep.subr.bf16.mxu0 %v1579
  %3297 = vmatpush1.bf16.msra.mxu0 %v1578
  %3298 = vmatprep.subr.bf16.mxu0 %v1591
  %3299 = vmatpush1.bf16.msra.mxu0 %v1590
  %3300 = vmatprep.subr.bf16.mxu0 %v1603
  %3301 = vmatpush1.bf16.msra.mxu0 %v1602
  %3302 = vmatprep.subr.bf16.mxu0 %v1615
  %3303 = vmatpush1.bf16.msra.mxu0 %v1614
  %3304 = vmatprep.subr.bf16.mxu0 %v1627
  %3305 = vmatpush1.bf16.msra.mxu0 %v1626
  %3306 = vmatprep.subr.bf16.mxu0 %v1639
  %3307 = vmatpush1.bf16.msra.mxu0 %v1638
  %3308 = vmatprep.subr.bf16.mxu0 %v1651
  %3309 = vmatpush1.bf16.msra.mxu0 %v1650
  %3310 = vmatprep.subr.bf16.mxu0 %v1663
  %3311 = vmatpush1.bf16.msra.mxu0 %v1662
  %3312 = vmatprep.subr.bf16.mxu0 %v1675
  %3313 = vmatpush1.bf16.msra.mxu0 %v1674
  %3314 = vmatprep.subr.bf16.mxu0 %v1687
  %3315 = vmatpush1.bf16.msra.mxu0 %v1686
  %3316 = vmatprep.subr.bf16.mxu0 %v1699
  %3317 = vmatpush1.bf16.msra.mxu0 %v1698
  %3318 = vmatprep.subr.bf16.mxu0 %v1711
  %3319 = vmatpush1.bf16.msra.mxu0 %v1710
  %3320 = vmatprep.subr.bf16.mxu0 %v1723
  %3321 = vmatpush1.bf16.msra.mxu0 %v1722
  %3322 = vmatprep.subr.bf16.mxu0 %v1735
  %3323 = vmatpush1.bf16.msra.mxu0 %v1734
  %3324 = vmatprep.subr.bf16.mxu0 %v1747
  %3325 = vmatpush1.bf16.msra.mxu0 %v1746
  %3326 = vmatprep.mubr.bf16.mxu0 %v601
  %3327 = vmatmul.mubr.bf16.gmra.mrb[0].mxu0 %v600
  %v3328 = vpop.f32.mrb[0].mxu0
  %v3329 = vadd.f32 %v407, %v3328
  %v3330 = vpop.f32.mrb[0].mxu0
  %v3331 = vadd.f32 %v411, %v3330
  %v3332 = vpop.f32.mrb[0].mxu0
  %v3333 = vadd.f32 %v407, %v3332
  %v3334 = vpop.f32.mrb[0].mxu0
  %v3335 = vadd.f32 %v411, %v3334
  %3336 = vmatprep.mubr.bf16.mxu0 %v604
  %3337 = vmatmul.mubr.bf16.gmra.mrb[0].mxu0 %v603
  %v3338 = vpop.f32.mrb[0].mxu0
  %v3339 = vadd.f32 %v407, %v3338
  %v3340 = vpop.f32.mrb[0].mxu0
  %v3341 = vadd.f32 %v411, %v3340
  %v3342 = vpop.f32.mrb[0].mxu0
  %v3343 = vadd.f32 %v407, %v3342
  %v3344 = vpop.f32.mrb[0].mxu0
  %v3345 = vadd.f32 %v411, %v3344
  %3346 = vmatprep.mubr.bf16.mxu0 %v607
  %3347 = vmatmul.mubr.bf16.gmra.mrb[0].mxu0 %v606
  %v3348 = vpop.f32.mrb[0].mxu0
  %v3349 = vadd.f32 %v407, %v3348
  %v3350 = vpop.f32.mrb[0].mxu0
  %v3351 = vadd.f32 %v411, %v3350
  %v3352 = vpop.f32.mrb[0].mxu0
  %v3353 = vadd.f32 %v407, %v3352
  %v3354 = vpop.f32.mrb[0].mxu0
  %v3355 = vadd.f32 %v411, %v3354
  %3356 = vmatprep.mubr.bf16.mxu0 %v610
  %3357 = vmatmul.mubr.bf16.gmra.mrb[0].mxu0 %v609
  %v3358 = vpop.f32.mrb[0].mxu0
  %v3359 = vadd.f32 %v407, %v3358
  %v3360 = vpop.f32.mrb[0].mxu0
  %v3361 = vadd.f32 %v411, %v3360
  %v3362 = vpop.f32.mrb[0].mxu0
  %v3363 = vadd.f32 %v407, %v3362
  %v3364 = vpop.f32.mrb[0].mxu0
  %v3365 = vadd.f32 %v411, %v3364
  %3366 = vmatprep.mubr.bf16.mxu0 %v613
  %3367 = vmatmul.mubr.bf16.gmra.mrb[0].mxu0 %v612
  %v3368 = vpop.f32.mrb[0].mxu0
  %v3369 = vadd.f32 %v407, %v3368
  %v3370 = vpop.f32.mrb[0].mxu0
  %v3371 = vadd.f32 %v411, %v3370
  %v3372 = vpop.f32.mrb[0].mxu0
  %v3373 = vadd.f32 %v407, %v3372
  %v3374 = vpop.f32.mrb[0].mxu0
  %v3375 = vadd.f32 %v411, %v3374
  %3376 = vmatprep.mubr.bf16.mxu0 %v616
  %3377 = vmatmul.mubr.bf16.gmra.mrb[0].mxu0 %v615
  %v3378 = vpop.f32.mrb[0].mxu0
  %v3379 = vadd.f32 %v407, %v3378
  %v3380 = vpop.f32.mrb[0].mxu0
  %v3381 = vadd.f32 %v411, %v3380
  %v3382 = vpop.f32.mrb[0].mxu0
  %v3383 = vadd.f32 %v407, %v3382
  %v3384 = vpop.f32.mrb[0].mxu0
  %v3385 = vadd.f32 %v411, %v3384
  %3386 = vmatprep.mubr.bf16.mxu0 %v619
  %3387 = vmatmul.mubr.bf16.gmra.mrb[0].mxu0 %v618
  %v3388 = vpop.f32.mrb[0].mxu0
  %v3389 = vadd.f32 %v407, %v3388
  %v3390 = vpop.f32.mrb[0].mxu0
  %v3391 = vadd.f32 %v411, %v3390
  %v3392 = vpop.f32.mrb[0].mxu0
  %v3393 = vadd.f32 %v407, %v3392
  %v3394 = vpop.f32.mrb[0].mxu0
  %v3395 = vadd.f32 %v411, %v3394
  %3396 = vmatprep.mubr.bf16.mxu0 %v622
  %3397 = vmatmul.mubr.bf16.gmra.mrb[0].mxu0 %v621
  %v3398 = vpop.f32.mrb[0].mxu0
  %v3399 = vadd.f32 %v407, %v3398
  %v3400 = vpop.f32.mrb[0].mxu0
  %v3401 = vadd.f32 %v411, %v3400
  %v3402 = vpop.f32.mrb[0].mxu0
  %v3403 = vadd.f32 %v407, %v3402
  %v3404 = vpop.f32.mrb[0].mxu0
  %v3405 = vadd.f32 %v411, %v3404
  %3406 = vmatprep.mubr.bf16.mxu0 %v625
  %3407 = vmatmul.mubr.bf16.gmra.mrb[0].mxu0 %v624
  %v3408 = vpop.f32.mrb[0].mxu0
  %v3409 = vadd.f32 %v407, %v3408
  %v3410 = vpop.f32.mrb[0].mxu0
  %v3411 = vadd.f32 %v411, %v3410
  %v3412 = vpop.f32.mrb[0].mxu0
  %v3413 = vadd.f32 %v407, %v3412
  %v3414 = vpop.f32.mrb[0].mxu0
  %v3415 = vadd.f32 %v411, %v3414
  %3416 = vmatprep.mubr.bf16.mxu0 %v628
  %3417 = vmatmul.mubr.bf16.gmra.mrb[0].mxu0 %v627
  %v3418 = vpop.f32.mrb[0].mxu0
  %v3419 = vadd.f32 %v407, %v3418
  %v3420 = vpop.f32.mrb[0].mxu0
  %v3421 = vadd.f32 %v411, %v3420
  %v3422 = vpop.f32.mrb[0].mxu0
  %v3423 = vadd.f32 %v407, %v3422
  %v3424 = vpop.f32.mrb[0].mxu0
  %v3425 = vadd.f32 %v411, %v3424
  %3426 = vmatprep.mubr.bf16.mxu0 %v631
  %3427 = vmatmul.mubr.bf16.gmra.mrb[0].mxu0 %v630
  %v3428 = vpop.f32.mrb[0].mxu0
  %v3429 = vadd.f32 %v407, %v3428
  %v3430 = vpop.f32.mrb[0].mxu0
  %v3431 = vadd.f32 %v411, %v3430
  %v3432 = vpop.f32.mrb[0].mxu0
  %v3433 = vadd.f32 %v407, %v3432
  %v3434 = vpop.f32.mrb[0].mxu0
  %v3435 = vadd.f32 %v411, %v3434
  %3436 = vmatprep.mubr.bf16.mxu0 %v634
  %3437 = vmatmul.mubr.bf16.gmra.mrb[0].mxu0 %v633
  %v3438 = vpop.f32.mrb[0].mxu0
  %v3439 = vadd.f32 %v407, %v3438
  %v3440 = vpop.f32.mrb[0].mxu0
  %v3441 = vadd.f32 %v411, %v3440
  %v3442 = vpop.f32.mrb[0].mxu0
  %v3443 = vadd.f32 %v407, %v3442
  %v3444 = vpop.f32.mrb[0].mxu0
  %v3445 = vadd.f32 %v411, %v3444
  %3446 = vmatprep.mubr.bf16.mxu0 %v637
  %3447 = vmatmul.mubr.bf16.gmra.mrb[0].mxu0 %v636
  %v3448 = vpop.f32.mrb[0].mxu0
  %v3449 = vadd.f32 %v407, %v3448
  %v3450 = vpop.f32.mrb[0].mxu0
  %v3451 = vadd.f32 %v411, %v3450
  %v3452 = vpop.f32.mrb[0].mxu0
  %v3453 = vadd.f32 %v407, %v3452
  %v3454 = vpop.f32.mrb[0].mxu0
  %v3455 = vadd.f32 %v411, %v3454
  %3456 = vmatprep.mubr.bf16.mxu0 %v640
  %3457 = vmatmul.mubr.bf16.gmra.mrb[0].mxu0 %v639
  %v3458 = vpop.f32.mrb[0].mxu0
  %v3459 = vadd.f32 %v407, %v3458
  %v3460 = vpop.f32.mrb[0].mxu0
  %v3461 = vadd.f32 %v411, %v3460
  %v3462 = vpop.f32.mrb[0].mxu0
  %v3463 = vadd.f32 %v407, %v3462
  %v3464 = vpop.f32.mrb[0].mxu0
  %v3465 = vadd.f32 %v411, %v3464
  %3466 = vmatprep.mubr.bf16.mxu0 %v643
  %3467 = vmatmul.mubr.bf16.gmra.mrb[0].mxu0 %v642
  %v3468 = vpop.f32.mrb[0].mxu0
  %v3469 = vadd.f32 %v407, %v3468
  %v3470 = vpop.f32.mrb[0].mxu0
  %v3471 = vadd.f32 %v411, %v3470
  %v3472 = vpop.f32.mrb[0].mxu0
  %v3473 = vadd.f32 %v407, %v3472
  %v3474 = vpop.f32.mrb[0].mxu0
  %v3475 = vadd.f32 %v411, %v3474
  %3476 = vmatprep.mubr.bf16.mxu0 %v646
  %3477 = vmatmul.mubr.bf16.gmra.mrb[0].mxu0 %v645
  %v3478 = vpop.f32.mrb[0].mxu0
  %v3479 = vadd.f32 %v407, %v3478
  %v3480 = vpop.f32.mrb[0].mxu0
  %v3481 = vadd.f32 %v411, %v3480
  %v3482 = vpop.f32.mrb[0].mxu0
  %v3483 = vadd.f32 %v407, %v3482
  %v3484 = vpop.f32.mrb[0].mxu0
  %v3485 = vadd.f32 %v411, %v3484
  %3486 = vdwg.mxu0
  %3487 = vmatprep.subr.bf16.mxu0 %v1759
  %3488 = vmatpush1.bf16.msra.mxu0 %v1758
  %3489 = vmatprep.subr.bf16.mxu0 %v1771
  %3490 = vmatpush1.bf16.msra.mxu0 %v1770
  %3491 = vmatprep.subr.bf16.mxu0 %v1783
  %3492 = vmatpush1.bf16.msra.mxu0 %v1782
  %3493 = vmatprep.subr.bf16.mxu0 %v1795
  %3494 = vmatpush1.bf16.msra.mxu0 %v1794
  %3495 = vmatprep.subr.bf16.mxu0 %v1807
  %3496 = vmatpush1.bf16.msra.mxu0 %v1806
  %3497 = vmatprep.subr.bf16.mxu0 %v1819
  %3498 = vmatpush1.bf16.msra.mxu0 %v1818
  %3499 = vmatprep.subr.bf16.mxu0 %v1831
  %3500 = vmatpush1.bf16.msra.mxu0 %v1830
  %3501 = vmatprep.subr.bf16.mxu0 %v1843
  %3502 = vmatpush1.bf16.msra.mxu0 %v1842
  %3503 = vmatprep.subr.bf16.mxu0 0
  %3504 = vmatpush1.bf16.msra.mxu0 0
  %3505 = vmatprep.subr.bf16.mxu0 0
  %3506 = vmatpush1.bf16.msra.mxu0 0
  %3507 = vmatprep.subr.bf16.mxu0 0
  %3508 = vmatpush1.bf16.msra.mxu0 0
  %3509 = vmatprep.subr.bf16.mxu0 0
  %3510 = vmatpush1.bf16.msra.mxu0 0
  %3511 = vmatprep.subr.bf16.mxu0 0
  %3512 = vmatpush1.bf16.msra.mxu0 0
  %3513 = vmatprep.subr.bf16.mxu0 0
  %3514 = vmatpush1.bf16.msra.mxu0 0
  %3515 = vmatprep.subr.bf16.mxu0 0
  %3516 = vmatpush1.bf16.msra.mxu0 0
  %3517 = vmatprep.subr.bf16.mxu0 0
  %3518 = vmatpush1.bf16.msra.mxu0 0
  %3519 = vmatprep.mubr.bf16.mxu0 0
  %3520 = vmatmul.mubr.bf16.gmra.mrb[0].mxu0 %v602
  %v3521 = vpop.f32.mrb[0].mxu0
  %v3522 = vadd.f32 %v3329, %v3521
  %v3523 = vpop.f32.mrb[0].mxu0
  %v3524 = vadd.f32 %v3331, %v3523
  %v3525 = vpop.f32.mrb[0].mxu0
  %v3526 = vadd.f32 %v3333, %v3525
  %v3527 = vpop.f32.mrb[0].mxu0
  %v3528 = vadd.f32 %v3335, %v3527
  %3529 = vmatprep.mubr.bf16.mxu0 0
  %3530 = vmatmul.mubr.bf16.gmra.mrb[0].mxu0 %v605
  %v3531 = vpop.f32.mrb[0].mxu0
  %v3532 = vadd.f32 %v3339, %v3531
  %v3533 = vpop.f32.mrb[0].mxu0
  %v3534 = vadd.f32 %v3341, %v3533
  %v3535 = vpop.f32.mrb[0].mxu0
  %v3536 = vadd.f32 %v3343, %v3535
  %v3537 = vpop.f32.mrb[0].mxu0
  %v3538 = vadd.f32 %v3345, %v3537
  %3539 = vmatprep.mubr.bf16.mxu0 0
  %3540 = vmatmul.mubr.bf16.gmra.mrb[0].mxu0 %v608
  %v3541 = vpop.f32.mrb[0].mxu0
  %v3542 = vadd.f32 %v3349, %v3541
  %v3543 = vpop.f32.mrb[0].mxu0
  %v3544 = vadd.f32 %v3351, %v3543
  %v3545 = vpop.f32.mrb[0].mxu0
  %v3546 = vadd.f32 %v3353, %v3545
  %v3547 = vpop.f32.mrb[0].mxu0
  %v3548 = vadd.f32 %v3355, %v3547
  %3549 = vmatprep.mubr.bf16.mxu0 0
  %3550 = vmatmul.mubr.bf16.gmra.mrb[0].mxu0 %v611
  %v3551 = vpop.f32.mrb[0].mxu0
  %v3552 = vadd.f32 %v3359, %v3551
  %v3553 = vpop.f32.mrb[0].mxu0
  %v3554 = vadd.f32 %v3361, %v3553
  %v3555 = vpop.f32.mrb[0].mxu0
  %v3556 = vadd.f32 %v3363, %v3555
  %v3557 = vpop.f32.mrb[0].mxu0
  %v3558 = vadd.f32 %v3365, %v3557
  %3559 = vmatprep.mubr.bf16.mxu0 0
  %3560 = vmatmul.mubr.bf16.gmra.mrb[0].mxu0 %v614
  %v3561 = vpop.f32.mrb[0].mxu0
  %v3562 = vadd.f32 %v3369, %v3561
  %v3563 = vpop.f32.mrb[0].mxu0
  %v3564 = vadd.f32 %v3371, %v3563
  %v3565 = vpop.f32.mrb[0].mxu0
  %v3566 = vadd.f32 %v3373, %v3565
  %v3567 = vpop.f32.mrb[0].mxu0
  %v3568 = vadd.f32 %v3375, %v3567
  %3569 = vmatprep.mubr.bf16.mxu0 0
  %3570 = vmatmul.mubr.bf16.gmra.mrb[0].mxu0 %v617
  %v3571 = vpop.f32.mrb[0].mxu0
  %v3572 = vadd.f32 %v3379, %v3571
  %v3573 = vpop.f32.mrb[0].mxu0
  %v3574 = vadd.f32 %v3381, %v3573
  %v3575 = vpop.f32.mrb[0].mxu0
  %v3576 = vadd.f32 %v3383, %v3575
  %v3577 = vpop.f32.mrb[0].mxu0
  %v3578 = vadd.f32 %v3385, %v3577
  %3579 = vmatprep.mubr.bf16.mxu0 0
  %3580 = vmatmul.mubr.bf16.gmra.mrb[0].mxu0 %v620
  %v3581 = vpop.f32.mrb[0].mxu0
  %v3582 = vadd.f32 %v3389, %v3581
  %v3583 = vpop.f32.mrb[0].mxu0
  %v3584 = vadd.f32 %v3391, %v3583
  %v3585 = vpop.f32.mrb[0].mxu0
  %v3586 = vadd.f32 %v3393, %v3585
  %v3587 = vpop.f32.mrb[0].mxu0
  %v3588 = vadd.f32 %v3395, %v3587
  %3589 = vmatprep.mubr.bf16.mxu0 0
  %3590 = vmatmul.mubr.bf16.gmra.mrb[0].mxu0 %v623
  %v3591 = vpop.f32.mrb[0].mxu0
  %v3592 = vadd.f32 %v3399, %v3591
  %v3593 = vpop.f32.mrb[0].mxu0
  %v3594 = vadd.f32 %v3401, %v3593
  %v3595 = vpop.f32.mrb[0].mxu0
  %v3596 = vadd.f32 %v3403, %v3595
  %v3597 = vpop.f32.mrb[0].mxu0
  %v3598 = vadd.f32 %v3405, %v3597
  %3599 = vmatprep.mubr.bf16.mxu0 0
  %3600 = vmatmul.mubr.bf16.gmra.mrb[0].mxu0 %v626
  %v3601 = vpop.f32.mrb[0].mxu0
  %v3602 = vadd.f32 %v3409, %v3601
  %v3603 = vpop.f32.mrb[0].mxu0
  %v3604 = vadd.f32 %v3411, %v3603
  %v3605 = vpop.f32.mrb[0].mxu0
  %v3606 = vadd.f32 %v3413, %v3605
  %v3607 = vpop.f32.mrb[0].mxu0
  %v3608 = vadd.f32 %v3415, %v3607
  %3609 = vmatprep.mubr.bf16.mxu0 0
  %3610 = vmatmul.mubr.bf16.gmra.mrb[0].mxu0 %v629
  %v3611 = vpop.f32.mrb[0].mxu0
  %v3612 = vadd.f32 %v3419, %v3611
  %v3613 = vpop.f32.mrb[0].mxu0
  %v3614 = vadd.f32 %v3421, %v3613
  %v3615 = vpop.f32.mrb[0].mxu0
  %v3616 = vadd.f32 %v3423, %v3615
  %v3617 = vpop.f32.mrb[0].mxu0
  %v3618 = vadd.f32 %v3425, %v3617
  %3619 = vmatprep.mubr.bf16.mxu0 0
  %3620 = vmatmul.mubr.bf16.gmra.mrb[0].mxu0 %v632
  %v3621 = vpop.f32.mrb[0].mxu0
  %v3622 = vadd.f32 %v3429, %v3621
  %v3623 = vpop.f32.mrb[0].mxu0
  %v3624 = vadd.f32 %v3431, %v3623
  %v3625 = vpop.f32.mrb[0].mxu0
  %v3626 = vadd.f32 %v3433, %v3625
  %v3627 = vpop.f32.mrb[0].mxu0
  %v3628 = vadd.f32 %v3435, %v3627
  %3629 = vmatprep.mubr.bf16.mxu0 0
  %3630 = vmatmul.mubr.bf16.gmra.mrb[0].mxu0 %v635
  %v3631 = vpop.f32.mrb[0].mxu0
  %v3632 = vadd.f32 %v3439, %v3631
  %v3633 = vpop.f32.mrb[0].mxu0
  %v3634 = vadd.f32 %v3441, %v3633
  %v3635 = vpop.f32.mrb[0].mxu0
  %v3636 = vadd.f32 %v3443, %v3635
  %v3637 = vpop.f32.mrb[0].mxu0
  %v3638 = vadd.f32 %v3445, %v3637
  %3639 = vmatprep.mubr.bf16.mxu0 0
  %3640 = vmatmul.mubr.bf16.gmra.mrb[0].mxu0 %v638
  %v3641 = vpop.f32.mrb[0].mxu0
  %v3642 = vadd.f32 %v3449, %v3641
  %v3643 = vpop.f32.mrb[0].mxu0
  %v3644 = vadd.f32 %v3451, %v3643
  %v3645 = vpop.f32.mrb[0].mxu0
  %v3646 = vadd.f32 %v3453, %v3645
  %v3647 = vpop.f32.mrb[0].mxu0
  %v3648 = vadd.f32 %v3455, %v3647
  %3649 = vmatprep.mubr.bf16.mxu0 0
  %3650 = vmatmul.mubr.bf16.gmra.mrb[0].mxu0 %v641
  %v3651 = vpop.f32.mrb[0].mxu0
  %v3652 = vadd.f32 %v3459, %v3651
  %v3653 = vpop.f32.mrb[0].mxu0
  %v3654 = vadd.f32 %v3461, %v3653
  %v3655 = vpop.f32.mrb[0].mxu0
  %v3656 = vadd.f32 %v3463, %v3655
  %v3657 = vpop.f32.mrb[0].mxu0
  %v3658 = vadd.f32 %v3465, %v3657
  %3659 = vmatprep.mubr.bf16.mxu0 0
  %3660 = vmatmul.mubr.bf16.gmra.mrb[0].mxu0 %v644
  %v3661 = vpop.f32.mrb[0].mxu0
  %v3662 = vadd.f32 %v3469, %v3661
  %v3663 = vpop.f32.mrb[0].mxu0
  %v3664 = vadd.f32 %v3471, %v3663
  %v3665 = vpop.f32.mrb[0].mxu0
  %v3666 = vadd.f32 %v3473, %v3665
  %v3667 = vpop.f32.mrb[0].mxu0
  %v3668 = vadd.f32 %v3475, %v3667
  %3669 = vmatprep.mubr.bf16.mxu0 0
  %3670 = vmatmul.mubr.bf16.gmra.mrb[0].mxu0 %v647
  %v3671 = vpop.f32.mrb[0].mxu0
  %v3672 = vadd.f32 %v3479, %v3671
  %v3673 = vpop.f32.mrb[0].mxu0
  %v3674 = vadd.f32 %v3481, %v3673
  %v3675 = vpop.f32.mrb[0].mxu0
  %v3676 = vadd.f32 %v3483, %v3675
  %v3677 = vpop.f32.mrb[0].mxu0
  %v3678 = vadd.f32 %v3485, %v3677
  %3679 = vdwg.mxu0
  %3680 = vmatprep.subr.bf16.mxu0 %v1569
  %3681 = vmatpush1.bf16.msra.mxu0 %v1568
  %3682 = vmatprep.subr.bf16.mxu0 %v1581
  %3683 = vmatpush1.bf16.msra.mxu0 %v1580
  %3684 = vmatprep.subr.bf16.mxu0 %v1593
  %3685 = vmatpush1.bf16.msra.mxu0 %v1592
  %3686 = vmatprep.subr.bf16.mxu0 %v1605
  %3687 = vmatpush1.bf16.msra.mxu0 %v1604
  %3688 = vmatprep.subr.bf16.mxu0 %v1617
  %3689 = vmatpush1.bf16.msra.mxu0 %v1616
  %3690 = vmatprep.subr.bf16.mxu0 %v1629
  %3691 = vmatpush1.bf16.msra.mxu0 %v1628
  %3692 = vmatprep.subr.bf16.mxu0 %v1641
  %3693 = vmatpush1.bf16.msra.mxu0 %v1640
  %3694 = vmatprep.subr.bf16.mxu0 %v1653
  %3695 = vmatpush1.bf16.msra.mxu0 %v1652
  %3696 = vmatprep.subr.bf16.mxu0 %v1665
  %3697 = vmatpush1.bf16.msra.mxu0 %v1664
  %3698 = vmatprep.subr.bf16.mxu0 %v1677
  %3699 = vmatpush1.bf16.msra.mxu0 %v1676
  %3700 = vmatprep.subr.bf16.mxu0 %v1689
  %3701 = vmatpush1.bf16.msra.mxu0 %v1688
  %3702 = vmatprep.subr.bf16.mxu0 %v1701
  %3703 = vmatpush1.bf16.msra.mxu0 %v1700
  %3704 = vmatprep.subr.bf16.mxu0 %v1713
  %3705 = vmatpush1.bf16.msra.mxu0 %v1712
  %3706 = vmatprep.subr.bf16.mxu0 %v1725
  %3707 = vmatpush1.bf16.msra.mxu0 %v1724
  %3708 = vmatprep.subr.bf16.mxu0 %v1737
  %3709 = vmatpush1.bf16.msra.mxu0 %v1736
  %3710 = vmatprep.subr.bf16.mxu0 %v1749
  %3711 = vmatpush1.bf16.msra.mxu0 %v1748
  %3712 = vmatprep.mubr.bf16.mxu0 %v601
  %3713 = vmatmul.mubr.bf16.gmra.mrb[0].mxu0 %v600
  %v3714 = vpop.f32.mrb[0].mxu0
  %v3715 = vadd.f32 %v415, %v3714
  %v3716 = vpop.f32.mrb[0].mxu0
  %v3717 = vadd.f32 %v419, %v3716
  %v3718 = vpop.f32.mrb[0].mxu0
  %v3719 = vadd.f32 %v415, %v3718
  %v3720 = vpop.f32.mrb[0].mxu0
  %v3721 = vadd.f32 %v419, %v3720
  %3722 = vmatprep.mubr.bf16.mxu0 %v604
  %3723 = vmatmul.mubr.bf16.gmra.mrb[0].mxu0 %v603
  %v3724 = vpop.f32.mrb[0].mxu0
  %v3725 = vadd.f32 %v415, %v3724
  %v3726 = vpop.f32.mrb[0].mxu0
  %v3727 = vadd.f32 %v419, %v3726
  %v3728 = vpop.f32.mrb[0].mxu0
  %v3729 = vadd.f32 %v415, %v3728
  %v3730 = vpop.f32.mrb[0].mxu0
  %v3731 = vadd.f32 %v419, %v3730
  %3732 = vmatprep.mubr.bf16.mxu0 %v607
  %3733 = vmatmul.mubr.bf16.gmra.mrb[0].mxu0 %v606
  %v3734 = vpop.f32.mrb[0].mxu0
  %v3735 = vadd.f32 %v415, %v3734
  %v3736 = vpop.f32.mrb[0].mxu0
  %v3737 = vadd.f32 %v419, %v3736
  %v3738 = vpop.f32.mrb[0].mxu0
  %v3739 = vadd.f32 %v415, %v3738
  %v3740 = vpop.f32.mrb[0].mxu0
  %v3741 = vadd.f32 %v419, %v3740
  %3742 = vmatprep.mubr.bf16.mxu0 %v610
  %3743 = vmatmul.mubr.bf16.gmra.mrb[0].mxu0 %v609
  %v3744 = vpop.f32.mrb[0].mxu0
  %v3745 = vadd.f32 %v415, %v3744
  %v3746 = vpop.f32.mrb[0].mxu0
  %v3747 = vadd.f32 %v419, %v3746
  %v3748 = vpop.f32.mrb[0].mxu0
  %v3749 = vadd.f32 %v415, %v3748
  %v3750 = vpop.f32.mrb[0].mxu0
  %v3751 = vadd.f32 %v419, %v3750
  %3752 = vmatprep.mubr.bf16.mxu0 %v613
  %3753 = vmatmul.mubr.bf16.gmra.mrb[0].mxu0 %v612
  %v3754 = vpop.f32.mrb[0].mxu0
  %v3755 = vadd.f32 %v415, %v3754
  %v3756 = vpop.f32.mrb[0].mxu0
  %v3757 = vadd.f32 %v419, %v3756
  %v3758 = vpop.f32.mrb[0].mxu0
  %v3759 = vadd.f32 %v415, %v3758
  %v3760 = vpop.f32.mrb[0].mxu0
  %v3761 = vadd.f32 %v419, %v3760
  %3762 = vmatprep.mubr.bf16.mxu0 %v616
  %3763 = vmatmul.mubr.bf16.gmra.mrb[0].mxu0 %v615
  %v3764 = vpop.f32.mrb[0].mxu0
  %v3765 = vadd.f32 %v415, %v3764
  %v3766 = vpop.f32.mrb[0].mxu0
  %v3767 = vadd.f32 %v419, %v3766
  %v3768 = vpop.f32.mrb[0].mxu0
  %v3769 = vadd.f32 %v415, %v3768
  %v3770 = vpop.f32.mrb[0].mxu0
  %v3771 = vadd.f32 %v419, %v3770
  %3772 = vmatprep.mubr.bf16.mxu0 %v619
  %3773 = vmatmul.mubr.bf16.gmra.mrb[0].mxu0 %v618
  %v3774 = vpop.f32.mrb[0].mxu0
  %v3775 = vadd.f32 %v415, %v3774
  %v3776 = vpop.f32.mrb[0].mxu0
  %v3777 = vadd.f32 %v419, %v3776
  %v3778 = vpop.f32.mrb[0].mxu0
  %v3779 = vadd.f32 %v415, %v3778
  %v3780 = vpop.f32.mrb[0].mxu0
  %v3781 = vadd.f32 %v419, %v3780
  %3782 = vmatprep.mubr.bf16.mxu0 %v622
  %3783 = vmatmul.mubr.bf16.gmra.mrb[0].mxu0 %v621
  %v3784 = vpop.f32.mrb[0].mxu0
  %v3785 = vadd.f32 %v415, %v3784
  %v3786 = vpop.f32.mrb[0].mxu0
  %v3787 = vadd.f32 %v419, %v3786
  %v3788 = vpop.f32.mrb[0].mxu0
  %v3789 = vadd.f32 %v415, %v3788
  %v3790 = vpop.f32.mrb[0].mxu0
  %v3791 = vadd.f32 %v419, %v3790
  %3792 = vmatprep.mubr.bf16.mxu0 %v625
  %3793 = vmatmul.mubr.bf16.gmra.mrb[0].mxu0 %v624
  %v3794 = vpop.f32.mrb[0].mxu0
  %v3795 = vadd.f32 %v415, %v3794
  %v3796 = vpop.f32.mrb[0].mxu0
  %v3797 = vadd.f32 %v419, %v3796
  %v3798 = vpop.f32.mrb[0].mxu0
  %v3799 = vadd.f32 %v415, %v3798
  %v3800 = vpop.f32.mrb[0].mxu0
  %v3801 = vadd.f32 %v419, %v3800
  %3802 = vmatprep.mubr.bf16.mxu0 %v628
  %3803 = vmatmul.mubr.bf16.gmra.mrb[0].mxu0 %v627
  %v3804 = vpop.f32.mrb[0].mxu0
  %v3805 = vadd.f32 %v415, %v3804
  %v3806 = vpop.f32.mrb[0].mxu0
  %v3807 = vadd.f32 %v419, %v3806
  %v3808 = vpop.f32.mrb[0].mxu0
  %v3809 = vadd.f32 %v415, %v3808
  %v3810 = vpop.f32.mrb[0].mxu0
  %v3811 = vadd.f32 %v419, %v3810
  %3812 = vmatprep.mubr.bf16.mxu0 %v631
  %3813 = vmatmul.mubr.bf16.gmra.mrb[0].mxu0 %v630
  %v3814 = vpop.f32.mrb[0].mxu0
  %v3815 = vadd.f32 %v415, %v3814
  %v3816 = vpop.f32.mrb[0].mxu0
  %v3817 = vadd.f32 %v419, %v3816
  %v3818 = vpop.f32.mrb[0].mxu0
  %v3819 = vadd.f32 %v415, %v3818
  %v3820 = vpop.f32.mrb[0].mxu0
  %v3821 = vadd.f32 %v419, %v3820
  %3822 = vmatprep.mubr.bf16.mxu0 %v634
  %3823 = vmatmul.mubr.bf16.gmra.mrb[0].mxu0 %v633
  %v3824 = vpop.f32.mrb[0].mxu0
  %v3825 = vadd.f32 %v415, %v3824
  %v3826 = vpop.f32.mrb[0].mxu0
  %v3827 = vadd.f32 %v419, %v3826
  %v3828 = vpop.f32.mrb[0].mxu0
  %v3829 = vadd.f32 %v415, %v3828
  %v3830 = vpop.f32.mrb[0].mxu0
  %v3831 = vadd.f32 %v419, %v3830
  %3832 = vmatprep.mubr.bf16.mxu0 %v637
  %3833 = vmatmul.mubr.bf16.gmra.mrb[0].mxu0 %v636
  %v3834 = vpop.f32.mrb[0].mxu0
  %v3835 = vadd.f32 %v415, %v3834
  %v3836 = vpop.f32.mrb[0].mxu0
  %v3837 = vadd.f32 %v419, %v3836
  %v3838 = vpop.f32.mrb[0].mxu0
  %v3839 = vadd.f32 %v415, %v3838
  %v3840 = vpop.f32.mrb[0].mxu0
  %v3841 = vadd.f32 %v419, %v3840
  %3842 = vmatprep.mubr.bf16.mxu0 %v640
  %3843 = vmatmul.mubr.bf16.gmra.mrb[0].mxu0 %v639
  %v3844 = vpop.f32.mrb[0].mxu0
  %v3845 = vadd.f32 %v415, %v3844
  %v3846 = vpop.f32.mrb[0].mxu0
  %v3847 = vadd.f32 %v419, %v3846
  %v3848 = vpop.f32.mrb[0].mxu0
  %v3849 = vadd.f32 %v415, %v3848
  %v3850 = vpop.f32.mrb[0].mxu0
  %v3851 = vadd.f32 %v419, %v3850
  %3852 = vmatprep.mubr.bf16.mxu0 %v643
  %3853 = vmatmul.mubr.bf16.gmra.mrb[0].mxu0 %v642
  %v3854 = vpop.f32.mrb[0].mxu0
  %v3855 = vadd.f32 %v415, %v3854
  %v3856 = vpop.f32.mrb[0].mxu0
  %v3857 = vadd.f32 %v419, %v3856
  %v3858 = vpop.f32.mrb[0].mxu0
  %v3859 = vadd.f32 %v415, %v3858
  %v3860 = vpop.f32.mrb[0].mxu0
  %v3861 = vadd.f32 %v419, %v3860
  %3862 = vmatprep.mubr.bf16.mxu0 %v646
  %3863 = vmatmul.mubr.bf16.gmra.mrb[0].mxu0 %v645
  %v3864 = vpop.f32.mrb[0].mxu0
  %v3865 = vadd.f32 %v415, %v3864
  %v3866 = vpop.f32.mrb[0].mxu0
  %v3867 = vadd.f32 %v419, %v3866
  %v3868 = vpop.f32.mrb[0].mxu0
  %v3869 = vadd.f32 %v415, %v3868
  %v3870 = vpop.f32.mrb[0].mxu0
  %v3871 = vadd.f32 %v419, %v3870
  %3872 = vdwg.mxu0
  %3873 = vmatprep.subr.bf16.mxu0 %v1761
  %3874 = vmatpush1.bf16.msra.mxu0 %v1760
  %3875 = vmatprep.subr.bf16.mxu0 %v1773
  %3876 = vmatpush1.bf16.msra.mxu0 %v1772
  %3877 = vmatprep.subr.bf16.mxu0 %v1785
  %3878 = vmatpush1.bf16.msra.mxu0 %v1784
  %3879 = vmatprep.subr.bf16.mxu0 %v1797
  %3880 = vmatpush1.bf16.msra.mxu0 %v1796
  %3881 = vmatprep.subr.bf16.mxu0 %v1809
  %3882 = vmatpush1.bf16.msra.mxu0 %v1808
  %3883 = vmatprep.subr.bf16.mxu0 %v1821
  %3884 = vmatpush1.bf16.msra.mxu0 %v1820
  %3885 = vmatprep.subr.bf16.mxu0 %v1833
  %3886 = vmatpush1.bf16.msra.mxu0 %v1832
  %3887 = vmatprep.subr.bf16.mxu0 %v1845
  %3888 = vmatpush1.bf16.msra.mxu0 %v1844
  %3889 = vmatprep.subr.bf16.mxu0 0
  %3890 = vmatpush1.bf16.msra.mxu0 0
  %3891 = vmatprep.subr.bf16.mxu0 0
  %3892 = vmatpush1.bf16.msra.mxu0 0
  %3893 = vmatprep.subr.bf16.mxu0 0
  %3894 = vmatpush1.bf16.msra.mxu0 0
  %3895 = vmatprep.subr.bf16.mxu0 0
  %3896 = vmatpush1.bf16.msra.mxu0 0
  %3897 = vmatprep.subr.bf16.mxu0 0
  %3898 = vmatpush1.bf16.msra.mxu0 0
  %3899 = vmatprep.subr.bf16.mxu0 0
  %3900 = vmatpush1.bf16.msra.mxu0 0
  %3901 = vmatprep.subr.bf16.mxu0 0
  %3902 = vmatpush1.bf16.msra.mxu0 0
  %3903 = vmatprep.subr.bf16.mxu0 0
  %3904 = vmatpush1.bf16.msra.mxu0 0
  %3905 = vmatprep.mubr.bf16.mxu0 0
  %3906 = vmatmul.mubr.bf16.gmra.mrb[0].mxu0 %v602
  %v3907 = vpop.f32.mrb[0].mxu0
  %v3908 = vadd.f32 %v3715, %v3907
  %v3909 = vpop.f32.mrb[0].mxu0
  %v3910 = vadd.f32 %v3717, %v3909
  %v3911 = vpop.f32.mrb[0].mxu0
  %v3912 = vadd.f32 %v3719, %v3911
  %v3913 = vpop.f32.mrb[0].mxu0
  %v3914 = vadd.f32 %v3721, %v3913
  %3915 = vmatprep.mubr.bf16.mxu0 0
  %3916 = vmatmul.mubr.bf16.gmra.mrb[0].mxu0 %v605
  %v3917 = vpop.f32.mrb[0].mxu0
  %v3918 = vadd.f32 %v3725, %v3917
  %v3919 = vpop.f32.mrb[0].mxu0
  %v3920 = vadd.f32 %v3727, %v3919
  %v3921 = vpop.f32.mrb[0].mxu0
  %v3922 = vadd.f32 %v3729, %v3921
  %v3923 = vpop.f32.mrb[0].mxu0
  %v3924 = vadd.f32 %v3731, %v3923
  %3925 = vmatprep.mubr.bf16.mxu0 0
  %3926 = vmatmul.mubr.bf16.gmra.mrb[0].mxu0 %v608
  %v3927 = vpop.f32.mrb[0].mxu0
  %v3928 = vadd.f32 %v3735, %v3927
  %v3929 = vpop.f32.mrb[0].mxu0
  %v3930 = vadd.f32 %v3737, %v3929
  %v3931 = vpop.f32.mrb[0].mxu0
  %v3932 = vadd.f32 %v3739, %v3931
  %v3933 = vpop.f32.mrb[0].mxu0
  %v3934 = vadd.f32 %v3741, %v3933
  %3935 = vmatprep.mubr.bf16.mxu0 0
  %3936 = vmatmul.mubr.bf16.gmra.mrb[0].mxu0 %v611
  %v3937 = vpop.f32.mrb[0].mxu0
  %v3938 = vadd.f32 %v3745, %v3937
  %v3939 = vpop.f32.mrb[0].mxu0
  %v3940 = vadd.f32 %v3747, %v3939
  %v3941 = vpop.f32.mrb[0].mxu0
  %v3942 = vadd.f32 %v3749, %v3941
  %v3943 = vpop.f32.mrb[0].mxu0
  %v3944 = vadd.f32 %v3751, %v3943
  %3945 = vmatprep.mubr.bf16.mxu0 0
  %3946 = vmatmul.mubr.bf16.gmra.mrb[0].mxu0 %v614
  %v3947 = vpop.f32.mrb[0].mxu0
  %v3948 = vadd.f32 %v3755, %v3947
  %v3949 = vpop.f32.mrb[0].mxu0
  %v3950 = vadd.f32 %v3757, %v3949
  %v3951 = vpop.f32.mrb[0].mxu0
  %v3952 = vadd.f32 %v3759, %v3951
  %v3953 = vpop.f32.mrb[0].mxu0
  %v3954 = vadd.f32 %v3761, %v3953
  %3955 = vmatprep.mubr.bf16.mxu0 0
  %3956 = vmatmul.mubr.bf16.gmra.mrb[0].mxu0 %v617
  %v3957 = vpop.f32.mrb[0].mxu0
  %v3958 = vadd.f32 %v3765, %v3957
  %v3959 = vpop.f32.mrb[0].mxu0
  %v3960 = vadd.f32 %v3767, %v3959
  %v3961 = vpop.f32.mrb[0].mxu0
  %v3962 = vadd.f32 %v3769, %v3961
  %v3963 = vpop.f32.mrb[0].mxu0
  %v3964 = vadd.f32 %v3771, %v3963
  %3965 = vmatprep.mubr.bf16.mxu0 0
  %3966 = vmatmul.mubr.bf16.gmra.mrb[0].mxu0 %v620
  %v3967 = vpop.f32.mrb[0].mxu0
  %v3968 = vadd.f32 %v3775, %v3967
  %v3969 = vpop.f32.mrb[0].mxu0
  %v3970 = vadd.f32 %v3777, %v3969
  %v3971 = vpop.f32.mrb[0].mxu0
  %v3972 = vadd.f32 %v3779, %v3971
  %v3973 = vpop.f32.mrb[0].mxu0
  %v3974 = vadd.f32 %v3781, %v3973
  %3975 = vmatprep.mubr.bf16.mxu0 0
  %3976 = vmatmul.mubr.bf16.gmra.mrb[0].mxu0 %v623
  %v3977 = vpop.f32.mrb[0].mxu0
  %v3978 = vadd.f32 %v3785, %v3977
  %v3979 = vpop.f32.mrb[0].mxu0
  %v3980 = vadd.f32 %v3787, %v3979
  %v3981 = vpop.f32.mrb[0].mxu0
  %v3982 = vadd.f32 %v3789, %v3981
  %v3983 = vpop.f32.mrb[0].mxu0
  %v3984 = vadd.f32 %v3791, %v3983
  %3985 = vmatprep.mubr.bf16.mxu0 0
  %3986 = vmatmul.mubr.bf16.gmra.mrb[0].mxu0 %v626
  %v3987 = vpop.f32.mrb[0].mxu0
  %v3988 = vadd.f32 %v3795, %v3987
  %v3989 = vpop.f32.mrb[0].mxu0
  %v3990 = vadd.f32 %v3797, %v3989
  %v3991 = vpop.f32.mrb[0].mxu0
  %v3992 = vadd.f32 %v3799, %v3991
  %v3993 = vpop.f32.mrb[0].mxu0
  %v3994 = vadd.f32 %v3801, %v3993
  %3995 = vmatprep.mubr.bf16.mxu0 0
  %3996 = vmatmul.mubr.bf16.gmra.mrb[0].mxu0 %v629
  %v3997 = vpop.f32.mrb[0].mxu0
  %v3998 = vadd.f32 %v3805, %v3997
  %v3999 = vpop.f32.mrb[0].mxu0
  %v4000 = vadd.f32 %v3807, %v3999
  %v4001 = vpop.f32.mrb[0].mxu0
  %v4002 = vadd.f32 %v3809, %v4001
  %v4003 = vpop.f32.mrb[0].mxu0
  %v4004 = vadd.f32 %v3811, %v4003
  %4005 = vmatprep.mubr.bf16.mxu0 0
  %4006 = vmatmul.mubr.bf16.gmra.mrb[0].mxu0 %v632
  %v4007 = vpop.f32.mrb[0].mxu0
  %v4008 = vadd.f32 %v3815, %v4007
  %v4009 = vpop.f32.mrb[0].mxu0
  %v4010 = vadd.f32 %v3817, %v4009
  %v4011 = vpop.f32.mrb[0].mxu0
  %v4012 = vadd.f32 %v3819, %v4011
  %v4013 = vpop.f32.mrb[0].mxu0
  %v4014 = vadd.f32 %v3821, %v4013
  %4015 = vmatprep.mubr.bf16.mxu0 0
  %4016 = vmatmul.mubr.bf16.gmra.mrb[0].mxu0 %v635
  %v4017 = vpop.f32.mrb[0].mxu0
  %v4018 = vadd.f32 %v3825, %v4017
  %v4019 = vpop.f32.mrb[0].mxu0
  %v4020 = vadd.f32 %v3827, %v4019
  %v4021 = vpop.f32.mrb[0].mxu0
  %v4022 = vadd.f32 %v3829, %v4021
  %v4023 = vpop.f32.mrb[0].mxu0
  %v4024 = vadd.f32 %v3831, %v4023
  %4025 = vmatprep.mubr.bf16.mxu0 0
  %4026 = vmatmul.mubr.bf16.gmra.mrb[0].mxu0 %v638
  %v4027 = vpop.f32.mrb[0].mxu0
  %v4028 = vadd.f32 %v3835, %v4027
  %v4029 = vpop.f32.mrb[0].mxu0
  %v4030 = vadd.f32 %v3837, %v4029
  %v4031 = vpop.f32.mrb[0].mxu0
  %v4032 = vadd.f32 %v3839, %v4031
  %v4033 = vpop.f32.mrb[0].mxu0
  %v4034 = vadd.f32 %v3841, %v4033
  %4035 = vmatprep.mubr.bf16.mxu0 0
  %4036 = vmatmul.mubr.bf16.gmra.mrb[0].mxu0 %v641
  %v4037 = vpop.f32.mrb[0].mxu0
  %v4038 = vadd.f32 %v3845, %v4037
  %v4039 = vpop.f32.mrb[0].mxu0
  %v4040 = vadd.f32 %v3847, %v4039
  %v4041 = vpop.f32.mrb[0].mxu0
  %v4042 = vadd.f32 %v3849, %v4041
  %v4043 = vpop.f32.mrb[0].mxu0
  %v4044 = vadd.f32 %v3851, %v4043
  %4045 = vmatprep.mubr.bf16.mxu0 0
  %4046 = vmatmul.mubr.bf16.gmra.mrb[0].mxu0 %v644
  %v4047 = vpop.f32.mrb[0].mxu0
  %v4048 = vadd.f32 %v3855, %v4047
  %v4049 = vpop.f32.mrb[0].mxu0
  %v4050 = vadd.f32 %v3857, %v4049
  %v4051 = vpop.f32.mrb[0].mxu0
  %v4052 = vadd.f32 %v3859, %v4051
  %v4053 = vpop.f32.mrb[0].mxu0
  %v4054 = vadd.f32 %v3861, %v4053
  %4055 = vmatprep.mubr.bf16.mxu0 0
  %4056 = vmatmul.mubr.bf16.gmra.mrb[0].mxu0 %v647
  %v4057 = vpop.f32.mrb[0].mxu0
  %v4058 = vadd.f32 %v3865, %v4057
  %v4059 = vpop.f32.mrb[0].mxu0
  %v4060 = vadd.f32 %v3867, %v4059
  %v4061 = vpop.f32.mrb[0].mxu0
  %v4062 = vadd.f32 %v3869, %v4061
  %v4063 = vpop.f32.mrb[0].mxu0
  %v4064 = vadd.f32 %v3871, %v4063
  %4065 = vdwg.mxu0
  %4066 = vmatprep.subr.bf16.mxu0 %v1571
  %4067 = vmatpush1.bf16.msra.mxu0 %v1570
  %4068 = vmatprep.subr.bf16.mxu0 %v1583
  %4069 = vmatpush1.bf16.msra.mxu0 %v1582
  %4070 = vmatprep.subr.bf16.mxu0 %v1595
  %4071 = vmatpush1.bf16.msra.mxu0 %v1594
  %4072 = vmatprep.subr.bf16.mxu0 %v1607
  %4073 = vmatpush1.bf16.msra.mxu0 %v1606
  %4074 = vmatprep.subr.bf16.mxu0 %v1619
  %4075 = vmatpush1.bf16.msra.mxu0 %v1618
  %4076 = vmatprep.subr.bf16.mxu0 %v1631
  %4077 = vmatpush1.bf16.msra.mxu0 %v1630
  %4078 = vmatprep.subr.bf16.mxu0 %v1643
  %4079 = vmatpush1.bf16.msra.mxu0 %v1642
  %4080 = vmatprep.subr.bf16.mxu0 %v1655
  %4081 = vmatpush1.bf16.msra.mxu0 %v1654
  %4082 = vmatprep.subr.bf16.mxu0 %v1667
  %4083 = vmatpush1.bf16.msra.mxu0 %v1666
  %4084 = vmatprep.subr.bf16.mxu0 %v1679
  %4085 = vmatpush1.bf16.msra.mxu0 %v1678
  %4086 = vmatprep.subr.bf16.mxu0 %v1691
  %4087 = vmatpush1.bf16.msra.mxu0 %v1690
  %4088 = vmatprep.subr.bf16.mxu0 %v1703
  %4089 = vmatpush1.bf16.msra.mxu0 %v1702
  %4090 = vmatprep.subr.bf16.mxu0 %v1715
  %4091 = vmatpush1.bf16.msra.mxu0 %v1714
  %4092 = vmatprep.subr.bf16.mxu0 %v1727
  %4093 = vmatpush1.bf16.msra.mxu0 %v1726
  %4094 = vmatprep.subr.bf16.mxu0 %v1739
  %4095 = vmatpush1.bf16.msra.mxu0 %v1738
  %4096 = vmatprep.subr.bf16.mxu0 %v1751
  %4097 = vmatpush1.bf16.msra.mxu0 %v1750
  %4098 = vmatprep.mubr.bf16.mxu0 %v601
  %4099 = vmatmul.mubr.bf16.gmra.mrb[0].mxu0 %v600
  %v4100 = vpop.f32.mrb[0].mxu0
  %v4101 = vadd.f32 %v423, %v4100
  %v4102 = vpop.f32.mrb[0].mxu0
  %v4103 = vadd.f32 %v427, %v4102
  %v4104 = vpop.f32.mrb[0].mxu0
  %v4105 = vadd.f32 %v423, %v4104
  %v4106 = vpop.f32.mrb[0].mxu0
  %v4107 = vadd.f32 %v427, %v4106
  %4108 = vmatprep.mubr.bf16.mxu0 %v604
  %4109 = vmatmul.mubr.bf16.gmra.mrb[0].mxu0 %v603
  %v4110 = vpop.f32.mrb[0].mxu0
  %v4111 = vadd.f32 %v423, %v4110
  %v4112 = vpop.f32.mrb[0].mxu0
  %v4113 = vadd.f32 %v427, %v4112
  %v4114 = vpop.f32.mrb[0].mxu0
  %v4115 = vadd.f32 %v423, %v4114
  %v4116 = vpop.f32.mrb[0].mxu0
  %v4117 = vadd.f32 %v427, %v4116
  %4118 = vmatprep.mubr.bf16.mxu0 %v607
  %4119 = vmatmul.mubr.bf16.gmra.mrb[0].mxu0 %v606
  %v4120 = vpop.f32.mrb[0].mxu0
  %v4121 = vadd.f32 %v423, %v4120
  %v4122 = vpop.f32.mrb[0].mxu0
  %v4123 = vadd.f32 %v427, %v4122
  %v4124 = vpop.f32.mrb[0].mxu0
  %v4125 = vadd.f32 %v423, %v4124
  %v4126 = vpop.f32.mrb[0].mxu0
  %v4127 = vadd.f32 %v427, %v4126
  %4128 = vmatprep.mubr.bf16.mxu0 %v610
  %4129 = vmatmul.mubr.bf16.gmra.mrb[0].mxu0 %v609
  %v4130 = vpop.f32.mrb[0].mxu0
  %v4131 = vadd.f32 %v423, %v4130
  %v4132 = vpop.f32.mrb[0].mxu0
  %v4133 = vadd.f32 %v427, %v4132
  %v4134 = vpop.f32.mrb[0].mxu0
  %v4135 = vadd.f32 %v423, %v4134
  %v4136 = vpop.f32.mrb[0].mxu0
  %v4137 = vadd.f32 %v427, %v4136
  %4138 = vmatprep.mubr.bf16.mxu0 %v613
  %4139 = vmatmul.mubr.bf16.gmra.mrb[0].mxu0 %v612
  %v4140 = vpop.f32.mrb[0].mxu0
  %v4141 = vadd.f32 %v423, %v4140
  %v4142 = vpop.f32.mrb[0].mxu0
  %v4143 = vadd.f32 %v427, %v4142
  %v4144 = vpop.f32.mrb[0].mxu0
  %v4145 = vadd.f32 %v423, %v4144
  %v4146 = vpop.f32.mrb[0].mxu0
  %v4147 = vadd.f32 %v427, %v4146
  %4148 = vmatprep.mubr.bf16.mxu0 %v616
  %4149 = vmatmul.mubr.bf16.gmra.mrb[0].mxu0 %v615
  %v4150 = vpop.f32.mrb[0].mxu0
  %v4151 = vadd.f32 %v423, %v4150
  %v4152 = vpop.f32.mrb[0].mxu0
  %v4153 = vadd.f32 %v427, %v4152
  %v4154 = vpop.f32.mrb[0].mxu0
  %v4155 = vadd.f32 %v423, %v4154
  %v4156 = vpop.f32.mrb[0].mxu0
  %v4157 = vadd.f32 %v427, %v4156
  %4158 = vmatprep.mubr.bf16.mxu0 %v619
  %4159 = vmatmul.mubr.bf16.gmra.mrb[0].mxu0 %v618
  %v4160 = vpop.f32.mrb[0].mxu0
  %v4161 = vadd.f32 %v423, %v4160
  %v4162 = vpop.f32.mrb[0].mxu0
  %v4163 = vadd.f32 %v427, %v4162
  %v4164 = vpop.f32.mrb[0].mxu0
  %v4165 = vadd.f32 %v423, %v4164
  %v4166 = vpop.f32.mrb[0].mxu0
  %v4167 = vadd.f32 %v427, %v4166
  %4168 = vmatprep.mubr.bf16.mxu0 %v622
  %4169 = vmatmul.mubr.bf16.gmra.mrb[0].mxu0 %v621
  %v4170 = vpop.f32.mrb[0].mxu0
  %v4171 = vadd.f32 %v423, %v4170
  %v4172 = vpop.f32.mrb[0].mxu0
  %v4173 = vadd.f32 %v427, %v4172
  %v4174 = vpop.f32.mrb[0].mxu0
  %v4175 = vadd.f32 %v423, %v4174
  %v4176 = vpop.f32.mrb[0].mxu0
  %v4177 = vadd.f32 %v427, %v4176
  %4178 = vmatprep.mubr.bf16.mxu0 %v625
  %4179 = vmatmul.mubr.bf16.gmra.mrb[0].mxu0 %v624
  %v4180 = vpop.f32.mrb[0].mxu0
  %v4181 = vadd.f32 %v423, %v4180
  %v4182 = vpop.f32.mrb[0].mxu0
  %v4183 = vadd.f32 %v427, %v4182
  %v4184 = vpop.f32.mrb[0].mxu0
  %v4185 = vadd.f32 %v423, %v4184
  %v4186 = vpop.f32.mrb[0].mxu0
  %v4187 = vadd.f32 %v427, %v4186
  %4188 = vmatprep.mubr.bf16.mxu0 %v628
  %4189 = vmatmul.mubr.bf16.gmra.mrb[0].mxu0 %v627
  %v4190 = vpop.f32.mrb[0].mxu0
  %v4191 = vadd.f32 %v423, %v4190
  %v4192 = vpop.f32.mrb[0].mxu0
  %v4193 = vadd.f32 %v427, %v4192
  %v4194 = vpop.f32.mrb[0].mxu0
  %v4195 = vadd.f32 %v423, %v4194
  %v4196 = vpop.f32.mrb[0].mxu0
  %v4197 = vadd.f32 %v427, %v4196
  %4198 = vmatprep.mubr.bf16.mxu0 %v631
  %4199 = vmatmul.mubr.bf16.gmra.mrb[0].mxu0 %v630
  %v4200 = vpop.f32.mrb[0].mxu0
  %v4201 = vadd.f32 %v423, %v4200
  %v4202 = vpop.f32.mrb[0].mxu0
  %v4203 = vadd.f32 %v427, %v4202
  %v4204 = vpop.f32.mrb[0].mxu0
  %v4205 = vadd.f32 %v423, %v4204
  %v4206 = vpop.f32.mrb[0].mxu0
  %v4207 = vadd.f32 %v427, %v4206
  %4208 = vmatprep.mubr.bf16.mxu0 %v634
  %4209 = vmatmul.mubr.bf16.gmra.mrb[0].mxu0 %v633
  %v4210 = vpop.f32.mrb[0].mxu0
  %v4211 = vadd.f32 %v423, %v4210
  %v4212 = vpop.f32.mrb[0].mxu0
  %v4213 = vadd.f32 %v427, %v4212
  %v4214 = vpop.f32.mrb[0].mxu0
  %v4215 = vadd.f32 %v423, %v4214
  %v4216 = vpop.f32.mrb[0].mxu0
  %v4217 = vadd.f32 %v427, %v4216
  %4218 = vmatprep.mubr.bf16.mxu0 %v637
  %4219 = vmatmul.mubr.bf16.gmra.mrb[0].mxu0 %v636
  %v4220 = vpop.f32.mrb[0].mxu0
  %v4221 = vadd.f32 %v423, %v4220
  %v4222 = vpop.f32.mrb[0].mxu0
  %v4223 = vadd.f32 %v427, %v4222
  %v4224 = vpop.f32.mrb[0].mxu0
  %v4225 = vadd.f32 %v423, %v4224
  %v4226 = vpop.f32.mrb[0].mxu0
  %v4227 = vadd.f32 %v427, %v4226
  %4228 = vmatprep.mubr.bf16.mxu0 %v640
  %4229 = vmatmul.mubr.bf16.gmra.mrb[0].mxu0 %v639
  %v4230 = vpop.f32.mrb[0].mxu0
  %v4231 = vadd.f32 %v423, %v4230
  %v4232 = vpop.f32.mrb[0].mxu0
  %v4233 = vadd.f32 %v427, %v4232
  %v4234 = vpop.f32.mrb[0].mxu0
  %v4235 = vadd.f32 %v423, %v4234
  %v4236 = vpop.f32.mrb[0].mxu0
  %v4237 = vadd.f32 %v427, %v4236
  %4238 = vmatprep.mubr.bf16.mxu0 %v643
  %4239 = vmatmul.mubr.bf16.gmra.mrb[0].mxu0 %v642
  %v4240 = vpop.f32.mrb[0].mxu0
  %v4241 = vadd.f32 %v423, %v4240
  %v4242 = vpop.f32.mrb[0].mxu0
  %v4243 = vadd.f32 %v427, %v4242
  %v4244 = vpop.f32.mrb[0].mxu0
  %v4245 = vadd.f32 %v423, %v4244
  %v4246 = vpop.f32.mrb[0].mxu0
  %v4247 = vadd.f32 %v427, %v4246
  %4248 = vmatprep.mubr.bf16.mxu0 %v646
  %4249 = vmatmul.mubr.bf16.gmra.mrb[0].mxu0 %v645
  %v4250 = vpop.f32.mrb[0].mxu0
  %v4251 = vadd.f32 %v423, %v4250
  %v4252 = vpop.f32.mrb[0].mxu0
  %v4253 = vadd.f32 %v427, %v4252
  %v4254 = vpop.f32.mrb[0].mxu0
  %v4255 = vadd.f32 %v423, %v4254
  %v4256 = vpop.f32.mrb[0].mxu0
  %v4257 = vadd.f32 %v427, %v4256
  %4258 = vdwg.mxu0
  %4259 = vmatprep.subr.bf16.mxu0 %v1763
  %4260 = vmatpush1.bf16.msra.mxu0 %v1762
  %4261 = vmatprep.subr.bf16.mxu0 %v1775
  %4262 = vmatpush1.bf16.msra.mxu0 %v1774
  %4263 = vmatprep.subr.bf16.mxu0 %v1787
  %4264 = vmatpush1.bf16.msra.mxu0 %v1786
  %4265 = vmatprep.subr.bf16.mxu0 %v1799
  %4266 = vmatpush1.bf16.msra.mxu0 %v1798
  %4267 = vmatprep.subr.bf16.mxu0 %v1811
  %4268 = vmatpush1.bf16.msra.mxu0 %v1810
  %4269 = vmatprep.subr.bf16.mxu0 %v1823
  %4270 = vmatpush1.bf16.msra.mxu0 %v1822
  %4271 = vmatprep.subr.bf16.mxu0 %v1835
  %4272 = vmatpush1.bf16.msra.mxu0 %v1834
  %4273 = vmatprep.subr.bf16.mxu0 %v1847
  %4274 = vmatpush1.bf16.msra.mxu0 %v1846
  %4275 = vmatprep.subr.bf16.mxu0 0
  %4276 = vmatpush1.bf16.msra.mxu0 0
  %4277 = vmatprep.subr.bf16.mxu0 0
  %4278 = vmatpush1.bf16.msra.mxu0 0
  %4279 = vmatprep.subr.bf16.mxu0 0
  %4280 = vmatpush1.bf16.msra.mxu0 0
  %4281 = vmatprep.subr.bf16.mxu0 0
  %4282 = vmatpush1.bf16.msra.mxu0 0
  %4283 = vmatprep.subr.bf16.mxu0 0
  %4284 = vmatpush1.bf16.msra.mxu0 0
  %4285 = vmatprep.subr.bf16.mxu0 0
  %4286 = vmatpush1.bf16.msra.mxu0 0
  %4287 = vmatprep.subr.bf16.mxu0 0
  %4288 = vmatpush1.bf16.msra.mxu0 0
  %4289 = vmatprep.subr.bf16.mxu0 0
  %4290 = vmatpush1.bf16.msra.mxu0 0
  %4291 = vmatprep.mubr.bf16.mxu0 0
  %4292 = vmatmul.mubr.bf16.gmra.mrb[0].mxu0 %v602
  %v4293 = vpop.f32.mrb[0].mxu0
  %v4294 = vadd.f32 %v4101, %v4293
  %v4295 = vpop.f32.mrb[0].mxu0
  %v4296 = vadd.f32 %v4103, %v4295
  %v4297 = vpop.f32.mrb[0].mxu0
  %v4298 = vadd.f32 %v4105, %v4297
  %v4299 = vpop.f32.mrb[0].mxu0
  %v4300 = vadd.f32 %v4107, %v4299
  %4301 = vmatprep.mubr.bf16.mxu0 0
  %4302 = vmatmul.mubr.bf16.gmra.mrb[0].mxu0 %v605
  %v4303 = vpop.f32.mrb[0].mxu0
  %v4304 = vadd.f32 %v4111, %v4303
  %v4305 = vpop.f32.mrb[0].mxu0
  %v4306 = vadd.f32 %v4113, %v4305
  %v4307 = vpop.f32.mrb[0].mxu0
  %v4308 = vadd.f32 %v4115, %v4307
  %v4309 = vpop.f32.mrb[0].mxu0
  %v4310 = vadd.f32 %v4117, %v4309
  %4311 = vmatprep.mubr.bf16.mxu0 0
  %4312 = vmatmul.mubr.bf16.gmra.mrb[0].mxu0 %v608
  %v4313 = vpop.f32.mrb[0].mxu0
  %v4314 = vadd.f32 %v4121, %v4313
  %v4315 = vpop.f32.mrb[0].mxu0
  %v4316 = vadd.f32 %v4123, %v4315
  %v4317 = vpop.f32.mrb[0].mxu0
  %v4318 = vadd.f32 %v4125, %v4317
  %v4319 = vpop.f32.mrb[0].mxu0
  %v4320 = vadd.f32 %v4127, %v4319
  %4321 = vmatprep.mubr.bf16.mxu0 0
  %4322 = vmatmul.mubr.bf16.gmra.mrb[0].mxu0 %v611
  %v4323 = vpop.f32.mrb[0].mxu0
  %v4324 = vadd.f32 %v4131, %v4323
  %v4325 = vpop.f32.mrb[0].mxu0
  %v4326 = vadd.f32 %v4133, %v4325
  %v4327 = vpop.f32.mrb[0].mxu0
  %v4328 = vadd.f32 %v4135, %v4327
  %v4329 = vpop.f32.mrb[0].mxu0
  %v4330 = vadd.f32 %v4137, %v4329
  %4331 = vmatprep.mubr.bf16.mxu0 0
  %4332 = vmatmul.mubr.bf16.gmra.mrb[0].mxu0 %v614
  %v4333 = vpop.f32.mrb[0].mxu0
  %v4334 = vadd.f32 %v4141, %v4333
  %v4335 = vpop.f32.mrb[0].mxu0
  %v4336 = vadd.f32 %v4143, %v4335
  %v4337 = vpop.f32.mrb[0].mxu0
  %v4338 = vadd.f32 %v4145, %v4337
  %v4339 = vpop.f32.mrb[0].mxu0
  %v4340 = vadd.f32 %v4147, %v4339
  %4341 = vmatprep.mubr.bf16.mxu0 0
  %4342 = vmatmul.mubr.bf16.gmra.mrb[0].mxu0 %v617
  %v4343 = vpop.f32.mrb[0].mxu0
  %v4344 = vadd.f32 %v4151, %v4343
  %v4345 = vpop.f32.mrb[0].mxu0
  %v4346 = vadd.f32 %v4153, %v4345
  %v4347 = vpop.f32.mrb[0].mxu0
  %v4348 = vadd.f32 %v4155, %v4347
  %v4349 = vpop.f32.mrb[0].mxu0
  %v4350 = vadd.f32 %v4157, %v4349
  %4351 = vmatprep.mubr.bf16.mxu0 0
  %4352 = vmatmul.mubr.bf16.gmra.mrb[0].mxu0 %v620
  %v4353 = vpop.f32.mrb[0].mxu0
  %v4354 = vadd.f32 %v4161, %v4353
  %v4355 = vpop.f32.mrb[0].mxu0
  %v4356 = vadd.f32 %v4163, %v4355
  %v4357 = vpop.f32.mrb[0].mxu0
  %v4358 = vadd.f32 %v4165, %v4357
  %v4359 = vpop.f32.mrb[0].mxu0
  %v4360 = vadd.f32 %v4167, %v4359
  %4361 = vmatprep.mubr.bf16.mxu0 0
  %4362 = vmatmul.mubr.bf16.gmra.mrb[0].mxu0 %v623
  %v4363 = vpop.f32.mrb[0].mxu0
  %v4364 = vadd.f32 %v4171, %v4363
  %v4365 = vpop.f32.mrb[0].mxu0
  %v4366 = vadd.f32 %v4173, %v4365
  %v4367 = vpop.f32.mrb[0].mxu0
  %v4368 = vadd.f32 %v4175, %v4367
  %v4369 = vpop.f32.mrb[0].mxu0
  %v4370 = vadd.f32 %v4177, %v4369
  %4371 = vmatprep.mubr.bf16.mxu0 0
  %4372 = vmatmul.mubr.bf16.gmra.mrb[0].mxu0 %v626
  %v4373 = vpop.f32.mrb[0].mxu0
  %v4374 = vadd.f32 %v4181, %v4373
  %v4375 = vpop.f32.mrb[0].mxu0
  %v4376 = vadd.f32 %v4183, %v4375
  %v4377 = vpop.f32.mrb[0].mxu0
  %v4378 = vadd.f32 %v4185, %v4377
  %v4379 = vpop.f32.mrb[0].mxu0
  %v4380 = vadd.f32 %v4187, %v4379
  %4381 = vmatprep.mubr.bf16.mxu0 0
  %4382 = vmatmul.mubr.bf16.gmra.mrb[0].mxu0 %v629
  %v4383 = vpop.f32.mrb[0].mxu0
  %v4384 = vadd.f32 %v4191, %v4383
  %v4385 = vpop.f32.mrb[0].mxu0
  %v4386 = vadd.f32 %v4193, %v4385
  %v4387 = vpop.f32.mrb[0].mxu0
  %v4388 = vadd.f32 %v4195, %v4387
  %v4389 = vpop.f32.mrb[0].mxu0
  %v4390 = vadd.f32 %v4197, %v4389
  %4391 = vmatprep.mubr.bf16.mxu0 0
  %4392 = vmatmul.mubr.bf16.gmra.mrb[0].mxu0 %v632
  %v4393 = vpop.f32.mrb[0].mxu0
  %v4394 = vadd.f32 %v4201, %v4393
  %v4395 = vpop.f32.mrb[0].mxu0
  %v4396 = vadd.f32 %v4203, %v4395
  %v4397 = vpop.f32.mrb[0].mxu0
  %v4398 = vadd.f32 %v4205, %v4397
  %v4399 = vpop.f32.mrb[0].mxu0
  %v4400 = vadd.f32 %v4207, %v4399
  %4401 = vmatprep.mubr.bf16.mxu0 0
  %4402 = vmatmul.mubr.bf16.gmra.mrb[0].mxu0 %v635
  %v4403 = vpop.f32.mrb[0].mxu0
  %v4404 = vadd.f32 %v4211, %v4403
  %v4405 = vpop.f32.mrb[0].mxu0
  %v4406 = vadd.f32 %v4213, %v4405
  %v4407 = vpop.f32.mrb[0].mxu0
  %v4408 = vadd.f32 %v4215, %v4407
  %v4409 = vpop.f32.mrb[0].mxu0
  %v4410 = vadd.f32 %v4217, %v4409
  %4411 = vmatprep.mubr.bf16.mxu0 0
  %4412 = vmatmul.mubr.bf16.gmra.mrb[0].mxu0 %v638
  %v4413 = vpop.f32.mrb[0].mxu0
  %v4414 = vadd.f32 %v4221, %v4413
  %v4415 = vpop.f32.mrb[0].mxu0
  %v4416 = vadd.f32 %v4223, %v4415
  %v4417 = vpop.f32.mrb[0].mxu0
  %v4418 = vadd.f32 %v4225, %v4417
  %v4419 = vpop.f32.mrb[0].mxu0
  %v4420 = vadd.f32 %v4227, %v4419
  %4421 = vmatprep.mubr.bf16.mxu0 0
  %4422 = vmatmul.mubr.bf16.gmra.mrb[0].mxu0 %v641
  %v4423 = vpop.f32.mrb[0].mxu0
  %v4424 = vadd.f32 %v4231, %v4423
  %v4425 = vpop.f32.mrb[0].mxu0
  %v4426 = vadd.f32 %v4233, %v4425
  %v4427 = vpop.f32.mrb[0].mxu0
  %v4428 = vadd.f32 %v4235, %v4427
  %v4429 = vpop.f32.mrb[0].mxu0
  %v4430 = vadd.f32 %v4237, %v4429
  %4431 = vmatprep.mubr.bf16.mxu0 0
  %4432 = vmatmul.mubr.bf16.gmra.mrb[0].mxu0 %v644
  %v4433 = vpop.f32.mrb[0].mxu0
  %v4434 = vadd.f32 %v4241, %v4433
  %v4435 = vpop.f32.mrb[0].mxu0
  %v4436 = vadd.f32 %v4243, %v4435
  %v4437 = vpop.f32.mrb[0].mxu0
  %v4438 = vadd.f32 %v4245, %v4437
  %v4439 = vpop.f32.mrb[0].mxu0
  %v4440 = vadd.f32 %v4247, %v4439
  %4441 = vmatprep.mubr.bf16.mxu0 0
  %4442 = vmatmul.mubr.bf16.gmra.mrb[0].mxu0 %v647
  %v4443 = vpop.f32.mrb[0].mxu0
  %v4444 = vadd.f32 %v4251, %v4443
  %v4445 = vpop.f32.mrb[0].mxu0
  %v4446 = vadd.f32 %v4253, %v4445
  %v4447 = vpop.f32.mrb[0].mxu0
  %v4448 = vadd.f32 %v4255, %v4447
  %v4449 = vpop.f32.mrb[0].mxu0
  %v4450 = vadd.f32 %v4257, %v4449
  %4451 = vdwg.mxu0
  %v4452 = vmax.f32 %v2364, 0.0
  %v4453 = vmax.f32 %v2366, 0.0
  %v4454 = vmax.f32 %v2750, 0.0
  %v4455 = vmax.f32 %v2752, 0.0
  %v4456 = vmax.f32 %v3136, 0.0
  %v4457 = vmax.f32 %v3138, 0.0
  %v4458 = vmax.f32 %v3522, 0.0
  %v4459 = vmax.f32 %v3524, 0.0
  %v4460 = vmax.f32 %v3908, 0.0
  %v4461 = vmax.f32 %v3910, 0.0
  %v4462 = vmax.f32 %v4294, 0.0
  %v4463 = vmax.f32 %v4296, 0.0
  %v4464 = vmax.f32 %v2368, 0.0
  %v4465 = vmax.f32 %v2370, 0.0
  %v4466 = vmax.f32 %v2754, 0.0
  %v4467 = vmax.f32 %v2756, 0.0
  %v4468 = vmax.f32 %v3140, 0.0
  %v4469 = vmax.f32 %v3142, 0.0
  %v4470 = vmax.f32 %v3526, 0.0
  %v4471 = vmax.f32 %v3528, 0.0
  %v4472 = vmax.f32 %v3912, 0.0
  %v4473 = vmax.f32 %v3914, 0.0
  %v4474 = vmax.f32 %v4298, 0.0
  %v4475 = vmax.f32 %v4300, 0.0
  %v4476 = vmax.f32 %v2374, 0.0
  %v4477 = vmax.f32 %v2376, 0.0
  %v4478 = vmax.f32 %v2760, 0.0
  %v4479 = vmax.f32 %v2762, 0.0
  %v4480 = vmax.f32 %v3146, 0.0
  %v4481 = vmax.f32 %v3148, 0.0
  %v4482 = vmax.f32 %v3532, 0.0
  %v4483 = vmax.f32 %v3534, 0.0
  %v4484 = vmax.f32 %v3918, 0.0
  %v4485 = vmax.f32 %v3920, 0.0
  %v4486 = vmax.f32 %v4304, 0.0
  %v4487 = vmax.f32 %v4306, 0.0
  %v4488 = vmax.f32 %v2378, 0.0
  %v4489 = vmax.f32 %v2380, 0.0
  %v4490 = vmax.f32 %v2764, 0.0
  %v4491 = vmax.f32 %v2766, 0.0
  %v4492 = vmax.f32 %v3150, 0.0
  %v4493 = vmax.f32 %v3152, 0.0
  %v4494 = vmax.f32 %v3536, 0.0
  %v4495 = vmax.f32 %v3538, 0.0
  %v4496 = vmax.f32 %v3922, 0.0
  %v4497 = vmax.f32 %v3924, 0.0
  %v4498 = vmax.f32 %v4308, 0.0
  %v4499 = vmax.f32 %v4310, 0.0
  %v4500 = vmax.f32 %v2384, 0.0
  %v4501 = vmax.f32 %v2386, 0.0
  %v4502 = vmax.f32 %v2770, 0.0
  %v4503 = vmax.f32 %v2772, 0.0
  %v4504 = vmax.f32 %v3156, 0.0
  %v4505 = vmax.f32 %v3158, 0.0
  %v4506 = vmax.f32 %v3542, 0.0
  %v4507 = vmax.f32 %v3544, 0.0
  %v4508 = vmax.f32 %v3928, 0.0
  %v4509 = vmax.f32 %v3930, 0.0
  %v4510 = vmax.f32 %v4314, 0.0
  %v4511 = vmax.f32 %v4316, 0.0
  %v4512 = vmax.f32 %v2388, 0.0
  %v4513 = vmax.f32 %v2390, 0.0
  %v4514 = vmax.f32 %v2774, 0.0
  %v4515 = vmax.f32 %v2776, 0.0
  %v4516 = vmax.f32 %v3160, 0.0
  %v4517 = vmax.f32 %v3162, 0.0
  %v4518 = vmax.f32 %v3546, 0.0
  %v4519 = vmax.f32 %v3548, 0.0
  %v4520 = vmax.f32 %v3932, 0.0
  %v4521 = vmax.f32 %v3934, 0.0
  %v4522 = vmax.f32 %v4318, 0.0
  %v4523 = vmax.f32 %v4320, 0.0
  %v4524 = vmax.f32 %v2394, 0.0
  %v4525 = vmax.f32 %v2396, 0.0
  %v4526 = vmax.f32 %v2780, 0.0
  %v4527 = vmax.f32 %v2782, 0.0
  %v4528 = vmax.f32 %v3166, 0.0
  %v4529 = vmax.f32 %v3168, 0.0
  %v4530 = vmax.f32 %v3552, 0.0
  %v4531 = vmax.f32 %v3554, 0.0
  %v4532 = vmax.f32 %v3938, 0.0
  %v4533 = vmax.f32 %v3940, 0.0
  %v4534 = vmax.f32 %v4324, 0.0
  %v4535 = vmax.f32 %v4326, 0.0
  %v4536 = vmax.f32 %v2398, 0.0
  %v4537 = vmax.f32 %v2400, 0.0
  %v4538 = vmax.f32 %v2784, 0.0
  %v4539 = vmax.f32 %v2786, 0.0
  %v4540 = vmax.f32 %v3170, 0.0
  %v4541 = vmax.f32 %v3172, 0.0
  %v4542 = vmax.f32 %v3556, 0.0
  %v4543 = vmax.f32 %v3558, 0.0
  %v4544 = vmax.f32 %v3942, 0.0
  %v4545 = vmax.f32 %v3944, 0.0
  %v4546 = vmax.f32 %v4328, 0.0
  %v4547 = vmax.f32 %v4330, 0.0
  %v4548 = vmax.f32 %v2404, 0.0
  %v4549 = vmax.f32 %v2406, 0.0
  %v4550 = vmax.f32 %v2790, 0.0
  %v4551 = vmax.f32 %v2792, 0.0
  %v4552 = vmax.f32 %v3176, 0.0
  %v4553 = vmax.f32 %v3178, 0.0
  %v4554 = vmax.f32 %v3562, 0.0
  %v4555 = vmax.f32 %v3564, 0.0
  %v4556 = vmax.f32 %v3948, 0.0
  %v4557 = vmax.f32 %v3950, 0.0
  %v4558 = vmax.f32 %v4334, 0.0
  %v4559 = vmax.f32 %v4336, 0.0
  %v4560 = vmax.f32 %v2408, 0.0
  %v4561 = vmax.f32 %v2410, 0.0
  %v4562 = vmax.f32 %v2794, 0.0
  %v4563 = vmax.f32 %v2796, 0.0
  %v4564 = vmax.f32 %v3180, 0.0
  %v4565 = vmax.f32 %v3182, 0.0
  %v4566 = vmax.f32 %v3566, 0.0
  %v4567 = vmax.f32 %v3568, 0.0
  %v4568 = vmax.f32 %v3952, 0.0
  %v4569 = vmax.f32 %v3954, 0.0
  %v4570 = vmax.f32 %v4338, 0.0
  %v4571 = vmax.f32 %v4340, 0.0
  %v4572 = vmax.f32 %v2414, 0.0
  %v4573 = vmax.f32 %v2416, 0.0
  %v4574 = vmax.f32 %v2800, 0.0
  %v4575 = vmax.f32 %v2802, 0.0
  %v4576 = vmax.f32 %v3186, 0.0
  %v4577 = vmax.f32 %v3188, 0.0
  %v4578 = vmax.f32 %v3572, 0.0
  %v4579 = vmax.f32 %v3574, 0.0
  %v4580 = vmax.f32 %v3958, 0.0
  %v4581 = vmax.f32 %v3960, 0.0
  %v4582 = vmax.f32 %v4344, 0.0
  %v4583 = vmax.f32 %v4346, 0.0
  %v4584 = vmax.f32 %v2418, 0.0
  %v4585 = vmax.f32 %v2420, 0.0
  %v4586 = vmax.f32 %v2804, 0.0
  %v4587 = vmax.f32 %v2806, 0.0
  %v4588 = vmax.f32 %v3190, 0.0
  %v4589 = vmax.f32 %v3192, 0.0
  %v4590 = vmax.f32 %v3576, 0.0
  %v4591 = vmax.f32 %v3578, 0.0
  %v4592 = vmax.f32 %v3962, 0.0
  %v4593 = vmax.f32 %v3964, 0.0
  %v4594 = vmax.f32 %v4348, 0.0
  %v4595 = vmax.f32 %v4350, 0.0
  %v4596 = vmax.f32 %v2424, 0.0
  %v4597 = vmax.f32 %v2426, 0.0
  %v4598 = vmax.f32 %v2810, 0.0
  %v4599 = vmax.f32 %v2812, 0.0
  %v4600 = vmax.f32 %v3196, 0.0
  %v4601 = vmax.f32 %v3198, 0.0
  %v4602 = vmax.f32 %v3582, 0.0
  %v4603 = vmax.f32 %v3584, 0.0
  %v4604 = vmax.f32 %v3968, 0.0
  %v4605 = vmax.f32 %v3970, 0.0
  %v4606 = vmax.f32 %v4354, 0.0
  %v4607 = vmax.f32 %v4356, 0.0
  %v4608 = vmax.f32 %v2428, 0.0
  %v4609 = vmax.f32 %v2430, 0.0
  %v4610 = vmax.f32 %v2814, 0.0
  %v4611 = vmax.f32 %v2816, 0.0
  %v4612 = vmax.f32 %v3200, 0.0
  %v4613 = vmax.f32 %v3202, 0.0
  %v4614 = vmax.f32 %v3586, 0.0
  %v4615 = vmax.f32 %v3588, 0.0
  %v4616 = vmax.f32 %v3972, 0.0
  %v4617 = vmax.f32 %v3974, 0.0
  %v4618 = vmax.f32 %v4358, 0.0
  %v4619 = vmax.f32 %v4360, 0.0
  %v4620 = vmax.f32 %v2434, 0.0
  %v4621 = vmax.f32 %v2436, 0.0
  %v4622 = vmax.f32 %v2820, 0.0
  %v4623 = vmax.f32 %v2822, 0.0
  %v4624 = vmax.f32 %v3206, 0.0
  %v4625 = vmax.f32 %v3208, 0.0
  %v4626 = vmax.f32 %v3592, 0.0
  %v4627 = vmax.f32 %v3594, 0.0
  %v4628 = vmax.f32 %v3978, 0.0
  %v4629 = vmax.f32 %v3980, 0.0
  %v4630 = vmax.f32 %v4364, 0.0
  %v4631 = vmax.f32 %v4366, 0.0
  %v4632 = vmax.f32 %v2438, 0.0
  %v4633 = vmax.f32 %v2440, 0.0
  %v4634 = vmax.f32 %v2824, 0.0
  %v4635 = vmax.f32 %v2826, 0.0
  %v4636 = vmax.f32 %v3210, 0.0
  %v4637 = vmax.f32 %v3212, 0.0
  %v4638 = vmax.f32 %v3596, 0.0
  %v4639 = vmax.f32 %v3598, 0.0
  %v4640 = vmax.f32 %v3982, 0.0
  %v4641 = vmax.f32 %v3984, 0.0
  %v4642 = vmax.f32 %v4368, 0.0
  %v4643 = vmax.f32 %v4370, 0.0
  %v4644 = vmax.f32 %v2444, 0.0
  %v4645 = vmax.f32 %v2446, 0.0
  %v4646 = vmax.f32 %v2830, 0.0
  %v4647 = vmax.f32 %v2832, 0.0
  %v4648 = vmax.f32 %v3216, 0.0
  %v4649 = vmax.f32 %v3218, 0.0
  %v4650 = vmax.f32 %v3602, 0.0
  %v4651 = vmax.f32 %v3604, 0.0
  %v4652 = vmax.f32 %v3988, 0.0
  %v4653 = vmax.f32 %v3990, 0.0
  %v4654 = vmax.f32 %v4374, 0.0
  %v4655 = vmax.f32 %v4376, 0.0
  %v4656 = vmax.f32 %v2448, 0.0
  %v4657 = vmax.f32 %v2450, 0.0
  %v4658 = vmax.f32 %v2834, 0.0
  %v4659 = vmax.f32 %v2836, 0.0
  %v4660 = vmax.f32 %v3220, 0.0
  %v4661 = vmax.f32 %v3222, 0.0
  %v4662 = vmax.f32 %v3606, 0.0
  %v4663 = vmax.f32 %v3608, 0.0
  %v4664 = vmax.f32 %v3992, 0.0
  %v4665 = vmax.f32 %v3994, 0.0
  %v4666 = vmax.f32 %v4378, 0.0
  %v4667 = vmax.f32 %v4380, 0.0
  %v4668 = vmax.f32 %v2454, 0.0
  %v4669 = vmax.f32 %v2456, 0.0
  %v4670 = vmax.f32 %v2840, 0.0
  %v4671 = vmax.f32 %v2842, 0.0
  %v4672 = vmax.f32 %v3226, 0.0
  %v4673 = vmax.f32 %v3228, 0.0
  %v4674 = vmax.f32 %v3612, 0.0
  %v4675 = vmax.f32 %v3614, 0.0
  %v4676 = vmax.f32 %v3998, 0.0
  %v4677 = vmax.f32 %v4000, 0.0
  %v4678 = vmax.f32 %v4384, 0.0
  %v4679 = vmax.f32 %v4386, 0.0
  %v4680 = vmax.f32 %v2458, 0.0
  %v4681 = vmax.f32 %v2460, 0.0
  %v4682 = vmax.f32 %v2844, 0.0
  %v4683 = vmax.f32 %v2846, 0.0
  %v4684 = vmax.f32 %v3230, 0.0
  %v4685 = vmax.f32 %v3232, 0.0
  %v4686 = vmax.f32 %v3616, 0.0
  %v4687 = vmax.f32 %v3618, 0.0
  %v4688 = vmax.f32 %v4002, 0.0
  %v4689 = vmax.f32 %v4004, 0.0
  %v4690 = vmax.f32 %v4388, 0.0
  %v4691 = vmax.f32 %v4390, 0.0
  %v4692 = vmax.f32 %v2464, 0.0
  %v4693 = vmax.f32 %v2466, 0.0
  %v4694 = vmax.f32 %v2850, 0.0
  %v4695 = vmax.f32 %v2852, 0.0
  %v4696 = vmax.f32 %v3236, 0.0
  %v4697 = vmax.f32 %v3238, 0.0
  %v4698 = vmax.f32 %v3622, 0.0
  %v4699 = vmax.f32 %v3624, 0.0
  %v4700 = vmax.f32 %v4008, 0.0
  %v4701 = vmax.f32 %v4010, 0.0
  %v4702 = vmax.f32 %v4394, 0.0
  %v4703 = vmax.f32 %v4396, 0.0
  %v4704 = vmax.f32 %v2468, 0.0
  %v4705 = vmax.f32 %v2470, 0.0
  %v4706 = vmax.f32 %v2854, 0.0
  %v4707 = vmax.f32 %v2856, 0.0
  %v4708 = vmax.f32 %v3240, 0.0
  %v4709 = vmax.f32 %v3242, 0.0
  %v4710 = vmax.f32 %v3626, 0.0
  %v4711 = vmax.f32 %v3628, 0.0
  %v4712 = vmax.f32 %v4012, 0.0
  %v4713 = vmax.f32 %v4014, 0.0
  %v4714 = vmax.f32 %v4398, 0.0
  %v4715 = vmax.f32 %v4400, 0.0
  %v4716 = vmax.f32 %v2474, 0.0
  %v4717 = vmax.f32 %v2476, 0.0
  %v4718 = vmax.f32 %v2860, 0.0
  %v4719 = vmax.f32 %v2862, 0.0
  %v4720 = vmax.f32 %v3246, 0.0
  %v4721 = vmax.f32 %v3248, 0.0
  %v4722 = vmax.f32 %v3632, 0.0
  %v4723 = vmax.f32 %v3634, 0.0
  %v4724 = vmax.f32 %v4018, 0.0
  %v4725 = vmax.f32 %v4020, 0.0
  %v4726 = vmax.f32 %v4404, 0.0
  %v4727 = vmax.f32 %v4406, 0.0
  %v4728 = vmax.f32 %v2478, 0.0
  %v4729 = vmax.f32 %v2480, 0.0
  %v4730 = vmax.f32 %v2864, 0.0
  %v4731 = vmax.f32 %v2866, 0.0
  %v4732 = vmax.f32 %v3250, 0.0
  %v4733 = vmax.f32 %v3252, 0.0
  %v4734 = vmax.f32 %v3636, 0.0
  %v4735 = vmax.f32 %v3638, 0.0
  %v4736 = vmax.f32 %v4022, 0.0
  %v4737 = vmax.f32 %v4024, 0.0
  %v4738 = vmax.f32 %v4408, 0.0
  %v4739 = vmax.f32 %v4410, 0.0
  %v4740 = vmax.f32 %v2484, 0.0
  %v4741 = vmax.f32 %v2486, 0.0
  %v4742 = vmax.f32 %v2870, 0.0
  %v4743 = vmax.f32 %v2872, 0.0
  %v4744 = vmax.f32 %v3256, 0.0
  %v4745 = vmax.f32 %v3258, 0.0
  %v4746 = vmax.f32 %v3642, 0.0
  %v4747 = vmax.f32 %v3644, 0.0
  %v4748 = vmax.f32 %v4028, 0.0
  %v4749 = vmax.f32 %v4030, 0.0
  %v4750 = vmax.f32 %v4414, 0.0
  %v4751 = vmax.f32 %v4416, 0.0
  %v4752 = vmax.f32 %v2488, 0.0
  %v4753 = vmax.f32 %v2490, 0.0
  %v4754 = vmax.f32 %v2874, 0.0
  %v4755 = vmax.f32 %v2876, 0.0
  %v4756 = vmax.f32 %v3260, 0.0
  %v4757 = vmax.f32 %v3262, 0.0
  %v4758 = vmax.f32 %v3646, 0.0
  %v4759 = vmax.f32 %v3648, 0.0
  %v4760 = vmax.f32 %v4032, 0.0
  %v4761 = vmax.f32 %v4034, 0.0
  %v4762 = vmax.f32 %v4418, 0.0
  %v4763 = vmax.f32 %v4420, 0.0
  %v4764 = vmax.f32 %v2494, 0.0
  %v4765 = vmax.f32 %v2496, 0.0
  %v4766 = vmax.f32 %v2880, 0.0
  %v4767 = vmax.f32 %v2882, 0.0
  %v4768 = vmax.f32 %v3266, 0.0
  %v4769 = vmax.f32 %v3268, 0.0
  %v4770 = vmax.f32 %v3652, 0.0
  %v4771 = vmax.f32 %v3654, 0.0
  %v4772 = vmax.f32 %v4038, 0.0
  %v4773 = vmax.f32 %v4040, 0.0
  %v4774 = vmax.f32 %v4424, 0.0
  %v4775 = vmax.f32 %v4426, 0.0
  %v4776 = vmax.f32 %v2498, 0.0
  %v4777 = vmax.f32 %v2500, 0.0
  %v4778 = vmax.f32 %v2884, 0.0
  %v4779 = vmax.f32 %v2886, 0.0
  %v4780 = vmax.f32 %v3270, 0.0
  %v4781 = vmax.f32 %v3272, 0.0
  %v4782 = vmax.f32 %v3656, 0.0
  %v4783 = vmax.f32 %v3658, 0.0
  %v4784 = vmax.f32 %v4042, 0.0
  %v4785 = vmax.f32 %v4044, 0.0
  %v4786 = vmax.f32 %v4428, 0.0
  %v4787 = vmax.f32 %v4430, 0.0
  %v4788 = vmax.f32 %v2504, 0.0
  %v4789 = vmax.f32 %v2506, 0.0
  %v4790 = vmax.f32 %v2890, 0.0
  %v4791 = vmax.f32 %v2892, 0.0
  %v4792 = vmax.f32 %v3276, 0.0
  %v4793 = vmax.f32 %v3278, 0.0
  %v4794 = vmax.f32 %v3662, 0.0
  %v4795 = vmax.f32 %v3664, 0.0
  %v4796 = vmax.f32 %v4048, 0.0
  %v4797 = vmax.f32 %v4050, 0.0
  %v4798 = vmax.f32 %v4434, 0.0
  %v4799 = vmax.f32 %v4436, 0.0
  %v4800 = vmax.f32 %v2508, 0.0
  %v4801 = vmax.f32 %v2510, 0.0
  %v4802 = vmax.f32 %v2894, 0.0
  %v4803 = vmax.f32 %v2896, 0.0
  %v4804 = vmax.f32 %v3280, 0.0
  %v4805 = vmax.f32 %v3282, 0.0
  %v4806 = vmax.f32 %v3666, 0.0
  %v4807 = vmax.f32 %v3668, 0.0
  %v4808 = vmax.f32 %v4052, 0.0
  %v4809 = vmax.f32 %v4054, 0.0
  %v4810 = vmax.f32 %v4438, 0.0
  %v4811 = vmax.f32 %v4440, 0.0
  %v4812 = vmax.f32 %v2514, 0.0
  %v4813 = vmax.f32 %v2516, 0.0
  %v4814 = vmax.f32 %v2900, 0.0
  %v4815 = vmax.f32 %v2902, 0.0
  %v4816 = vmax.f32 %v3286, 0.0
  %v4817 = vmax.f32 %v3288, 0.0
  %v4818 = vmax.f32 %v3672, 0.0
  %v4819 = vmax.f32 %v3674, 0.0
  %v4820 = vmax.f32 %v4058, 0.0
  %v4821 = vmax.f32 %v4060, 0.0
  %v4822 = vmax.f32 %v4444, 0.0
  %v4823 = vmax.f32 %v4446, 0.0
  %v4824 = vmax.f32 %v2518, 0.0
  %v4825 = vmax.f32 %v2520, 0.0
  %v4826 = vmax.f32 %v2904, 0.0
  %v4827 = vmax.f32 %v2906, 0.0
  %v4828 = vmax.f32 %v3290, 0.0
  %v4829 = vmax.f32 %v3292, 0.0
  %v4830 = vmax.f32 %v3676, 0.0
  %v4831 = vmax.f32 %v3678, 0.0
  %v4832 = vmax.f32 %v4062, 0.0
  %v4833 = vmax.f32 %v4064, 0.0
  %v4834 = vmax.f32 %v4448, 0.0
  %v4835 = vmax.f32 %v4450, 0.0
  %v4836 = vpack.c.bf16 %v4464, %v4452
  %v4837 = vpack.c.bf16 %v4465, %v4453
  %v4838 = vpack.c.bf16 %v4466, %v4454
  %v4839 = vpack.c.bf16 %v4467, %v4455
  %v4840 = vpack.c.bf16 %v4468, %v4456
  %v4841 = vpack.c.bf16 %v4469, %v4457
  %v4842 = vpack.c.bf16 %v4470, %v4458
  %v4843 = vpack.c.bf16 %v4471, %v4459
  %v4844 = vpack.c.bf16 %v4472, %v4460
  %v4845 = vpack.c.bf16 %v4473, %v4461
  %v4846 = vpack.c.bf16 %v4474, %v4462
  %v4847 = vpack.c.bf16 %v4475, %v4463
  %v4848 = vpack.c.bf16 %v4488, %v4476
  %v4849 = vpack.c.bf16 %v4489, %v4477
  %v4850 = vpack.c.bf16 %v4490, %v4478
  %v4851 = vpack.c.bf16 %v4491, %v4479
  %v4852 = vpack.c.bf16 %v4492, %v4480
  %v4853 = vpack.c.bf16 %v4493, %v4481
  %v4854 = vpack.c.bf16 %v4494, %v4482
  %v4855 = vpack.c.bf16 %v4495, %v4483
  %v4856 = vpack.c.bf16 %v4496, %v4484
  %v4857 = vpack.c.bf16 %v4497, %v4485
  %v4858 = vpack.c.bf16 %v4498, %v4486
  %v4859 = vpack.c.bf16 %v4499, %v4487
  %v4860 = vpack.c.bf16 %v4512, %v4500
  %v4861 = vpack.c.bf16 %v4513, %v4501
  %v4862 = vpack.c.bf16 %v4514, %v4502
  %v4863 = vpack.c.bf16 %v4515, %v4503
  %v4864 = vpack.c.bf16 %v4516, %v4504
  %v4865 = vpack.c.bf16 %v4517, %v4505
  %v4866 = vpack.c.bf16 %v4518, %v4506
  %v4867 = vpack.c.bf16 %v4519, %v4507
  %v4868 = vpack.c.bf16 %v4520, %v4508
  %v4869 = vpack.c.bf16 %v4521, %v4509
  %v4870 = vpack.c.bf16 %v4522, %v4510
  %v4871 = vpack.c.bf16 %v4523, %v4511
  %v4872 = vpack.c.bf16 %v4536, %v4524
  %v4873 = vpack.c.bf16 %v4537, %v4525
  %v4874 = vpack.c.bf16 %v4538, %v4526
  %v4875 = vpack.c.bf16 %v4539, %v4527
  %v4876 = vpack.c.bf16 %v4540, %v4528
  %v4877 = vpack.c.bf16 %v4541, %v4529
  %v4878 = vpack.c.bf16 %v4542, %v4530
  %v4879 = vpack.c.bf16 %v4543, %v4531
  %v4880 = vpack.c.bf16 %v4544, %v4532
  %v4881 = vpack.c.bf16 %v4545, %v4533
  %v4882 = vpack.c.bf16 %v4546, %v4534
  %v4883 = vpack.c.bf16 %v4547, %v4535
  %v4884 = vpack.c.bf16 %v4560, %v4548
  %v4885 = vpack.c.bf16 %v4561, %v4549
  %v4886 = vpack.c.bf16 %v4562, %v4550
  %v4887 = vpack.c.bf16 %v4563, %v4551
  %v4888 = vpack.c.bf16 %v4564, %v4552
  %v4889 = vpack.c.bf16 %v4565, %v4553
  %v4890 = vpack.c.bf16 %v4566, %v4554
  %v4891 = vpack.c.bf16 %v4567, %v4555
  %v4892 = vpack.c.bf16 %v4568, %v4556
  %v4893 = vpack.c.bf16 %v4569, %v4557
  %v4894 = vpack.c.bf16 %v4570, %v4558
  %v4895 = vpack.c.bf16 %v4571, %v4559
  %v4896 = vpack.c.bf16 %v4584, %v4572
  %v4897 = vpack.c.bf16 %v4585, %v4573
  %v4898 = vpack.c.bf16 %v4586, %v4574
  %v4899 = vpack.c.bf16 %v4587, %v4575
  %v4900 = vpack.c.bf16 %v4588, %v4576
  %v4901 = vpack.c.bf16 %v4589, %v4577
  %v4902 = vpack.c.bf16 %v4590, %v4578
  %v4903 = vpack.c.bf16 %v4591, %v4579
  %v4904 = vpack.c.bf16 %v4592, %v4580
  %v4905 = vpack.c.bf16 %v4593, %v4581
  %v4906 = vpack.c.bf16 %v4594, %v4582
  %v4907 = vpack.c.bf16 %v4595, %v4583
  %v4908 = vpack.c.bf16 %v4608, %v4596
  %v4909 = vpack.c.bf16 %v4609, %v4597
  %v4910 = vpack.c.bf16 %v4610, %v4598
  %v4911 = vpack.c.bf16 %v4611, %v4599
  %v4912 = vpack.c.bf16 %v4612, %v4600
  %v4913 = vpack.c.bf16 %v4613, %v4601
  %v4914 = vpack.c.bf16 %v4614, %v4602
  %v4915 = vpack.c.bf16 %v4615, %v4603
  %v4916 = vpack.c.bf16 %v4616, %v4604
  %v4917 = vpack.c.bf16 %v4617, %v4605
  %v4918 = vpack.c.bf16 %v4618, %v4606
  %v4919 = vpack.c.bf16 %v4619, %v4607
  %v4920 = vpack.c.bf16 %v4632, %v4620
  %v4921 = vpack.c.bf16 %v4633, %v4621
  %v4922 = vpack.c.bf16 %v4634, %v4622
  %v4923 = vpack.c.bf16 %v4635, %v4623
  %v4924 = vpack.c.bf16 %v4636, %v4624
  %v4925 = vpack.c.bf16 %v4637, %v4625
  %v4926 = vpack.c.bf16 %v4638, %v4626
  %v4927 = vpack.c.bf16 %v4639, %v4627
  %v4928 = vpack.c.bf16 %v4640, %v4628
  %v4929 = vpack.c.bf16 %v4641, %v4629
  %v4930 = vpack.c.bf16 %v4642, %v4630
  %v4931 = vpack.c.bf16 %v4643, %v4631
  %v4932 = vpack.c.bf16 %v4656, %v4644
  %v4933 = vpack.c.bf16 %v4657, %v4645
  %v4934 = vpack.c.bf16 %v4658, %v4646
  %v4935 = vpack.c.bf16 %v4659, %v4647
  %v4936 = vpack.c.bf16 %v4660, %v4648
  %v4937 = vpack.c.bf16 %v4661, %v4649
  %v4938 = vpack.c.bf16 %v4662, %v4650
  %v4939 = vpack.c.bf16 %v4663, %v4651
  %v4940 = vpack.c.bf16 %v4664, %v4652
  %v4941 = vpack.c.bf16 %v4665, %v4653
  %v4942 = vpack.c.bf16 %v4666, %v4654
  %v4943 = vpack.c.bf16 %v4667, %v4655
  %v4944 = vpack.c.bf16 %v4680, %v4668
  %v4945 = vpack.c.bf16 %v4681, %v4669
  %v4946 = vpack.c.bf16 %v4682, %v4670
  %v4947 = vpack.c.bf16 %v4683, %v4671
  %v4948 = vpack.c.bf16 %v4684, %v4672
  %v4949 = vpack.c.bf16 %v4685, %v4673
  %v4950 = vpack.c.bf16 %v4686, %v4674
  %v4951 = vpack.c.bf16 %v4687, %v4675
  %v4952 = vpack.c.bf16 %v4688, %v4676
  %v4953 = vpack.c.bf16 %v4689, %v4677
  %v4954 = vpack.c.bf16 %v4690, %v4678
  %v4955 = vpack.c.bf16 %v4691, %v4679
  %v4956 = vpack.c.bf16 %v4704, %v4692
  %v4957 = vpack.c.bf16 %v4705, %v4693
  %v4958 = vpack.c.bf16 %v4706, %v4694
  %v4959 = vpack.c.bf16 %v4707, %v4695
  %v4960 = vpack.c.bf16 %v4708, %v4696
  %v4961 = vpack.c.bf16 %v4709, %v4697
  %v4962 = vpack.c.bf16 %v4710, %v4698
  %v4963 = vpack.c.bf16 %v4711, %v4699
  %v4964 = vpack.c.bf16 %v4712, %v4700
  %v4965 = vpack.c.bf16 %v4713, %v4701
  %v4966 = vpack.c.bf16 %v4714, %v4702
  %v4967 = vpack.c.bf16 %v4715, %v4703
  %v4968 = vpack.c.bf16 %v4728, %v4716
  %v4969 = vpack.c.bf16 %v4729, %v4717
  %v4970 = vpack.c.bf16 %v4730, %v4718
  %v4971 = vpack.c.bf16 %v4731, %v4719
  %v4972 = vpack.c.bf16 %v4732, %v4720
  %v4973 = vpack.c.bf16 %v4733, %v4721
  %v4974 = vpack.c.bf16 %v4734, %v4722
  %v4975 = vpack.c.bf16 %v4735, %v4723
  %v4976 = vpack.c.bf16 %v4736, %v4724
  %v4977 = vpack.c.bf16 %v4737, %v4725
  %v4978 = vpack.c.bf16 %v4738, %v4726
  %v4979 = vpack.c.bf16 %v4739, %v4727
  %v4980 = vpack.c.bf16 %v4752, %v4740
  %v4981 = vpack.c.bf16 %v4753, %v4741
  %v4982 = vpack.c.bf16 %v4754, %v4742
  %v4983 = vpack.c.bf16 %v4755, %v4743
  %v4984 = vpack.c.bf16 %v4756, %v4744
  %v4985 = vpack.c.bf16 %v4757, %v4745
  %v4986 = vpack.c.bf16 %v4758, %v4746
  %v4987 = vpack.c.bf16 %v4759, %v4747
  %v4988 = vpack.c.bf16 %v4760, %v4748
  %v4989 = vpack.c.bf16 %v4761, %v4749
  %v4990 = vpack.c.bf16 %v4762, %v4750
  %v4991 = vpack.c.bf16 %v4763, %v4751
  %v4992 = vpack.c.bf16 %v4776, %v4764
  %v4993 = vpack.c.bf16 %v4777, %v4765
  %v4994 = vpack.c.bf16 %v4778, %v4766
  %v4995 = vpack.c.bf16 %v4779, %v4767
  %v4996 = vpack.c.bf16 %v4780, %v4768
  %v4997 = vpack.c.bf16 %v4781, %v4769
  %v4998 = vpack.c.bf16 %v4782, %v4770
  %v4999 = vpack.c.bf16 %v4783, %v4771
  %v5000 = vpack.c.bf16 %v4784, %v4772
  %v5001 = vpack.c.bf16 %v4785, %v4773
  %v5002 = vpack.c.bf16 %v4786, %v4774
  %v5003 = vpack.c.bf16 %v4787, %v4775
  %v5004 = vpack.c.bf16 %v4800, %v4788
  %v5005 = vpack.c.bf16 %v4801, %v4789
  %v5006 = vpack.c.bf16 %v4802, %v4790
  %v5007 = vpack.c.bf16 %v4803, %v4791
  %v5008 = vpack.c.bf16 %v4804, %v4792
  %v5009 = vpack.c.bf16 %v4805, %v4793
  %v5010 = vpack.c.bf16 %v4806, %v4794
  %v5011 = vpack.c.bf16 %v4807, %v4795
  %v5012 = vpack.c.bf16 %v4808, %v4796
  %v5013 = vpack.c.bf16 %v4809, %v4797
  %v5014 = vpack.c.bf16 %v4810, %v4798
  %v5015 = vpack.c.bf16 %v4811, %v4799
  %v5016 = vpack.c.bf16 %v4824, %v4812
  %v5017 = vpack.c.bf16 %v4825, %v4813
  %v5018 = vpack.c.bf16 %v4826, %v4814
  %v5019 = vpack.c.bf16 %v4827, %v4815
  %v5020 = vpack.c.bf16 %v4828, %v4816
  %v5021 = vpack.c.bf16 %v4829, %v4817
  %v5022 = vpack.c.bf16 %v4830, %v4818
  %v5023 = vpack.c.bf16 %v4831, %v4819
  %v5024 = vpack.c.bf16 %v4832, %v4820
  %v5025 = vpack.c.bf16 %v4833, %v4821
  %v5026 = vpack.c.bf16 %v4834, %v4822
  %v5027 = vpack.c.bf16 %v4835, %v4823
  %v5028 = vld [vmem:[%s3] sm:$0xff]
  %v5029 = vld [vmem:[%s3 + $0x8] sm:$0xf]
  %v5030 = vld [vmem:[%s3 + $0xc] sm:$0xff]
  %v5031 = vld [vmem:[%s3 + $0x14] sm:$0xf]
  %v5032 = vld [vmem:[%s3 + $0x18] sm:$0xff]
  %v5033 = vld [vmem:[%s3 + $0x20] sm:$0xf]
  %v5034 = vld [vmem:[%s3 + $0x24] sm:$0xff]
  %v5035 = vld [vmem:[%s3 + $0x2c] sm:$0xf]
  %v5036 = vld [vmem:[%s3 + $0x30] sm:$0xff]
  %v5037 = vld [vmem:[%s3 + $0x38] sm:$0xf]
  %v5038 = vld [vmem:[%s3 + $0x3c] sm:$0xff]
  %v5039 = vld [vmem:[%s3 + $0x44] sm:$0xf]
  %v5040 = vld [vmem:[%s3 + $0x48] sm:$0xff]
  %v5041 = vld [vmem:[%s3 + $0x50] sm:$0xf]
  %v5042 = vld [vmem:[%s3 + $0x54] sm:$0xff]
  %v5043 = vld [vmem:[%s3 + $0x5c] sm:$0xf]
  %v5044 = vld [vmem:[%s3 + $0x60] sm:$0xff]
  %v5045 = vld [vmem:[%s3 + $0x68] sm:$0xf]
  %v5046 = vld [vmem:[%s3 + $0x6c] sm:$0xff]
  %v5047 = vld [vmem:[%s3 + $0x74] sm:$0xf]
  %v5048 = vld [vmem:[%s3 + $0x78] sm:$0xff]
  %v5049 = vld [vmem:[%s3 + $0x80] sm:$0xf]
  %v5050 = vld [vmem:[%s3 + $0x84] sm:$0xff]
  %v5051 = vld [vmem:[%s3 + $0x8c] sm:$0xf]
  %v5052 = vld [vmem:[%s3 + $0x90] sm:$0xff]
  %v5053 = vld [vmem:[%s3 + $0x98] sm:$0xf]
  %v5054 = vld [vmem:[%s3 + $0x9c] sm:$0xff]
  %v5055 = vld [vmem:[%s3 + $0xa4] sm:$0xf]
  %v5056 = vld [vmem:[%s3 + $0xa8] sm:$0xff]
  %v5057 = vld [vmem:[%s3 + $0xb0] sm:$0xf]
  %v5058 = vld [vmem:[%s3 + $0xb4] sm:$0xff]
  %v5059 = vld [vmem:[%s3 + $0xbc] sm:$0xf]
  %v5060 = vld [vmem:[%s3 + $0xc0] sm:$0xff]
  %v5061 = vld [vmem:[%s3 + $0xc8] sm:$0xf]
  %v5062 = vld [vmem:[%s3 + $0xcc] sm:$0xff]
  %v5063 = vld [vmem:[%s3 + $0xd4] sm:$0xf]
  %v5064 = vld [vmem:[%s3 + $0xd8] sm:$0xff]
  %v5065 = vld [vmem:[%s3 + $0xe0] sm:$0xf]
  %v5066 = vld [vmem:[%s3 + $0xe4] sm:$0xff]
  %v5067 = vld [vmem:[%s3 + $0xec] sm:$0xf]
  %v5068 = vld [vmem:[%s3 + $0xf0] sm:$0xff]
  %v5069 = vld [vmem:[%s3 + $0xf8] sm:$0xf]
  %v5070 = vld [vmem:[%s3 + $0xfc] sm:$0xff]
  %v5071 = vld [vmem:[%s3 + $0x104] sm:$0xf]
  %v5072 = vld [vmem:[%s3 + $0x108] sm:$0xff]
  %v5073 = vld [vmem:[%s3 + $0x110] sm:$0xf]
  %v5074 = vld [vmem:[%s3 + $0x114] sm:$0xff]
  %v5075 = vld [vmem:[%s3 + $0x11c] sm:$0xf]
  %v5076 = vld [vmem:[%s3 + $0x120] sm:$0xff]
  %v5077 = vld [vmem:[%s3 + $0x128] sm:$0xf]
  %v5078 = vld [vmem:[%s3 + $0x12c] sm:$0xff]
  %v5079 = vld [vmem:[%s3 + $0x134] sm:$0xf]
  %v5080 = vld [vmem:[%s3 + $0x138] sm:$0xff]
  %v5081 = vld [vmem:[%s3 + $0x140] sm:$0xf]
  %v5082 = vld [vmem:[%s3 + $0x144] sm:$0xff]
  %v5083 = vld [vmem:[%s3 + $0x14c] sm:$0xf]
  %v5084 = vld [vmem:[%s3 + $0x150] sm:$0xff]
  %v5085 = vld [vmem:[%s3 + $0x158] sm:$0xf]
  %v5086 = vld [vmem:[%s3 + $0x15c] sm:$0xff]
  %v5087 = vld [vmem:[%s3 + $0x164] sm:$0xf]
  %v5088 = vld [vmem:[%s3 + $0x168] sm:$0xff]
  %v5089 = vld [vmem:[%s3 + $0x170] sm:$0xf]
  %v5090 = vld [vmem:[%s3 + $0x174] sm:$0xff]
  %v5091 = vld [vmem:[%s3 + $0x17c] sm:$0xf]
  %v5092 = vld [vmem:[%s3 + $0x180] sm:$0xff]
  %v5093 = vld [vmem:[%s3 + $0x188] sm:$0xf]
  %v5094 = vld [vmem:[%s3 + $0x18c] sm:$0xff]
  %v5095 = vld [vmem:[%s3 + $0x194] sm:$0xf]
  %v5096 = vld [vmem:[%s3 + $0x198] sm:$0xff]
  %v5097 = vld [vmem:[%s3 + $0x1a0] sm:$0xf]
  %v5098 = vld [vmem:[%s3 + $0x1a4] sm:$0xff]
  %v5099 = vld [vmem:[%s3 + $0x1ac] sm:$0xf]
  %v5100 = vld [vmem:[%s3 + $0x1b0] sm:$0xff]
  %v5101 = vld [vmem:[%s3 + $0x1b8] sm:$0xf]
  %v5102 = vld [vmem:[%s3 + $0x1bc] sm:$0xff]
  %v5103 = vld [vmem:[%s3 + $0x1c4] sm:$0xf]
  %v5104 = vld [vmem:[%s3 + $0x1c8] sm:$0xff]
  %v5105 = vld [vmem:[%s3 + $0x1d0] sm:$0xf]
  %v5106 = vld [vmem:[%s3 + $0x1d4] sm:$0xff]
  %v5107 = vld [vmem:[%s3 + $0x1dc] sm:$0xf]
  %v5108 = vld [vmem:[%s3 + $0x1e0] sm:$0xff]
  %v5109 = vld [vmem:[%s3 + $0x1e8] sm:$0xf]
  %v5110 = vld [vmem:[%s3 + $0x1ec] sm:$0xff]
  %v5111 = vld [vmem:[%s3 + $0x1f4] sm:$0xf]
  %v5112 = vld [vmem:[%s3 + $0x1f8] sm:$0xff]
  %v5113 = vld [vmem:[%s3 + $0x200] sm:$0xf]
  %v5114 = vld [vmem:[%s3 + $0x204] sm:$0xff]
  %v5115 = vld [vmem:[%s3 + $0x20c] sm:$0xf]
  %v5116 = vld [vmem:[%s3 + $0x210] sm:$0xff]
  %v5117 = vld [vmem:[%s3 + $0x218] sm:$0xf]
  %v5118 = vld [vmem:[%s3 + $0x21c] sm:$0xff]
  %v5119 = vld [vmem:[%s3 + $0x224] sm:$0xf]
  %v5120 = vld [vmem:[%s3 + $0x228] sm:$0xff]
  %v5121 = vld [vmem:[%s3 + $0x230] sm:$0xf]
  %v5122 = vld [vmem:[%s3 + $0x234] sm:$0xff]
  %v5123 = vld [vmem:[%s3 + $0x23c] sm:$0xf]
  %v5124 = vld [vmem:[%s3 + $0x240] sm:$0xff]
  %v5125 = vld [vmem:[%s3 + $0x248] sm:$0xf]
  %v5126 = vld [vmem:[%s3 + $0x24c] sm:$0xff]
  %v5127 = vld [vmem:[%s3 + $0x254] sm:$0xf]
  %v5128 = vld [vmem:[%s3 + $0x258] sm:$0xff]
  %v5129 = vld [vmem:[%s3 + $0x260] sm:$0xf]
  %v5130 = vld [vmem:[%s3 + $0x264] sm:$0xff]
  %v5131 = vld [vmem:[%s3 + $0x26c] sm:$0xf]
  %v5132 = vld [vmem:[%s3 + $0x270] sm:$0xff]
  %v5133 = vld [vmem:[%s3 + $0x278] sm:$0xf]
  %v5134 = vld [vmem:[%s3 + $0x27c] sm:$0xff]
  %v5135 = vld [vmem:[%s3 + $0x284] sm:$0xf]
  %v5136 = vld [vmem:[%s3 + $0x288] sm:$0xff]
  %v5137 = vld [vmem:[%s3 + $0x290] sm:$0xf]
  %v5138 = vld [vmem:[%s3 + $0x294] sm:$0xff]
  %v5139 = vld [vmem:[%s3 + $0x29c] sm:$0xf]
  %v5140 = vld [vmem:[%s3 + $0x2a0] sm:$0xff]
  %v5141 = vld [vmem:[%s3 + $0x2a8] sm:$0xf]
  %v5142 = vld [vmem:[%s3 + $0x2ac] sm:$0xff]
  %v5143 = vld [vmem:[%s3 + $0x2b4] sm:$0xf]
  %v5144 = vld [vmem:[%s3 + $0x2b8] sm:$0xff]
  %v5145 = vld [vmem:[%s3 + $0x2c0] sm:$0xf]
  %v5146 = vld [vmem:[%s3 + $0x2c4] sm:$0xff]
  %v5147 = vld [vmem:[%s3 + $0x2cc] sm:$0xf]
  %v5148 = vld [vmem:[%s3 + $0x2d0] sm:$0xff]
  %v5149 = vld [vmem:[%s3 + $0x2d8] sm:$0xf]
  %v5150 = vld [vmem:[%s3 + $0x2dc] sm:$0xff]
  %v5151 = vld [vmem:[%s3 + $0x2e4] sm:$0xf]
  %v5152 = vld [vmem:[%s3 + $0x2e8] sm:$0xff]
  %v5153 = vld [vmem:[%s3 + $0x2f0] sm:$0xf]
  %v5154 = vld [vmem:[%s3 + $0x2f4] sm:$0xff]
  %v5155 = vld [vmem:[%s3 + $0x2fc] sm:$0xf]
  %v5156 = vld [vmem:[%s3 + $0x300] sm:$0xff]
  %v5157 = vld [vmem:[%s3 + $0x308] sm:$0xf]
  %v5158 = vld [vmem:[%s3 + $0x30c] sm:$0xff]
  %v5159 = vld [vmem:[%s3 + $0x314] sm:$0xf]
  %v5160 = vld [vmem:[%s3 + $0x318] sm:$0xff]
  %v5161 = vld [vmem:[%s3 + $0x320] sm:$0xf]
  %v5162 = vld [vmem:[%s3 + $0x324] sm:$0xff]
  %v5163 = vld [vmem:[%s3 + $0x32c] sm:$0xf]
  %v5164 = vld [vmem:[%s3 + $0x330] sm:$0xff]
  %v5165 = vld [vmem:[%s3 + $0x338] sm:$0xf]
  %v5166 = vld [vmem:[%s3 + $0x33c] sm:$0xff]
  %v5167 = vld [vmem:[%s3 + $0x344] sm:$0xf]
  %v5168 = vld [vmem:[%s3 + $0x348] sm:$0xff]
  %v5169 = vld [vmem:[%s3 + $0x350] sm:$0xf]
  %v5170 = vld [vmem:[%s3 + $0x354] sm:$0xff]
  %v5171 = vld [vmem:[%s3 + $0x35c] sm:$0xf]
  %v5172 = vld [vmem:[%s3 + $0x360] sm:$0xff]
  %v5173 = vld [vmem:[%s3 + $0x368] sm:$0xf]
  %v5174 = vld [vmem:[%s3 + $0x36c] sm:$0xff]
  %v5175 = vld [vmem:[%s3 + $0x374] sm:$0xf]
  %v5176 = vld [vmem:[%s3 + $0x378] sm:$0xff]
  %v5177 = vld [vmem:[%s3 + $0x380] sm:$0xf]
  %v5178 = vld [vmem:[%s3 + $0x384] sm:$0xff]
  %v5179 = vld [vmem:[%s3 + $0x38c] sm:$0xf]
  %v5180 = vld [vmem:[%s3 + $0x390] sm:$0xff]
  %v5181 = vld [vmem:[%s3 + $0x398] sm:$0xf]
  %v5182 = vld [vmem:[%s3 + $0x39c] sm:$0xff]
  %v5183 = vld [vmem:[%s3 + $0x3a4] sm:$0xf]
  %v5184 = vld [vmem:[%s3 + $0x3a8] sm:$0xff]
  %v5185 = vld [vmem:[%s3 + $0x3b0] sm:$0xf]
  %v5186 = vld [vmem:[%s3 + $0x3b4] sm:$0xff]
  %v5187 = vld [vmem:[%s3 + $0x3bc] sm:$0xf]
  %v5188 = vld [vmem:[%s3 + $0x3c0] sm:$0xff]
  %v5189 = vld [vmem:[%s3 + $0x3c8] sm:$0xf]
  %v5190 = vld [vmem:[%s3 + $0x3cc] sm:$0xff]
  %v5191 = vld [vmem:[%s3 + $0x3d4] sm:$0xf]
  %v5192 = vld [vmem:[%s3 + $0x3d8] sm:$0xff]
  %v5193 = vld [vmem:[%s3 + $0x3e0] sm:$0xf]
  %v5194 = vld [vmem:[%s3 + $0x3e4] sm:$0xff]
  %v5195 = vld [vmem:[%s3 + $0x3ec] sm:$0xf]
  %v5196 = vld [vmem:[%s3 + $0x3f0] sm:$0xff]
  %v5197 = vld [vmem:[%s3 + $0x3f8] sm:$0xf]
  %v5198 = vld [vmem:[%s3 + $0x3fc] sm:$0xff]
  %v5199 = vld [vmem:[%s3 + $0x404] sm:$0xf]
  %v5200 = vld [vmem:[%s3 + $0x408] sm:$0xff]
  %v5201 = vld [vmem:[%s3 + $0x410] sm:$0xf]
  %v5202 = vld [vmem:[%s3 + $0x414] sm:$0xff]
  %v5203 = vld [vmem:[%s3 + $0x41c] sm:$0xf]
  %v5204 = vld [vmem:[%s3 + $0x420] sm:$0xff]
  %v5205 = vld [vmem:[%s3 + $0x428] sm:$0xf]
  %v5206 = vld [vmem:[%s3 + $0x42c] sm:$0xff]
  %v5207 = vld [vmem:[%s3 + $0x434] sm:$0xf]
  %v5208 = vld [vmem:[%s3 + $0x438] sm:$0xff]
  %v5209 = vld [vmem:[%s3 + $0x440] sm:$0xf]
  %v5210 = vld [vmem:[%s3 + $0x444] sm:$0xff]
  %v5211 = vld [vmem:[%s3 + $0x44c] sm:$0xf]
  %v5212 = vld [vmem:[%s3 + $0x450] sm:$0xff]
  %v5213 = vld [vmem:[%s3 + $0x458] sm:$0xf]
  %v5214 = vld [vmem:[%s3 + $0x45c] sm:$0xff]
  %v5215 = vld [vmem:[%s3 + $0x464] sm:$0xf]
  %v5216 = vld [vmem:[%s3 + $0x468] sm:$0xff]
  %v5217 = vld [vmem:[%s3 + $0x470] sm:$0xf]
  %v5218 = vld [vmem:[%s3 + $0x474] sm:$0xff]
  %v5219 = vld [vmem:[%s3 + $0x47c] sm:$0xf]
  %v5220 = vld [vmem:[%s3 + $0x480] sm:$0xff]
  %v5221 = vld [vmem:[%s3 + $0x488] sm:$0xf]
  %v5222 = vld [vmem:[%s3 + $0x48c] sm:$0xff]
  %v5223 = vld [vmem:[%s3 + $0x494] sm:$0xf]
  %v5224 = vld [vmem:[%s3 + $0x498] sm:$0xff]
  %v5225 = vld [vmem:[%s3 + $0x4a0] sm:$0xf]
  %v5226 = vld [vmem:[%s3 + $0x4a4] sm:$0xff]
  %v5227 = vld [vmem:[%s3 + $0x4ac] sm:$0xf]
  %v5228 = vld [vmem:[%s3 + $0x4b0] sm:$0xff]
  %v5229 = vld [vmem:[%s3 + $0x4b8] sm:$0xf]
  %v5230 = vld [vmem:[%s3 + $0x4bc] sm:$0xff]
  %v5231 = vld [vmem:[%s3 + $0x4c4] sm:$0xf]
  %v5232 = vld [vmem:[%s3 + $0x4c8] sm:$0xff]
  %v5233 = vld [vmem:[%s3 + $0x4d0] sm:$0xf]
  %v5234 = vld [vmem:[%s3 + $0x4d4] sm:$0xff]
  %v5235 = vld [vmem:[%s3 + $0x4dc] sm:$0xf]
  %v5236 = vld [vmem:[%s3 + $0x4e0] sm:$0xff]
  %v5237 = vld [vmem:[%s3 + $0x4e8] sm:$0xf]
  %v5238 = vld [vmem:[%s3 + $0x4ec] sm:$0xff]
  %v5239 = vld [vmem:[%s3 + $0x4f4] sm:$0xf]
  %v5240 = vld [vmem:[%s3 + $0x4f8] sm:$0xff]
  %v5241 = vld [vmem:[%s3 + $0x500] sm:$0xf]
  %v5242 = vld [vmem:[%s3 + $0x504] sm:$0xff]
  %v5243 = vld [vmem:[%s3 + $0x50c] sm:$0xf]
  %v5244 = vld [vmem:[%s3 + $0x510] sm:$0xff]
  %v5245 = vld [vmem:[%s3 + $0x518] sm:$0xf]
  %v5246 = vld [vmem:[%s3 + $0x51c] sm:$0xff]
  %v5247 = vld [vmem:[%s3 + $0x524] sm:$0xf]
  %v5248 = vld [vmem:[%s3 + $0x528] sm:$0xff]
  %v5249 = vld [vmem:[%s3 + $0x530] sm:$0xf]
  %v5250 = vld [vmem:[%s3 + $0x534] sm:$0xff]
  %v5251 = vld [vmem:[%s3 + $0x53c] sm:$0xf]
  %v5252 = vld [vmem:[%s3 + $0x540] sm:$0xff]
  %v5253 = vld [vmem:[%s3 + $0x548] sm:$0xf]
  %v5254 = vld [vmem:[%s3 + $0x54c] sm:$0xff]
  %v5255 = vld [vmem:[%s3 + $0x554] sm:$0xf]
  %v5256 = vld [vmem:[%s3 + $0x558] sm:$0xff]
  %v5257 = vld [vmem:[%s3 + $0x560] sm:$0xf]
  %v5258 = vld [vmem:[%s3 + $0x564] sm:$0xff]
  %v5259 = vld [vmem:[%s3 + $0x56c] sm:$0xf]
  %v5260 = vld [vmem:[%s3 + $0x570] sm:$0xff]
  %v5261 = vld [vmem:[%s3 + $0x578] sm:$0xf]
  %v5262 = vld [vmem:[%s3 + $0x57c] sm:$0xff]
  %v5263 = vld [vmem:[%s3 + $0x584] sm:$0xf]
  %v5264 = vld [vmem:[%s3 + $0x588] sm:$0xff]
  %v5265 = vld [vmem:[%s3 + $0x590] sm:$0xf]
  %v5266 = vld [vmem:[%s3 + $0x594] sm:$0xff]
  %v5267 = vld [vmem:[%s3 + $0x59c] sm:$0xf]
  %v5268 = vld [vmem:[%s3 + $0x5a0] sm:$0xff]
  %v5269 = vld [vmem:[%s3 + $0x5a8] sm:$0xf]
  %v5270 = vld [vmem:[%s3 + $0x5ac] sm:$0xff]
  %v5271 = vld [vmem:[%s3 + $0x5b4] sm:$0xf]
  %v5272 = vld [vmem:[%s3 + $0x5b8] sm:$0xff]
  %v5273 = vld [vmem:[%s3 + $0x5c0] sm:$0xf]
  %v5274 = vld [vmem:[%s3 + $0x5c4] sm:$0xff]
  %v5275 = vld [vmem:[%s3 + $0x5cc] sm:$0xf]
  %v5276 = vld [vmem:[%s3 + $0x5d0] sm:$0xff]
  %v5277 = vld [vmem:[%s3 + $0x5d8] sm:$0xf]
  %v5278 = vld [vmem:[%s3 + $0x5dc] sm:$0xff]
  %v5279 = vld [vmem:[%s3 + $0x5e4] sm:$0xf]
  %v5280 = vld [vmem:[%s3 + $0x5e8] sm:$0xff]
  %v5281 = vld [vmem:[%s3 + $0x5f0] sm:$0xf]
  %v5282 = vld [vmem:[%s3 + $0x5f4] sm:$0xff]
  %v5283 = vld [vmem:[%s3 + $0x5fc] sm:$0xf]
  %v5284 = vld [vmem:[%s3 + $0x600] sm:$0xff]
  %v5285 = vld [vmem:[%s3 + $0x608] sm:$0xf]
  %v5286 = vld [vmem:[%s3 + $0x60c] sm:$0xff]
  %v5287 = vld [vmem:[%s3 + $0x614] sm:$0xf]
  %v5288 = vld [vmem:[%s3 + $0x618] sm:$0xff]
  %v5289 = vld [vmem:[%s3 + $0x620] sm:$0xf]
  %v5290 = vld [vmem:[%s3 + $0x624] sm:$0xff]
  %v5291 = vld [vmem:[%s3 + $0x62c] sm:$0xf]
  %v5292 = vld [vmem:[%s3 + $0x630] sm:$0xff]
  %v5293 = vld [vmem:[%s3 + $0x638] sm:$0xf]
  %v5294 = vld [vmem:[%s3 + $0x63c] sm:$0xff]
  %v5295 = vld [vmem:[%s3 + $0x644] sm:$0xf]
  %v5296 = vld [vmem:[%s3 + $0x648] sm:$0xff]
  %v5297 = vld [vmem:[%s3 + $0x650] sm:$0xf]
  %v5298 = vld [vmem:[%s3 + $0x654] sm:$0xff]
  %v5299 = vld [vmem:[%s3 + $0x65c] sm:$0xf]
  %v5300 = vld [vmem:[%s3 + $0x660] sm:$0xff]
  %v5301 = vld [vmem:[%s3 + $0x668] sm:$0xf]
  %v5302 = vld [vmem:[%s3 + $0x66c] sm:$0xff]
  %v5303 = vld [vmem:[%s3 + $0x674] sm:$0xf]
  %v5304 = vld [vmem:[%s3 + $0x678] sm:$0xff]
  %v5305 = vld [vmem:[%s3 + $0x680] sm:$0xf]
  %v5306 = vld [vmem:[%s3 + $0x684] sm:$0xff]
  %v5307 = vld [vmem:[%s3 + $0x68c] sm:$0xf]
  %v5308 = vld [vmem:[%s3 + $0x690] sm:$0xff]
  %v5309 = vld [vmem:[%s3 + $0x698] sm:$0xf]
  %v5310 = vld [vmem:[%s3 + $0x69c] sm:$0xff]
  %v5311 = vld [vmem:[%s3 + $0x6a4] sm:$0xf]
  %v5312 = vld [vmem:[%s3 + $0x6a8] sm:$0xff]
  %v5313 = vld [vmem:[%s3 + $0x6b0] sm:$0xf]
  %v5314 = vld [vmem:[%s3 + $0x6b4] sm:$0xff]
  %v5315 = vld [vmem:[%s3 + $0x6bc] sm:$0xf]
  %v5316 = vld [vmem:[%s3 + $0x6c0] sm:$0xff]
  %v5317 = vld [vmem:[%s3 + $0x6c8] sm:$0xf]
  %v5318 = vld [vmem:[%s3 + $0x6cc] sm:$0xff]
  %v5319 = vld [vmem:[%s3 + $0x6d4] sm:$0xf]
  %v5320 = vld [vmem:[%s3 + $0x6d8] sm:$0xff]
  %v5321 = vld [vmem:[%s3 + $0x6e0] sm:$0xf]
  %v5322 = vld [vmem:[%s3 + $0x6e4] sm:$0xff]
  %v5323 = vld [vmem:[%s3 + $0x6ec] sm:$0xf]
  %v5324 = vld [vmem:[%s3 + $0x6f0] sm:$0xff]
  %v5325 = vld [vmem:[%s3 + $0x6f8] sm:$0xf]
  %v5326 = vld [vmem:[%s3 + $0x6fc] sm:$0xff]
  %v5327 = vld [vmem:[%s3 + $0x704] sm:$0xf]
  %v5328 = vld [vmem:[%s3 + $0x708] sm:$0xff]
  %v5329 = vld [vmem:[%s3 + $0x710] sm:$0xf]
  %v5330 = vld [vmem:[%s3 + $0x714] sm:$0xff]
  %v5331 = vld [vmem:[%s3 + $0x71c] sm:$0xf]
  %v5332 = vld [vmem:[%s3 + $0x720] sm:$0xff]
  %v5333 = vld [vmem:[%s3 + $0x728] sm:$0xf]
  %v5334 = vld [vmem:[%s3 + $0x72c] sm:$0xff]
  %v5335 = vld [vmem:[%s3 + $0x734] sm:$0xf]
  %v5336 = vld [vmem:[%s3 + $0x738] sm:$0xff]
  %v5337 = vld [vmem:[%s3 + $0x740] sm:$0xf]
  %v5338 = vld [vmem:[%s3 + $0x744] sm:$0xff]
  %v5339 = vld [vmem:[%s3 + $0x74c] sm:$0xf]
  %v5340 = vld [vmem:[%s3 + $0x750] sm:$0xff]
  %v5341 = vld [vmem:[%s3 + $0x758] sm:$0xf]
  %v5342 = vld [vmem:[%s3 + $0x75c] sm:$0xff]
  %v5343 = vld [vmem:[%s3 + $0x764] sm:$0xf]
  %v5344 = vld [vmem:[%s3 + $0x768] sm:$0xff]
  %v5345 = vld [vmem:[%s3 + $0x770] sm:$0xf]
  %v5346 = vld [vmem:[%s3 + $0x774] sm:$0xff]
  %v5347 = vld [vmem:[%s3 + $0x77c] sm:$0xf]
  %v5348 = vld [vmem:[%s3 + $0x780] sm:$0xff]
  %v5349 = vld [vmem:[%s3 + $0x788] sm:$0xf]
  %v5350 = vld [vmem:[%s3 + $0x78c] sm:$0xff]
  %v5351 = vld [vmem:[%s3 + $0x794] sm:$0xf]
  %v5352 = vld [vmem:[%s3 + $0x798] sm:$0xff]
  %v5353 = vld [vmem:[%s3 + $0x7a0] sm:$0xf]
  %v5354 = vld [vmem:[%s3 + $0x7a4] sm:$0xff]
  %v5355 = vld [vmem:[%s3 + $0x7ac] sm:$0xf]
  %v5356 = vld [vmem:[%s3 + $0x7b0] sm:$0xff]
  %v5357 = vld [vmem:[%s3 + $0x7b8] sm:$0xf]
  %v5358 = vld [vmem:[%s3 + $0x7bc] sm:$0xff]
  %v5359 = vld [vmem:[%s3 + $0x7c4] sm:$0xf]
  %v5360 = vld [vmem:[%s3 + $0x7c8] sm:$0xff]
  %v5361 = vld [vmem:[%s3 + $0x7d0] sm:$0xf]
  %v5362 = vld [vmem:[%s3 + $0x7d4] sm:$0xff]
  %v5363 = vld [vmem:[%s3 + $0x7dc] sm:$0xf]
  %v5364 = vld [vmem:[%s3 + $0x7e0] sm:$0xff]
  %v5365 = vld [vmem:[%s3 + $0x7e8] sm:$0xf]
  %v5366 = vld [vmem:[%s3 + $0x7ec] sm:$0xff]
  %v5367 = vld [vmem:[%s3 + $0x7f4] sm:$0xf]
  %v5368 = vld [vmem:[%s3 + $0x7f8] sm:$0xff]
  %v5369 = vld [vmem:[%s3 + $0x800] sm:$0xf]
  %v5370 = vld [vmem:[%s3 + $0x804] sm:$0xff]
  %v5371 = vld [vmem:[%s3 + $0x80c] sm:$0xf]
  %v5372 = vld [vmem:[%s3 + $0x810] sm:$0xff]
  %v5373 = vld [vmem:[%s3 + $0x818] sm:$0xf]
  %v5374 = vld [vmem:[%s3 + $0x81c] sm:$0xff]
  %v5375 = vld [vmem:[%s3 + $0x824] sm:$0xf]
  %v5376 = vld [vmem:[%s3 + $0x828] sm:$0xff]
  %v5377 = vld [vmem:[%s3 + $0x830] sm:$0xf]
  %v5378 = vld [vmem:[%s3 + $0x834] sm:$0xff]
  %v5379 = vld [vmem:[%s3 + $0x83c] sm:$0xf]
  %v5380 = vld [vmem:[%s3 + $0x840] sm:$0xff]
  %v5381 = vld [vmem:[%s3 + $0x848] sm:$0xf]
  %v5382 = vld [vmem:[%s3 + $0x84c] sm:$0xff]
  %v5383 = vld [vmem:[%s3 + $0x854] sm:$0xf]
  %v5384 = vld [vmem:[%s3 + $0x858] sm:$0xff]
  %v5385 = vld [vmem:[%s3 + $0x860] sm:$0xf]
  %v5386 = vld [vmem:[%s3 + $0x864] sm:$0xff]
  %v5387 = vld [vmem:[%s3 + $0x86c] sm:$0xf]
  %v5388 = vld [vmem:[%s3 + $0x870] sm:$0xff]
  %v5389 = vld [vmem:[%s3 + $0x878] sm:$0xf]
  %v5390 = vld [vmem:[%s3 + $0x87c] sm:$0xff]
  %v5391 = vld [vmem:[%s3 + $0x884] sm:$0xf]
  %v5392 = vld [vmem:[%s3 + $0x888] sm:$0xff]
  %v5393 = vld [vmem:[%s3 + $0x890] sm:$0xf]
  %v5394 = vld [vmem:[%s3 + $0x894] sm:$0xff]
  %v5395 = vld [vmem:[%s3 + $0x89c] sm:$0xf]
  %v5396 = vld [vmem:[%s3 + $0x8a0] sm:$0xff]
  %v5397 = vld [vmem:[%s3 + $0x8a8] sm:$0xf]
  %v5398 = vld [vmem:[%s3 + $0x8ac] sm:$0xff]
  %v5399 = vld [vmem:[%s3 + $0x8b4] sm:$0xf]
  %v5400 = vld [vmem:[%s3 + $0x8b8] sm:$0xff]
  %v5401 = vld [vmem:[%s3 + $0x8c0] sm:$0xf]
  %v5402 = vld [vmem:[%s3 + $0x8c4] sm:$0xff]
  %v5403 = vld [vmem:[%s3 + $0x8cc] sm:$0xf]
  %v5404 = vld [vmem:[%s3 + $0x8d0] sm:$0xff]
  %v5405 = vld [vmem:[%s3 + $0x8d8] sm:$0xf]
  %v5406 = vld [vmem:[%s3 + $0x8dc] sm:$0xff]
  %v5407 = vld [vmem:[%s3 + $0x8e4] sm:$0xf]
  %v5408 = vld [vmem:[%s3 + $0x8e8] sm:$0xff]
  %v5409 = vld [vmem:[%s3 + $0x8f0] sm:$0xf]
  %v5410 = vld [vmem:[%s3 + $0x8f4] sm:$0xff]
  %v5411 = vld [vmem:[%s3 + $0x8fc] sm:$0xf]
  %v5412 = vld [vmem:[%s4] sm:$0x7]
  %v5414 = vlaneseq
  %v5415 = vshrl.u32 %v5414, 7
  %v5416 = vsub.s32 0, %v5415
  %v5417 = vrot.slane %v5412, %v5416
  %v5418 = vlaneseq
  %v5419 = vshrl.u32 %v5418, 7
  %v5420 = vsub.s32 1, %v5419
  %v5421 = vrot.slane %v5412, %v5420
  %v5422 = vlaneseq
  %v5423 = vshrl.u32 %v5422, 7
  %v5424 = vsub.s32 2, %v5423
  %v5425 = vrot.slane %v5412, %v5424
  %v5813 = vunpack.c.l.b16 %v5028
  %v5814 = vunpack.c.h.b16 %v5028
  %v5815 = vunpack.c.l.b16 %v5029
  %v5816 = vunpack.c.l.b16 %v5030
  %v5817 = vunpack.c.h.b16 %v5030
  %v5818 = vunpack.c.l.b16 %v5031
  %v5819 = vunpack.c.l.b16 %v5032
  %v5820 = vunpack.c.h.b16 %v5032
  %v5821 = vunpack.c.l.b16 %v5033
  %v5822 = vunpack.c.l.b16 %v5034
  %v5823 = vunpack.c.h.b16 %v5034
  %v5824 = vunpack.c.l.b16 %v5035
  %v5825 = vunpack.c.l.b16 %v5036
  %v5826 = vunpack.c.h.b16 %v5036
  %v5827 = vunpack.c.l.b16 %v5037
  %v5828 = vunpack.c.l.b16 %v5038
  %v5829 = vunpack.c.h.b16 %v5038
  %v5830 = vunpack.c.l.b16 %v5039
  %v5831 = vunpack.c.l.b16 %v5040
  %v5832 = vunpack.c.h.b16 %v5040
  %v5833 = vunpack.c.l.b16 %v5041
  %v5834 = vunpack.c.l.b16 %v5042
  %v5835 = vunpack.c.h.b16 %v5042
  %v5836 = vunpack.c.l.b16 %v5043
  %v5837 = vunpack.c.l.b16 %v5044
  %v5838 = vunpack.c.h.b16 %v5044
  %v5839 = vunpack.c.l.b16 %v5045
  %v5840 = vunpack.c.l.b16 %v5046
  %v5841 = vunpack.c.h.b16 %v5046
  %v5842 = vunpack.c.l.b16 %v5047
  %v5843 = vunpack.c.l.b16 %v5048
  %v5844 = vunpack.c.h.b16 %v5048
  %v5845 = vunpack.c.l.b16 %v5049
  %v5846 = vunpack.c.l.b16 %v5050
  %v5847 = vunpack.c.h.b16 %v5050
  %v5848 = vunpack.c.l.b16 %v5051
  %v5849 = vunpack.c.l.b16 %v5052
  %v5850 = vunpack.c.h.b16 %v5052
  %v5851 = vunpack.c.l.b16 %v5053
  %v5852 = vunpack.c.l.b16 %v5054
  %v5853 = vunpack.c.h.b16 %v5054
  %v5854 = vunpack.c.l.b16 %v5055
  %v5855 = vunpack.c.l.b16 %v5056
  %v5856 = vunpack.c.h.b16 %v5056
  %v5857 = vunpack.c.l.b16 %v5057
  %v5858 = vunpack.c.l.b16 %v5058
  %v5859 = vunpack.c.h.b16 %v5058
  %v5860 = vunpack.c.l.b16 %v5059
  %v5861 = vunpack.c.l.b16 %v5060
  %v5862 = vunpack.c.h.b16 %v5060
  %v5863 = vunpack.c.l.b16 %v5061
  %v5864 = vunpack.c.l.b16 %v5062
  %v5865 = vunpack.c.h.b16 %v5062
  %v5866 = vunpack.c.l.b16 %v5063
  %v5867 = vunpack.c.l.b16 %v5064
  %v5868 = vunpack.c.h.b16 %v5064
  %v5869 = vunpack.c.l.b16 %v5065
  %v5870 = vunpack.c.l.b16 %v5066
  %v5871 = vunpack.c.h.b16 %v5066
  %v5872 = vunpack.c.l.b16 %v5067
  %v5873 = vunpack.c.l.b16 %v5068
  %v5874 = vunpack.c.h.b16 %v5068
  %v5875 = vunpack.c.l.b16 %v5069
  %v5876 = vunpack.c.l.b16 %v5070
  %v5877 = vunpack.c.h.b16 %v5070
  %v5878 = vunpack.c.l.b16 %v5071
  %v5879 = vunpack.c.l.b16 %v5072
  %v5880 = vunpack.c.h.b16 %v5072
  %v5881 = vunpack.c.l.b16 %v5073
  %v5882 = vunpack.c.l.b16 %v5074
  %v5883 = vunpack.c.h.b16 %v5074
  %v5884 = vunpack.c.l.b16 %v5075
  %v5885 = vunpack.c.l.b16 %v5076
  %v5886 = vunpack.c.h.b16 %v5076
  %v5887 = vunpack.c.l.b16 %v5077
  %v5888 = vunpack.c.l.b16 %v5078
  %v5889 = vunpack.c.h.b16 %v5078
  %v5890 = vunpack.c.l.b16 %v5079
  %v5891 = vunpack.c.l.b16 %v5080
  %v5892 = vunpack.c.h.b16 %v5080
  %v5893 = vunpack.c.l.b16 %v5081
  %v5894 = vunpack.c.l.b16 %v5082
  %v5895 = vunpack.c.h.b16 %v5082
  %v5896 = vunpack.c.l.b16 %v5083
  %v5897 = vunpack.c.l.b16 %v5084
  %v5898 = vunpack.c.h.b16 %v5084
  %v5899 = vunpack.c.l.b16 %v5085
  %v5900 = vunpack.c.l.b16 %v5086
  %v5901 = vunpack.c.h.b16 %v5086
  %v5902 = vunpack.c.l.b16 %v5087
  %v5903 = vunpack.c.l.b16 %v5088
  %v5904 = vunpack.c.h.b16 %v5088
  %v5905 = vunpack.c.l.b16 %v5089
  %v5906 = vunpack.c.l.b16 %v5090
  %v5907 = vunpack.c.h.b16 %v5090
  %v5908 = vunpack.c.l.b16 %v5091
  %v5909 = vunpack.c.l.b16 %v5092
  %v5910 = vunpack.c.h.b16 %v5092
  %v5911 = vunpack.c.l.b16 %v5093
  %v5912 = vunpack.c.l.b16 %v5094
  %v5913 = vunpack.c.h.b16 %v5094
  %v5914 = vunpack.c.l.b16 %v5095
  %v5915 = vunpack.c.l.b16 %v5096
  %v5916 = vunpack.c.h.b16 %v5096
  %v5917 = vunpack.c.l.b16 %v5097
  %v5918 = vunpack.c.l.b16 %v5098
  %v5919 = vunpack.c.h.b16 %v5098
  %v5920 = vunpack.c.l.b16 %v5099
  %v5921 = vunpack.c.l.b16 %v5100
  %v5922 = vunpack.c.h.b16 %v5100
  %v5923 = vunpack.c.l.b16 %v5101
  %v5924 = vunpack.c.l.b16 %v5102
  %v5925 = vunpack.c.h.b16 %v5102
  %v5926 = vunpack.c.l.b16 %v5103
  %v5927 = vunpack.c.l.b16 %v5104
  %v5928 = vunpack.c.h.b16 %v5104
  %v5929 = vunpack.c.l.b16 %v5105
  %v5930 = vunpack.c.l.b16 %v5106
  %v5931 = vunpack.c.h.b16 %v5106
  %v5932 = vunpack.c.l.b16 %v5107
  %v5933 = vunpack.c.l.b16 %v5108
  %v5934 = vunpack.c.h.b16 %v5108
  %v5935 = vunpack.c.l.b16 %v5109
  %v5936 = vunpack.c.l.b16 %v5110
  %v5937 = vunpack.c.h.b16 %v5110
  %v5938 = vunpack.c.l.b16 %v5111
  %v5939 = vunpack.c.l.b16 %v5112
  %v5940 = vunpack.c.h.b16 %v5112
  %v5941 = vunpack.c.l.b16 %v5113
  %v5942 = vunpack.c.l.b16 %v5114
  %v5943 = vunpack.c.h.b16 %v5114
  %v5944 = vunpack.c.l.b16 %v5115
  %v5945 = vunpack.c.l.b16 %v5116
  %v5946 = vunpack.c.h.b16 %v5116
  %v5947 = vunpack.c.l.b16 %v5117
  %v5948 = vunpack.c.l.b16 %v5118
  %v5949 = vunpack.c.h.b16 %v5118
  %v5950 = vunpack.c.l.b16 %v5119
  %v5951 = vunpack.c.l.b16 %v5120
  %v5952 = vunpack.c.h.b16 %v5120
  %v5953 = vunpack.c.l.b16 %v5121
  %v5954 = vunpack.c.l.b16 %v5122
  %v5955 = vunpack.c.h.b16 %v5122
  %v5956 = vunpack.c.l.b16 %v5123
  %v5957 = vunpack.c.l.b16 %v5124
  %v5958 = vunpack.c.h.b16 %v5124
  %v5959 = vunpack.c.l.b16 %v5125
  %v5960 = vunpack.c.l.b16 %v5126
  %v5961 = vunpack.c.h.b16 %v5126
  %v5962 = vunpack.c.l.b16 %v5127
  %v5963 = vunpack.c.l.b16 %v5128
  %v5964 = vunpack.c.h.b16 %v5128
  %v5965 = vunpack.c.l.b16 %v5129
  %v5966 = vunpack.c.l.b16 %v5130
  %v5967 = vunpack.c.h.b16 %v5130
  %v5968 = vunpack.c.l.b16 %v5131
  %v5969 = vunpack.c.l.b16 %v5132
  %v5970 = vunpack.c.h.b16 %v5132
  %v5971 = vunpack.c.l.b16 %v5133
  %v5972 = vunpack.c.l.b16 %v5134
  %v5973 = vunpack.c.h.b16 %v5134
  %v5974 = vunpack.c.l.b16 %v5135
  %v5975 = vunpack.c.l.b16 %v5136
  %v5976 = vunpack.c.h.b16 %v5136
  %v5977 = vunpack.c.l.b16 %v5137
  %v5978 = vunpack.c.l.b16 %v5138
  %v5979 = vunpack.c.h.b16 %v5138
  %v5980 = vunpack.c.l.b16 %v5139
  %v5981 = vunpack.c.l.b16 %v5140
  %v5982 = vunpack.c.h.b16 %v5140
  %v5983 = vunpack.c.l.b16 %v5141
  %v5984 = vunpack.c.l.b16 %v5142
  %v5985 = vunpack.c.h.b16 %v5142
  %v5986 = vunpack.c.l.b16 %v5143
  %v5987 = vunpack.c.l.b16 %v5144
  %v5988 = vunpack.c.h.b16 %v5144
  %v5989 = vunpack.c.l.b16 %v5145
  %v5990 = vunpack.c.l.b16 %v5146
  %v5991 = vunpack.c.h.b16 %v5146
  %v5992 = vunpack.c.l.b16 %v5147
  %v5993 = vunpack.c.l.b16 %v5148
  %v5994 = vunpack.c.h.b16 %v5148
  %v5995 = vunpack.c.l.b16 %v5149
  %v5996 = vunpack.c.l.b16 %v5150
  %v5997 = vunpack.c.h.b16 %v5150
  %v5998 = vunpack.c.l.b16 %v5151
  %v5999 = vunpack.c.l.b16 %v5152
  %v6000 = vunpack.c.h.b16 %v5152
  %v6001 = vunpack.c.l.b16 %v5153
  %v6002 = vunpack.c.l.b16 %v5154
  %v6003 = vunpack.c.h.b16 %v5154
  %v6004 = vunpack.c.l.b16 %v5155
  %v6005 = vunpack.c.l.b16 %v5156
  %v6006 = vunpack.c.h.b16 %v5156
  %v6007 = vunpack.c.l.b16 %v5157
  %v6008 = vunpack.c.l.b16 %v5158
  %v6009 = vunpack.c.h.b16 %v5158
  %v6010 = vunpack.c.l.b16 %v5159
  %v6011 = vunpack.c.l.b16 %v5160
  %v6012 = vunpack.c.h.b16 %v5160
  %v6013 = vunpack.c.l.b16 %v5161
  %v6014 = vunpack.c.l.b16 %v5162
  %v6015 = vunpack.c.h.b16 %v5162
  %v6016 = vunpack.c.l.b16 %v5163
  %v6017 = vunpack.c.l.b16 %v5164
  %v6018 = vunpack.c.h.b16 %v5164
  %v6019 = vunpack.c.l.b16 %v5165
  %v6020 = vunpack.c.l.b16 %v5166
  %v6021 = vunpack.c.h.b16 %v5166
  %v6022 = vunpack.c.l.b16 %v5167
  %v6023 = vunpack.c.l.b16 %v5168
  %v6024 = vunpack.c.h.b16 %v5168
  %v6025 = vunpack.c.l.b16 %v5169
  %v6026 = vunpack.c.l.b16 %v5170
  %v6027 = vunpack.c.h.b16 %v5170
  %v6028 = vunpack.c.l.b16 %v5171
  %v6029 = vunpack.c.l.b16 %v5172
  %v6030 = vunpack.c.h.b16 %v5172
  %v6031 = vunpack.c.l.b16 %v5173
  %v6032 = vunpack.c.l.b16 %v5174
  %v6033 = vunpack.c.h.b16 %v5174
  %v6034 = vunpack.c.l.b16 %v5175
  %v6035 = vunpack.c.l.b16 %v5176
  %v6036 = vunpack.c.h.b16 %v5176
  %v6037 = vunpack.c.l.b16 %v5177
  %v6038 = vunpack.c.l.b16 %v5178
  %v6039 = vunpack.c.h.b16 %v5178
  %v6040 = vunpack.c.l.b16 %v5179
  %v6041 = vunpack.c.l.b16 %v5180
  %v6042 = vunpack.c.h.b16 %v5180
  %v6043 = vunpack.c.l.b16 %v5181
  %v6044 = vunpack.c.l.b16 %v5182
  %v6045 = vunpack.c.h.b16 %v5182
  %v6046 = vunpack.c.l.b16 %v5183
  %v6047 = vunpack.c.l.b16 %v5184
  %v6048 = vunpack.c.h.b16 %v5184
  %v6049 = vunpack.c.l.b16 %v5185
  %v6050 = vunpack.c.l.b16 %v5186
  %v6051 = vunpack.c.h.b16 %v5186
  %v6052 = vunpack.c.l.b16 %v5187
  %v6053 = vunpack.c.l.b16 %v5188
  %v6054 = vunpack.c.h.b16 %v5188
  %v6055 = vunpack.c.l.b16 %v5189
  %v6056 = vunpack.c.l.b16 %v5190
  %v6057 = vunpack.c.h.b16 %v5190
  %v6058 = vunpack.c.l.b16 %v5191
  %v6059 = vunpack.c.l.b16 %v5192
  %v6060 = vunpack.c.h.b16 %v5192
  %v6061 = vunpack.c.l.b16 %v5193
  %v6062 = vunpack.c.l.b16 %v5194
  %v6063 = vunpack.c.h.b16 %v5194
  %v6064 = vunpack.c.l.b16 %v5195
  %v6065 = vunpack.c.l.b16 %v5196
  %v6066 = vunpack.c.h.b16 %v5196
  %v6067 = vunpack.c.l.b16 %v5197
  %v6068 = vunpack.c.l.b16 %v5198
  %v6069 = vunpack.c.h.b16 %v5198
  %v6070 = vunpack.c.l.b16 %v5199
  %v6071 = vunpack.c.l.b16 %v5200
  %v6072 = vunpack.c.h.b16 %v5200
  %v6073 = vunpack.c.l.b16 %v5201
  %v6074 = vunpack.c.l.b16 %v5202
  %v6075 = vunpack.c.h.b16 %v5202
  %v6076 = vunpack.c.l.b16 %v5203
  %v6077 = vunpack.c.l.b16 %v5204
  %v6078 = vunpack.c.h.b16 %v5204
  %v6079 = vunpack.c.l.b16 %v5205
  %v6080 = vunpack.c.l.b16 %v5206
  %v6081 = vunpack.c.h.b16 %v5206
  %v6082 = vunpack.c.l.b16 %v5207
  %v6083 = vunpack.c.l.b16 %v5208
  %v6084 = vunpack.c.h.b16 %v5208
  %v6085 = vunpack.c.l.b16 %v5209
  %v6086 = vunpack.c.l.b16 %v5210
  %v6087 = vunpack.c.h.b16 %v5210
  %v6088 = vunpack.c.l.b16 %v5211
  %v6089 = vunpack.c.l.b16 %v5212
  %v6090 = vunpack.c.h.b16 %v5212
  %v6091 = vunpack.c.l.b16 %v5213
  %v6092 = vunpack.c.l.b16 %v5214
  %v6093 = vunpack.c.h.b16 %v5214
  %v6094 = vunpack.c.l.b16 %v5215
  %v6095 = vunpack.c.l.b16 %v5216
  %v6096 = vunpack.c.h.b16 %v5216
  %v6097 = vunpack.c.l.b16 %v5217
  %v6098 = vunpack.c.l.b16 %v5218
  %v6099 = vunpack.c.h.b16 %v5218
  %v6100 = vunpack.c.l.b16 %v5219
  %v6101 = vunpack.c.l.b16 %v5220
  %v6102 = vunpack.c.h.b16 %v5220
  %v6103 = vunpack.c.l.b16 %v5221
  %v6104 = vunpack.c.l.b16 %v5222
  %v6105 = vunpack.c.h.b16 %v5222
  %v6106 = vunpack.c.l.b16 %v5223
  %v6107 = vunpack.c.l.b16 %v5224
  %v6108 = vunpack.c.h.b16 %v5224
  %v6109 = vunpack.c.l.b16 %v5225
  %v6110 = vunpack.c.l.b16 %v5226
  %v6111 = vunpack.c.h.b16 %v5226
  %v6112 = vunpack.c.l.b16 %v5227
  %v6113 = vunpack.c.l.b16 %v5228
  %v6114 = vunpack.c.h.b16 %v5228
  %v6115 = vunpack.c.l.b16 %v5229
  %v6116 = vunpack.c.l.b16 %v5230
  %v6117 = vunpack.c.h.b16 %v5230
  %v6118 = vunpack.c.l.b16 %v5231
  %v6119 = vunpack.c.l.b16 %v5232
  %v6120 = vunpack.c.h.b16 %v5232
  %v6121 = vunpack.c.l.b16 %v5233
  %v6122 = vunpack.c.l.b16 %v5234
  %v6123 = vunpack.c.h.b16 %v5234
  %v6124 = vunpack.c.l.b16 %v5235
  %v6125 = vunpack.c.l.b16 %v5236
  %v6126 = vunpack.c.h.b16 %v5236
  %v6127 = vunpack.c.l.b16 %v5237
  %v6128 = vunpack.c.l.b16 %v5238
  %v6129 = vunpack.c.h.b16 %v5238
  %v6130 = vunpack.c.l.b16 %v5239
  %v6131 = vunpack.c.l.b16 %v5240
  %v6132 = vunpack.c.h.b16 %v5240
  %v6133 = vunpack.c.l.b16 %v5241
  %v6134 = vunpack.c.l.b16 %v5242
  %v6135 = vunpack.c.h.b16 %v5242
  %v6136 = vunpack.c.l.b16 %v5243
  %v6137 = vunpack.c.l.b16 %v5244
  %v6138 = vunpack.c.h.b16 %v5244
  %v6139 = vunpack.c.l.b16 %v5245
  %v6140 = vunpack.c.l.b16 %v5246
  %v6141 = vunpack.c.h.b16 %v5246
  %v6142 = vunpack.c.l.b16 %v5247
  %v6143 = vunpack.c.l.b16 %v5248
  %v6144 = vunpack.c.h.b16 %v5248
  %v6145 = vunpack.c.l.b16 %v5249
  %v6146 = vunpack.c.l.b16 %v5250
  %v6147 = vunpack.c.h.b16 %v5250
  %v6148 = vunpack.c.l.b16 %v5251
  %v6149 = vunpack.c.l.b16 %v5252
  %v6150 = vunpack.c.h.b16 %v5252
  %v6151 = vunpack.c.l.b16 %v5253
  %v6152 = vunpack.c.l.b16 %v5254
  %v6153 = vunpack.c.h.b16 %v5254
  %v6154 = vunpack.c.l.b16 %v5255
  %v6155 = vunpack.c.l.b16 %v5256
  %v6156 = vunpack.c.h.b16 %v5256
  %v6157 = vunpack.c.l.b16 %v5257
  %v6158 = vunpack.c.l.b16 %v5258
  %v6159 = vunpack.c.h.b16 %v5258
  %v6160 = vunpack.c.l.b16 %v5259
  %v6161 = vunpack.c.l.b16 %v5260
  %v6162 = vunpack.c.h.b16 %v5260
  %v6163 = vunpack.c.l.b16 %v5261
  %v6164 = vunpack.c.l.b16 %v5262
  %v6165 = vunpack.c.h.b16 %v5262
  %v6166 = vunpack.c.l.b16 %v5263
  %v6167 = vunpack.c.l.b16 %v5264
  %v6168 = vunpack.c.h.b16 %v5264
  %v6169 = vunpack.c.l.b16 %v5265
  %v6170 = vunpack.c.l.b16 %v5266
  %v6171 = vunpack.c.h.b16 %v5266
  %v6172 = vunpack.c.l.b16 %v5267
  %v6173 = vunpack.c.l.b16 %v5268
  %v6174 = vunpack.c.h.b16 %v5268
  %v6175 = vunpack.c.l.b16 %v5269
  %v6176 = vunpack.c.l.b16 %v5270
  %v6177 = vunpack.c.h.b16 %v5270
  %v6178 = vunpack.c.l.b16 %v5271
  %v6179 = vunpack.c.l.b16 %v5272
  %v6180 = vunpack.c.h.b16 %v5272
  %v6181 = vunpack.c.l.b16 %v5273
  %v6182 = vunpack.c.l.b16 %v5274
  %v6183 = vunpack.c.h.b16 %v5274
  %v6184 = vunpack.c.l.b16 %v5275
  %v6185 = vunpack.c.l.b16 %v5276
  %v6186 = vunpack.c.h.b16 %v5276
  %v6187 = vunpack.c.l.b16 %v5277
  %v6188 = vunpack.c.l.b16 %v5278
  %v6189 = vunpack.c.h.b16 %v5278
  %v6190 = vunpack.c.l.b16 %v5279
  %v6191 = vunpack.c.l.b16 %v5280
  %v6192 = vunpack.c.h.b16 %v5280
  %v6193 = vunpack.c.l.b16 %v5281
  %v6194 = vunpack.c.l.b16 %v5282
  %v6195 = vunpack.c.h.b16 %v5282
  %v6196 = vunpack.c.l.b16 %v5283
  %v6197 = vunpack.c.l.b16 %v5284
  %v6198 = vunpack.c.h.b16 %v5284
  %v6199 = vunpack.c.l.b16 %v5285
  %v6200 = vunpack.c.l.b16 %v5286
  %v6201 = vunpack.c.h.b16 %v5286
  %v6202 = vunpack.c.l.b16 %v5287
  %v6203 = vunpack.c.l.b16 %v5288
  %v6204 = vunpack.c.h.b16 %v5288
  %v6205 = vunpack.c.l.b16 %v5289
  %v6206 = vunpack.c.l.b16 %v5290
  %v6207 = vunpack.c.h.b16 %v5290
  %v6208 = vunpack.c.l.b16 %v5291
  %v6209 = vunpack.c.l.b16 %v5292
  %v6210 = vunpack.c.h.b16 %v5292
  %v6211 = vunpack.c.l.b16 %v5293
  %v6212 = vunpack.c.l.b16 %v5294
  %v6213 = vunpack.c.h.b16 %v5294
  %v6214 = vunpack.c.l.b16 %v5295
  %v6215 = vunpack.c.l.b16 %v5296
  %v6216 = vunpack.c.h.b16 %v5296
  %v6217 = vunpack.c.l.b16 %v5297
  %v6218 = vunpack.c.l.b16 %v5298
  %v6219 = vunpack.c.h.b16 %v5298
  %v6220 = vunpack.c.l.b16 %v5299
  %v6221 = vunpack.c.l.b16 %v5300
  %v6222 = vunpack.c.h.b16 %v5300
  %v6223 = vunpack.c.l.b16 %v5301
  %v6224 = vunpack.c.l.b16 %v5302
  %v6225 = vunpack.c.h.b16 %v5302
  %v6226 = vunpack.c.l.b16 %v5303
  %v6227 = vunpack.c.l.b16 %v5304
  %v6228 = vunpack.c.h.b16 %v5304
  %v6229 = vunpack.c.l.b16 %v5305
  %v6230 = vunpack.c.l.b16 %v5306
  %v6231 = vunpack.c.h.b16 %v5306
  %v6232 = vunpack.c.l.b16 %v5307
  %v6233 = vunpack.c.l.b16 %v5308
  %v6234 = vunpack.c.h.b16 %v5308
  %v6235 = vunpack.c.l.b16 %v5309
  %v6236 = vunpack.c.l.b16 %v5310
  %v6237 = vunpack.c.h.b16 %v5310
  %v6238 = vunpack.c.l.b16 %v5311
  %v6239 = vunpack.c.l.b16 %v5312
  %v6240 = vunpack.c.h.b16 %v5312
  %v6241 = vunpack.c.l.b16 %v5313
  %v6242 = vunpack.c.l.b16 %v5314
  %v6243 = vunpack.c.h.b16 %v5314
  %v6244 = vunpack.c.l.b16 %v5315
  %v6245 = vunpack.c.l.b16 %v5316
  %v6246 = vunpack.c.h.b16 %v5316
  %v6247 = vunpack.c.l.b16 %v5317
  %v6248 = vunpack.c.l.b16 %v5318
  %v6249 = vunpack.c.h.b16 %v5318
  %v6250 = vunpack.c.l.b16 %v5319
  %v6251 = vunpack.c.l.b16 %v5320
  %v6252 = vunpack.c.h.b16 %v5320
  %v6253 = vunpack.c.l.b16 %v5321
  %v6254 = vunpack.c.l.b16 %v5322
  %v6255 = vunpack.c.h.b16 %v5322
  %v6256 = vunpack.c.l.b16 %v5323
  %v6257 = vunpack.c.l.b16 %v5324
  %v6258 = vunpack.c.h.b16 %v5324
  %v6259 = vunpack.c.l.b16 %v5325
  %v6260 = vunpack.c.l.b16 %v5326
  %v6261 = vunpack.c.h.b16 %v5326
  %v6262 = vunpack.c.l.b16 %v5327
  %v6263 = vunpack.c.l.b16 %v5328
  %v6264 = vunpack.c.h.b16 %v5328
  %v6265 = vunpack.c.l.b16 %v5329
  %v6266 = vunpack.c.l.b16 %v5330
  %v6267 = vunpack.c.h.b16 %v5330
  %v6268 = vunpack.c.l.b16 %v5331
  %v6269 = vunpack.c.l.b16 %v5332
  %v6270 = vunpack.c.h.b16 %v5332
  %v6271 = vunpack.c.l.b16 %v5333
  %v6272 = vunpack.c.l.b16 %v5334
  %v6273 = vunpack.c.h.b16 %v5334
  %v6274 = vunpack.c.l.b16 %v5335
  %v6275 = vunpack.c.l.b16 %v5336
  %v6276 = vunpack.c.h.b16 %v5336
  %v6277 = vunpack.c.l.b16 %v5337
  %v6278 = vunpack.c.l.b16 %v5338
  %v6279 = vunpack.c.h.b16 %v5338
  %v6280 = vunpack.c.l.b16 %v5339
  %v6281 = vunpack.c.l.b16 %v5340
  %v6282 = vunpack.c.h.b16 %v5340
  %v6283 = vunpack.c.l.b16 %v5341
  %v6284 = vunpack.c.l.b16 %v5342
  %v6285 = vunpack.c.h.b16 %v5342
  %v6286 = vunpack.c.l.b16 %v5343
  %v6287 = vunpack.c.l.b16 %v5344
  %v6288 = vunpack.c.h.b16 %v5344
  %v6289 = vunpack.c.l.b16 %v5345
  %v6290 = vunpack.c.l.b16 %v5346
  %v6291 = vunpack.c.h.b16 %v5346
  %v6292 = vunpack.c.l.b16 %v5347
  %v6293 = vunpack.c.l.b16 %v5348
  %v6294 = vunpack.c.h.b16 %v5348
  %v6295 = vunpack.c.l.b16 %v5349
  %v6296 = vunpack.c.l.b16 %v5350
  %v6297 = vunpack.c.h.b16 %v5350
  %v6298 = vunpack.c.l.b16 %v5351
  %v6299 = vunpack.c.l.b16 %v5352
  %v6300 = vunpack.c.h.b16 %v5352
  %v6301 = vunpack.c.l.b16 %v5353
  %v6302 = vunpack.c.l.b16 %v5354
  %v6303 = vunpack.c.h.b16 %v5354
  %v6304 = vunpack.c.l.b16 %v5355
  %v6305 = vunpack.c.l.b16 %v5356
  %v6306 = vunpack.c.h.b16 %v5356
  %v6307 = vunpack.c.l.b16 %v5357
  %v6308 = vunpack.c.l.b16 %v5358
  %v6309 = vunpack.c.h.b16 %v5358
  %v6310 = vunpack.c.l.b16 %v5359
  %v6311 = vunpack.c.l.b16 %v5360
  %v6312 = vunpack.c.h.b16 %v5360
  %v6313 = vunpack.c.l.b16 %v5361
  %v6314 = vunpack.c.l.b16 %v5362
  %v6315 = vunpack.c.h.b16 %v5362
  %v6316 = vunpack.c.l.b16 %v5363
  %v6317 = vunpack.c.l.b16 %v5364
  %v6318 = vunpack.c.h.b16 %v5364
  %v6319 = vunpack.c.l.b16 %v5365
  %v6320 = vunpack.c.l.b16 %v5366
  %v6321 = vunpack.c.h.b16 %v5366
  %v6322 = vunpack.c.l.b16 %v5367
  %v6323 = vunpack.c.l.b16 %v5368
  %v6324 = vunpack.c.h.b16 %v5368
  %v6325 = vunpack.c.l.b16 %v5369
  %v6326 = vunpack.c.l.b16 %v5370
  %v6327 = vunpack.c.h.b16 %v5370
  %v6328 = vunpack.c.l.b16 %v5371
  %v6329 = vunpack.c.l.b16 %v5372
  %v6330 = vunpack.c.h.b16 %v5372
  %v6331 = vunpack.c.l.b16 %v5373
  %v6332 = vunpack.c.l.b16 %v5374
  %v6333 = vunpack.c.h.b16 %v5374
  %v6334 = vunpack.c.l.b16 %v5375
  %v6335 = vunpack.c.l.b16 %v5376
  %v6336 = vunpack.c.h.b16 %v5376
  %v6337 = vunpack.c.l.b16 %v5377
  %v6338 = vunpack.c.l.b16 %v5378
  %v6339 = vunpack.c.h.b16 %v5378
  %v6340 = vunpack.c.l.b16 %v5379
  %v6341 = vunpack.c.l.b16 %v5380
  %v6342 = vunpack.c.h.b16 %v5380
  %v6343 = vunpack.c.l.b16 %v5381
  %v6344 = vunpack.c.l.b16 %v5382
  %v6345 = vunpack.c.h.b16 %v5382
  %v6346 = vunpack.c.l.b16 %v5383
  %v6347 = vunpack.c.l.b16 %v5384
  %v6348 = vunpack.c.h.b16 %v5384
  %v6349 = vunpack.c.l.b16 %v5385
  %v6350 = vunpack.c.l.b16 %v5386
  %v6351 = vunpack.c.h.b16 %v5386
  %v6352 = vunpack.c.l.b16 %v5387
  %v6353 = vunpack.c.l.b16 %v5388
  %v6354 = vunpack.c.h.b16 %v5388
  %v6355 = vunpack.c.l.b16 %v5389
  %v6356 = vunpack.c.l.b16 %v5390
  %v6357 = vunpack.c.h.b16 %v5390
  %v6358 = vunpack.c.l.b16 %v5391
  %v6359 = vunpack.c.l.b16 %v5392
  %v6360 = vunpack.c.h.b16 %v5392
  %v6361 = vunpack.c.l.b16 %v5393
  %v6362 = vunpack.c.l.b16 %v5394
  %v6363 = vunpack.c.h.b16 %v5394
  %v6364 = vunpack.c.l.b16 %v5395
  %v6365 = vunpack.c.l.b16 %v5396
  %v6366 = vunpack.c.h.b16 %v5396
  %v6367 = vunpack.c.l.b16 %v5397
  %v6368 = vunpack.c.l.b16 %v5398
  %v6369 = vunpack.c.h.b16 %v5398
  %v6370 = vunpack.c.l.b16 %v5399
  %v6371 = vunpack.c.l.b16 %v5400
  %v6372 = vunpack.c.h.b16 %v5400
  %v6373 = vunpack.c.l.b16 %v5401
  %v6374 = vunpack.c.l.b16 %v5402
  %v6375 = vunpack.c.h.b16 %v5402
  %v6376 = vunpack.c.l.b16 %v5403
  %v6377 = vunpack.c.l.b16 %v5404
  %v6378 = vunpack.c.h.b16 %v5404
  %v6379 = vunpack.c.l.b16 %v5405
  %v6380 = vunpack.c.l.b16 %v5406
  %v6381 = vunpack.c.h.b16 %v5406
  %v6382 = vunpack.c.l.b16 %v5407
  %v6383 = vunpack.c.l.b16 %v5408
  %v6384 = vunpack.c.h.b16 %v5408
  %v6385 = vunpack.c.l.b16 %v5409
  %v6386 = vunpack.c.l.b16 %v5410
  %v6387 = vunpack.c.h.b16 %v5410
  %v6388 = vunpack.c.l.b16 %v5411
  %v6389 = vpack.c.b16 %v5816, %v5813
  %v6390 = vpack.c.b16 %v5817, %v5814
  %v6391 = vpack.c.b16 %v5818, %v5815
  %v6392 = vpack.c.b16 %v5822, %v5819
  %v6393 = vpack.c.b16 %v5823, %v5820
  %v6394 = vpack.c.b16 %v5824, %v5821
  %v6395 = vpack.c.b16 %v5828, %v5825
  %v6396 = vpack.c.b16 %v5829, %v5826
  %v6397 = vpack.c.b16 %v5830, %v5827
  %v6398 = vpack.c.b16 %v5834, %v5831
  %v6399 = vpack.c.b16 %v5835, %v5832
  %v6400 = vpack.c.b16 %v5836, %v5833
  %v6401 = vpack.c.b16 %v5840, %v5837
  %v6402 = vpack.c.b16 %v5841, %v5838
  %v6403 = vpack.c.b16 %v5842, %v5839
  %v6404 = vpack.c.b16 %v5846, %v5843
  %v6405 = vpack.c.b16 %v5847, %v5844
  %v6406 = vpack.c.b16 %v5848, %v5845
  %v6407 = vpack.c.b16 %v5852, %v5849
  %v6408 = vpack.c.b16 %v5853, %v5850
  %v6409 = vpack.c.b16 %v5854, %v5851
  %v6410 = vpack.c.b16 %v5858, %v5855
  %v6411 = vpack.c.b16 %v5859, %v5856
  %v6412 = vpack.c.b16 %v5860, %v5857
  %v6413 = vpack.c.b16 %v5864, %v5861
  %v6414 = vpack.c.b16 %v5865, %v5862
  %v6415 = vpack.c.b16 %v5866, %v5863
  %v6416 = vpack.c.b16 %v5870, %v5867
  %v6417 = vpack.c.b16 %v5871, %v5868
  %v6418 = vpack.c.b16 %v5872, %v5869
  %v6419 = vpack.c.b16 %v5876, %v5873
  %v6420 = vpack.c.b16 %v5877, %v5874
  %v6421 = vpack.c.b16 %v5878, %v5875
  %v6422 = vpack.c.b16 %v5882, %v5879
  %v6423 = vpack.c.b16 %v5883, %v5880
  %v6424 = vpack.c.b16 %v5884, %v5881
  %v6425 = vpack.c.b16 %v5888, %v5885
  %v6426 = vpack.c.b16 %v5889, %v5886
  %v6427 = vpack.c.b16 %v5890, %v5887
  %v6428 = vpack.c.b16 %v5894, %v5891
  %v6429 = vpack.c.b16 %v5895, %v5892
  %v6430 = vpack.c.b16 %v5896, %v5893
  %v6431 = vpack.c.b16 %v5900, %v5897
  %v6432 = vpack.c.b16 %v5901, %v5898
  %v6433 = vpack.c.b16 %v5902, %v5899
  %v6434 = vpack.c.b16 %v5906, %v5903
  %v6435 = vpack.c.b16 %v5907, %v5904
  %v6436 = vpack.c.b16 %v5908, %v5905
  %v6437 = vpack.c.b16 %v5912, %v5909
  %v6438 = vpack.c.b16 %v5913, %v5910
  %v6439 = vpack.c.b16 %v5914, %v5911
  %v6440 = vpack.c.b16 %v5918, %v5915
  %v6441 = vpack.c.b16 %v5919, %v5916
  %v6442 = vpack.c.b16 %v5920, %v5917
  %v6443 = vpack.c.b16 %v5924, %v5921
  %v6444 = vpack.c.b16 %v5925, %v5922
  %v6445 = vpack.c.b16 %v5926, %v5923
  %v6446 = vpack.c.b16 %v5930, %v5927
  %v6447 = vpack.c.b16 %v5931, %v5928
  %v6448 = vpack.c.b16 %v5932, %v5929
  %v6449 = vpack.c.b16 %v5936, %v5933
  %v6450 = vpack.c.b16 %v5937, %v5934
  %v6451 = vpack.c.b16 %v5938, %v5935
  %v6452 = vpack.c.b16 %v5942, %v5939
  %v6453 = vpack.c.b16 %v5943, %v5940
  %v6454 = vpack.c.b16 %v5944, %v5941
  %v6455 = vpack.c.b16 %v5948, %v5945
  %v6456 = vpack.c.b16 %v5949, %v5946
  %v6457 = vpack.c.b16 %v5950, %v5947
  %v6458 = vpack.c.b16 %v5954, %v5951
  %v6459 = vpack.c.b16 %v5955, %v5952
  %v6460 = vpack.c.b16 %v5956, %v5953
  %v6461 = vpack.c.b16 %v5960, %v5957
  %v6462 = vpack.c.b16 %v5961, %v5958
  %v6463 = vpack.c.b16 %v5962, %v5959
  %v6464 = vpack.c.b16 %v5966, %v5963
  %v6465 = vpack.c.b16 %v5967, %v5964
  %v6466 = vpack.c.b16 %v5968, %v5965
  %v6467 = vpack.c.b16 %v5972, %v5969
  %v6468 = vpack.c.b16 %v5973, %v5970
  %v6469 = vpack.c.b16 %v5974, %v5971
  %v6470 = vpack.c.b16 %v5978, %v5975
  %v6471 = vpack.c.b16 %v5979, %v5976
  %v6472 = vpack.c.b16 %v5980, %v5977
  %v6473 = vpack.c.b16 %v5984, %v5981
  %v6474 = vpack.c.b16 %v5985, %v5982
  %v6475 = vpack.c.b16 %v5986, %v5983
  %v6476 = vpack.c.b16 %v5990, %v5987
  %v6477 = vpack.c.b16 %v5991, %v5988
  %v6478 = vpack.c.b16 %v5992, %v5989
  %v6479 = vpack.c.b16 %v5996, %v5993
  %v6480 = vpack.c.b16 %v5997, %v5994
  %v6481 = vpack.c.b16 %v5998, %v5995
  %v6482 = vpack.c.b16 %v6002, %v5999
  %v6483 = vpack.c.b16 %v6003, %v6000
  %v6484 = vpack.c.b16 %v6004, %v6001
  %v6485 = vpack.c.b16 %v6008, %v6005
  %v6486 = vpack.c.b16 %v6009, %v6006
  %v6487 = vpack.c.b16 %v6010, %v6007
  %v6488 = vpack.c.b16 %v6014, %v6011
  %v6489 = vpack.c.b16 %v6015, %v6012
  %v6490 = vpack.c.b16 %v6016, %v6013
  %v6491 = vpack.c.b16 %v6020, %v6017
  %v6492 = vpack.c.b16 %v6021, %v6018
  %v6493 = vpack.c.b16 %v6022, %v6019
  %v6494 = vpack.c.b16 %v6026, %v6023
  %v6495 = vpack.c.b16 %v6027, %v6024
  %v6496 = vpack.c.b16 %v6028, %v6025
  %v6497 = vpack.c.b16 %v6032, %v6029
  %v6498 = vpack.c.b16 %v6033, %v6030
  %v6499 = vpack.c.b16 %v6034, %v6031
  %v6500 = vpack.c.b16 %v6038, %v6035
  %v6501 = vpack.c.b16 %v6039, %v6036
  %v6502 = vpack.c.b16 %v6040, %v6037
  %v6503 = vpack.c.b16 %v6044, %v6041
  %v6504 = vpack.c.b16 %v6045, %v6042
  %v6505 = vpack.c.b16 %v6046, %v6043
  %v6506 = vpack.c.b16 %v6050, %v6047
  %v6507 = vpack.c.b16 %v6051, %v6048
  %v6508 = vpack.c.b16 %v6052, %v6049
  %v6509 = vpack.c.b16 %v6056, %v6053
  %v6510 = vpack.c.b16 %v6057, %v6054
  %v6511 = vpack.c.b16 %v6058, %v6055
  %v6512 = vpack.c.b16 %v6062, %v6059
  %v6513 = vpack.c.b16 %v6063, %v6060
  %v6514 = vpack.c.b16 %v6064, %v6061
  %v6515 = vpack.c.b16 %v6068, %v6065
  %v6516 = vpack.c.b16 %v6069, %v6066
  %v6517 = vpack.c.b16 %v6070, %v6067
  %v6518 = vpack.c.b16 %v6074, %v6071
  %v6519 = vpack.c.b16 %v6075, %v6072
  %v6520 = vpack.c.b16 %v6076, %v6073
  %v6521 = vpack.c.b16 %v6080, %v6077
  %v6522 = vpack.c.b16 %v6081, %v6078
  %v6523 = vpack.c.b16 %v6082, %v6079
  %v6524 = vpack.c.b16 %v6086, %v6083
  %v6525 = vpack.c.b16 %v6087, %v6084
  %v6526 = vpack.c.b16 %v6088, %v6085
  %v6527 = vpack.c.b16 %v6092, %v6089
  %v6528 = vpack.c.b16 %v6093, %v6090
  %v6529 = vpack.c.b16 %v6094, %v6091
  %v6530 = vpack.c.b16 %v6098, %v6095
  %v6531 = vpack.c.b16 %v6099, %v6096
  %v6532 = vpack.c.b16 %v6100, %v6097
  %v6533 = vpack.c.b16 %v6104, %v6101
  %v6534 = vpack.c.b16 %v6105, %v6102
  %v6535 = vpack.c.b16 %v6106, %v6103
  %v6536 = vpack.c.b16 %v6110, %v6107
  %v6537 = vpack.c.b16 %v6111, %v6108
  %v6538 = vpack.c.b16 %v6112, %v6109
  %v6539 = vpack.c.b16 %v6116, %v6113
  %v6540 = vpack.c.b16 %v6117, %v6114
  %v6541 = vpack.c.b16 %v6118, %v6115
  %v6542 = vpack.c.b16 %v6122, %v6119
  %v6543 = vpack.c.b16 %v6123, %v6120
  %v6544 = vpack.c.b16 %v6124, %v6121
  %v6545 = vpack.c.b16 %v6128, %v6125
  %v6546 = vpack.c.b16 %v6129, %v6126
  %v6547 = vpack.c.b16 %v6130, %v6127
  %v6548 = vpack.c.b16 %v6134, %v6131
  %v6549 = vpack.c.b16 %v6135, %v6132
  %v6550 = vpack.c.b16 %v6136, %v6133
  %v6551 = vpack.c.b16 %v6140, %v6137
  %v6552 = vpack.c.b16 %v6141, %v6138
  %v6553 = vpack.c.b16 %v6142, %v6139
  %v6554 = vpack.c.b16 %v6146, %v6143
  %v6555 = vpack.c.b16 %v6147, %v6144
  %v6556 = vpack.c.b16 %v6148, %v6145
  %v6557 = vpack.c.b16 %v6152, %v6149
  %v6558 = vpack.c.b16 %v6153, %v6150
  %v6559 = vpack.c.b16 %v6154, %v6151
  %v6560 = vpack.c.b16 %v6158, %v6155
  %v6561 = vpack.c.b16 %v6159, %v6156
  %v6562 = vpack.c.b16 %v6160, %v6157
  %v6563 = vpack.c.b16 %v6164, %v6161
  %v6564 = vpack.c.b16 %v6165, %v6162
  %v6565 = vpack.c.b16 %v6166, %v6163
  %v6566 = vpack.c.b16 %v6170, %v6167
  %v6567 = vpack.c.b16 %v6171, %v6168
  %v6568 = vpack.c.b16 %v6172, %v6169
  %v6569 = vpack.c.b16 %v6176, %v6173
  %v6570 = vpack.c.b16 %v6177, %v6174
  %v6571 = vpack.c.b16 %v6178, %v6175
  %v6572 = vpack.c.b16 %v6182, %v6179
  %v6573 = vpack.c.b16 %v6183, %v6180
  %v6574 = vpack.c.b16 %v6184, %v6181
  %v6575 = vpack.c.b16 %v6188, %v6185
  %v6576 = vpack.c.b16 %v6189, %v6186
  %v6577 = vpack.c.b16 %v6190, %v6187
  %v6578 = vpack.c.b16 %v6194, %v6191
  %v6579 = vpack.c.b16 %v6195, %v6192
  %v6580 = vpack.c.b16 %v6196, %v6193
  %v6581 = vpack.c.b16 %v6200, %v6197
  %v6582 = vpack.c.b16 %v6201, %v6198
  %v6583 = vpack.c.b16 %v6202, %v6199
  %v6584 = vpack.c.b16 %v6206, %v6203
  %v6585 = vpack.c.b16 %v6207, %v6204
  %v6586 = vpack.c.b16 %v6208, %v6205
  %v6587 = vpack.c.b16 %v6212, %v6209
  %v6588 = vpack.c.b16 %v6213, %v6210
  %v6589 = vpack.c.b16 %v6214, %v6211
  %v6590 = vpack.c.b16 %v6218, %v6215
  %v6591 = vpack.c.b16 %v6219, %v6216
  %v6592 = vpack.c.b16 %v6220, %v6217
  %v6593 = vpack.c.b16 %v6224, %v6221
  %v6594 = vpack.c.b16 %v6225, %v6222
  %v6595 = vpack.c.b16 %v6226, %v6223
  %v6596 = vpack.c.b16 %v6230, %v6227
  %v6597 = vpack.c.b16 %v6231, %v6228
  %v6598 = vpack.c.b16 %v6232, %v6229
  %v6599 = vpack.c.b16 %v6236, %v6233
  %v6600 = vpack.c.b16 %v6237, %v6234
  %v6601 = vpack.c.b16 %v6238, %v6235
  %v6602 = vpack.c.b16 %v6242, %v6239
  %v6603 = vpack.c.b16 %v6243, %v6240
  %v6604 = vpack.c.b16 %v6244, %v6241
  %v6605 = vpack.c.b16 %v6248, %v6245
  %v6606 = vpack.c.b16 %v6249, %v6246
  %v6607 = vpack.c.b16 %v6250, %v6247
  %v6608 = vpack.c.b16 %v6254, %v6251
  %v6609 = vpack.c.b16 %v6255, %v6252
  %v6610 = vpack.c.b16 %v6256, %v6253
  %v6611 = vpack.c.b16 %v6260, %v6257
  %v6612 = vpack.c.b16 %v6261, %v6258
  %v6613 = vpack.c.b16 %v6262, %v6259
  %v6614 = vpack.c.b16 %v6266, %v6263
  %v6615 = vpack.c.b16 %v6267, %v6264
  %v6616 = vpack.c.b16 %v6268, %v6265
  %v6617 = vpack.c.b16 %v6272, %v6269
  %v6618 = vpack.c.b16 %v6273, %v6270
  %v6619 = vpack.c.b16 %v6274, %v6271
  %v6620 = vpack.c.b16 %v6278, %v6275
  %v6621 = vpack.c.b16 %v6279, %v6276
  %v6622 = vpack.c.b16 %v6280, %v6277
  %v6623 = vpack.c.b16 %v6284, %v6281
  %v6624 = vpack.c.b16 %v6285, %v6282
  %v6625 = vpack.c.b16 %v6286, %v6283
  %v6626 = vpack.c.b16 %v6290, %v6287
  %v6627 = vpack.c.b16 %v6291, %v6288
  %v6628 = vpack.c.b16 %v6292, %v6289
  %v6629 = vpack.c.b16 %v6296, %v6293
  %v6630 = vpack.c.b16 %v6297, %v6294
  %v6631 = vpack.c.b16 %v6298, %v6295
  %v6632 = vpack.c.b16 %v6302, %v6299
  %v6633 = vpack.c.b16 %v6303, %v6300
  %v6634 = vpack.c.b16 %v6304, %v6301
  %v6635 = vpack.c.b16 %v6308, %v6305
  %v6636 = vpack.c.b16 %v6309, %v6306
  %v6637 = vpack.c.b16 %v6310, %v6307
  %v6638 = vpack.c.b16 %v6314, %v6311
  %v6639 = vpack.c.b16 %v6315, %v6312
  %v6640 = vpack.c.b16 %v6316, %v6313
  %v6641 = vpack.c.b16 %v6320, %v6317
  %v6642 = vpack.c.b16 %v6321, %v6318
  %v6643 = vpack.c.b16 %v6322, %v6319
  %v6644 = vpack.c.b16 %v6326, %v6323
  %v6645 = vpack.c.b16 %v6327, %v6324
  %v6646 = vpack.c.b16 %v6328, %v6325
  %v6647 = vpack.c.b16 %v6332, %v6329
  %v6648 = vpack.c.b16 %v6333, %v6330
  %v6649 = vpack.c.b16 %v6334, %v6331
  %v6650 = vpack.c.b16 %v6338, %v6335
  %v6651 = vpack.c.b16 %v6339, %v6336
  %v6652 = vpack.c.b16 %v6340, %v6337
  %v6653 = vpack.c.b16 %v6344, %v6341
  %v6654 = vpack.c.b16 %v6345, %v6342
  %v6655 = vpack.c.b16 %v6346, %v6343
  %v6656 = vpack.c.b16 %v6350, %v6347
  %v6657 = vpack.c.b16 %v6351, %v6348
  %v6658 = vpack.c.b16 %v6352, %v6349
  %v6659 = vpack.c.b16 %v6356, %v6353
  %v6660 = vpack.c.b16 %v6357, %v6354
  %v6661 = vpack.c.b16 %v6358, %v6355
  %v6662 = vpack.c.b16 %v6362, %v6359
  %v6663 = vpack.c.b16 %v6363, %v6360
  %v6664 = vpack.c.b16 %v6364, %v6361
  %v6665 = vpack.c.b16 %v6368, %v6365
  %v6666 = vpack.c.b16 %v6369, %v6366
  %v6667 = vpack.c.b16 %v6370, %v6367
  %v6668 = vpack.c.b16 %v6374, %v6371
  %v6669 = vpack.c.b16 %v6375, %v6372
  %v6670 = vpack.c.b16 %v6376, %v6373
  %v6671 = vpack.c.b16 %v6380, %v6377
  %v6672 = vpack.c.b16 %v6381, %v6378
  %v6673 = vpack.c.b16 %v6382, %v6379
  %v6674 = vpack.c.b16 %v6386, %v6383
  %v6675 = vpack.c.b16 %v6387, %v6384
  %v6676 = vpack.c.b16 %v6388, %v6385
  %6965 = vmatprep.subr.bf16.mxu0 %v6390
  %6966 = vmatpush1.bf16.msra.mxu0 %v6389
  %6967 = vmatprep.subr.bf16.mxu0 %v6393
  %6968 = vmatpush1.bf16.msra.mxu0 %v6392
  %6969 = vmatprep.subr.bf16.mxu0 %v6396
  %6970 = vmatpush1.bf16.msra.mxu0 %v6395
  %6971 = vmatprep.subr.bf16.mxu0 %v6399
  %6972 = vmatpush1.bf16.msra.mxu0 %v6398
  %6973 = vmatprep.subr.bf16.mxu0 %v6402
  %6974 = vmatpush1.bf16.msra.mxu0 %v6401
  %6975 = vmatprep.subr.bf16.mxu0 %v6405
  %6976 = vmatpush1.bf16.msra.mxu0 %v6404
  %6977 = vmatprep.subr.bf16.mxu0 %v6408
  %6978 = vmatpush1.bf16.msra.mxu0 %v6407
  %6979 = vmatprep.subr.bf16.mxu0 %v6411
  %6980 = vmatpush1.bf16.msra.mxu0 %v6410
  %6981 = vmatprep.subr.bf16.mxu0 %v6414
  %6982 = vmatpush1.bf16.msra.mxu0 %v6413
  %6983 = vmatprep.subr.bf16.mxu0 %v6417
  %6984 = vmatpush1.bf16.msra.mxu0 %v6416
  %6985 = vmatprep.subr.bf16.mxu0 %v6420
  %6986 = vmatpush1.bf16.msra.mxu0 %v6419
  %6987 = vmatprep.subr.bf16.mxu0 %v6423
  %6988 = vmatpush1.bf16.msra.mxu0 %v6422
  %6989 = vmatprep.subr.bf16.mxu0 %v6426
  %6990 = vmatpush1.bf16.msra.mxu0 %v6425
  %6991 = vmatprep.subr.bf16.mxu0 %v6429
  %6992 = vmatpush1.bf16.msra.mxu0 %v6428
  %6993 = vmatprep.subr.bf16.mxu0 %v6432
  %6994 = vmatpush1.bf16.msra.mxu0 %v6431
  %6995 = vmatprep.subr.bf16.mxu0 %v6435
  %6996 = vmatpush1.bf16.msra.mxu0 %v6434
  %6997 = vmatprep.mubr.bf16.mxu0 %v4837
  %6998 = vmatmul.mubr.bf16.gmra.mrb[0].mxu0 %v4836
  %v6999 = vpop.f32.mrb[0].mxu0
  %v7000 = vadd.f32 %v5417, %v6999
  %v7001 = vpop.f32.mrb[0].mxu0
  %v7002 = vadd.f32 %v5421, %v7001
  %v7003 = vpop.f32.mrb[0].mxu0
  %v7004 = vadd.f32 %v5417, %v7003
  %v7005 = vpop.f32.mrb[0].mxu0
  %v7006 = vadd.f32 %v5421, %v7005
  %7007 = vmatprep.mubr.bf16.mxu0 %v4849
  %7008 = vmatmul.mubr.bf16.gmra.mrb[0].mxu0 %v4848
  %v7009 = vpop.f32.mrb[0].mxu0
  %v7010 = vadd.f32 %v5417, %v7009
  %v7011 = vpop.f32.mrb[0].mxu0
  %v7012 = vadd.f32 %v5421, %v7011
  %v7013 = vpop.f32.mrb[0].mxu0
  %v7014 = vadd.f32 %v5417, %v7013
  %v7015 = vpop.f32.mrb[0].mxu0
  %v7016 = vadd.f32 %v5421, %v7015
  %7017 = vmatprep.mubr.bf16.mxu0 %v4861
  %7018 = vmatmul.mubr.bf16.gmra.mrb[0].mxu0 %v4860
  %v7019 = vpop.f32.mrb[0].mxu0
  %v7020 = vadd.f32 %v5417, %v7019
  %v7021 = vpop.f32.mrb[0].mxu0
  %v7022 = vadd.f32 %v5421, %v7021
  %v7023 = vpop.f32.mrb[0].mxu0
  %v7024 = vadd.f32 %v5417, %v7023
  %v7025 = vpop.f32.mrb[0].mxu0
  %v7026 = vadd.f32 %v5421, %v7025
  %7027 = vmatprep.mubr.bf16.mxu0 %v4873
  %7028 = vmatmul.mubr.bf16.gmra.mrb[0].mxu0 %v4872
  %v7029 = vpop.f32.mrb[0].mxu0
  %v7030 = vadd.f32 %v5417, %v7029
  %v7031 = vpop.f32.mrb[0].mxu0
  %v7032 = vadd.f32 %v5421, %v7031
  %v7033 = vpop.f32.mrb[0].mxu0
  %v7034 = vadd.f32 %v5417, %v7033
  %v7035 = vpop.f32.mrb[0].mxu0
  %v7036 = vadd.f32 %v5421, %v7035
  %7037 = vmatprep.mubr.bf16.mxu0 %v4885
  %7038 = vmatmul.mubr.bf16.gmra.mrb[0].mxu0 %v4884
  %v7039 = vpop.f32.mrb[0].mxu0
  %v7040 = vadd.f32 %v5417, %v7039
  %v7041 = vpop.f32.mrb[0].mxu0
  %v7042 = vadd.f32 %v5421, %v7041
  %v7043 = vpop.f32.mrb[0].mxu0
  %v7044 = vadd.f32 %v5417, %v7043
  %v7045 = vpop.f32.mrb[0].mxu0
  %v7046 = vadd.f32 %v5421, %v7045
  %7047 = vmatprep.mubr.bf16.mxu0 %v4897
  %7048 = vmatmul.mubr.bf16.gmra.mrb[0].mxu0 %v4896
  %v7049 = vpop.f32.mrb[0].mxu0
  %v7050 = vadd.f32 %v5417, %v7049
  %v7051 = vpop.f32.mrb[0].mxu0
  %v7052 = vadd.f32 %v5421, %v7051
  %v7053 = vpop.f32.mrb[0].mxu0
  %v7054 = vadd.f32 %v5417, %v7053
  %v7055 = vpop.f32.mrb[0].mxu0
  %v7056 = vadd.f32 %v5421, %v7055
  %7057 = vmatprep.mubr.bf16.mxu0 %v4909
  %7058 = vmatmul.mubr.bf16.gmra.mrb[0].mxu0 %v4908
  %v7059 = vpop.f32.mrb[0].mxu0
  %v7060 = vadd.f32 %v5417, %v7059
  %v7061 = vpop.f32.mrb[0].mxu0
  %v7062 = vadd.f32 %v5421, %v7061
  %v7063 = vpop.f32.mrb[0].mxu0
  %v7064 = vadd.f32 %v5417, %v7063
  %v7065 = vpop.f32.mrb[0].mxu0
  %v7066 = vadd.f32 %v5421, %v7065
  %7067 = vmatprep.mubr.bf16.mxu0 %v4921
  %7068 = vmatmul.mubr.bf16.gmra.mrb[0].mxu0 %v4920
  %v7069 = vpop.f32.mrb[0].mxu0
  %v7070 = vadd.f32 %v5417, %v7069
  %v7071 = vpop.f32.mrb[0].mxu0
  %v7072 = vadd.f32 %v5421, %v7071
  %v7073 = vpop.f32.mrb[0].mxu0
  %v7074 = vadd.f32 %v5417, %v7073
  %v7075 = vpop.f32.mrb[0].mxu0
  %v7076 = vadd.f32 %v5421, %v7075
  %7077 = vmatprep.mubr.bf16.mxu0 %v4933
  %7078 = vmatmul.mubr.bf16.gmra.mrb[0].mxu0 %v4932
  %v7079 = vpop.f32.mrb[0].mxu0
  %v7080 = vadd.f32 %v5417, %v7079
  %v7081 = vpop.f32.mrb[0].mxu0
  %v7082 = vadd.f32 %v5421, %v7081
  %v7083 = vpop.f32.mrb[0].mxu0
  %v7084 = vadd.f32 %v5417, %v7083
  %v7085 = vpop.f32.mrb[0].mxu0
  %v7086 = vadd.f32 %v5421, %v7085
  %7087 = vmatprep.mubr.bf16.mxu0 %v4945
  %7088 = vmatmul.mubr.bf16.gmra.mrb[0].mxu0 %v4944
  %v7089 = vpop.f32.mrb[0].mxu0
  %v7090 = vadd.f32 %v5417, %v7089
  %v7091 = vpop.f32.mrb[0].mxu0
  %v7092 = vadd.f32 %v5421, %v7091
  %v7093 = vpop.f32.mrb[0].mxu0
  %v7094 = vadd.f32 %v5417, %v7093
  %v7095 = vpop.f32.mrb[0].mxu0
  %v7096 = vadd.f32 %v5421, %v7095
  %7097 = vmatprep.mubr.bf16.mxu0 %v4957
  %7098 = vmatmul.mubr.bf16.gmra.mrb[0].mxu0 %v4956
  %v7099 = vpop.f32.mrb[0].mxu0
  %v7100 = vadd.f32 %v5417, %v7099
  %v7101 = vpop.f32.mrb[0].mxu0
  %v7102 = vadd.f32 %v5421, %v7101
  %v7103 = vpop.f32.mrb[0].mxu0
  %v7104 = vadd.f32 %v5417, %v7103
  %v7105 = vpop.f32.mrb[0].mxu0
  %v7106 = vadd.f32 %v5421, %v7105
  %7107 = vmatprep.mubr.bf16.mxu0 %v4969
  %7108 = vmatmul.mubr.bf16.gmra.mrb[0].mxu0 %v4968
  %v7109 = vpop.f32.mrb[0].mxu0
  %v7110 = vadd.f32 %v5417, %v7109
  %v7111 = vpop.f32.mrb[0].mxu0
  %v7112 = vadd.f32 %v5421, %v7111
  %v7113 = vpop.f32.mrb[0].mxu0
  %v7114 = vadd.f32 %v5417, %v7113
  %v7115 = vpop.f32.mrb[0].mxu0
  %v7116 = vadd.f32 %v5421, %v7115
  %7117 = vmatprep.mubr.bf16.mxu0 %v4981
  %7118 = vmatmul.mubr.bf16.gmra.mrb[0].mxu0 %v4980
  %v7119 = vpop.f32.mrb[0].mxu0
  %v7120 = vadd.f32 %v5417, %v7119
  %v7121 = vpop.f32.mrb[0].mxu0
  %v7122 = vadd.f32 %v5421, %v7121
  %v7123 = vpop.f32.mrb[0].mxu0
  %v7124 = vadd.f32 %v5417, %v7123
  %v7125 = vpop.f32.mrb[0].mxu0
  %v7126 = vadd.f32 %v5421, %v7125
  %7127 = vmatprep.mubr.bf16.mxu0 %v4993
  %7128 = vmatmul.mubr.bf16.gmra.mrb[0].mxu0 %v4992
  %v7129 = vpop.f32.mrb[0].mxu0
  %v7130 = vadd.f32 %v5417, %v7129
  %v7131 = vpop.f32.mrb[0].mxu0
  %v7132 = vadd.f32 %v5421, %v7131
  %v7133 = vpop.f32.mrb[0].mxu0
  %v7134 = vadd.f32 %v5417, %v7133
  %v7135 = vpop.f32.mrb[0].mxu0
  %v7136 = vadd.f32 %v5421, %v7135
  %7137 = vmatprep.mubr.bf16.mxu0 %v5005
  %7138 = vmatmul.mubr.bf16.gmra.mrb[0].mxu0 %v5004
  %v7139 = vpop.f32.mrb[0].mxu0
  %v7140 = vadd.f32 %v5417, %v7139
  %v7141 = vpop.f32.mrb[0].mxu0
  %v7142 = vadd.f32 %v5421, %v7141
  %v7143 = vpop.f32.mrb[0].mxu0
  %v7144 = vadd.f32 %v5417, %v7143
  %v7145 = vpop.f32.mrb[0].mxu0
  %v7146 = vadd.f32 %v5421, %v7145
  %7147 = vmatprep.mubr.bf16.mxu0 %v5017
  %7148 = vmatmul.mubr.bf16.gmra.mrb[0].mxu0 %v5016
  %v7149 = vpop.f32.mrb[0].mxu0
  %v7150 = vadd.f32 %v5417, %v7149
  %v7151 = vpop.f32.mrb[0].mxu0
  %v7152 = vadd.f32 %v5421, %v7151
  %v7153 = vpop.f32.mrb[0].mxu0
  %v7154 = vadd.f32 %v5417, %v7153
  %v7155 = vpop.f32.mrb[0].mxu0
  %v7156 = vadd.f32 %v5421, %v7155
  %7157 = vdwg.mxu0
  %7158 = vmatprep.subr.bf16.mxu0 %v6438
  %7159 = vmatpush1.bf16.msra.mxu0 %v6437
  %7160 = vmatprep.subr.bf16.mxu0 %v6441
  %7161 = vmatpush1.bf16.msra.mxu0 %v6440
  %7162 = vmatprep.subr.bf16.mxu0 %v6444
  %7163 = vmatpush1.bf16.msra.mxu0 %v6443
  %7164 = vmatprep.subr.bf16.mxu0 %v6447
  %7165 = vmatpush1.bf16.msra.mxu0 %v6446
  %7166 = vmatprep.subr.bf16.mxu0 %v6450
  %7167 = vmatpush1.bf16.msra.mxu0 %v6449
  %7168 = vmatprep.subr.bf16.mxu0 %v6453
  %7169 = vmatpush1.bf16.msra.mxu0 %v6452
  %7170 = vmatprep.subr.bf16.mxu0 %v6456
  %7171 = vmatpush1.bf16.msra.mxu0 %v6455
  %7172 = vmatprep.subr.bf16.mxu0 %v6459
  %7173 = vmatpush1.bf16.msra.mxu0 %v6458
  %7174 = vmatprep.subr.bf16.mxu0 %v6462
  %7175 = vmatpush1.bf16.msra.mxu0 %v6461
  %7176 = vmatprep.subr.bf16.mxu0 %v6465
  %7177 = vmatpush1.bf16.msra.mxu0 %v6464
  %7178 = vmatprep.subr.bf16.mxu0 %v6468
  %7179 = vmatpush1.bf16.msra.mxu0 %v6467
  %7180 = vmatprep.subr.bf16.mxu0 %v6471
  %7181 = vmatpush1.bf16.msra.mxu0 %v6470
  %7182 = vmatprep.subr.bf16.mxu0 %v6474
  %7183 = vmatpush1.bf16.msra.mxu0 %v6473
  %7184 = vmatprep.subr.bf16.mxu0 %v6477
  %7185 = vmatpush1.bf16.msra.mxu0 %v6476
  %7186 = vmatprep.subr.bf16.mxu0 %v6480
  %7187 = vmatpush1.bf16.msra.mxu0 %v6479
  %7188 = vmatprep.subr.bf16.mxu0 %v6483
  %7189 = vmatpush1.bf16.msra.mxu0 %v6482
  %7190 = vmatprep.mubr.bf16.mxu0 %v4839
  %7191 = vmatmul.mubr.bf16.gmra.mrb[0].mxu0 %v4838
  %v7192 = vpop.f32.mrb[0].mxu0
  %v7193 = vadd.f32 %v7000, %v7192
  %v7194 = vpop.f32.mrb[0].mxu0
  %v7195 = vadd.f32 %v7002, %v7194
  %v7196 = vpop.f32.mrb[0].mxu0
  %v7197 = vadd.f32 %v7004, %v7196
  %v7198 = vpop.f32.mrb[0].mxu0
  %v7199 = vadd.f32 %v7006, %v7198
  %7200 = vmatprep.mubr.bf16.mxu0 %v4851
  %7201 = vmatmul.mubr.bf16.gmra.mrb[0].mxu0 %v4850
  %v7202 = vpop.f32.mrb[0].mxu0
  %v7203 = vadd.f32 %v7010, %v7202
  %v7204 = vpop.f32.mrb[0].mxu0
  %v7205 = vadd.f32 %v7012, %v7204
  %v7206 = vpop.f32.mrb[0].mxu0
  %v7207 = vadd.f32 %v7014, %v7206
  %v7208 = vpop.f32.mrb[0].mxu0
  %v7209 = vadd.f32 %v7016, %v7208
  %7210 = vmatprep.mubr.bf16.mxu0 %v4863
  %7211 = vmatmul.mubr.bf16.gmra.mrb[0].mxu0 %v4862
  %v7212 = vpop.f32.mrb[0].mxu0
  %v7213 = vadd.f32 %v7020, %v7212
  %v7214 = vpop.f32.mrb[0].mxu0
  %v7215 = vadd.f32 %v7022, %v7214
  %v7216 = vpop.f32.mrb[0].mxu0
  %v7217 = vadd.f32 %v7024, %v7216
  %v7218 = vpop.f32.mrb[0].mxu0
  %v7219 = vadd.f32 %v7026, %v7218
  %7220 = vmatprep.mubr.bf16.mxu0 %v4875
  %7221 = vmatmul.mubr.bf16.gmra.mrb[0].mxu0 %v4874
  %v7222 = vpop.f32.mrb[0].mxu0
  %v7223 = vadd.f32 %v7030, %v7222
  %v7224 = vpop.f32.mrb[0].mxu0
  %v7225 = vadd.f32 %v7032, %v7224
  %v7226 = vpop.f32.mrb[0].mxu0
  %v7227 = vadd.f32 %v7034, %v7226
  %v7228 = vpop.f32.mrb[0].mxu0
  %v7229 = vadd.f32 %v7036, %v7228
  %7230 = vmatprep.mubr.bf16.mxu0 %v4887
  %7231 = vmatmul.mubr.bf16.gmra.mrb[0].mxu0 %v4886
  %v7232 = vpop.f32.mrb[0].mxu0
  %v7233 = vadd.f32 %v7040, %v7232
  %v7234 = vpop.f32.mrb[0].mxu0
  %v7235 = vadd.f32 %v7042, %v7234
  %v7236 = vpop.f32.mrb[0].mxu0
  %v7237 = vadd.f32 %v7044, %v7236
  %v7238 = vpop.f32.mrb[0].mxu0
  %v7239 = vadd.f32 %v7046, %v7238
  %7240 = vmatprep.mubr.bf16.mxu0 %v4899
  %7241 = vmatmul.mubr.bf16.gmra.mrb[0].mxu0 %v4898
  %v7242 = vpop.f32.mrb[0].mxu0
  %v7243 = vadd.f32 %v7050, %v7242
  %v7244 = vpop.f32.mrb[0].mxu0
  %v7245 = vadd.f32 %v7052, %v7244
  %v7246 = vpop.f32.mrb[0].mxu0
  %v7247 = vadd.f32 %v7054, %v7246
  %v7248 = vpop.f32.mrb[0].mxu0
  %v7249 = vadd.f32 %v7056, %v7248
  %7250 = vmatprep.mubr.bf16.mxu0 %v4911
  %7251 = vmatmul.mubr.bf16.gmra.mrb[0].mxu0 %v4910
  %v7252 = vpop.f32.mrb[0].mxu0
  %v7253 = vadd.f32 %v7060, %v7252
  %v7254 = vpop.f32.mrb[0].mxu0
  %v7255 = vadd.f32 %v7062, %v7254
  %v7256 = vpop.f32.mrb[0].mxu0
  %v7257 = vadd.f32 %v7064, %v7256
  %v7258 = vpop.f32.mrb[0].mxu0
  %v7259 = vadd.f32 %v7066, %v7258
  %7260 = vmatprep.mubr.bf16.mxu0 %v4923
  %7261 = vmatmul.mubr.bf16.gmra.mrb[0].mxu0 %v4922
  %v7262 = vpop.f32.mrb[0].mxu0
  %v7263 = vadd.f32 %v7070, %v7262
  %v7264 = vpop.f32.mrb[0].mxu0
  %v7265 = vadd.f32 %v7072, %v7264
  %v7266 = vpop.f32.mrb[0].mxu0
  %v7267 = vadd.f32 %v7074, %v7266
  %v7268 = vpop.f32.mrb[0].mxu0
  %v7269 = vadd.f32 %v7076, %v7268
  %7270 = vmatprep.mubr.bf16.mxu0 %v4935
  %7271 = vmatmul.mubr.bf16.gmra.mrb[0].mxu0 %v4934
  %v7272 = vpop.f32.mrb[0].mxu0
  %v7273 = vadd.f32 %v7080, %v7272
  %v7274 = vpop.f32.mrb[0].mxu0
  %v7275 = vadd.f32 %v7082, %v7274
  %v7276 = vpop.f32.mrb[0].mxu0
  %v7277 = vadd.f32 %v7084, %v7276
  %v7278 = vpop.f32.mrb[0].mxu0
  %v7279 = vadd.f32 %v7086, %v7278
  %7280 = vmatprep.mubr.bf16.mxu0 %v4947
  %7281 = vmatmul.mubr.bf16.gmra.mrb[0].mxu0 %v4946
  %v7282 = vpop.f32.mrb[0].mxu0
  %v7283 = vadd.f32 %v7090, %v7282
  %v7284 = vpop.f32.mrb[0].mxu0
  %v7285 = vadd.f32 %v7092, %v7284
  %v7286 = vpop.f32.mrb[0].mxu0
  %v7287 = vadd.f32 %v7094, %v7286
  %v7288 = vpop.f32.mrb[0].mxu0
  %v7289 = vadd.f32 %v7096, %v7288
  %7290 = vmatprep.mubr.bf16.mxu0 %v4959
  %7291 = vmatmul.mubr.bf16.gmra.mrb[0].mxu0 %v4958
  %v7292 = vpop.f32.mrb[0].mxu0
  %v7293 = vadd.f32 %v7100, %v7292
  %v7294 = vpop.f32.mrb[0].mxu0
  %v7295 = vadd.f32 %v7102, %v7294
  %v7296 = vpop.f32.mrb[0].mxu0
  %v7297 = vadd.f32 %v7104, %v7296
  %v7298 = vpop.f32.mrb[0].mxu0
  %v7299 = vadd.f32 %v7106, %v7298
  %7300 = vmatprep.mubr.bf16.mxu0 %v4971
  %7301 = vmatmul.mubr.bf16.gmra.mrb[0].mxu0 %v4970
  %v7302 = vpop.f32.mrb[0].mxu0
  %v7303 = vadd.f32 %v7110, %v7302
  %v7304 = vpop.f32.mrb[0].mxu0
  %v7305 = vadd.f32 %v7112, %v7304
  %v7306 = vpop.f32.mrb[0].mxu0
  %v7307 = vadd.f32 %v7114, %v7306
  %v7308 = vpop.f32.mrb[0].mxu0
  %v7309 = vadd.f32 %v7116, %v7308
  %7310 = vmatprep.mubr.bf16.mxu0 %v4983
  %7311 = vmatmul.mubr.bf16.gmra.mrb[0].mxu0 %v4982
  %v7312 = vpop.f32.mrb[0].mxu0
  %v7313 = vadd.f32 %v7120, %v7312
  %v7314 = vpop.f32.mrb[0].mxu0
  %v7315 = vadd.f32 %v7122, %v7314
  %v7316 = vpop.f32.mrb[0].mxu0
  %v7317 = vadd.f32 %v7124, %v7316
  %v7318 = vpop.f32.mrb[0].mxu0
  %v7319 = vadd.f32 %v7126, %v7318
  %7320 = vmatprep.mubr.bf16.mxu0 %v4995
  %7321 = vmatmul.mubr.bf16.gmra.mrb[0].mxu0 %v4994
  %v7322 = vpop.f32.mrb[0].mxu0
  %v7323 = vadd.f32 %v7130, %v7322
  %v7324 = vpop.f32.mrb[0].mxu0
  %v7325 = vadd.f32 %v7132, %v7324
  %v7326 = vpop.f32.mrb[0].mxu0
  %v7327 = vadd.f32 %v7134, %v7326
  %v7328 = vpop.f32.mrb[0].mxu0
  %v7329 = vadd.f32 %v7136, %v7328
  %7330 = vmatprep.mubr.bf16.mxu0 %v5007
  %7331 = vmatmul.mubr.bf16.gmra.mrb[0].mxu0 %v5006
  %v7332 = vpop.f32.mrb[0].mxu0
  %v7333 = vadd.f32 %v7140, %v7332
  %v7334 = vpop.f32.mrb[0].mxu0
  %v7335 = vadd.f32 %v7142, %v7334
  %v7336 = vpop.f32.mrb[0].mxu0
  %v7337 = vadd.f32 %v7144, %v7336
  %v7338 = vpop.f32.mrb[0].mxu0
  %v7339 = vadd.f32 %v7146, %v7338
  %7340 = vmatprep.mubr.bf16.mxu0 %v5019
  %7341 = vmatmul.mubr.bf16.gmra.mrb[0].mxu0 %v5018
  %v7342 = vpop.f32.mrb[0].mxu0
  %v7343 = vadd.f32 %v7150, %v7342
  %v7344 = vpop.f32.mrb[0].mxu0
  %v7345 = vadd.f32 %v7152, %v7344
  %v7346 = vpop.f32.mrb[0].mxu0
  %v7347 = vadd.f32 %v7154, %v7346
  %v7348 = vpop.f32.mrb[0].mxu0
  %v7349 = vadd.f32 %v7156, %v7348
  %7350 = vdwg.mxu0
  %7351 = vmatprep.subr.bf16.mxu0 %v6486
  %7352 = vmatpush1.bf16.msra.mxu0 %v6485
  %7353 = vmatprep.subr.bf16.mxu0 %v6489
  %7354 = vmatpush1.bf16.msra.mxu0 %v6488
  %7355 = vmatprep.subr.bf16.mxu0 %v6492
  %7356 = vmatpush1.bf16.msra.mxu0 %v6491
  %7357 = vmatprep.subr.bf16.mxu0 %v6495
  %7358 = vmatpush1.bf16.msra.mxu0 %v6494
  %7359 = vmatprep.subr.bf16.mxu0 %v6498
  %7360 = vmatpush1.bf16.msra.mxu0 %v6497
  %7361 = vmatprep.subr.bf16.mxu0 %v6501
  %7362 = vmatpush1.bf16.msra.mxu0 %v6500
  %7363 = vmatprep.subr.bf16.mxu0 %v6504
  %7364 = vmatpush1.bf16.msra.mxu0 %v6503
  %7365 = vmatprep.subr.bf16.mxu0 %v6507
  %7366 = vmatpush1.bf16.msra.mxu0 %v6506
  %7367 = vmatprep.subr.bf16.mxu0 %v6510
  %7368 = vmatpush1.bf16.msra.mxu0 %v6509
  %7369 = vmatprep.subr.bf16.mxu0 %v6513
  %7370 = vmatpush1.bf16.msra.mxu0 %v6512
  %7371 = vmatprep.subr.bf16.mxu0 %v6516
  %7372 = vmatpush1.bf16.msra.mxu0 %v6515
  %7373 = vmatprep.subr.bf16.mxu0 %v6519
  %7374 = vmatpush1.bf16.msra.mxu0 %v6518
  %7375 = vmatprep.subr.bf16.mxu0 %v6522
  %7376 = vmatpush1.bf16.msra.mxu0 %v6521
  %7377 = vmatprep.subr.bf16.mxu0 %v6525
  %7378 = vmatpush1.bf16.msra.mxu0 %v6524
  %7379 = vmatprep.subr.bf16.mxu0 %v6528
  %7380 = vmatpush1.bf16.msra.mxu0 %v6527
  %7381 = vmatprep.subr.bf16.mxu0 %v6531
  %7382 = vmatpush1.bf16.msra.mxu0 %v6530
  %7383 = vmatprep.mubr.bf16.mxu0 %v4841
  %7384 = vmatmul.mubr.bf16.gmra.mrb[0].mxu0 %v4840
  %v7385 = vpop.f32.mrb[0].mxu0
  %v7386 = vadd.f32 %v7193, %v7385
  %v7387 = vpop.f32.mrb[0].mxu0
  %v7388 = vadd.f32 %v7195, %v7387
  %v7389 = vpop.f32.mrb[0].mxu0
  %v7390 = vadd.f32 %v7197, %v7389
  %v7391 = vpop.f32.mrb[0].mxu0
  %v7392 = vadd.f32 %v7199, %v7391
  %7393 = vmatprep.mubr.bf16.mxu0 %v4853
  %7394 = vmatmul.mubr.bf16.gmra.mrb[0].mxu0 %v4852
  %v7395 = vpop.f32.mrb[0].mxu0
  %v7396 = vadd.f32 %v7203, %v7395
  %v7397 = vpop.f32.mrb[0].mxu0
  %v7398 = vadd.f32 %v7205, %v7397
  %v7399 = vpop.f32.mrb[0].mxu0
  %v7400 = vadd.f32 %v7207, %v7399
  %v7401 = vpop.f32.mrb[0].mxu0
  %v7402 = vadd.f32 %v7209, %v7401
  %7403 = vmatprep.mubr.bf16.mxu0 %v4865
  %7404 = vmatmul.mubr.bf16.gmra.mrb[0].mxu0 %v4864
  %v7405 = vpop.f32.mrb[0].mxu0
  %v7406 = vadd.f32 %v7213, %v7405
  %v7407 = vpop.f32.mrb[0].mxu0
  %v7408 = vadd.f32 %v7215, %v7407
  %v7409 = vpop.f32.mrb[0].mxu0
  %v7410 = vadd.f32 %v7217, %v7409
  %v7411 = vpop.f32.mrb[0].mxu0
  %v7412 = vadd.f32 %v7219, %v7411
  %7413 = vmatprep.mubr.bf16.mxu0 %v4877
  %7414 = vmatmul.mubr.bf16.gmra.mrb[0].mxu0 %v4876
  %v7415 = vpop.f32.mrb[0].mxu0
  %v7416 = vadd.f32 %v7223, %v7415
  %v7417 = vpop.f32.mrb[0].mxu0
  %v7418 = vadd.f32 %v7225, %v7417
  %v7419 = vpop.f32.mrb[0].mxu0
  %v7420 = vadd.f32 %v7227, %v7419
  %v7421 = vpop.f32.mrb[0].mxu0
  %v7422 = vadd.f32 %v7229, %v7421
  %7423 = vmatprep.mubr.bf16.mxu0 %v4889
  %7424 = vmatmul.mubr.bf16.gmra.mrb[0].mxu0 %v4888
  %v7425 = vpop.f32.mrb[0].mxu0
  %v7426 = vadd.f32 %v7233, %v7425
  %v7427 = vpop.f32.mrb[0].mxu0
  %v7428 = vadd.f32 %v7235, %v7427
  %v7429 = vpop.f32.mrb[0].mxu0
  %v7430 = vadd.f32 %v7237, %v7429
  %v7431 = vpop.f32.mrb[0].mxu0
  %v7432 = vadd.f32 %v7239, %v7431
  %7433 = vmatprep.mubr.bf16.mxu0 %v4901
  %7434 = vmatmul.mubr.bf16.gmra.mrb[0].mxu0 %v4900
  %v7435 = vpop.f32.mrb[0].mxu0
  %v7436 = vadd.f32 %v7243, %v7435
  %v7437 = vpop.f32.mrb[0].mxu0
  %v7438 = vadd.f32 %v7245, %v7437
  %v7439 = vpop.f32.mrb[0].mxu0
  %v7440 = vadd.f32 %v7247, %v7439
  %v7441 = vpop.f32.mrb[0].mxu0
  %v7442 = vadd.f32 %v7249, %v7441
  %7443 = vmatprep.mubr.bf16.mxu0 %v4913
  %7444 = vmatmul.mubr.bf16.gmra.mrb[0].mxu0 %v4912
  %v7445 = vpop.f32.mrb[0].mxu0
  %v7446 = vadd.f32 %v7253, %v7445
  %v7447 = vpop.f32.mrb[0].mxu0
  %v7448 = vadd.f32 %v7255, %v7447
  %v7449 = vpop.f32.mrb[0].mxu0
  %v7450 = vadd.f32 %v7257, %v7449
  %v7451 = vpop.f32.mrb[0].mxu0
  %v7452 = vadd.f32 %v7259, %v7451
  %7453 = vmatprep.mubr.bf16.mxu0 %v4925
  %7454 = vmatmul.mubr.bf16.gmra.mrb[0].mxu0 %v4924
  %v7455 = vpop.f32.mrb[0].mxu0
  %v7456 = vadd.f32 %v7263, %v7455
  %v7457 = vpop.f32.mrb[0].mxu0
  %v7458 = vadd.f32 %v7265, %v7457
  %v7459 = vpop.f32.mrb[0].mxu0
  %v7460 = vadd.f32 %v7267, %v7459
  %v7461 = vpop.f32.mrb[0].mxu0
  %v7462 = vadd.f32 %v7269, %v7461
  %7463 = vmatprep.mubr.bf16.mxu0 %v4937
  %7464 = vmatmul.mubr.bf16.gmra.mrb[0].mxu0 %v4936
  %v7465 = vpop.f32.mrb[0].mxu0
  %v7466 = vadd.f32 %v7273, %v7465
  %v7467 = vpop.f32.mrb[0].mxu0
  %v7468 = vadd.f32 %v7275, %v7467
  %v7469 = vpop.f32.mrb[0].mxu0
  %v7470 = vadd.f32 %v7277, %v7469
  %v7471 = vpop.f32.mrb[0].mxu0
  %v7472 = vadd.f32 %v7279, %v7471
  %7473 = vmatprep.mubr.bf16.mxu0 %v4949
  %7474 = vmatmul.mubr.bf16.gmra.mrb[0].mxu0 %v4948
  %v7475 = vpop.f32.mrb[0].mxu0
  %v7476 = vadd.f32 %v7283, %v7475
  %v7477 = vpop.f32.mrb[0].mxu0
  %v7478 = vadd.f32 %v7285, %v7477
  %v7479 = vpop.f32.mrb[0].mxu0
  %v7480 = vadd.f32 %v7287, %v7479
  %v7481 = vpop.f32.mrb[0].mxu0
  %v7482 = vadd.f32 %v7289, %v7481
  %7483 = vmatprep.mubr.bf16.mxu0 %v4961
  %7484 = vmatmul.mubr.bf16.gmra.mrb[0].mxu0 %v4960
  %v7485 = vpop.f32.mrb[0].mxu0
  %v7486 = vadd.f32 %v7293, %v7485
  %v7487 = vpop.f32.mrb[0].mxu0
  %v7488 = vadd.f32 %v7295, %v7487
  %v7489 = vpop.f32.mrb[0].mxu0
  %v7490 = vadd.f32 %v7297, %v7489
  %v7491 = vpop.f32.mrb[0].mxu0
  %v7492 = vadd.f32 %v7299, %v7491
  %7493 = vmatprep.mubr.bf16.mxu0 %v4973
  %7494 = vmatmul.mubr.bf16.gmra.mrb[0].mxu0 %v4972
  %v7495 = vpop.f32.mrb[0].mxu0
  %v7496 = vadd.f32 %v7303, %v7495
  %v7497 = vpop.f32.mrb[0].mxu0
  %v7498 = vadd.f32 %v7305, %v7497
  %v7499 = vpop.f32.mrb[0].mxu0
  %v7500 = vadd.f32 %v7307, %v7499
  %v7501 = vpop.f32.mrb[0].mxu0
  %v7502 = vadd.f32 %v7309, %v7501
  %7503 = vmatprep.mubr.bf16.mxu0 %v4985
  %7504 = vmatmul.mubr.bf16.gmra.mrb[0].mxu0 %v4984
  %v7505 = vpop.f32.mrb[0].mxu0
  %v7506 = vadd.f32 %v7313, %v7505
  %v7507 = vpop.f32.mrb[0].mxu0
  %v7508 = vadd.f32 %v7315, %v7507
  %v7509 = vpop.f32.mrb[0].mxu0
  %v7510 = vadd.f32 %v7317, %v7509
  %v7511 = vpop.f32.mrb[0].mxu0
  %v7512 = vadd.f32 %v7319, %v7511
  %7513 = vmatprep.mubr.bf16.mxu0 %v4997
  %7514 = vmatmul.mubr.bf16.gmra.mrb[0].mxu0 %v4996
  %v7515 = vpop.f32.mrb[0].mxu0
  %v7516 = vadd.f32 %v7323, %v7515
  %v7517 = vpop.f32.mrb[0].mxu0
  %v7518 = vadd.f32 %v7325, %v7517
  %v7519 = vpop.f32.mrb[0].mxu0
  %v7520 = vadd.f32 %v7327, %v7519
  %v7521 = vpop.f32.mrb[0].mxu0
  %v7522 = vadd.f32 %v7329, %v7521
  %7523 = vmatprep.mubr.bf16.mxu0 %v5009
  %7524 = vmatmul.mubr.bf16.gmra.mrb[0].mxu0 %v5008
  %v7525 = vpop.f32.mrb[0].mxu0
  %v7526 = vadd.f32 %v7333, %v7525
  %v7527 = vpop.f32.mrb[0].mxu0
  %v7528 = vadd.f32 %v7335, %v7527
  %v7529 = vpop.f32.mrb[0].mxu0
  %v7530 = vadd.f32 %v7337, %v7529
  %v7531 = vpop.f32.mrb[0].mxu0
  %v7532 = vadd.f32 %v7339, %v7531
  %7533 = vmatprep.mubr.bf16.mxu0 %v5021
  %7534 = vmatmul.mubr.bf16.gmra.mrb[0].mxu0 %v5020
  %v7535 = vpop.f32.mrb[0].mxu0
  %v7536 = vadd.f32 %v7343, %v7535
  %v7537 = vpop.f32.mrb[0].mxu0
  %v7538 = vadd.f32 %v7345, %v7537
  %v7539 = vpop.f32.mrb[0].mxu0
  %v7540 = vadd.f32 %v7347, %v7539
  %v7541 = vpop.f32.mrb[0].mxu0
  %v7542 = vadd.f32 %v7349, %v7541
  %7543 = vdwg.mxu0
  %7544 = vmatprep.subr.bf16.mxu0 %v6534
  %7545 = vmatpush1.bf16.msra.mxu0 %v6533
  %7546 = vmatprep.subr.bf16.mxu0 %v6537
  %7547 = vmatpush1.bf16.msra.mxu0 %v6536
  %7548 = vmatprep.subr.bf16.mxu0 %v6540
  %7549 = vmatpush1.bf16.msra.mxu0 %v6539
  %7550 = vmatprep.subr.bf16.mxu0 %v6543
  %7551 = vmatpush1.bf16.msra.mxu0 %v6542
  %7552 = vmatprep.subr.bf16.mxu0 %v6546
  %7553 = vmatpush1.bf16.msra.mxu0 %v6545
  %7554 = vmatprep.subr.bf16.mxu0 %v6549
  %7555 = vmatpush1.bf16.msra.mxu0 %v6548
  %7556 = vmatprep.subr.bf16.mxu0 %v6552
  %7557 = vmatpush1.bf16.msra.mxu0 %v6551
  %7558 = vmatprep.subr.bf16.mxu0 %v6555
  %7559 = vmatpush1.bf16.msra.mxu0 %v6554
  %7560 = vmatprep.subr.bf16.mxu0 %v6558
  %7561 = vmatpush1.bf16.msra.mxu0 %v6557
  %7562 = vmatprep.subr.bf16.mxu0 %v6561
  %7563 = vmatpush1.bf16.msra.mxu0 %v6560
  %7564 = vmatprep.subr.bf16.mxu0 %v6564
  %7565 = vmatpush1.bf16.msra.mxu0 %v6563
  %7566 = vmatprep.subr.bf16.mxu0 %v6567
  %7567 = vmatpush1.bf16.msra.mxu0 %v6566
  %7568 = vmatprep.subr.bf16.mxu0 %v6570
  %7569 = vmatpush1.bf16.msra.mxu0 %v6569
  %7570 = vmatprep.subr.bf16.mxu0 %v6573
  %7571 = vmatpush1.bf16.msra.mxu0 %v6572
  %7572 = vmatprep.subr.bf16.mxu0 %v6576
  %7573 = vmatpush1.bf16.msra.mxu0 %v6575
  %7574 = vmatprep.subr.bf16.mxu0 %v6579
  %7575 = vmatpush1.bf16.msra.mxu0 %v6578
  %7576 = vmatprep.mubr.bf16.mxu0 %v4843
  %7577 = vmatmul.mubr.bf16.gmra.mrb[0].mxu0 %v4842
  %v7578 = vpop.f32.mrb[0].mxu0
  %v7579 = vadd.f32 %v7386, %v7578
  %v7580 = vpop.f32.mrb[0].mxu0
  %v7581 = vadd.f32 %v7388, %v7580
  %v7582 = vpop.f32.mrb[0].mxu0
  %v7583 = vadd.f32 %v7390, %v7582
  %v7584 = vpop.f32.mrb[0].mxu0
  %v7585 = vadd.f32 %v7392, %v7584
  %7586 = vmatprep.mubr.bf16.mxu0 %v4855
  %7587 = vmatmul.mubr.bf16.gmra.mrb[0].mxu0 %v4854
  %v7588 = vpop.f32.mrb[0].mxu0
  %v7589 = vadd.f32 %v7396, %v7588
  %v7590 = vpop.f32.mrb[0].mxu0
  %v7591 = vadd.f32 %v7398, %v7590
  %v7592 = vpop.f32.mrb[0].mxu0
  %v7593 = vadd.f32 %v7400, %v7592
  %v7594 = vpop.f32.mrb[0].mxu0
  %v7595 = vadd.f32 %v7402, %v7594
  %7596 = vmatprep.mubr.bf16.mxu0 %v4867
  %7597 = vmatmul.mubr.bf16.gmra.mrb[0].mxu0 %v4866
  %v7598 = vpop.f32.mrb[0].mxu0
  %v7599 = vadd.f32 %v7406, %v7598
  %v7600 = vpop.f32.mrb[0].mxu0
  %v7601 = vadd.f32 %v7408, %v7600
  %v7602 = vpop.f32.mrb[0].mxu0
  %v7603 = vadd.f32 %v7410, %v7602
  %v7604 = vpop.f32.mrb[0].mxu0
  %v7605 = vadd.f32 %v7412, %v7604
  %7606 = vmatprep.mubr.bf16.mxu0 %v4879
  %7607 = vmatmul.mubr.bf16.gmra.mrb[0].mxu0 %v4878
  %v7608 = vpop.f32.mrb[0].mxu0
  %v7609 = vadd.f32 %v7416, %v7608
  %v7610 = vpop.f32.mrb[0].mxu0
  %v7611 = vadd.f32 %v7418, %v7610
  %v7612 = vpop.f32.mrb[0].mxu0
  %v7613 = vadd.f32 %v7420, %v7612
  %v7614 = vpop.f32.mrb[0].mxu0
  %v7615 = vadd.f32 %v7422, %v7614
  %7616 = vmatprep.mubr.bf16.mxu0 %v4891
  %7617 = vmatmul.mubr.bf16.gmra.mrb[0].mxu0 %v4890
  %v7618 = vpop.f32.mrb[0].mxu0
  %v7619 = vadd.f32 %v7426, %v7618
  %v7620 = vpop.f32.mrb[0].mxu0
  %v7621 = vadd.f32 %v7428, %v7620
  %v7622 = vpop.f32.mrb[0].mxu0
  %v7623 = vadd.f32 %v7430, %v7622
  %v7624 = vpop.f32.mrb[0].mxu0
  %v7625 = vadd.f32 %v7432, %v7624
  %7626 = vmatprep.mubr.bf16.mxu0 %v4903
  %7627 = vmatmul.mubr.bf16.gmra.mrb[0].mxu0 %v4902
  %v7628 = vpop.f32.mrb[0].mxu0
  %v7629 = vadd.f32 %v7436, %v7628
  %v7630 = vpop.f32.mrb[0].mxu0
  %v7631 = vadd.f32 %v7438, %v7630
  %v7632 = vpop.f32.mrb[0].mxu0
  %v7633 = vadd.f32 %v7440, %v7632
  %v7634 = vpop.f32.mrb[0].mxu0
  %v7635 = vadd.f32 %v7442, %v7634
  %7636 = vmatprep.mubr.bf16.mxu0 %v4915
  %7637 = vmatmul.mubr.bf16.gmra.mrb[0].mxu0 %v4914
  %v7638 = vpop.f32.mrb[0].mxu0
  %v7639 = vadd.f32 %v7446, %v7638
  %v7640 = vpop.f32.mrb[0].mxu0
  %v7641 = vadd.f32 %v7448, %v7640
  %v7642 = vpop.f32.mrb[0].mxu0
  %v7643 = vadd.f32 %v7450, %v7642
  %v7644 = vpop.f32.mrb[0].mxu0
  %v7645 = vadd.f32 %v7452, %v7644
  %7646 = vmatprep.mubr.bf16.mxu0 %v4927
  %7647 = vmatmul.mubr.bf16.gmra.mrb[0].mxu0 %v4926
  %v7648 = vpop.f32.mrb[0].mxu0
  %v7649 = vadd.f32 %v7456, %v7648
  %v7650 = vpop.f32.mrb[0].mxu0
  %v7651 = vadd.f32 %v7458, %v7650
  %v7652 = vpop.f32.mrb[0].mxu0
  %v7653 = vadd.f32 %v7460, %v7652
  %v7654 = vpop.f32.mrb[0].mxu0
  %v7655 = vadd.f32 %v7462, %v7654
  %7656 = vmatprep.mubr.bf16.mxu0 %v4939
  %7657 = vmatmul.mubr.bf16.gmra.mrb[0].mxu0 %v4938
  %v7658 = vpop.f32.mrb[0].mxu0
  %v7659 = vadd.f32 %v7466, %v7658
  %v7660 = vpop.f32.mrb[0].mxu0
  %v7661 = vadd.f32 %v7468, %v7660
  %v7662 = vpop.f32.mrb[0].mxu0
  %v7663 = vadd.f32 %v7470, %v7662
  %v7664 = vpop.f32.mrb[0].mxu0
  %v7665 = vadd.f32 %v7472, %v7664
  %7666 = vmatprep.mubr.bf16.mxu0 %v4951
  %7667 = vmatmul.mubr.bf16.gmra.mrb[0].mxu0 %v4950
  %v7668 = vpop.f32.mrb[0].mxu0
  %v7669 = vadd.f32 %v7476, %v7668
  %v7670 = vpop.f32.mrb[0].mxu0
  %v7671 = vadd.f32 %v7478, %v7670
  %v7672 = vpop.f32.mrb[0].mxu0
  %v7673 = vadd.f32 %v7480, %v7672
  %v7674 = vpop.f32.mrb[0].mxu0
  %v7675 = vadd.f32 %v7482, %v7674
  %7676 = vmatprep.mubr.bf16.mxu0 %v4963
  %7677 = vmatmul.mubr.bf16.gmra.mrb[0].mxu0 %v4962
  %v7678 = vpop.f32.mrb[0].mxu0
  %v7679 = vadd.f32 %v7486, %v7678
  %v7680 = vpop.f32.mrb[0].mxu0
  %v7681 = vadd.f32 %v7488, %v7680
  %v7682 = vpop.f32.mrb[0].mxu0
  %v7683 = vadd.f32 %v7490, %v7682
  %v7684 = vpop.f32.mrb[0].mxu0
  %v7685 = vadd.f32 %v7492, %v7684
  %7686 = vmatprep.mubr.bf16.mxu0 %v4975
  %7687 = vmatmul.mubr.bf16.gmra.mrb[0].mxu0 %v4974
  %v7688 = vpop.f32.mrb[0].mxu0
  %v7689 = vadd.f32 %v7496, %v7688
  %v7690 = vpop.f32.mrb[0].mxu0
  %v7691 = vadd.f32 %v7498, %v7690
  %v7692 = vpop.f32.mrb[0].mxu0
  %v7693 = vadd.f32 %v7500, %v7692
  %v7694 = vpop.f32.mrb[0].mxu0
  %v7695 = vadd.f32 %v7502, %v7694
  %7696 = vmatprep.mubr.bf16.mxu0 %v4987
  %7697 = vmatmul.mubr.bf16.gmra.mrb[0].mxu0 %v4986
  %v7698 = vpop.f32.mrb[0].mxu0
  %v7699 = vadd.f32 %v7506, %v7698
  %v7700 = vpop.f32.mrb[0].mxu0
  %v7701 = vadd.f32 %v7508, %v7700
  %v7702 = vpop.f32.mrb[0].mxu0
  %v7703 = vadd.f32 %v7510, %v7702
  %v7704 = vpop.f32.mrb[0].mxu0
  %v7705 = vadd.f32 %v7512, %v7704
  %7706 = vmatprep.mubr.bf16.mxu0 %v4999
  %7707 = vmatmul.mubr.bf16.gmra.mrb[0].mxu0 %v4998
  %v7708 = vpop.f32.mrb[0].mxu0
  %v7709 = vadd.f32 %v7516, %v7708
  %v7710 = vpop.f32.mrb[0].mxu0
  %v7711 = vadd.f32 %v7518, %v7710
  %v7712 = vpop.f32.mrb[0].mxu0
  %v7713 = vadd.f32 %v7520, %v7712
  %v7714 = vpop.f32.mrb[0].mxu0
  %v7715 = vadd.f32 %v7522, %v7714
  %7716 = vmatprep.mubr.bf16.mxu0 %v5011
  %7717 = vmatmul.mubr.bf16.gmra.mrb[0].mxu0 %v5010
  %v7718 = vpop.f32.mrb[0].mxu0
  %v7719 = vadd.f32 %v7526, %v7718
  %v7720 = vpop.f32.mrb[0].mxu0
  %v7721 = vadd.f32 %v7528, %v7720
  %v7722 = vpop.f32.mrb[0].mxu0
  %v7723 = vadd.f32 %v7530, %v7722
  %v7724 = vpop.f32.mrb[0].mxu0
  %v7725 = vadd.f32 %v7532, %v7724
  %7726 = vmatprep.mubr.bf16.mxu0 %v5023
  %7727 = vmatmul.mubr.bf16.gmra.mrb[0].mxu0 %v5022
  %v7728 = vpop.f32.mrb[0].mxu0
  %v7729 = vadd.f32 %v7536, %v7728
  %v7730 = vpop.f32.mrb[0].mxu0
  %v7731 = vadd.f32 %v7538, %v7730
  %v7732 = vpop.f32.mrb[0].mxu0
  %v7733 = vadd.f32 %v7540, %v7732
  %v7734 = vpop.f32.mrb[0].mxu0
  %v7735 = vadd.f32 %v7542, %v7734
  %7736 = vdwg.mxu0
  %7737 = vmatprep.subr.bf16.mxu0 %v6582
  %7738 = vmatpush1.bf16.msra.mxu0 %v6581
  %7739 = vmatprep.subr.bf16.mxu0 %v6585
  %7740 = vmatpush1.bf16.msra.mxu0 %v6584
  %7741 = vmatprep.subr.bf16.mxu0 %v6588
  %7742 = vmatpush1.bf16.msra.mxu0 %v6587
  %7743 = vmatprep.subr.bf16.mxu0 %v6591
  %7744 = vmatpush1.bf16.msra.mxu0 %v6590
  %7745 = vmatprep.subr.bf16.mxu0 %v6594
  %7746 = vmatpush1.bf16.msra.mxu0 %v6593
  %7747 = vmatprep.subr.bf16.mxu0 %v6597
  %7748 = vmatpush1.bf16.msra.mxu0 %v6596
  %7749 = vmatprep.subr.bf16.mxu0 %v6600
  %7750 = vmatpush1.bf16.msra.mxu0 %v6599
  %7751 = vmatprep.subr.bf16.mxu0 %v6603
  %7752 = vmatpush1.bf16.msra.mxu0 %v6602
  %7753 = vmatprep.subr.bf16.mxu0 %v6606
  %7754 = vmatpush1.bf16.msra.mxu0 %v6605
  %7755 = vmatprep.subr.bf16.mxu0 %v6609
  %7756 = vmatpush1.bf16.msra.mxu0 %v6608
  %7757 = vmatprep.subr.bf16.mxu0 %v6612
  %7758 = vmatpush1.bf16.msra.mxu0 %v6611
  %7759 = vmatprep.subr.bf16.mxu0 %v6615
  %7760 = vmatpush1.bf16.msra.mxu0 %v6614
  %7761 = vmatprep.subr.bf16.mxu0 %v6618
  %7762 = vmatpush1.bf16.msra.mxu0 %v6617
  %7763 = vmatprep.subr.bf16.mxu0 %v6621
  %7764 = vmatpush1.bf16.msra.mxu0 %v6620
  %7765 = vmatprep.subr.bf16.mxu0 %v6624
  %7766 = vmatpush1.bf16.msra.mxu0 %v6623
  %7767 = vmatprep.subr.bf16.mxu0 %v6627
  %7768 = vmatpush1.bf16.msra.mxu0 %v6626
  %7769 = vmatprep.mubr.bf16.mxu0 %v4845
  %7770 = vmatmul.mubr.bf16.gmra.mrb[0].mxu0 %v4844
  %v7771 = vpop.f32.mrb[0].mxu0
  %v7772 = vadd.f32 %v7579, %v7771
  %v7773 = vpop.f32.mrb[0].mxu0
  %v7774 = vadd.f32 %v7581, %v7773
  %v7775 = vpop.f32.mrb[0].mxu0
  %v7776 = vadd.f32 %v7583, %v7775
  %v7777 = vpop.f32.mrb[0].mxu0
  %v7778 = vadd.f32 %v7585, %v7777
  %7779 = vmatprep.mubr.bf16.mxu0 %v4857
  %7780 = vmatmul.mubr.bf16.gmra.mrb[0].mxu0 %v4856
  %v7781 = vpop.f32.mrb[0].mxu0
  %v7782 = vadd.f32 %v7589, %v7781
  %v7783 = vpop.f32.mrb[0].mxu0
  %v7784 = vadd.f32 %v7591, %v7783
  %v7785 = vpop.f32.mrb[0].mxu0
  %v7786 = vadd.f32 %v7593, %v7785
  %v7787 = vpop.f32.mrb[0].mxu0
  %v7788 = vadd.f32 %v7595, %v7787
  %7789 = vmatprep.mubr.bf16.mxu0 %v4869
  %7790 = vmatmul.mubr.bf16.gmra.mrb[0].mxu0 %v4868
  %v7791 = vpop.f32.mrb[0].mxu0
  %v7792 = vadd.f32 %v7599, %v7791
  %v7793 = vpop.f32.mrb[0].mxu0
  %v7794 = vadd.f32 %v7601, %v7793
  %v7795 = vpop.f32.mrb[0].mxu0
  %v7796 = vadd.f32 %v7603, %v7795
  %v7797 = vpop.f32.mrb[0].mxu0
  %v7798 = vadd.f32 %v7605, %v7797
  %7799 = vmatprep.mubr.bf16.mxu0 %v4881
  %7800 = vmatmul.mubr.bf16.gmra.mrb[0].mxu0 %v4880
  %v7801 = vpop.f32.mrb[0].mxu0
  %v7802 = vadd.f32 %v7609, %v7801
  %v7803 = vpop.f32.mrb[0].mxu0
  %v7804 = vadd.f32 %v7611, %v7803
  %v7805 = vpop.f32.mrb[0].mxu0
  %v7806 = vadd.f32 %v7613, %v7805
  %v7807 = vpop.f32.mrb[0].mxu0
  %v7808 = vadd.f32 %v7615, %v7807
  %7809 = vmatprep.mubr.bf16.mxu0 %v4893
  %7810 = vmatmul.mubr.bf16.gmra.mrb[0].mxu0 %v4892
  %v7811 = vpop.f32.mrb[0].mxu0
  %v7812 = vadd.f32 %v7619, %v7811
  %v7813 = vpop.f32.mrb[0].mxu0
  %v7814 = vadd.f32 %v7621, %v7813
  %v7815 = vpop.f32.mrb[0].mxu0
  %v7816 = vadd.f32 %v7623, %v7815
  %v7817 = vpop.f32.mrb[0].mxu0
  %v7818 = vadd.f32 %v7625, %v7817
  %7819 = vmatprep.mubr.bf16.mxu0 %v4905
  %7820 = vmatmul.mubr.bf16.gmra.mrb[0].mxu0 %v4904
  %v7821 = vpop.f32.mrb[0].mxu0
  %v7822 = vadd.f32 %v7629, %v7821
  %v7823 = vpop.f32.mrb[0].mxu0
  %v7824 = vadd.f32 %v7631, %v7823
  %v7825 = vpop.f32.mrb[0].mxu0
  %v7826 = vadd.f32 %v7633, %v7825
  %v7827 = vpop.f32.mrb[0].mxu0
  %v7828 = vadd.f32 %v7635, %v7827
  %7829 = vmatprep.mubr.bf16.mxu0 %v4917
  %7830 = vmatmul.mubr.bf16.gmra.mrb[0].mxu0 %v4916
  %v7831 = vpop.f32.mrb[0].mxu0
  %v7832 = vadd.f32 %v7639, %v7831
  %v7833 = vpop.f32.mrb[0].mxu0
  %v7834 = vadd.f32 %v7641, %v7833
  %v7835 = vpop.f32.mrb[0].mxu0
  %v7836 = vadd.f32 %v7643, %v7835
  %v7837 = vpop.f32.mrb[0].mxu0
  %v7838 = vadd.f32 %v7645, %v7837
  %7839 = vmatprep.mubr.bf16.mxu0 %v4929
  %7840 = vmatmul.mubr.bf16.gmra.mrb[0].mxu0 %v4928
  %v7841 = vpop.f32.mrb[0].mxu0
  %v7842 = vadd.f32 %v7649, %v7841
  %v7843 = vpop.f32.mrb[0].mxu0
  %v7844 = vadd.f32 %v7651, %v7843
  %v7845 = vpop.f32.mrb[0].mxu0
  %v7846 = vadd.f32 %v7653, %v7845
  %v7847 = vpop.f32.mrb[0].mxu0
  %v7848 = vadd.f32 %v7655, %v7847
  %7849 = vmatprep.mubr.bf16.mxu0 %v4941
  %7850 = vmatmul.mubr.bf16.gmra.mrb[0].mxu0 %v4940
  %v7851 = vpop.f32.mrb[0].mxu0
  %v7852 = vadd.f32 %v7659, %v7851
  %v7853 = vpop.f32.mrb[0].mxu0
  %v7854 = vadd.f32 %v7661, %v7853
  %v7855 = vpop.f32.mrb[0].mxu0
  %v7856 = vadd.f32 %v7663, %v7855
  %v7857 = vpop.f32.mrb[0].mxu0
  %v7858 = vadd.f32 %v7665, %v7857
  %7859 = vmatprep.mubr.bf16.mxu0 %v4953
  %7860 = vmatmul.mubr.bf16.gmra.mrb[0].mxu0 %v4952
  %v7861 = vpop.f32.mrb[0].mxu0
  %v7862 = vadd.f32 %v7669, %v7861
  %v7863 = vpop.f32.mrb[0].mxu0
  %v7864 = vadd.f32 %v7671, %v7863
  %v7865 = vpop.f32.mrb[0].mxu0
  %v7866 = vadd.f32 %v7673, %v7865
  %v7867 = vpop.f32.mrb[0].mxu0
  %v7868 = vadd.f32 %v7675, %v7867
  %7869 = vmatprep.mubr.bf16.mxu0 %v4965
  %7870 = vmatmul.mubr.bf16.gmra.mrb[0].mxu0 %v4964
  %v7871 = vpop.f32.mrb[0].mxu0
  %v7872 = vadd.f32 %v7679, %v7871
  %v7873 = vpop.f32.mrb[0].mxu0
  %v7874 = vadd.f32 %v7681, %v7873
  %v7875 = vpop.f32.mrb[0].mxu0
  %v7876 = vadd.f32 %v7683, %v7875
  %v7877 = vpop.f32.mrb[0].mxu0
  %v7878 = vadd.f32 %v7685, %v7877
  %7879 = vmatprep.mubr.bf16.mxu0 %v4977
  %7880 = vmatmul.mubr.bf16.gmra.mrb[0].mxu0 %v4976
  %v7881 = vpop.f32.mrb[0].mxu0
  %v7882 = vadd.f32 %v7689, %v7881
  %v7883 = vpop.f32.mrb[0].mxu0
  %v7884 = vadd.f32 %v7691, %v7883
  %v7885 = vpop.f32.mrb[0].mxu0
  %v7886 = vadd.f32 %v7693, %v7885
  %v7887 = vpop.f32.mrb[0].mxu0
  %v7888 = vadd.f32 %v7695, %v7887
  %7889 = vmatprep.mubr.bf16.mxu0 %v4989
  %7890 = vmatmul.mubr.bf16.gmra.mrb[0].mxu0 %v4988
  %v7891 = vpop.f32.mrb[0].mxu0
  %v7892 = vadd.f32 %v7699, %v7891
  %v7893 = vpop.f32.mrb[0].mxu0
  %v7894 = vadd.f32 %v7701, %v7893
  %v7895 = vpop.f32.mrb[0].mxu0
  %v7896 = vadd.f32 %v7703, %v7895
  %v7897 = vpop.f32.mrb[0].mxu0
  %v7898 = vadd.f32 %v7705, %v7897
  %7899 = vmatprep.mubr.bf16.mxu0 %v5001
  %7900 = vmatmul.mubr.bf16.gmra.mrb[0].mxu0 %v5000
  %v7901 = vpop.f32.mrb[0].mxu0
  %v7902 = vadd.f32 %v7709, %v7901
  %v7903 = vpop.f32.mrb[0].mxu0
  %v7904 = vadd.f32 %v7711, %v7903
  %v7905 = vpop.f32.mrb[0].mxu0
  %v7906 = vadd.f32 %v7713, %v7905
  %v7907 = vpop.f32.mrb[0].mxu0
  %v7908 = vadd.f32 %v7715, %v7907
  %7909 = vmatprep.mubr.bf16.mxu0 %v5013
  %7910 = vmatmul.mubr.bf16.gmra.mrb[0].mxu0 %v5012
  %v7911 = vpop.f32.mrb[0].mxu0
  %v7912 = vadd.f32 %v7719, %v7911
  %v7913 = vpop.f32.mrb[0].mxu0
  %v7914 = vadd.f32 %v7721, %v7913
  %v7915 = vpop.f32.mrb[0].mxu0
  %v7916 = vadd.f32 %v7723, %v7915
  %v7917 = vpop.f32.mrb[0].mxu0
  %v7918 = vadd.f32 %v7725, %v7917
  %7919 = vmatprep.mubr.bf16.mxu0 %v5025
  %7920 = vmatmul.mubr.bf16.gmra.mrb[0].mxu0 %v5024
  %v7921 = vpop.f32.mrb[0].mxu0
  %v7922 = vadd.f32 %v7729, %v7921
  %v7923 = vpop.f32.mrb[0].mxu0
  %v7924 = vadd.f32 %v7731, %v7923
  %v7925 = vpop.f32.mrb[0].mxu0
  %v7926 = vadd.f32 %v7733, %v7925
  %v7927 = vpop.f32.mrb[0].mxu0
  %v7928 = vadd.f32 %v7735, %v7927
  %7929 = vdwg.mxu0
  %7930 = vmatprep.subr.bf16.mxu0 %v6630
  %7931 = vmatpush1.bf16.msra.mxu0 %v6629
  %7932 = vmatprep.subr.bf16.mxu0 %v6633
  %7933 = vmatpush1.bf16.msra.mxu0 %v6632
  %7934 = vmatprep.subr.bf16.mxu0 %v6636
  %7935 = vmatpush1.bf16.msra.mxu0 %v6635
  %7936 = vmatprep.subr.bf16.mxu0 %v6639
  %7937 = vmatpush1.bf16.msra.mxu0 %v6638
  %7938 = vmatprep.subr.bf16.mxu0 %v6642
  %7939 = vmatpush1.bf16.msra.mxu0 %v6641
  %7940 = vmatprep.subr.bf16.mxu0 %v6645
  %7941 = vmatpush1.bf16.msra.mxu0 %v6644
  %7942 = vmatprep.subr.bf16.mxu0 %v6648
  %7943 = vmatpush1.bf16.msra.mxu0 %v6647
  %7944 = vmatprep.subr.bf16.mxu0 %v6651
  %7945 = vmatpush1.bf16.msra.mxu0 %v6650
  %7946 = vmatprep.subr.bf16.mxu0 %v6654
  %7947 = vmatpush1.bf16.msra.mxu0 %v6653
  %7948 = vmatprep.subr.bf16.mxu0 %v6657
  %7949 = vmatpush1.bf16.msra.mxu0 %v6656
  %7950 = vmatprep.subr.bf16.mxu0 %v6660
  %7951 = vmatpush1.bf16.msra.mxu0 %v6659
  %7952 = vmatprep.subr.bf16.mxu0 %v6663
  %7953 = vmatpush1.bf16.msra.mxu0 %v6662
  %7954 = vmatprep.subr.bf16.mxu0 %v6666
  %7955 = vmatpush1.bf16.msra.mxu0 %v6665
  %7956 = vmatprep.subr.bf16.mxu0 %v6669
  %7957 = vmatpush1.bf16.msra.mxu0 %v6668
  %7958 = vmatprep.subr.bf16.mxu0 %v6672
  %7959 = vmatpush1.bf16.msra.mxu0 %v6671
  %7960 = vmatprep.subr.bf16.mxu0 %v6675
  %7961 = vmatpush1.bf16.msra.mxu0 %v6674
  %7962 = vmatprep.mubr.bf16.mxu0 %v4847
  %7963 = vmatmul.mubr.bf16.gmra.mrb[0].mxu0 %v4846
  %v7964 = vpop.f32.mrb[0].mxu0
  %v7965 = vadd.f32 %v7772, %v7964
  %v7966 = vpop.f32.mrb[0].mxu0
  %v7967 = vadd.f32 %v7774, %v7966
  %v7968 = vpop.f32.mrb[0].mxu0
  %v7969 = vadd.f32 %v7776, %v7968
  %v7970 = vpop.f32.mrb[0].mxu0
  %v7971 = vadd.f32 %v7778, %v7970
  %7972 = vmatprep.mubr.bf16.mxu0 %v4859
  %7973 = vmatmul.mubr.bf16.gmra.mrb[0].mxu0 %v4858
  %v7974 = vpop.f32.mrb[0].mxu0
  %v7975 = vadd.f32 %v7782, %v7974
  %v7976 = vpop.f32.mrb[0].mxu0
  %v7977 = vadd.f32 %v7784, %v7976
  %v7978 = vpop.f32.mrb[0].mxu0
  %v7979 = vadd.f32 %v7786, %v7978
  %v7980 = vpop.f32.mrb[0].mxu0
  %v7981 = vadd.f32 %v7788, %v7980
  %7982 = vmatprep.mubr.bf16.mxu0 %v4871
  %7983 = vmatmul.mubr.bf16.gmra.mrb[0].mxu0 %v4870
  %v7984 = vpop.f32.mrb[0].mxu0
  %v7985 = vadd.f32 %v7792, %v7984
  %v7986 = vpop.f32.mrb[0].mxu0
  %v7987 = vadd.f32 %v7794, %v7986
  %v7988 = vpop.f32.mrb[0].mxu0
  %v7989 = vadd.f32 %v7796, %v7988
  %v7990 = vpop.f32.mrb[0].mxu0
  %v7991 = vadd.f32 %v7798, %v7990
  %7992 = vmatprep.mubr.bf16.mxu0 %v4883
  %7993 = vmatmul.mubr.bf16.gmra.mrb[0].mxu0 %v4882
  %v7994 = vpop.f32.mrb[0].mxu0
  %v7995 = vadd.f32 %v7802, %v7994
  %v7996 = vpop.f32.mrb[0].mxu0
  %v7997 = vadd.f32 %v7804, %v7996
  %v7998 = vpop.f32.mrb[0].mxu0
  %v7999 = vadd.f32 %v7806, %v7998
  %v8000 = vpop.f32.mrb[0].mxu0
  %v8001 = vadd.f32 %v7808, %v8000
  %8002 = vmatprep.mubr.bf16.mxu0 %v4895
  %8003 = vmatmul.mubr.bf16.gmra.mrb[0].mxu0 %v4894
  %v8004 = vpop.f32.mrb[0].mxu0
  %v8005 = vadd.f32 %v7812, %v8004
  %v8006 = vpop.f32.mrb[0].mxu0
  %v8007 = vadd.f32 %v7814, %v8006
  %v8008 = vpop.f32.mrb[0].mxu0
  %v8009 = vadd.f32 %v7816, %v8008
  %v8010 = vpop.f32.mrb[0].mxu0
  %v8011 = vadd.f32 %v7818, %v8010
  %8012 = vmatprep.mubr.bf16.mxu0 %v4907
  %8013 = vmatmul.mubr.bf16.gmra.mrb[0].mxu0 %v4906
  %v8014 = vpop.f32.mrb[0].mxu0
  %v8015 = vadd.f32 %v7822, %v8014
  %v8016 = vpop.f32.mrb[0].mxu0
  %v8017 = vadd.f32 %v7824, %v8016
  %v8018 = vpop.f32.mrb[0].mxu0
  %v8019 = vadd.f32 %v7826, %v8018
  %v8020 = vpop.f32.mrb[0].mxu0
  %v8021 = vadd.f32 %v7828, %v8020
  %8022 = vmatprep.mubr.bf16.mxu0 %v4919
  %8023 = vmatmul.mubr.bf16.gmra.mrb[0].mxu0 %v4918
  %v8024 = vpop.f32.mrb[0].mxu0
  %v8025 = vadd.f32 %v7832, %v8024
  %v8026 = vpop.f32.mrb[0].mxu0
  %v8027 = vadd.f32 %v7834, %v8026
  %v8028 = vpop.f32.mrb[0].mxu0
  %v8029 = vadd.f32 %v7836, %v8028
  %v8030 = vpop.f32.mrb[0].mxu0
  %v8031 = vadd.f32 %v7838, %v8030
  %8032 = vmatprep.mubr.bf16.mxu0 %v4931
  %8033 = vmatmul.mubr.bf16.gmra.mrb[0].mxu0 %v4930
  %v8034 = vpop.f32.mrb[0].mxu0
  %v8035 = vadd.f32 %v7842, %v8034
  %v8036 = vpop.f32.mrb[0].mxu0
  %v8037 = vadd.f32 %v7844, %v8036
  %v8038 = vpop.f32.mrb[0].mxu0
  %v8039 = vadd.f32 %v7846, %v8038
  %v8040 = vpop.f32.mrb[0].mxu0
  %v8041 = vadd.f32 %v7848, %v8040
  %8042 = vmatprep.mubr.bf16.mxu0 %v4943
  %8043 = vmatmul.mubr.bf16.gmra.mrb[0].mxu0 %v4942
  %v8044 = vpop.f32.mrb[0].mxu0
  %v8045 = vadd.f32 %v7852, %v8044
  %v8046 = vpop.f32.mrb[0].mxu0
  %v8047 = vadd.f32 %v7854, %v8046
  %v8048 = vpop.f32.mrb[0].mxu0
  %v8049 = vadd.f32 %v7856, %v8048
  %v8050 = vpop.f32.mrb[0].mxu0
  %v8051 = vadd.f32 %v7858, %v8050
  %8052 = vmatprep.mubr.bf16.mxu0 %v4955
  %8053 = vmatmul.mubr.bf16.gmra.mrb[0].mxu0 %v4954
  %v8054 = vpop.f32.mrb[0].mxu0
  %v8055 = vadd.f32 %v7862, %v8054
  %v8056 = vpop.f32.mrb[0].mxu0
  %v8057 = vadd.f32 %v7864, %v8056
  %v8058 = vpop.f32.mrb[0].mxu0
  %v8059 = vadd.f32 %v7866, %v8058
  %v8060 = vpop.f32.mrb[0].mxu0
  %v8061 = vadd.f32 %v7868, %v8060
  %8062 = vmatprep.mubr.bf16.mxu0 %v4967
  %8063 = vmatmul.mubr.bf16.gmra.mrb[0].mxu0 %v4966
  %v8064 = vpop.f32.mrb[0].mxu0
  %v8065 = vadd.f32 %v7872, %v8064
  %v8066 = vpop.f32.mrb[0].mxu0
  %v8067 = vadd.f32 %v7874, %v8066
  %v8068 = vpop.f32.mrb[0].mxu0
  %v8069 = vadd.f32 %v7876, %v8068
  %v8070 = vpop.f32.mrb[0].mxu0
  %v8071 = vadd.f32 %v7878, %v8070
  %8072 = vmatprep.mubr.bf16.mxu0 %v4979
  %8073 = vmatmul.mubr.bf16.gmra.mrb[0].mxu0 %v4978
  %v8074 = vpop.f32.mrb[0].mxu0
  %v8075 = vadd.f32 %v7882, %v8074
  %v8076 = vpop.f32.mrb[0].mxu0
  %v8077 = vadd.f32 %v7884, %v8076
  %v8078 = vpop.f32.mrb[0].mxu0
  %v8079 = vadd.f32 %v7886, %v8078
  %v8080 = vpop.f32.mrb[0].mxu0
  %v8081 = vadd.f32 %v7888, %v8080
  %8082 = vmatprep.mubr.bf16.mxu0 %v4991
  %8083 = vmatmul.mubr.bf16.gmra.mrb[0].mxu0 %v4990
  %v8084 = vpop.f32.mrb[0].mxu0
  %v8085 = vadd.f32 %v7892, %v8084
  %v8086 = vpop.f32.mrb[0].mxu0
  %v8087 = vadd.f32 %v7894, %v8086
  %v8088 = vpop.f32.mrb[0].mxu0
  %v8089 = vadd.f32 %v7896, %v8088
  %v8090 = vpop.f32.mrb[0].mxu0
  %v8091 = vadd.f32 %v7898, %v8090
  %8092 = vmatprep.mubr.bf16.mxu0 %v5003
  %8093 = vmatmul.mubr.bf16.gmra.mrb[0].mxu0 %v5002
  %v8094 = vpop.f32.mrb[0].mxu0
  %v8095 = vadd.f32 %v7902, %v8094
  %v8096 = vpop.f32.mrb[0].mxu0
  %v8097 = vadd.f32 %v7904, %v8096
  %v8098 = vpop.f32.mrb[0].mxu0
  %v8099 = vadd.f32 %v7906, %v8098
  %v8100 = vpop.f32.mrb[0].mxu0
  %v8101 = vadd.f32 %v7908, %v8100
  %8102 = vmatprep.mubr.bf16.mxu0 %v5015
  %8103 = vmatmul.mubr.bf16.gmra.mrb[0].mxu0 %v5014
  %v8104 = vpop.f32.mrb[0].mxu0
  %v8105 = vadd.f32 %v7912, %v8104
  %v8106 = vpop.f32.mrb[0].mxu0
  %v8107 = vadd.f32 %v7914, %v8106
  %v8108 = vpop.f32.mrb[0].mxu0
  %v8109 = vadd.f32 %v7916, %v8108
  %v8110 = vpop.f32.mrb[0].mxu0
  %v8111 = vadd.f32 %v7918, %v8110
  %8112 = vmatprep.mubr.bf16.mxu0 %v5027
  %8113 = vmatmul.mubr.bf16.gmra.mrb[0].mxu0 %v5026
  %v8114 = vpop.f32.mrb[0].mxu0
  %v8115 = vadd.f32 %v7922, %v8114
  %v8116 = vpop.f32.mrb[0].mxu0
  %v8117 = vadd.f32 %v7924, %v8116
  %v8118 = vpop.f32.mrb[0].mxu0
  %v8119 = vadd.f32 %v7926, %v8118
  %v8120 = vpop.f32.mrb[0].mxu0
  %v8121 = vadd.f32 %v7928, %v8120
  %8122 = vdwg.mxu0
  %8123 = vmatprep.subr.bf16.mxu0 0
  %8124 = vmatpush1.bf16.msra.mxu0 %v6391
  %8125 = vmatprep.subr.bf16.mxu0 0
  %8126 = vmatpush1.bf16.msra.mxu0 %v6394
  %8127 = vmatprep.subr.bf16.mxu0 0
  %8128 = vmatpush1.bf16.msra.mxu0 %v6397
  %8129 = vmatprep.subr.bf16.mxu0 0
  %8130 = vmatpush1.bf16.msra.mxu0 %v6400
  %8131 = vmatprep.subr.bf16.mxu0 0
  %8132 = vmatpush1.bf16.msra.mxu0 %v6403
  %8133 = vmatprep.subr.bf16.mxu0 0
  %8134 = vmatpush1.bf16.msra.mxu0 %v6406
  %8135 = vmatprep.subr.bf16.mxu0 0
  %8136 = vmatpush1.bf16.msra.mxu0 %v6409
  %8137 = vmatprep.subr.bf16.mxu0 0
  %8138 = vmatpush1.bf16.msra.mxu0 %v6412
  %8139 = vmatprep.subr.bf16.mxu0 0
  %8140 = vmatpush1.bf16.msra.mxu0 %v6415
  %8141 = vmatprep.subr.bf16.mxu0 0
  %8142 = vmatpush1.bf16.msra.mxu0 %v6418
  %8143 = vmatprep.subr.bf16.mxu0 0
  %8144 = vmatpush1.bf16.msra.mxu0 %v6421
  %8145 = vmatprep.subr.bf16.mxu0 0
  %8146 = vmatpush1.bf16.msra.mxu0 %v6424
  %8147 = vmatprep.subr.bf16.mxu0 0
  %8148 = vmatpush1.bf16.msra.mxu0 %v6427
  %8149 = vmatprep.subr.bf16.mxu0 0
  %8150 = vmatpush1.bf16.msra.mxu0 %v6430
  %8151 = vmatprep.subr.bf16.mxu0 0
  %8152 = vmatpush1.bf16.msra.mxu0 %v6433
  %8153 = vmatprep.subr.bf16.mxu0 0
  %8154 = vmatpush1.bf16.msra.mxu0 %v6436
  %8155 = vmatprep.mubr.bf16.mxu0 %v4837
  %8156 = vmatmul.mubr.bf16.gmra.mrb[0].mxu0 %v4836
  %v8157 = vpop.f32.mrb[0].mxu0
  %v8158 = vadd.f32 %v5425, %v8157
  %v8159 = vpop.f32.mrb[0].mxu0
  %v8160 = vpop.f32.mrb[0].mxu0
  %v8161 = vadd.f32 %v5425, %v8160
  %v8162 = vpop.f32.mrb[0].mxu0
  %8163 = vmatprep.mubr.bf16.mxu0 %v4849
  %8164 = vmatmul.mubr.bf16.gmra.mrb[0].mxu0 %v4848
  %v8165 = vpop.f32.mrb[0].mxu0
  %v8166 = vadd.f32 %v5425, %v8165
  %v8167 = vpop.f32.mrb[0].mxu0
  %v8168 = vpop.f32.mrb[0].mxu0
  %v8169 = vadd.f32 %v5425, %v8168
  %v8170 = vpop.f32.mrb[0].mxu0
  %8171 = vmatprep.mubr.bf16.mxu0 %v4861
  %8172 = vmatmul.mubr.bf16.gmra.mrb[0].mxu0 %v4860
  %v8173 = vpop.f32.mrb[0].mxu0
  %v8174 = vadd.f32 %v5425, %v8173
  %v8175 = vpop.f32.mrb[0].mxu0
  %v8176 = vpop.f32.mrb[0].mxu0
  %v8177 = vadd.f32 %v5425, %v8176
  %v8178 = vpop.f32.mrb[0].mxu0
  %8179 = vmatprep.mubr.bf16.mxu0 %v4873
  %8180 = vmatmul.mubr.bf16.gmra.mrb[0].mxu0 %v4872
  %v8181 = vpop.f32.mrb[0].mxu0
  %v8182 = vadd.f32 %v5425, %v8181
  %v8183 = vpop.f32.mrb[0].mxu0
  %v8184 = vpop.f32.mrb[0].mxu0
  %v8185 = vadd.f32 %v5425, %v8184
  %v8186 = vpop.f32.mrb[0].mxu0
  %8187 = vmatprep.mubr.bf16.mxu0 %v4885
  %8188 = vmatmul.mubr.bf16.gmra.mrb[0].mxu0 %v4884
  %v8189 = vpop.f32.mrb[0].mxu0
  %v8190 = vadd.f32 %v5425, %v8189
  %v8191 = vpop.f32.mrb[0].mxu0
  %v8192 = vpop.f32.mrb[0].mxu0
  %v8193 = vadd.f32 %v5425, %v8192
  %v8194 = vpop.f32.mrb[0].mxu0
  %8195 = vmatprep.mubr.bf16.mxu0 %v4897
  %8196 = vmatmul.mubr.bf16.gmra.mrb[0].mxu0 %v4896
  %v8197 = vpop.f32.mrb[0].mxu0
  %v8198 = vadd.f32 %v5425, %v8197
  %v8199 = vpop.f32.mrb[0].mxu0
  %v8200 = vpop.f32.mrb[0].mxu0
  %v8201 = vadd.f32 %v5425, %v8200
  %v8202 = vpop.f32.mrb[0].mxu0
  %8203 = vmatprep.mubr.bf16.mxu0 %v4909
  %8204 = vmatmul.mubr.bf16.gmra.mrb[0].mxu0 %v4908
  %v8205 = vpop.f32.mrb[0].mxu0
  %v8206 = vadd.f32 %v5425, %v8205
  %v8207 = vpop.f32.mrb[0].mxu0
  %v8208 = vpop.f32.mrb[0].mxu0
  %v8209 = vadd.f32 %v5425, %v8208
  %v8210 = vpop.f32.mrb[0].mxu0
  %8211 = vmatprep.mubr.bf16.mxu0 %v4921
  %8212 = vmatmul.mubr.bf16.gmra.mrb[0].mxu0 %v4920
  %v8213 = vpop.f32.mrb[0].mxu0
  %v8214 = vadd.f32 %v5425, %v8213
  %v8215 = vpop.f32.mrb[0].mxu0
  %v8216 = vpop.f32.mrb[0].mxu0
  %v8217 = vadd.f32 %v5425, %v8216
  %v8218 = vpop.f32.mrb[0].mxu0
  %8219 = vmatprep.mubr.bf16.mxu0 %v4933
  %8220 = vmatmul.mubr.bf16.gmra.mrb[0].mxu0 %v4932
  %v8221 = vpop.f32.mrb[0].mxu0
  %v8222 = vadd.f32 %v5425, %v8221
  %v8223 = vpop.f32.mrb[0].mxu0
  %v8224 = vpop.f32.mrb[0].mxu0
  %v8225 = vadd.f32 %v5425, %v8224
  %v8226 = vpop.f32.mrb[0].mxu0
  %8227 = vmatprep.mubr.bf16.mxu0 %v4945
  %8228 = vmatmul.mubr.bf16.gmra.mrb[0].mxu0 %v4944
  %v8229 = vpop.f32.mrb[0].mxu0
  %v8230 = vadd.f32 %v5425, %v8229
  %v8231 = vpop.f32.mrb[0].mxu0
  %v8232 = vpop.f32.mrb[0].mxu0
  %v8233 = vadd.f32 %v5425, %v8232
  %v8234 = vpop.f32.mrb[0].mxu0
  %8235 = vmatprep.mubr.bf16.mxu0 %v4957
  %8236 = vmatmul.mubr.bf16.gmra.mrb[0].mxu0 %v4956
  %v8237 = vpop.f32.mrb[0].mxu0
  %v8238 = vadd.f32 %v5425, %v8237
  %v8239 = vpop.f32.mrb[0].mxu0
  %v8240 = vpop.f32.mrb[0].mxu0
  %v8241 = vadd.f32 %v5425, %v8240
  %v8242 = vpop.f32.mrb[0].mxu0
  %8243 = vmatprep.mubr.bf16.mxu0 %v4969
  %8244 = vmatmul.mubr.bf16.gmra.mrb[0].mxu0 %v4968
  %v8245 = vpop.f32.mrb[0].mxu0
  %v8246 = vadd.f32 %v5425, %v8245
  %v8247 = vpop.f32.mrb[0].mxu0
  %v8248 = vpop.f32.mrb[0].mxu0
  %v8249 = vadd.f32 %v5425, %v8248
  %v8250 = vpop.f32.mrb[0].mxu0
  %8251 = vmatprep.mubr.bf16.mxu0 %v4981
  %8252 = vmatmul.mubr.bf16.gmra.mrb[0].mxu0 %v4980
  %v8253 = vpop.f32.mrb[0].mxu0
  %v8254 = vadd.f32 %v5425, %v8253
  %v8255 = vpop.f32.mrb[0].mxu0
  %v8256 = vpop.f32.mrb[0].mxu0
  %v8257 = vadd.f32 %v5425, %v8256
  %v8258 = vpop.f32.mrb[0].mxu0
  %8259 = vmatprep.mubr.bf16.mxu0 %v4993
  %8260 = vmatmul.mubr.bf16.gmra.mrb[0].mxu0 %v4992
  %v8261 = vpop.f32.mrb[0].mxu0
  %v8262 = vadd.f32 %v5425, %v8261
  %v8263 = vpop.f32.mrb[0].mxu0
  %v8264 = vpop.f32.mrb[0].mxu0
  %v8265 = vadd.f32 %v5425, %v8264
  %v8266 = vpop.f32.mrb[0].mxu0
  %8267 = vmatprep.mubr.bf16.mxu0 %v5005
  %8268 = vmatmul.mubr.bf16.gmra.mrb[0].mxu0 %v5004
  %v8269 = vpop.f32.mrb[0].mxu0
  %v8270 = vadd.f32 %v5425, %v8269
  %v8271 = vpop.f32.mrb[0].mxu0
  %v8272 = vpop.f32.mrb[0].mxu0
  %v8273 = vadd.f32 %v5425, %v8272
  %v8274 = vpop.f32.mrb[0].mxu0
  %8275 = vmatprep.mubr.bf16.mxu0 %v5017
  %8276 = vmatmul.mubr.bf16.gmra.mrb[0].mxu0 %v5016
  %v8277 = vpop.f32.mrb[0].mxu0
  %v8278 = vadd.f32 %v5425, %v8277
  %v8279 = vpop.f32.mrb[0].mxu0
  %v8280 = vpop.f32.mrb[0].mxu0
  %v8281 = vadd.f32 %v5425, %v8280
  %v8282 = vpop.f32.mrb[0].mxu0
  %8283 = vdwg.mxu0
  %8284 = vmatprep.subr.bf16.mxu0 0
  %8285 = vmatpush1.bf16.msra.mxu0 %v6439
  %8286 = vmatprep.subr.bf16.mxu0 0
  %8287 = vmatpush1.bf16.msra.mxu0 %v6442
  %8288 = vmatprep.subr.bf16.mxu0 0
  %8289 = vmatpush1.bf16.msra.mxu0 %v6445
  %8290 = vmatprep.subr.bf16.mxu0 0
  %8291 = vmatpush1.bf16.msra.mxu0 %v6448
  %8292 = vmatprep.subr.bf16.mxu0 0
  %8293 = vmatpush1.bf16.msra.mxu0 %v6451
  %8294 = vmatprep.subr.bf16.mxu0 0
  %8295 = vmatpush1.bf16.msra.mxu0 %v6454
  %8296 = vmatprep.subr.bf16.mxu0 0
  %8297 = vmatpush1.bf16.msra.mxu0 %v6457
  %8298 = vmatprep.subr.bf16.mxu0 0
  %8299 = vmatpush1.bf16.msra.mxu0 %v6460
  %8300 = vmatprep.subr.bf16.mxu0 0
  %8301 = vmatpush1.bf16.msra.mxu0 %v6463
  %8302 = vmatprep.subr.bf16.mxu0 0
  %8303 = vmatpush1.bf16.msra.mxu0 %v6466
  %8304 = vmatprep.subr.bf16.mxu0 0
  %8305 = vmatpush1.bf16.msra.mxu0 %v6469
  %8306 = vmatprep.subr.bf16.mxu0 0
  %8307 = vmatpush1.bf16.msra.mxu0 %v6472
  %8308 = vmatprep.subr.bf16.mxu0 0
  %8309 = vmatpush1.bf16.msra.mxu0 %v6475
  %8310 = vmatprep.subr.bf16.mxu0 0
  %8311 = vmatpush1.bf16.msra.mxu0 %v6478
  %8312 = vmatprep.subr.bf16.mxu0 0
  %8313 = vmatpush1.bf16.msra.mxu0 %v6481
  %8314 = vmatprep.subr.bf16.mxu0 0
  %8315 = vmatpush1.bf16.msra.mxu0 %v6484
  %8316 = vmatprep.mubr.bf16.mxu0 %v4839
  %8317 = vmatmul.mubr.bf16.gmra.mrb[0].mxu0 %v4838
  %v8318 = vpop.f32.mrb[0].mxu0
  %v8319 = vadd.f32 %v8158, %v8318
  %v8320 = vpop.f32.mrb[0].mxu0
  %v8321 = vpop.f32.mrb[0].mxu0
  %v8322 = vadd.f32 %v8161, %v8321
  %v8323 = vpop.f32.mrb[0].mxu0
  %8324 = vmatprep.mubr.bf16.mxu0 %v4851
  %8325 = vmatmul.mubr.bf16.gmra.mrb[0].mxu0 %v4850
  %v8326 = vpop.f32.mrb[0].mxu0
  %v8327 = vadd.f32 %v8166, %v8326
  %v8328 = vpop.f32.mrb[0].mxu0
  %v8329 = vpop.f32.mrb[0].mxu0
  %v8330 = vadd.f32 %v8169, %v8329
  %v8331 = vpop.f32.mrb[0].mxu0
  %8332 = vmatprep.mubr.bf16.mxu0 %v4863
  %8333 = vmatmul.mubr.bf16.gmra.mrb[0].mxu0 %v4862
  %v8334 = vpop.f32.mrb[0].mxu0
  %v8335 = vadd.f32 %v8174, %v8334
  %v8336 = vpop.f32.mrb[0].mxu0
  %v8337 = vpop.f32.mrb[0].mxu0
  %v8338 = vadd.f32 %v8177, %v8337
  %v8339 = vpop.f32.mrb[0].mxu0
  %8340 = vmatprep.mubr.bf16.mxu0 %v4875
  %8341 = vmatmul.mubr.bf16.gmra.mrb[0].mxu0 %v4874
  %v8342 = vpop.f32.mrb[0].mxu0
  %v8343 = vadd.f32 %v8182, %v8342
  %v8344 = vpop.f32.mrb[0].mxu0
  %v8345 = vpop.f32.mrb[0].mxu0
  %v8346 = vadd.f32 %v8185, %v8345
  %v8347 = vpop.f32.mrb[0].mxu0
  %8348 = vmatprep.mubr.bf16.mxu0 %v4887
  %8349 = vmatmul.mubr.bf16.gmra.mrb[0].mxu0 %v4886
  %v8350 = vpop.f32.mrb[0].mxu0
  %v8351 = vadd.f32 %v8190, %v8350
  %v8352 = vpop.f32.mrb[0].mxu0
  %v8353 = vpop.f32.mrb[0].mxu0
  %v8354 = vadd.f32 %v8193, %v8353
  %v8355 = vpop.f32.mrb[0].mxu0
  %8356 = vmatprep.mubr.bf16.mxu0 %v4899
  %8357 = vmatmul.mubr.bf16.gmra.mrb[0].mxu0 %v4898
  %v8358 = vpop.f32.mrb[0].mxu0
  %v8359 = vadd.f32 %v8198, %v8358
  %v8360 = vpop.f32.mrb[0].mxu0
  %v8361 = vpop.f32.mrb[0].mxu0
  %v8362 = vadd.f32 %v8201, %v8361
  %v8363 = vpop.f32.mrb[0].mxu0
  %8364 = vmatprep.mubr.bf16.mxu0 %v4911
  %8365 = vmatmul.mubr.bf16.gmra.mrb[0].mxu0 %v4910
  %v8366 = vpop.f32.mrb[0].mxu0
  %v8367 = vadd.f32 %v8206, %v8366
  %v8368 = vpop.f32.mrb[0].mxu0
  %v8369 = vpop.f32.mrb[0].mxu0
  %v8370 = vadd.f32 %v8209, %v8369
  %v8371 = vpop.f32.mrb[0].mxu0
  %8372 = vmatprep.mubr.bf16.mxu0 %v4923
  %8373 = vmatmul.mubr.bf16.gmra.mrb[0].mxu0 %v4922
  %v8374 = vpop.f32.mrb[0].mxu0
  %v8375 = vadd.f32 %v8214, %v8374
  %v8376 = vpop.f32.mrb[0].mxu0
  %v8377 = vpop.f32.mrb[0].mxu0
  %v8378 = vadd.f32 %v8217, %v8377
  %v8379 = vpop.f32.mrb[0].mxu0
  %8380 = vmatprep.mubr.bf16.mxu0 %v4935
  %8381 = vmatmul.mubr.bf16.gmra.mrb[0].mxu0 %v4934
  %v8382 = vpop.f32.mrb[0].mxu0
  %v8383 = vadd.f32 %v8222, %v8382
  %v8384 = vpop.f32.mrb[0].mxu0
  %v8385 = vpop.f32.mrb[0].mxu0
  %v8386 = vadd.f32 %v8225, %v8385
  %v8387 = vpop.f32.mrb[0].mxu0
  %8388 = vmatprep.mubr.bf16.mxu0 %v4947
  %8389 = vmatmul.mubr.bf16.gmra.mrb[0].mxu0 %v4946
  %v8390 = vpop.f32.mrb[0].mxu0
  %v8391 = vadd.f32 %v8230, %v8390
  %v8392 = vpop.f32.mrb[0].mxu0
  %v8393 = vpop.f32.mrb[0].mxu0
  %v8394 = vadd.f32 %v8233, %v8393
  %v8395 = vpop.f32.mrb[0].mxu0
  %8396 = vmatprep.mubr.bf16.mxu0 %v4959
  %8397 = vmatmul.mubr.bf16.gmra.mrb[0].mxu0 %v4958
  %v8398 = vpop.f32.mrb[0].mxu0
  %v8399 = vadd.f32 %v8238, %v8398
  %v8400 = vpop.f32.mrb[0].mxu0
  %v8401 = vpop.f32.mrb[0].mxu0
  %v8402 = vadd.f32 %v8241, %v8401
  %v8403 = vpop.f32.mrb[0].mxu0
  %8404 = vmatprep.mubr.bf16.mxu0 %v4971
  %8405 = vmatmul.mubr.bf16.gmra.mrb[0].mxu0 %v4970
  %v8406 = vpop.f32.mrb[0].mxu0
  %v8407 = vadd.f32 %v8246, %v8406
  %v8408 = vpop.f32.mrb[0].mxu0
  %v8409 = vpop.f32.mrb[0].mxu0
  %v8410 = vadd.f32 %v8249, %v8409
  %v8411 = vpop.f32.mrb[0].mxu0
  %8412 = vmatprep.mubr.bf16.mxu0 %v4983
  %8413 = vmatmul.mubr.bf16.gmra.mrb[0].mxu0 %v4982
  %v8414 = vpop.f32.mrb[0].mxu0
  %v8415 = vadd.f32 %v8254, %v8414
  %v8416 = vpop.f32.mrb[0].mxu0
  %v8417 = vpop.f32.mrb[0].mxu0
  %v8418 = vadd.f32 %v8257, %v8417
  %v8419 = vpop.f32.mrb[0].mxu0
  %8420 = vmatprep.mubr.bf16.mxu0 %v4995
  %8421 = vmatmul.mubr.bf16.gmra.mrb[0].mxu0 %v4994
  %v8422 = vpop.f32.mrb[0].mxu0
  %v8423 = vadd.f32 %v8262, %v8422
  %v8424 = vpop.f32.mrb[0].mxu0
  %v8425 = vpop.f32.mrb[0].mxu0
  %v8426 = vadd.f32 %v8265, %v8425
  %v8427 = vpop.f32.mrb[0].mxu0
  %8428 = vmatprep.mubr.bf16.mxu0 %v5007
  %8429 = vmatmul.mubr.bf16.gmra.mrb[0].mxu0 %v5006
  %v8430 = vpop.f32.mrb[0].mxu0
  %v8431 = vadd.f32 %v8270, %v8430
  %v8432 = vpop.f32.mrb[0].mxu0
  %v8433 = vpop.f32.mrb[0].mxu0
  %v8434 = vadd.f32 %v8273, %v8433
  %v8435 = vpop.f32.mrb[0].mxu0
  %8436 = vmatprep.mubr.bf16.mxu0 %v5019
  %8437 = vmatmul.mubr.bf16.gmra.mrb[0].mxu0 %v5018
  %v8438 = vpop.f32.mrb[0].mxu0
  %v8439 = vadd.f32 %v8278, %v8438
  %v8440 = vpop.f32.mrb[0].mxu0
  %v8441 = vpop.f32.mrb[0].mxu0
  %v8442 = vadd.f32 %v8281, %v8441
  %v8443 = vpop.f32.mrb[0].mxu0
  %8444 = vdwg.mxu0
  %8445 = vmatprep.subr.bf16.mxu0 0
  %8446 = vmatpush1.bf16.msra.mxu0 %v6487
  %8447 = vmatprep.subr.bf16.mxu0 0
  %8448 = vmatpush1.bf16.msra.mxu0 %v6490
  %8449 = vmatprep.subr.bf16.mxu0 0
  %8450 = vmatpush1.bf16.msra.mxu0 %v6493
  %8451 = vmatprep.subr.bf16.mxu0 0
  %8452 = vmatpush1.bf16.msra.mxu0 %v6496
  %8453 = vmatprep.subr.bf16.mxu0 0
  %8454 = vmatpush1.bf16.msra.mxu0 %v6499
  %8455 = vmatprep.subr.bf16.mxu0 0
  %8456 = vmatpush1.bf16.msra.mxu0 %v6502
  %8457 = vmatprep.subr.bf16.mxu0 0
  %8458 = vmatpush1.bf16.msra.mxu0 %v6505
  %8459 = vmatprep.subr.bf16.mxu0 0
  %8460 = vmatpush1.bf16.msra.mxu0 %v6508
  %8461 = vmatprep.subr.bf16.mxu0 0
  %8462 = vmatpush1.bf16.msra.mxu0 %v6511
  %8463 = vmatprep.subr.bf16.mxu0 0
  %8464 = vmatpush1.bf16.msra.mxu0 %v6514
  %8465 = vmatprep.subr.bf16.mxu0 0
  %8466 = vmatpush1.bf16.msra.mxu0 %v6517
  %8467 = vmatprep.subr.bf16.mxu0 0
  %8468 = vmatpush1.bf16.msra.mxu0 %v6520
  %8469 = vmatprep.subr.bf16.mxu0 0
  %8470 = vmatpush1.bf16.msra.mxu0 %v6523
  %8471 = vmatprep.subr.bf16.mxu0 0
  %8472 = vmatpush1.bf16.msra.mxu0 %v6526
  %8473 = vmatprep.subr.bf16.mxu0 0
  %8474 = vmatpush1.bf16.msra.mxu0 %v6529
  %8475 = vmatprep.subr.bf16.mxu0 0
  %8476 = vmatpush1.bf16.msra.mxu0 %v6532
  %8477 = vmatprep.mubr.bf16.mxu0 %v4841
  %8478 = vmatmul.mubr.bf16.gmra.mrb[0].mxu0 %v4840
  %v8479 = vpop.f32.mrb[0].mxu0
  %v8480 = vadd.f32 %v8319, %v8479
  %v8481 = vpop.f32.mrb[0].mxu0
  %v8482 = vpop.f32.mrb[0].mxu0
  %v8483 = vadd.f32 %v8322, %v8482
  %v8484 = vpop.f32.mrb[0].mxu0
  %8485 = vmatprep.mubr.bf16.mxu0 %v4853
  %8486 = vmatmul.mubr.bf16.gmra.mrb[0].mxu0 %v4852
  %v8487 = vpop.f32.mrb[0].mxu0
  %v8488 = vadd.f32 %v8327, %v8487
  %v8489 = vpop.f32.mrb[0].mxu0
  %v8490 = vpop.f32.mrb[0].mxu0
  %v8491 = vadd.f32 %v8330, %v8490
  %v8492 = vpop.f32.mrb[0].mxu0
  %8493 = vmatprep.mubr.bf16.mxu0 %v4865
  %8494 = vmatmul.mubr.bf16.gmra.mrb[0].mxu0 %v4864
  %v8495 = vpop.f32.mrb[0].mxu0
  %v8496 = vadd.f32 %v8335, %v8495
  %v8497 = vpop.f32.mrb[0].mxu0
  %v8498 = vpop.f32.mrb[0].mxu0
  %v8499 = vadd.f32 %v8338, %v8498
  %v8500 = vpop.f32.mrb[0].mxu0
  %8501 = vmatprep.mubr.bf16.mxu0 %v4877
  %8502 = vmatmul.mubr.bf16.gmra.mrb[0].mxu0 %v4876
  %v8503 = vpop.f32.mrb[0].mxu0
  %v8504 = vadd.f32 %v8343, %v8503
  %v8505 = vpop.f32.mrb[0].mxu0
  %v8506 = vpop.f32.mrb[0].mxu0
  %v8507 = vadd.f32 %v8346, %v8506
  %v8508 = vpop.f32.mrb[0].mxu0
  %8509 = vmatprep.mubr.bf16.mxu0 %v4889
  %8510 = vmatmul.mubr.bf16.gmra.mrb[0].mxu0 %v4888
  %v8511 = vpop.f32.mrb[0].mxu0
  %v8512 = vadd.f32 %v8351, %v8511
  %v8513 = vpop.f32.mrb[0].mxu0
  %v8514 = vpop.f32.mrb[0].mxu0
  %v8515 = vadd.f32 %v8354, %v8514
  %v8516 = vpop.f32.mrb[0].mxu0
  %8517 = vmatprep.mubr.bf16.mxu0 %v4901
  %8518 = vmatmul.mubr.bf16.gmra.mrb[0].mxu0 %v4900
  %v8519 = vpop.f32.mrb[0].mxu0
  %v8520 = vadd.f32 %v8359, %v8519
  %v8521 = vpop.f32.mrb[0].mxu0
  %v8522 = vpop.f32.mrb[0].mxu0
  %v8523 = vadd.f32 %v8362, %v8522
  %v8524 = vpop.f32.mrb[0].mxu0
  %8525 = vmatprep.mubr.bf16.mxu0 %v4913
  %8526 = vmatmul.mubr.bf16.gmra.mrb[0].mxu0 %v4912
  %v8527 = vpop.f32.mrb[0].mxu0
  %v8528 = vadd.f32 %v8367, %v8527
  %v8529 = vpop.f32.mrb[0].mxu0
  %v8530 = vpop.f32.mrb[0].mxu0
  %v8531 = vadd.f32 %v8370, %v8530
  %v8532 = vpop.f32.mrb[0].mxu0
  %8533 = vmatprep.mubr.bf16.mxu0 %v4925
  %8534 = vmatmul.mubr.bf16.gmra.mrb[0].mxu0 %v4924
  %v8535 = vpop.f32.mrb[0].mxu0
  %v8536 = vadd.f32 %v8375, %v8535
  %v8537 = vpop.f32.mrb[0].mxu0
  %v8538 = vpop.f32.mrb[0].mxu0
  %v8539 = vadd.f32 %v8378, %v8538
  %v8540 = vpop.f32.mrb[0].mxu0
  %8541 = vmatprep.mubr.bf16.mxu0 %v4937
  %8542 = vmatmul.mubr.bf16.gmra.mrb[0].mxu0 %v4936
  %v8543 = vpop.f32.mrb[0].mxu0
  %v8544 = vadd.f32 %v8383, %v8543
  %v8545 = vpop.f32.mrb[0].mxu0
  %v8546 = vpop.f32.mrb[0].mxu0
  %v8547 = vadd.f32 %v8386, %v8546
  %v8548 = vpop.f32.mrb[0].mxu0
  %8549 = vmatprep.mubr.bf16.mxu0 %v4949
  %8550 = vmatmul.mubr.bf16.gmra.mrb[0].mxu0 %v4948
  %v8551 = vpop.f32.mrb[0].mxu0
  %v8552 = vadd.f32 %v8391, %v8551
  %v8553 = vpop.f32.mrb[0].mxu0
  %v8554 = vpop.f32.mrb[0].mxu0
  %v8555 = vadd.f32 %v8394, %v8554
  %v8556 = vpop.f32.mrb[0].mxu0
  %8557 = vmatprep.mubr.bf16.mxu0 %v4961
  %8558 = vmatmul.mubr.bf16.gmra.mrb[0].mxu0 %v4960
  %v8559 = vpop.f32.mrb[0].mxu0
  %v8560 = vadd.f32 %v8399, %v8559
  %v8561 = vpop.f32.mrb[0].mxu0
  %v8562 = vpop.f32.mrb[0].mxu0
  %v8563 = vadd.f32 %v8402, %v8562
  %v8564 = vpop.f32.mrb[0].mxu0
  %8565 = vmatprep.mubr.bf16.mxu0 %v4973
  %8566 = vmatmul.mubr.bf16.gmra.mrb[0].mxu0 %v4972
  %v8567 = vpop.f32.mrb[0].mxu0
  %v8568 = vadd.f32 %v8407, %v8567
  %v8569 = vpop.f32.mrb[0].mxu0
  %v8570 = vpop.f32.mrb[0].mxu0
  %v8571 = vadd.f32 %v8410, %v8570
  %v8572 = vpop.f32.mrb[0].mxu0
  %8573 = vmatprep.mubr.bf16.mxu0 %v4985
  %8574 = vmatmul.mubr.bf16.gmra.mrb[0].mxu0 %v4984
  %v8575 = vpop.f32.mrb[0].mxu0
  %v8576 = vadd.f32 %v8415, %v8575
  %v8577 = vpop.f32.mrb[0].mxu0
  %v8578 = vpop.f32.mrb[0].mxu0
  %v8579 = vadd.f32 %v8418, %v8578
  %v8580 = vpop.f32.mrb[0].mxu0
  %8581 = vmatprep.mubr.bf16.mxu0 %v4997
  %8582 = vmatmul.mubr.bf16.gmra.mrb[0].mxu0 %v4996
  %v8583 = vpop.f32.mrb[0].mxu0
  %v8584 = vadd.f32 %v8423, %v8583
  %v8585 = vpop.f32.mrb[0].mxu0
  %v8586 = vpop.f32.mrb[0].mxu0
  %v8587 = vadd.f32 %v8426, %v8586
  %v8588 = vpop.f32.mrb[0].mxu0
  %8589 = vmatprep.mubr.bf16.mxu0 %v5009
  %8590 = vmatmul.mubr.bf16.gmra.mrb[0].mxu0 %v5008
  %v8591 = vpop.f32.mrb[0].mxu0
  %v8592 = vadd.f32 %v8431, %v8591
  %v8593 = vpop.f32.mrb[0].mxu0
  %v8594 = vpop.f32.mrb[0].mxu0
  %v8595 = vadd.f32 %v8434, %v8594
  %v8596 = vpop.f32.mrb[0].mxu0
  %8597 = vmatprep.mubr.bf16.mxu0 %v5021
  %8598 = vmatmul.mubr.bf16.gmra.mrb[0].mxu0 %v5020
  %v8599 = vpop.f32.mrb[0].mxu0
  %v8600 = vadd.f32 %v8439, %v8599
  %v8601 = vpop.f32.mrb[0].mxu0
  %v8602 = vpop.f32.mrb[0].mxu0
  %v8603 = vadd.f32 %v8442, %v8602
  %v8604 = vpop.f32.mrb[0].mxu0
  %8605 = vdwg.mxu0
  %8606 = vmatprep.subr.bf16.mxu0 0
  %8607 = vmatpush1.bf16.msra.mxu0 %v6535
  %8608 = vmatprep.subr.bf16.mxu0 0
  %8609 = vmatpush1.bf16.msra.mxu0 %v6538
  %8610 = vmatprep.subr.bf16.mxu0 0
  %8611 = vmatpush1.bf16.msra.mxu0 %v6541
  %8612 = vmatprep.subr.bf16.mxu0 0
  %8613 = vmatpush1.bf16.msra.mxu0 %v6544
  %8614 = vmatprep.subr.bf16.mxu0 0
  %8615 = vmatpush1.bf16.msra.mxu0 %v6547
  %8616 = vmatprep.subr.bf16.mxu0 0
  %8617 = vmatpush1.bf16.msra.mxu0 %v6550
  %8618 = vmatprep.subr.bf16.mxu0 0
  %8619 = vmatpush1.bf16.msra.mxu0 %v6553
  %8620 = vmatprep.subr.bf16.mxu0 0
  %8621 = vmatpush1.bf16.msra.mxu0 %v6556
  %8622 = vmatprep.subr.bf16.mxu0 0
  %8623 = vmatpush1.bf16.msra.mxu0 %v6559
  %8624 = vmatprep.subr.bf16.mxu0 0
  %8625 = vmatpush1.bf16.msra.mxu0 %v6562
  %8626 = vmatprep.subr.bf16.mxu0 0
  %8627 = vmatpush1.bf16.msra.mxu0 %v6565
  %8628 = vmatprep.subr.bf16.mxu0 0
  %8629 = vmatpush1.bf16.msra.mxu0 %v6568
  %8630 = vmatprep.subr.bf16.mxu0 0
  %8631 = vmatpush1.bf16.msra.mxu0 %v6571
  %8632 = vmatprep.subr.bf16.mxu0 0
  %8633 = vmatpush1.bf16.msra.mxu0 %v6574
  %8634 = vmatprep.subr.bf16.mxu0 0
  %8635 = vmatpush1.bf16.msra.mxu0 %v6577
  %8636 = vmatprep.subr.bf16.mxu0 0
  %8637 = vmatpush1.bf16.msra.mxu0 %v6580
  %8638 = vmatprep.mubr.bf16.mxu0 %v4843
  %8639 = vmatmul.mubr.bf16.gmra.mrb[0].mxu0 %v4842
  %v8640 = vpop.f32.mrb[0].mxu0
  %v8641 = vadd.f32 %v8480, %v8640
  %v8642 = vpop.f32.mrb[0].mxu0
  %v8643 = vpop.f32.mrb[0].mxu0
  %v8644 = vadd.f32 %v8483, %v8643
  %v8645 = vpop.f32.mrb[0].mxu0
  %8646 = vmatprep.mubr.bf16.mxu0 %v4855
  %8647 = vmatmul.mubr.bf16.gmra.mrb[0].mxu0 %v4854
  %v8648 = vpop.f32.mrb[0].mxu0
  %v8649 = vadd.f32 %v8488, %v8648
  %v8650 = vpop.f32.mrb[0].mxu0
  %v8651 = vpop.f32.mrb[0].mxu0
  %v8652 = vadd.f32 %v8491, %v8651
  %v8653 = vpop.f32.mrb[0].mxu0
  %8654 = vmatprep.mubr.bf16.mxu0 %v4867
  %8655 = vmatmul.mubr.bf16.gmra.mrb[0].mxu0 %v4866
  %v8656 = vpop.f32.mrb[0].mxu0
  %v8657 = vadd.f32 %v8496, %v8656
  %v8658 = vpop.f32.mrb[0].mxu0
  %v8659 = vpop.f32.mrb[0].mxu0
  %v8660 = vadd.f32 %v8499, %v8659
  %v8661 = vpop.f32.mrb[0].mxu0
  %8662 = vmatprep.mubr.bf16.mxu0 %v4879
  %8663 = vmatmul.mubr.bf16.gmra.mrb[0].mxu0 %v4878
  %v8664 = vpop.f32.mrb[0].mxu0
  %v8665 = vadd.f32 %v8504, %v8664
  %v8666 = vpop.f32.mrb[0].mxu0
  %v8667 = vpop.f32.mrb[0].mxu0
  %v8668 = vadd.f32 %v8507, %v8667
  %v8669 = vpop.f32.mrb[0].mxu0
  %8670 = vmatprep.mubr.bf16.mxu0 %v4891
  %8671 = vmatmul.mubr.bf16.gmra.mrb[0].mxu0 %v4890
  %v8672 = vpop.f32.mrb[0].mxu0
  %v8673 = vadd.f32 %v8512, %v8672
  %v8674 = vpop.f32.mrb[0].mxu0
  %v8675 = vpop.f32.mrb[0].mxu0
  %v8676 = vadd.f32 %v8515, %v8675
  %v8677 = vpop.f32.mrb[0].mxu0
  %8678 = vmatprep.mubr.bf16.mxu0 %v4903
  %8679 = vmatmul.mubr.bf16.gmra.mrb[0].mxu0 %v4902
  %v8680 = vpop.f32.mrb[0].mxu0
  %v8681 = vadd.f32 %v8520, %v8680
  %v8682 = vpop.f32.mrb[0].mxu0
  %v8683 = vpop.f32.mrb[0].mxu0
  %v8684 = vadd.f32 %v8523, %v8683
  %v8685 = vpop.f32.mrb[0].mxu0
  %8686 = vmatprep.mubr.bf16.mxu0 %v4915
  %8687 = vmatmul.mubr.bf16.gmra.mrb[0].mxu0 %v4914
  %v8688 = vpop.f32.mrb[0].mxu0
  %v8689 = vadd.f32 %v8528, %v8688
  %v8690 = vpop.f32.mrb[0].mxu0
  %v8691 = vpop.f32.mrb[0].mxu0
  %v8692 = vadd.f32 %v8531, %v8691
  %v8693 = vpop.f32.mrb[0].mxu0
  %8694 = vmatprep.mubr.bf16.mxu0 %v4927
  %8695 = vmatmul.mubr.bf16.gmra.mrb[0].mxu0 %v4926
  %v8696 = vpop.f32.mrb[0].mxu0
  %v8697 = vadd.f32 %v8536, %v8696
  %v8698 = vpop.f32.mrb[0].mxu0
  %v8699 = vpop.f32.mrb[0].mxu0
  %v8700 = vadd.f32 %v8539, %v8699
  %v8701 = vpop.f32.mrb[0].mxu0
  %8702 = vmatprep.mubr.bf16.mxu0 %v4939
  %8703 = vmatmul.mubr.bf16.gmra.mrb[0].mxu0 %v4938
  %v8704 = vpop.f32.mrb[0].mxu0
  %v8705 = vadd.f32 %v8544, %v8704
  %v8706 = vpop.f32.mrb[0].mxu0
  %v8707 = vpop.f32.mrb[0].mxu0
  %v8708 = vadd.f32 %v8547, %v8707
  %v8709 = vpop.f32.mrb[0].mxu0
  %8710 = vmatprep.mubr.bf16.mxu0 %v4951
  %8711 = vmatmul.mubr.bf16.gmra.mrb[0].mxu0 %v4950
  %v8712 = vpop.f32.mrb[0].mxu0
  %v8713 = vadd.f32 %v8552, %v8712
  %v8714 = vpop.f32.mrb[0].mxu0
  %v8715 = vpop.f32.mrb[0].mxu0
  %v8716 = vadd.f32 %v8555, %v8715
  %v8717 = vpop.f32.mrb[0].mxu0
  %8718 = vmatprep.mubr.bf16.mxu0 %v4963
  %8719 = vmatmul.mubr.bf16.gmra.mrb[0].mxu0 %v4962
  %v8720 = vpop.f32.mrb[0].mxu0
  %v8721 = vadd.f32 %v8560, %v8720
  %v8722 = vpop.f32.mrb[0].mxu0
  %v8723 = vpop.f32.mrb[0].mxu0
  %v8724 = vadd.f32 %v8563, %v8723
  %v8725 = vpop.f32.mrb[0].mxu0
  %8726 = vmatprep.mubr.bf16.mxu0 %v4975
  %8727 = vmatmul.mubr.bf16.gmra.mrb[0].mxu0 %v4974
  %v8728 = vpop.f32.mrb[0].mxu0
  %v8729 = vadd.f32 %v8568, %v8728
  %v8730 = vpop.f32.mrb[0].mxu0
  %v8731 = vpop.f32.mrb[0].mxu0
  %v8732 = vadd.f32 %v8571, %v8731
  %v8733 = vpop.f32.mrb[0].mxu0
  %8734 = vmatprep.mubr.bf16.mxu0 %v4987
  %8735 = vmatmul.mubr.bf16.gmra.mrb[0].mxu0 %v4986
  %v8736 = vpop.f32.mrb[0].mxu0
  %v8737 = vadd.f32 %v8576, %v8736
  %v8738 = vpop.f32.mrb[0].mxu0
  %v8739 = vpop.f32.mrb[0].mxu0
  %v8740 = vadd.f32 %v8579, %v8739
  %v8741 = vpop.f32.mrb[0].mxu0
  %8742 = vmatprep.mubr.bf16.mxu0 %v4999
  %8743 = vmatmul.mubr.bf16.gmra.mrb[0].mxu0 %v4998
  %v8744 = vpop.f32.mrb[0].mxu0
  %v8745 = vadd.f32 %v8584, %v8744
  %v8746 = vpop.f32.mrb[0].mxu0
  %v8747 = vpop.f32.mrb[0].mxu0
  %v8748 = vadd.f32 %v8587, %v8747
  %v8749 = vpop.f32.mrb[0].mxu0
  %8750 = vmatprep.mubr.bf16.mxu0 %v5011
  %8751 = vmatmul.mubr.bf16.gmra.mrb[0].mxu0 %v5010
  %v8752 = vpop.f32.mrb[0].mxu0
  %v8753 = vadd.f32 %v8592, %v8752
  %v8754 = vpop.f32.mrb[0].mxu0
  %v8755 = vpop.f32.mrb[0].mxu0
  %v8756 = vadd.f32 %v8595, %v8755
  %v8757 = vpop.f32.mrb[0].mxu0
  %8758 = vmatprep.mubr.bf16.mxu0 %v5023
  %8759 = vmatmul.mubr.bf16.gmra.mrb[0].mxu0 %v5022
  %v8760 = vpop.f32.mrb[0].mxu0
  %v8761 = vadd.f32 %v8600, %v8760
  %v8762 = vpop.f32.mrb[0].mxu0
  %v8763 = vpop.f32.mrb[0].mxu0
  %v8764 = vadd.f32 %v8603, %v8763
  %v8765 = vpop.f32.mrb[0].mxu0
  %8766 = vdwg.mxu0
  %8767 = vmatprep.subr.bf16.mxu0 0
  %8768 = vmatpush1.bf16.msra.mxu0 %v6583
  %8769 = vmatprep.subr.bf16.mxu0 0
  %8770 = vmatpush1.bf16.msra.mxu0 %v6586
  %8771 = vmatprep.subr.bf16.mxu0 0
  %8772 = vmatpush1.bf16.msra.mxu0 %v6589
  %8773 = vmatprep.subr.bf16.mxu0 0
  %8774 = vmatpush1.bf16.msra.mxu0 %v6592
  %8775 = vmatprep.subr.bf16.mxu0 0
  %8776 = vmatpush1.bf16.msra.mxu0 %v6595
  %8777 = vmatprep.subr.bf16.mxu0 0
  %8778 = vmatpush1.bf16.msra.mxu0 %v6598
  %8779 = vmatprep.subr.bf16.mxu0 0
  %8780 = vmatpush1.bf16.msra.mxu0 %v6601
  %8781 = vmatprep.subr.bf16.mxu0 0
  %8782 = vmatpush1.bf16.msra.mxu0 %v6604
  %8783 = vmatprep.subr.bf16.mxu0 0
  %8784 = vmatpush1.bf16.msra.mxu0 %v6607
  %8785 = vmatprep.subr.bf16.mxu0 0
  %8786 = vmatpush1.bf16.msra.mxu0 %v6610
  %8787 = vmatprep.subr.bf16.mxu0 0
  %8788 = vmatpush1.bf16.msra.mxu0 %v6613
  %8789 = vmatprep.subr.bf16.mxu0 0
  %8790 = vmatpush1.bf16.msra.mxu0 %v6616
  %8791 = vmatprep.subr.bf16.mxu0 0
  %8792 = vmatpush1.bf16.msra.mxu0 %v6619
  %8793 = vmatprep.subr.bf16.mxu0 0
  %8794 = vmatpush1.bf16.msra.mxu0 %v6622
  %8795 = vmatprep.subr.bf16.mxu0 0
  %8796 = vmatpush1.bf16.msra.mxu0 %v6625
  %8797 = vmatprep.subr.bf16.mxu0 0
  %8798 = vmatpush1.bf16.msra.mxu0 %v6628
  %8799 = vmatprep.mubr.bf16.mxu0 %v4845
  %8800 = vmatmul.mubr.bf16.gmra.mrb[0].mxu0 %v4844
  %v8801 = vpop.f32.mrb[0].mxu0
  %v8802 = vadd.f32 %v8641, %v8801
  %v8803 = vpop.f32.mrb[0].mxu0
  %v8804 = vpop.f32.mrb[0].mxu0
  %v8805 = vadd.f32 %v8644, %v8804
  %v8806 = vpop.f32.mrb[0].mxu0
  %8807 = vmatprep.mubr.bf16.mxu0 %v4857
  %8808 = vmatmul.mubr.bf16.gmra.mrb[0].mxu0 %v4856
  %v8809 = vpop.f32.mrb[0].mxu0
  %v8810 = vadd.f32 %v8649, %v8809
  %v8811 = vpop.f32.mrb[0].mxu0
  %v8812 = vpop.f32.mrb[0].mxu0
  %v8813 = vadd.f32 %v8652, %v8812
  %v8814 = vpop.f32.mrb[0].mxu0
  %8815 = vmatprep.mubr.bf16.mxu0 %v4869
  %8816 = vmatmul.mubr.bf16.gmra.mrb[0].mxu0 %v4868
  %v8817 = vpop.f32.mrb[0].mxu0
  %v8818 = vadd.f32 %v8657, %v8817
  %v8819 = vpop.f32.mrb[0].mxu0
  %v8820 = vpop.f32.mrb[0].mxu0
  %v8821 = vadd.f32 %v8660, %v8820
  %v8822 = vpop.f32.mrb[0].mxu0
  %8823 = vmatprep.mubr.bf16.mxu0 %v4881
  %8824 = vmatmul.mubr.bf16.gmra.mrb[0].mxu0 %v4880
  %v8825 = vpop.f32.mrb[0].mxu0
  %v8826 = vadd.f32 %v8665, %v8825
  %v8827 = vpop.f32.mrb[0].mxu0
  %v8828 = vpop.f32.mrb[0].mxu0
  %v8829 = vadd.f32 %v8668, %v8828
  %v8830 = vpop.f32.mrb[0].mxu0
  %8831 = vmatprep.mubr.bf16.mxu0 %v4893
  %8832 = vmatmul.mubr.bf16.gmra.mrb[0].mxu0 %v4892
  %v8833 = vpop.f32.mrb[0].mxu0
  %v8834 = vadd.f32 %v8673, %v8833
  %v8835 = vpop.f32.mrb[0].mxu0
  %v8836 = vpop.f32.mrb[0].mxu0
  %v8837 = vadd.f32 %v8676, %v8836
  %v8838 = vpop.f32.mrb[0].mxu0
  %8839 = vmatprep.mubr.bf16.mxu0 %v4905
  %8840 = vmatmul.mubr.bf16.gmra.mrb[0].mxu0 %v4904
  %v8841 = vpop.f32.mrb[0].mxu0
  %v8842 = vadd.f32 %v8681, %v8841
  %v8843 = vpop.f32.mrb[0].mxu0
  %v8844 = vpop.f32.mrb[0].mxu0
  %v8845 = vadd.f32 %v8684, %v8844
  %v8846 = vpop.f32.mrb[0].mxu0
  %8847 = vmatprep.mubr.bf16.mxu0 %v4917
  %8848 = vmatmul.mubr.bf16.gmra.mrb[0].mxu0 %v4916
  %v8849 = vpop.f32.mrb[0].mxu0
  %v8850 = vadd.f32 %v8689, %v8849
  %v8851 = vpop.f32.mrb[0].mxu0
  %v8852 = vpop.f32.mrb[0].mxu0
  %v8853 = vadd.f32 %v8692, %v8852
  %v8854 = vpop.f32.mrb[0].mxu0
  %8855 = vmatprep.mubr.bf16.mxu0 %v4929
  %8856 = vmatmul.mubr.bf16.gmra.mrb[0].mxu0 %v4928
  %v8857 = vpop.f32.mrb[0].mxu0
  %v8858 = vadd.f32 %v8697, %v8857
  %v8859 = vpop.f32.mrb[0].mxu0
  %v8860 = vpop.f32.mrb[0].mxu0
  %v8861 = vadd.f32 %v8700, %v8860
  %v8862 = vpop.f32.mrb[0].mxu0
  %8863 = vmatprep.mubr.bf16.mxu0 %v4941
  %8864 = vmatmul.mubr.bf16.gmra.mrb[0].mxu0 %v4940
  %v8865 = vpop.f32.mrb[0].mxu0
  %v8866 = vadd.f32 %v8705, %v8865
  %v8867 = vpop.f32.mrb[0].mxu0
  %v8868 = vpop.f32.mrb[0].mxu0
  %v8869 = vadd.f32 %v8708, %v8868
  %v8870 = vpop.f32.mrb[0].mxu0
  %8871 = vmatprep.mubr.bf16.mxu0 %v4953
  %8872 = vmatmul.mubr.bf16.gmra.mrb[0].mxu0 %v4952
  %v8873 = vpop.f32.mrb[0].mxu0
  %v8874 = vadd.f32 %v8713, %v8873
  %v8875 = vpop.f32.mrb[0].mxu0
  %v8876 = vpop.f32.mrb[0].mxu0
  %v8877 = vadd.f32 %v8716, %v8876
  %v8878 = vpop.f32.mrb[0].mxu0
  %8879 = vmatprep.mubr.bf16.mxu0 %v4965
  %8880 = vmatmul.mubr.bf16.gmra.mrb[0].mxu0 %v4964
  %v8881 = vpop.f32.mrb[0].mxu0
  %v8882 = vadd.f32 %v8721, %v8881
  %v8883 = vpop.f32.mrb[0].mxu0
  %v8884 = vpop.f32.mrb[0].mxu0
  %v8885 = vadd.f32 %v8724, %v8884
  %v8886 = vpop.f32.mrb[0].mxu0
  %8887 = vmatprep.mubr.bf16.mxu0 %v4977
  %8888 = vmatmul.mubr.bf16.gmra.mrb[0].mxu0 %v4976
  %v8889 = vpop.f32.mrb[0].mxu0
  %v8890 = vadd.f32 %v8729, %v8889
  %v8891 = vpop.f32.mrb[0].mxu0
  %v8892 = vpop.f32.mrb[0].mxu0
  %v8893 = vadd.f32 %v8732, %v8892
  %v8894 = vpop.f32.mrb[0].mxu0
  %8895 = vmatprep.mubr.bf16.mxu0 %v4989
  %8896 = vmatmul.mubr.bf16.gmra.mrb[0].mxu0 %v4988
  %v8897 = vpop.f32.mrb[0].mxu0
  %v8898 = vadd.f32 %v8737, %v8897
  %v8899 = vpop.f32.mrb[0].mxu0
  %v8900 = vpop.f32.mrb[0].mxu0
  %v8901 = vadd.f32 %v8740, %v8900
  %v8902 = vpop.f32.mrb[0].mxu0
  %8903 = vmatprep.mubr.bf16.mxu0 %v5001
  %8904 = vmatmul.mubr.bf16.gmra.mrb[0].mxu0 %v5000
  %v8905 = vpop.f32.mrb[0].mxu0
  %v8906 = vadd.f32 %v8745, %v8905
  %v8907 = vpop.f32.mrb[0].mxu0
  %v8908 = vpop.f32.mrb[0].mxu0
  %v8909 = vadd.f32 %v8748, %v8908
  %v8910 = vpop.f32.mrb[0].mxu0
  %8911 = vmatprep.mubr.bf16.mxu0 %v5013
  %8912 = vmatmul.mubr.bf16.gmra.mrb[0].mxu0 %v5012
  %v8913 = vpop.f32.mrb[0].mxu0
  %v8914 = vadd.f32 %v8753, %v8913
  %v8915 = vpop.f32.mrb[0].mxu0
  %v8916 = vpop.f32.mrb[0].mxu0
  %v8917 = vadd.f32 %v8756, %v8916
  %v8918 = vpop.f32.mrb[0].mxu0
  %8919 = vmatprep.mubr.bf16.mxu0 %v5025
  %8920 = vmatmul.mubr.bf16.gmra.mrb[0].mxu0 %v5024
  %v8921 = vpop.f32.mrb[0].mxu0
  %v8922 = vadd.f32 %v8761, %v8921
  %v8923 = vpop.f32.mrb[0].mxu0
  %v8924 = vpop.f32.mrb[0].mxu0
  %v8925 = vadd.f32 %v8764, %v8924
  %v8926 = vpop.f32.mrb[0].mxu0
  %8927 = vdwg.mxu0
  %8928 = vmatprep.subr.bf16.mxu0 0
  %8929 = vmatpush1.bf16.msra.mxu0 %v6631
  %8930 = vmatprep.subr.bf16.mxu0 0
  %8931 = vmatpush1.bf16.msra.mxu0 %v6634
  %8932 = vmatprep.subr.bf16.mxu0 0
  %8933 = vmatpush1.bf16.msra.mxu0 %v6637
  %8934 = vmatprep.subr.bf16.mxu0 0
  %8935 = vmatpush1.bf16.msra.mxu0 %v6640
  %8936 = vmatprep.subr.bf16.mxu0 0
  %8937 = vmatpush1.bf16.msra.mxu0 %v6643
  %8938 = vmatprep.subr.bf16.mxu0 0
  %8939 = vmatpush1.bf16.msra.mxu0 %v6646
  %8940 = vmatprep.subr.bf16.mxu0 0
  %8941 = vmatpush1.bf16.msra.mxu0 %v6649
  %8942 = vmatprep.subr.bf16.mxu0 0
  %8943 = vmatpush1.bf16.msra.mxu0 %v6652
  %8944 = vmatprep.subr.bf16.mxu0 0
  %8945 = vmatpush1.bf16.msra.mxu0 %v6655
  %8946 = vmatprep.subr.bf16.mxu0 0
  %8947 = vmatpush1.bf16.msra.mxu0 %v6658
  %8948 = vmatprep.subr.bf16.mxu0 0
  %8949 = vmatpush1.bf16.msra.mxu0 %v6661
  %8950 = vmatprep.subr.bf16.mxu0 0
  %8951 = vmatpush1.bf16.msra.mxu0 %v6664
  %8952 = vmatprep.subr.bf16.mxu0 0
  %8953 = vmatpush1.bf16.msra.mxu0 %v6667
  %8954 = vmatprep.subr.bf16.mxu0 0
  %8955 = vmatpush1.bf16.msra.mxu0 %v6670
  %8956 = vmatprep.subr.bf16.mxu0 0
  %8957 = vmatpush1.bf16.msra.mxu0 %v6673
  %8958 = vmatprep.subr.bf16.mxu0 0
  %8959 = vmatpush1.bf16.msra.mxu0 %v6676
  %8960 = vmatprep.mubr.bf16.mxu0 %v4847
  %8961 = vmatmul.mubr.bf16.gmra.mrb[0].mxu0 %v4846
  %v8962 = vpop.f32.mrb[0].mxu0
  %v8963 = vadd.f32 %v8802, %v8962
  %v8964 = vpop.f32.mrb[0].mxu0
  %v8965 = vpop.f32.mrb[0].mxu0
  %v8966 = vadd.f32 %v8805, %v8965
  %v8967 = vpop.f32.mrb[0].mxu0
  %8968 = vmatprep.mubr.bf16.mxu0 %v4859
  %8969 = vmatmul.mubr.bf16.gmra.mrb[0].mxu0 %v4858
  %v8970 = vpop.f32.mrb[0].mxu0
  %v8971 = vadd.f32 %v8810, %v8970
  %v8972 = vpop.f32.mrb[0].mxu0
  %v8973 = vpop.f32.mrb[0].mxu0
  %v8974 = vadd.f32 %v8813, %v8973
  %v8975 = vpop.f32.mrb[0].mxu0
  %8976 = vmatprep.mubr.bf16.mxu0 %v4871
  %8977 = vmatmul.mubr.bf16.gmra.mrb[0].mxu0 %v4870
  %v8978 = vpop.f32.mrb[0].mxu0
  %v8979 = vadd.f32 %v8818, %v8978
  %v8980 = vpop.f32.mrb[0].mxu0
  %v8981 = vpop.f32.mrb[0].mxu0
  %v8982 = vadd.f32 %v8821, %v8981
  %v8983 = vpop.f32.mrb[0].mxu0
  %8984 = vmatprep.mubr.bf16.mxu0 %v4883
  %8985 = vmatmul.mubr.bf16.gmra.mrb[0].mxu0 %v4882
  %v8986 = vpop.f32.mrb[0].mxu0
  %v8987 = vadd.f32 %v8826, %v8986
  %v8988 = vpop.f32.mrb[0].mxu0
  %v8989 = vpop.f32.mrb[0].mxu0
  %v8990 = vadd.f32 %v8829, %v8989
  %v8991 = vpop.f32.mrb[0].mxu0
  %8992 = vmatprep.mubr.bf16.mxu0 %v4895
  %8993 = vmatmul.mubr.bf16.gmra.mrb[0].mxu0 %v4894
  %v8994 = vpop.f32.mrb[0].mxu0
  %v8995 = vadd.f32 %v8834, %v8994
  %v8996 = vpop.f32.mrb[0].mxu0
  %v8997 = vpop.f32.mrb[0].mxu0
  %v8998 = vadd.f32 %v8837, %v8997
  %v8999 = vpop.f32.mrb[0].mxu0
  %9000 = vmatprep.mubr.bf16.mxu0 %v4907
  %9001 = vmatmul.mubr.bf16.gmra.mrb[0].mxu0 %v4906
  %v9002 = vpop.f32.mrb[0].mxu0
  %v9003 = vadd.f32 %v8842, %v9002
  %v9004 = vpop.f32.mrb[0].mxu0
  %v9005 = vpop.f32.mrb[0].mxu0
  %v9006 = vadd.f32 %v8845, %v9005
  %v9007 = vpop.f32.mrb[0].mxu0
  %9008 = vmatprep.mubr.bf16.mxu0 %v4919
  %9009 = vmatmul.mubr.bf16.gmra.mrb[0].mxu0 %v4918
  %v9010 = vpop.f32.mrb[0].mxu0
  %v9011 = vadd.f32 %v8850, %v9010
  %v9012 = vpop.f32.mrb[0].mxu0
  %v9013 = vpop.f32.mrb[0].mxu0
  %v9014 = vadd.f32 %v8853, %v9013
  %v9015 = vpop.f32.mrb[0].mxu0
  %9016 = vmatprep.mubr.bf16.mxu0 %v4931
  %9017 = vmatmul.mubr.bf16.gmra.mrb[0].mxu0 %v4930
  %v9018 = vpop.f32.mrb[0].mxu0
  %v9019 = vadd.f32 %v8858, %v9018
  %v9020 = vpop.f32.mrb[0].mxu0
  %v9021 = vpop.f32.mrb[0].mxu0
  %v9022 = vadd.f32 %v8861, %v9021
  %v9023 = vpop.f32.mrb[0].mxu0
  %9024 = vmatprep.mubr.bf16.mxu0 %v4943
  %9025 = vmatmul.mubr.bf16.gmra.mrb[0].mxu0 %v4942
  %v9026 = vpop.f32.mrb[0].mxu0
  %v9027 = vadd.f32 %v8866, %v9026
  %v9028 = vpop.f32.mrb[0].mxu0
  %v9029 = vpop.f32.mrb[0].mxu0
  %v9030 = vadd.f32 %v8869, %v9029
  %v9031 = vpop.f32.mrb[0].mxu0
  %9032 = vmatprep.mubr.bf16.mxu0 %v4955
  %9033 = vmatmul.mubr.bf16.gmra.mrb[0].mxu0 %v4954
  %v9034 = vpop.f32.mrb[0].mxu0
  %v9035 = vadd.f32 %v8874, %v9034
  %v9036 = vpop.f32.mrb[0].mxu0
  %v9037 = vpop.f32.mrb[0].mxu0
  %v9038 = vadd.f32 %v8877, %v9037
  %v9039 = vpop.f32.mrb[0].mxu0
  %9040 = vmatprep.mubr.bf16.mxu0 %v4967
  %9041 = vmatmul.mubr.bf16.gmra.mrb[0].mxu0 %v4966
  %v9042 = vpop.f32.mrb[0].mxu0
  %v9043 = vadd.f32 %v8882, %v9042
  %v9044 = vpop.f32.mrb[0].mxu0
  %v9045 = vpop.f32.mrb[0].mxu0
  %v9046 = vadd.f32 %v8885, %v9045
  %v9047 = vpop.f32.mrb[0].mxu0
  %9048 = vmatprep.mubr.bf16.mxu0 %v4979
  %9049 = vmatmul.mubr.bf16.gmra.mrb[0].mxu0 %v4978
  %v9050 = vpop.f32.mrb[0].mxu0
  %v9051 = vadd.f32 %v8890, %v9050
  %v9052 = vpop.f32.mrb[0].mxu0
  %v9053 = vpop.f32.mrb[0].mxu0
  %v9054 = vadd.f32 %v8893, %v9053
  %v9055 = vpop.f32.mrb[0].mxu0
  %9056 = vmatprep.mubr.bf16.mxu0 %v4991
  %9057 = vmatmul.mubr.bf16.gmra.mrb[0].mxu0 %v4990
  %v9058 = vpop.f32.mrb[0].mxu0
  %v9059 = vadd.f32 %v8898, %v9058
  %v9060 = vpop.f32.mrb[0].mxu0
  %v9061 = vpop.f32.mrb[0].mxu0
  %v9062 = vadd.f32 %v8901, %v9061
  %v9063 = vpop.f32.mrb[0].mxu0
  %9064 = vmatprep.mubr.bf16.mxu0 %v5003
  %9065 = vmatmul.mubr.bf16.gmra.mrb[0].mxu0 %v5002
  %v9066 = vpop.f32.mrb[0].mxu0
  %v9067 = vadd.f32 %v8906, %v9066
  %v9068 = vpop.f32.mrb[0].mxu0
  %v9069 = vpop.f32.mrb[0].mxu0
  %v9070 = vadd.f32 %v8909, %v9069
  %v9071 = vpop.f32.mrb[0].mxu0
  %9072 = vmatprep.mubr.bf16.mxu0 %v5015
  %9073 = vmatmul.mubr.bf16.gmra.mrb[0].mxu0 %v5014
  %v9074 = vpop.f32.mrb[0].mxu0
  %v9075 = vadd.f32 %v8914, %v9074
  %v9076 = vpop.f32.mrb[0].mxu0
  %v9077 = vpop.f32.mrb[0].mxu0
  %v9078 = vadd.f32 %v8917, %v9077
  %v9079 = vpop.f32.mrb[0].mxu0
  %9080 = vmatprep.mubr.bf16.mxu0 %v5027
  %9081 = vmatmul.mubr.bf16.gmra.mrb[0].mxu0 %v5026
  %v9082 = vpop.f32.mrb[0].mxu0
  %v9083 = vadd.f32 %v8922, %v9082
  %v9084 = vpop.f32.mrb[0].mxu0
  %v9085 = vpop.f32.mrb[0].mxu0
  %v9086 = vadd.f32 %v8925, %v9085
  %v9087 = vpop.f32.mrb[0].mxu0
  %9088 = vdwg.mxu0
  %v9089 = vld [vmem:[%s5] sm:$0xff]
  %v9090 = vld [vmem:[%s5 + $0x8] sm:$0xff]
  %v9091 = vld [vmem:[%s5 + $0x10] sm:$0xff]
  %v9092 = vld [vmem:[%s5 + $0x18] sm:$0xff]
  %v9093 = vld [vmem:[%s5 + $0x20] sm:$0xff]
  %v9094 = vld [vmem:[%s5 + $0x28] sm:$0xff]
  %v9095 = vld [vmem:[%s5 + $0x30] sm:$0xff]
  %v9096 = vld [vmem:[%s5 + $0x38] sm:$0xff]
  %v9097 = vld [vmem:[%s5 + $0x40] sm:$0xff]
  %v9098 = vld [vmem:[%s5 + $0x48] sm:$0xff]
  %v9099 = vld [vmem:[%s5 + $0x50] sm:$0xff]
  %v9100 = vld [vmem:[%s5 + $0x58] sm:$0xff]
  %v9101 = vld [vmem:[%s5 + $0x60] sm:$0xff]
  %v9102 = vld [vmem:[%s5 + $0x68] sm:$0xff]
  %v9103 = vld [vmem:[%s5 + $0x70] sm:$0xff]
  %v9104 = vld [vmem:[%s5 + $0x78] sm:$0xff]
  %v9105 = vld [vmem:[%s5 + $0x80] sm:$0xff]
  %v9106 = vld [vmem:[%s5 + $0x88] sm:$0xff]
  %v9107 = vld [vmem:[%s5 + $0x90] sm:$0xff]
  %v9108 = vld [vmem:[%s5 + $0x98] sm:$0xff]
  %v9109 = vld [vmem:[%s5 + $0xa0] sm:$0xff]
  %v9110 = vld [vmem:[%s5 + $0xa8] sm:$0xff]
  %v9111 = vld [vmem:[%s5 + $0xb0] sm:$0xff]
  %v9112 = vld [vmem:[%s5 + $0xb8] sm:$0xff]
  %v9113 = vld [vmem:[%s5 + $0xc0] sm:$0xff]
  %v9114 = vld [vmem:[%s5 + $0xc8] sm:$0xff]
  %v9115 = vld [vmem:[%s5 + $0xd0] sm:$0xff]
  %v9116 = vld [vmem:[%s5 + $0xd8] sm:$0xff]
  %v9117 = vld [vmem:[%s5 + $0xe0] sm:$0xff]
  %v9118 = vld [vmem:[%s5 + $0xe8] sm:$0xff]
  %v9119 = vld [vmem:[%s5 + $0xf0] sm:$0xff]
  %v9120 = vld [vmem:[%s5 + $0xf8] sm:$0xff]
  %v9121 = vld [vmem:[%s5 + $0x100] sm:$0xff]
  %v9122 = vld [vmem:[%s5 + $0x108] sm:$0xff]
  %v9123 = vld [vmem:[%s5 + $0x110] sm:$0xff]
  %v9124 = vld [vmem:[%s5 + $0x118] sm:$0xff]
  %v9125 = vld [vmem:[%s5 + $0x120] sm:$0xff]
  %v9126 = vld [vmem:[%s5 + $0x128] sm:$0xff]
  %v9127 = vld [vmem:[%s5 + $0x130] sm:$0xff]
  %v9128 = vld [vmem:[%s5 + $0x138] sm:$0xff]
  %v9129 = vld [vmem:[%s5 + $0x140] sm:$0xff]
  %v9130 = vld [vmem:[%s5 + $0x148] sm:$0xff]
  %v9131 = vld [vmem:[%s5 + $0x150] sm:$0xff]
  %v9132 = vld [vmem:[%s5 + $0x158] sm:$0xff]
  %v9133 = vld [vmem:[%s5 + $0x160] sm:$0xff]
  %v9134 = vld [vmem:[%s5 + $0x168] sm:$0xff]
  %v9135 = vld [vmem:[%s5 + $0x170] sm:$0xff]
  %v9136 = vld [vmem:[%s5 + $0x178] sm:$0xff]
  %v9137 = vld [vmem:[%s5 + $0x180] sm:$0xff]
  %v9138 = vld [vmem:[%s5 + $0x188] sm:$0xff]
  %v9139 = vld [vmem:[%s5 + $0x190] sm:$0xff]
  %v9140 = vld [vmem:[%s5 + $0x198] sm:$0xff]
  %v9141 = vld [vmem:[%s5 + $0x1a0] sm:$0xff]
  %v9142 = vld [vmem:[%s5 + $0x1a8] sm:$0xff]
  %v9143 = vld [vmem:[%s5 + $0x1b0] sm:$0xff]
  %v9144 = vld [vmem:[%s5 + $0x1b8] sm:$0xff]
  %v9145 = vld [vmem:[%s5 + $0x1c0] sm:$0xff]
  %v9146 = vld [vmem:[%s5 + $0x1c8] sm:$0xff]
  %v9147 = vld [vmem:[%s5 + $0x1d0] sm:$0xff]
  %v9148 = vld [vmem:[%s5 + $0x1d8] sm:$0xff]
  %v9149 = vld [vmem:[%s5 + $0x1e0] sm:$0xff]
  %v9150 = vld [vmem:[%s5 + $0x1e8] sm:$0xff]
  %v9151 = vld [vmem:[%s5 + $0x1f0] sm:$0xff]
  %v9152 = vld [vmem:[%s5 + $0x1f8] sm:$0xff]
  %v9153 = vld [vmem:[%s5 + $0x200] sm:$0xff]
  %v9154 = vld [vmem:[%s5 + $0x208] sm:$0xff]
  %v9155 = vld [vmem:[%s5 + $0x210] sm:$0xff]
  %v9156 = vld [vmem:[%s5 + $0x218] sm:$0xff]
  %v9157 = vld [vmem:[%s5 + $0x220] sm:$0xff]
  %v9158 = vld [vmem:[%s5 + $0x228] sm:$0xff]
  %v9159 = vld [vmem:[%s5 + $0x230] sm:$0xff]
  %v9160 = vld [vmem:[%s5 + $0x238] sm:$0xff]
  %v9161 = vld [vmem:[%s5 + $0x240] sm:$0xff]
  %v9162 = vld [vmem:[%s5 + $0x248] sm:$0xff]
  %v9163 = vld [vmem:[%s5 + $0x250] sm:$0xff]
  %v9164 = vld [vmem:[%s5 + $0x258] sm:$0xff]
  %v9165 = vld [vmem:[%s5 + $0x260] sm:$0xff]
  %v9166 = vld [vmem:[%s5 + $0x268] sm:$0xff]
  %v9167 = vld [vmem:[%s5 + $0x270] sm:$0xff]
  %v9168 = vld [vmem:[%s5 + $0x278] sm:$0xff]
  %v9169 = vld [vmem:[%s5 + $0x280] sm:$0xff]
  %v9170 = vld [vmem:[%s5 + $0x288] sm:$0xff]
  %v9171 = vld [vmem:[%s5 + $0x290] sm:$0xff]
  %v9172 = vld [vmem:[%s5 + $0x298] sm:$0xff]
  %v9173 = vld [vmem:[%s5 + $0x2a0] sm:$0xff]
  %v9174 = vld [vmem:[%s5 + $0x2a8] sm:$0xff]
  %v9175 = vld [vmem:[%s5 + $0x2b0] sm:$0xff]
  %v9176 = vld [vmem:[%s5 + $0x2b8] sm:$0xff]
  %v9177 = vld [vmem:[%s5 + $0x2c0] sm:$0xff]
  %v9178 = vld [vmem:[%s5 + $0x2c8] sm:$0xff]
  %v9179 = vld [vmem:[%s5 + $0x2d0] sm:$0xff]
  %v9180 = vld [vmem:[%s5 + $0x2d8] sm:$0xff]
  %v9181 = vld [vmem:[%s5 + $0x2e0] sm:$0xff]
  %v9182 = vld [vmem:[%s5 + $0x2e8] sm:$0xff]
  %v9183 = vld [vmem:[%s5 + $0x2f0] sm:$0xff]
  %v9184 = vld [vmem:[%s5 + $0x2f8] sm:$0xff]
  %vm9185 = vcmp.ge.u32.totalorder %v9089, 858993459
  %vm9186 = vcmp.ge.u32.totalorder %v9090, 858993459
  %vm9187 = vcmp.ge.u32.totalorder %v9091, 858993459
  %vm9188 = vcmp.ge.u32.totalorder %v9092, 858993459
  %vm9189 = vcmp.ge.u32.totalorder %v9093, 858993459
  %vm9190 = vcmp.ge.u32.totalorder %v9094, 858993459
  %vm9191 = vcmp.ge.u32.totalorder %v9095, 858993459
  %vm9192 = vcmp.ge.u32.totalorder %v9096, 858993459
  %vm9193 = vcmp.ge.u32.totalorder %v9097, 858993459
  %vm9194 = vcmp.ge.u32.totalorder %v9098, 858993459
  %vm9195 = vcmp.ge.u32.totalorder %v9099, 858993459
  %vm9196 = vcmp.ge.u32.totalorder %v9100, 858993459
  %vm9197 = vcmp.ge.u32.totalorder %v9101, 858993459
  %vm9198 = vcmp.ge.u32.totalorder %v9102, 858993459
  %vm9199 = vcmp.ge.u32.totalorder %v9103, 858993459
  %vm9200 = vcmp.ge.u32.totalorder %v9104, 858993459
  %vm9201 = vcmp.ge.u32.totalorder %v9105, 858993459
  %vm9202 = vcmp.ge.u32.totalorder %v9106, 858993459
  %vm9203 = vcmp.ge.u32.totalorder %v9107, 858993459
  %vm9204 = vcmp.ge.u32.totalorder %v9108, 858993459
  %vm9205 = vcmp.ge.u32.totalorder %v9109, 858993459
  %vm9206 = vcmp.ge.u32.totalorder %v9110, 858993459
  %vm9207 = vcmp.ge.u32.totalorder %v9111, 858993459
  %vm9208 = vcmp.ge.u32.totalorder %v9112, 858993459
  %vm9209 = vcmp.ge.u32.totalorder %v9113, 858993459
  %vm9210 = vcmp.ge.u32.totalorder %v9114, 858993459
  %vm9211 = vcmp.ge.u32.totalorder %v9115, 858993459
  %vm9212 = vcmp.ge.u32.totalorder %v9116, 858993459
  %vm9213 = vcmp.ge.u32.totalorder %v9117, 858993459
  %vm9214 = vcmp.ge.u32.totalorder %v9118, 858993459
  %vm9215 = vcmp.ge.u32.totalorder %v9119, 858993459
  %vm9216 = vcmp.ge.u32.totalorder %v9120, 858993459
  %vm9217 = vcmp.ge.u32.totalorder %v9121, 858993459
  %vm9218 = vcmp.ge.u32.totalorder %v9122, 858993459
  %vm9219 = vcmp.ge.u32.totalorder %v9123, 858993459
  %vm9220 = vcmp.ge.u32.totalorder %v9124, 858993459
  %vm9221 = vcmp.ge.u32.totalorder %v9125, 858993459
  %vm9222 = vcmp.ge.u32.totalorder %v9126, 858993459
  %vm9223 = vcmp.ge.u32.totalorder %v9127, 858993459
  %vm9224 = vcmp.ge.u32.totalorder %v9128, 858993459
  %vm9225 = vcmp.ge.u32.totalorder %v9129, 858993459
  %vm9226 = vcmp.ge.u32.totalorder %v9130, 858993459
  %vm9227 = vcmp.ge.u32.totalorder %v9131, 858993459
  %vm9228 = vcmp.ge.u32.totalorder %v9132, 858993459
  %vm9229 = vcmp.ge.u32.totalorder %v9133, 858993459
  %vm9230 = vcmp.ge.u32.totalorder %v9134, 858993459
  %vm9231 = vcmp.ge.u32.totalorder %v9135, 858993459
  %vm9232 = vcmp.ge.u32.totalorder %v9136, 858993459
  %vm9233 = vcmp.ge.u32.totalorder %v9137, 858993459
  %vm9234 = vcmp.ge.u32.totalorder %v9138, 858993459
  %vm9235 = vcmp.ge.u32.totalorder %v9139, 858993459
  %vm9236 = vcmp.ge.u32.totalorder %v9140, 858993459
  %vm9237 = vcmp.ge.u32.totalorder %v9141, 858993459
  %vm9238 = vcmp.ge.u32.totalorder %v9142, 858993459
  %vm9239 = vcmp.ge.u32.totalorder %v9143, 858993459
  %vm9240 = vcmp.ge.u32.totalorder %v9144, 858993459
  %vm9241 = vcmp.ge.u32.totalorder %v9145, 858993459
  %vm9242 = vcmp.ge.u32.totalorder %v9146, 858993459
  %vm9243 = vcmp.ge.u32.totalorder %v9147, 858993459
  %vm9244 = vcmp.ge.u32.totalorder %v9148, 858993459
  %vm9245 = vcmp.ge.u32.totalorder %v9149, 858993459
  %vm9246 = vcmp.ge.u32.totalorder %v9150, 858993459
  %vm9247 = vcmp.ge.u32.totalorder %v9151, 858993459
  %vm9248 = vcmp.ge.u32.totalorder %v9152, 858993459
  %vm9249 = vcmp.ge.u32.totalorder %v9153, 858993459
  %vm9250 = vcmp.ge.u32.totalorder %v9154, 858993459
  %vm9251 = vcmp.ge.u32.totalorder %v9155, 858993459
  %vm9252 = vcmp.ge.u32.totalorder %v9156, 858993459
  %vm9253 = vcmp.ge.u32.totalorder %v9157, 858993459
  %vm9254 = vcmp.ge.u32.totalorder %v9158, 858993459
  %vm9255 = vcmp.ge.u32.totalorder %v9159, 858993459
  %vm9256 = vcmp.ge.u32.totalorder %v9160, 858993459
  %vm9257 = vcmp.ge.u32.totalorder %v9161, 858993459
  %vm9258 = vcmp.ge.u32.totalorder %v9162, 858993459
  %vm9259 = vcmp.ge.u32.totalorder %v9163, 858993459
  %vm9260 = vcmp.ge.u32.totalorder %v9164, 858993459
  %vm9261 = vcmp.ge.u32.totalorder %v9165, 858993459
  %vm9262 = vcmp.ge.u32.totalorder %v9166, 858993459
  %vm9263 = vcmp.ge.u32.totalorder %v9167, 858993459
  %vm9264 = vcmp.ge.u32.totalorder %v9168, 858993459
  %vm9265 = vcmp.ge.u32.totalorder %v9169, 858993459
  %vm9266 = vcmp.ge.u32.totalorder %v9170, 858993459
  %vm9267 = vcmp.ge.u32.totalorder %v9171, 858993459
  %vm9268 = vcmp.ge.u32.totalorder %v9172, 858993459
  %vm9269 = vcmp.ge.u32.totalorder %v9173, 858993459
  %vm9270 = vcmp.ge.u32.totalorder %v9174, 858993459
  %vm9271 = vcmp.ge.u32.totalorder %v9175, 858993459
  %vm9272 = vcmp.ge.u32.totalorder %v9176, 858993459
  %vm9273 = vcmp.ge.u32.totalorder %v9177, 858993459
  %vm9274 = vcmp.ge.u32.totalorder %v9178, 858993459
  %vm9275 = vcmp.ge.u32.totalorder %v9179, 858993459
  %vm9276 = vcmp.ge.u32.totalorder %v9180, 858993459
  %vm9277 = vcmp.ge.u32.totalorder %v9181, 858993459
  %vm9278 = vcmp.ge.u32.totalorder %v9182, 858993459
  %vm9279 = vcmp.ge.u32.totalorder %v9183, 858993459
  %vm9280 = vcmp.ge.u32.totalorder %v9184, 858993459
  %v9281 = vmul.f32 %v7965, 1.25
  %v9282 = vmul.f32 %v7967, 1.25
  %v9283 = vmul.f32 %v8963, 1.25
  %v9284 = vmul.f32 %v7969, 1.25
  %v9285 = vmul.f32 %v7971, 1.25
  %v9286 = vmul.f32 %v8966, 1.25
  %v9287 = vmul.f32 %v7975, 1.25
  %v9288 = vmul.f32 %v7977, 1.25
  %v9289 = vmul.f32 %v8971, 1.25
  %v9290 = vmul.f32 %v7979, 1.25
  %v9291 = vmul.f32 %v7981, 1.25
  %v9292 = vmul.f32 %v8974, 1.25
  %v9293 = vmul.f32 %v7985, 1.25
  %v9294 = vmul.f32 %v7987, 1.25
  %v9295 = vmul.f32 %v8979, 1.25
  %v9296 = vmul.f32 %v7989, 1.25
  %v9297 = vmul.f32 %v7991, 1.25
  %v9298 = vmul.f32 %v8982, 1.25
  %v9299 = vmul.f32 %v7995, 1.25
  %v9300 = vmul.f32 %v7997, 1.25
  %v9301 = vmul.f32 %v8987, 1.25
  %v9302 = vmul.f32 %v7999, 1.25
  %v9303 = vmul.f32 %v8001, 1.25
  %v9304 = vmul.f32 %v8990, 1.25
  %v9305 = vmul.f32 %v8005, 1.25
  %v9306 = vmul.f32 %v8007, 1.25
  %v9307 = vmul.f32 %v8995, 1.25
  %v9308 = vmul.f32 %v8009, 1.25
  %v9309 = vmul.f32 %v8011, 1.25
  %v9310 = vmul.f32 %v8998, 1.25
  %v9311 = vmul.f32 %v8015, 1.25
  %v9312 = vmul.f32 %v8017, 1.25
  %v9313 = vmul.f32 %v9003, 1.25
  %v9314 = vmul.f32 %v8019, 1.25
  %v9315 = vmul.f32 %v8021, 1.25
  %v9316 = vmul.f32 %v9006, 1.25
  %v9317 = vmul.f32 %v8025, 1.25
  %v9318 = vmul.f32 %v8027, 1.25
  %v9319 = vmul.f32 %v9011, 1.25
  %v9320 = vmul.f32 %v8029, 1.25
  %v9321 = vmul.f32 %v8031, 1.25
  %v9322 = vmul.f32 %v9014, 1.25
  %v9323 = vmul.f32 %v8035, 1.25
  %v9324 = vmul.f32 %v8037, 1.25
  %v9325 = vmul.f32 %v9019, 1.25
  %v9326 = vmul.f32 %v8039, 1.25
  %v9327 = vmul.f32 %v8041, 1.25
  %v9328 = vmul.f32 %v9022, 1.25
  %v9329 = vmul.f32 %v8045, 1.25
  %v9330 = vmul.f32 %v8047, 1.25
  %v9331 = vmul.f32 %v9027, 1.25
  %v9332 = vmul.f32 %v8049, 1.25
  %v9333 = vmul.f32 %v8051, 1.25
  %v9334 = vmul.f32 %v9030, 1.25
  %v9335 = vmul.f32 %v8055, 1.25
  %v9336 = vmul.f32 %v8057, 1.25
  %v9337 = vmul.f32 %v9035, 1.25
  %v9338 = vmul.f32 %v8059, 1.25
  %v9339 = vmul.f32 %v8061, 1.25
  %v9340 = vmul.f32 %v9038, 1.25
  %v9341 = vmul.f32 %v8065, 1.25
  %v9342 = vmul.f32 %v8067, 1.25
  %v9343 = vmul.f32 %v9043, 1.25
  %v9344 = vmul.f32 %v8069, 1.25
  %v9345 = vmul.f32 %v8071, 1.25
  %v9346 = vmul.f32 %v9046, 1.25
  %v9347 = vmul.f32 %v8075, 1.25
  %v9348 = vmul.f32 %v8077, 1.25
  %v9349 = vmul.f32 %v9051, 1.25
  %v9350 = vmul.f32 %v8079, 1.25
  %v9351 = vmul.f32 %v8081, 1.25
  %v9352 = vmul.f32 %v9054, 1.25
  %v9353 = vmul.f32 %v8085, 1.25
  %v9354 = vmul.f32 %v8087, 1.25
  %v9355 = vmul.f32 %v9059, 1.25
  %v9356 = vmul.f32 %v8089, 1.25
  %v9357 = vmul.f32 %v8091, 1.25
  %v9358 = vmul.f32 %v9062, 1.25
  %v9359 = vmul.f32 %v8095, 1.25
  %v9360 = vmul.f32 %v8097, 1.25
  %v9361 = vmul.f32 %v9067, 1.25
  %v9362 = vmul.f32 %v8099, 1.25
  %v9363 = vmul.f32 %v8101, 1.25
  %v9364 = vmul.f32 %v9070, 1.25
  %v9365 = vmul.f32 %v8105, 1.25
  %v9366 = vmul.f32 %v8107, 1.25
  %v9367 = vmul.f32 %v9075, 1.25
  %v9368 = vmul.f32 %v8109, 1.25
  %v9369 = vmul.f32 %v8111, 1.25
  %v9370 = vmul.f32 %v9078, 1.25
  %v9371 = vmul.f32 %v8115, 1.25
  %v9372 = vmul.f32 %v8117, 1.25
  %v9373 = vmul.f32 %v9083, 1.25
  %v9374 = vmul.f32 %v8119, 1.25
  %v9375 = vmul.f32 %v8121, 1.25
  %v9376 = vmul.f32 %v9086, 1.25
  %v9377 = vsel %vm9185, %v9281, 0.0
  %v9378 = vsel %vm9186, %v9282, 0.0
  %v9379 = vsel %vm9187, %v9283, 0.0
  %v9380 = vsel %vm9188, %v9284, 0.0
  %v9381 = vsel %vm9189, %v9285, 0.0
  %v9382 = vsel %vm9190, %v9286, 0.0
  %v9383 = vsel %vm9191, %v9287, 0.0
  %v9384 = vsel %vm9192, %v9288, 0.0
  %v9385 = vsel %vm9193, %v9289, 0.0
  %v9386 = vsel %vm9194, %v9290, 0.0
  %v9387 = vsel %vm9195, %v9291, 0.0
  %v9388 = vsel %vm9196, %v9292, 0.0
  %v9389 = vsel %vm9197, %v9293, 0.0
  %v9390 = vsel %vm9198, %v9294, 0.0
  %v9391 = vsel %vm9199, %v9295, 0.0
  %v9392 = vsel %vm9200, %v9296, 0.0
  %v9393 = vsel %vm9201, %v9297, 0.0
  %v9394 = vsel %vm9202, %v9298, 0.0
  %v9395 = vsel %vm9203, %v9299, 0.0
  %v9396 = vsel %vm9204, %v9300, 0.0
  %v9397 = vsel %vm9205, %v9301, 0.0
  %v9398 = vsel %vm9206, %v9302, 0.0
  %v9399 = vsel %vm9207, %v9303, 0.0
  %v9400 = vsel %vm9208, %v9304, 0.0
  %v9401 = vsel %vm9209, %v9305, 0.0
  %v9402 = vsel %vm9210, %v9306, 0.0
  %v9403 = vsel %vm9211, %v9307, 0.0
  %v9404 = vsel %vm9212, %v9308, 0.0
  %v9405 = vsel %vm9213, %v9309, 0.0
  %v9406 = vsel %vm9214, %v9310, 0.0
  %v9407 = vsel %vm9215, %v9311, 0.0
  %v9408 = vsel %vm9216, %v9312, 0.0
  %v9409 = vsel %vm9217, %v9313, 0.0
  %v9410 = vsel %vm9218, %v9314, 0.0
  %v9411 = vsel %vm9219, %v9315, 0.0
  %v9412 = vsel %vm9220, %v9316, 0.0
  %v9413 = vsel %vm9221, %v9317, 0.0
  %v9414 = vsel %vm9222, %v9318, 0.0
  %v9415 = vsel %vm9223, %v9319, 0.0
  %v9416 = vsel %vm9224, %v9320, 0.0
  %v9417 = vsel %vm9225, %v9321, 0.0
  %v9418 = vsel %vm9226, %v9322, 0.0
  %v9419 = vsel %vm9227, %v9323, 0.0
  %v9420 = vsel %vm9228, %v9324, 0.0
  %v9421 = vsel %vm9229, %v9325, 0.0
  %v9422 = vsel %vm9230, %v9326, 0.0
  %v9423 = vsel %vm9231, %v9327, 0.0
  %v9424 = vsel %vm9232, %v9328, 0.0
  %v9425 = vsel %vm9233, %v9329, 0.0
  %v9426 = vsel %vm9234, %v9330, 0.0
  %v9427 = vsel %vm9235, %v9331, 0.0
  %v9428 = vsel %vm9236, %v9332, 0.0
  %v9429 = vsel %vm9237, %v9333, 0.0
  %v9430 = vsel %vm9238, %v9334, 0.0
  %v9431 = vsel %vm9239, %v9335, 0.0
  %v9432 = vsel %vm9240, %v9336, 0.0
  %v9433 = vsel %vm9241, %v9337, 0.0
  %v9434 = vsel %vm9242, %v9338, 0.0
  %v9435 = vsel %vm9243, %v9339, 0.0
  %v9436 = vsel %vm9244, %v9340, 0.0
  %v9437 = vsel %vm9245, %v9341, 0.0
  %v9438 = vsel %vm9246, %v9342, 0.0
  %v9439 = vsel %vm9247, %v9343, 0.0
  %v9440 = vsel %vm9248, %v9344, 0.0
  %v9441 = vsel %vm9249, %v9345, 0.0
  %v9442 = vsel %vm9250, %v9346, 0.0
  %v9443 = vsel %vm9251, %v9347, 0.0
  %v9444 = vsel %vm9252, %v9348, 0.0
  %v9445 = vsel %vm9253, %v9349, 0.0
  %v9446 = vsel %vm9254, %v9350, 0.0
  %v9447 = vsel %vm9255, %v9351, 0.0
  %v9448 = vsel %vm9256, %v9352, 0.0
  %v9449 = vsel %vm9257, %v9353, 0.0
  %v9450 = vsel %vm9258, %v9354, 0.0
  %v9451 = vsel %vm9259, %v9355, 0.0
  %v9452 = vsel %vm9260, %v9356, 0.0
  %v9453 = vsel %vm9261, %v9357, 0.0
  %v9454 = vsel %vm9262, %v9358, 0.0
  %v9455 = vsel %vm9263, %v9359, 0.0
  %v9456 = vsel %vm9264, %v9360, 0.0
  %v9457 = vsel %vm9265, %v9361, 0.0
  %v9458 = vsel %vm9266, %v9362, 0.0
  %v9459 = vsel %vm9267, %v9363, 0.0
  %v9460 = vsel %vm9268, %v9364, 0.0
  %v9461 = vsel %vm9269, %v9365, 0.0
  %v9462 = vsel %vm9270, %v9366, 0.0
  %v9463 = vsel %vm9271, %v9367, 0.0
  %v9464 = vsel %vm9272, %v9368, 0.0
  %v9465 = vsel %vm9273, %v9369, 0.0
  %v9466 = vsel %vm9274, %v9370, 0.0
  %v9467 = vsel %vm9275, %v9371, 0.0
  %v9468 = vsel %vm9276, %v9372, 0.0
  %v9469 = vsel %vm9277, %v9373, 0.0
  %v9470 = vsel %vm9278, %v9374, 0.0
  %v9471 = vsel %vm9279, %v9375, 0.0
  %v9472 = vsel %vm9280, %v9376, 0.0
  %9473 = vst [vmem:[%s6] sm:$0xff] %v9377
  %9474 = vst [vmem:[%s6 + $0x8] sm:$0xff] %v9378
  %9475 = vst [vmem:[%s6 + $0x10] sm:$0xff] %v9379
  %9476 = vst [vmem:[%s6 + $0x18] sm:$0xff] %v9380
  %9477 = vst [vmem:[%s6 + $0x20] sm:$0xff] %v9381
  %9478 = vst [vmem:[%s6 + $0x28] sm:$0xff] %v9382
  %9479 = vst [vmem:[%s6 + $0x30] sm:$0xff] %v9383
  %9480 = vst [vmem:[%s6 + $0x38] sm:$0xff] %v9384
  %9481 = vst [vmem:[%s6 + $0x40] sm:$0xff] %v9385
  %9482 = vst [vmem:[%s6 + $0x48] sm:$0xff] %v9386
  %9483 = vst [vmem:[%s6 + $0x50] sm:$0xff] %v9387
  %9484 = vst [vmem:[%s6 + $0x58] sm:$0xff] %v9388
  %9485 = vst [vmem:[%s6 + $0x60] sm:$0xff] %v9389
  %9486 = vst [vmem:[%s6 + $0x68] sm:$0xff] %v9390
  %9487 = vst [vmem:[%s6 + $0x70] sm:$0xff] %v9391
  %9488 = vst [vmem:[%s6 + $0x78] sm:$0xff] %v9392
  %9489 = vst [vmem:[%s6 + $0x80] sm:$0xff] %v9393
  %9490 = vst [vmem:[%s6 + $0x88] sm:$0xff] %v9394
  %9491 = vst [vmem:[%s6 + $0x90] sm:$0xff] %v9395
  %9492 = vst [vmem:[%s6 + $0x98] sm:$0xff] %v9396
  %9493 = vst [vmem:[%s6 + $0xa0] sm:$0xff] %v9397
  %9494 = vst [vmem:[%s6 + $0xa8] sm:$0xff] %v9398
  %9495 = vst [vmem:[%s6 + $0xb0] sm:$0xff] %v9399
  %9496 = vst [vmem:[%s6 + $0xb8] sm:$0xff] %v9400
  %9497 = vst [vmem:[%s6 + $0xc0] sm:$0xff] %v9401
  %9498 = vst [vmem:[%s6 + $0xc8] sm:$0xff] %v9402
  %9499 = vst [vmem:[%s6 + $0xd0] sm:$0xff] %v9403
  %9500 = vst [vmem:[%s6 + $0xd8] sm:$0xff] %v9404
  %9501 = vst [vmem:[%s6 + $0xe0] sm:$0xff] %v9405
  %9502 = vst [vmem:[%s6 + $0xe8] sm:$0xff] %v9406
  %9503 = vst [vmem:[%s6 + $0xf0] sm:$0xff] %v9407
  %9504 = vst [vmem:[%s6 + $0xf8] sm:$0xff] %v9408
  %9505 = vst [vmem:[%s6 + $0x100] sm:$0xff] %v9409
  %9506 = vst [vmem:[%s6 + $0x108] sm:$0xff] %v9410
  %9507 = vst [vmem:[%s6 + $0x110] sm:$0xff] %v9411
  %9508 = vst [vmem:[%s6 + $0x118] sm:$0xff] %v9412
  %9509 = vst [vmem:[%s6 + $0x120] sm:$0xff] %v9413
  %9510 = vst [vmem:[%s6 + $0x128] sm:$0xff] %v9414
  %9511 = vst [vmem:[%s6 + $0x130] sm:$0xff] %v9415
  %9512 = vst [vmem:[%s6 + $0x138] sm:$0xff] %v9416
  %9513 = vst [vmem:[%s6 + $0x140] sm:$0xff] %v9417
  %9514 = vst [vmem:[%s6 + $0x148] sm:$0xff] %v9418
  %9515 = vst [vmem:[%s6 + $0x150] sm:$0xff] %v9419
  %9516 = vst [vmem:[%s6 + $0x158] sm:$0xff] %v9420
  %9517 = vst [vmem:[%s6 + $0x160] sm:$0xff] %v9421
  %9518 = vst [vmem:[%s6 + $0x168] sm:$0xff] %v9422
  %9519 = vst [vmem:[%s6 + $0x170] sm:$0xff] %v9423
  %9520 = vst [vmem:[%s6 + $0x178] sm:$0xff] %v9424
  %9521 = vst [vmem:[%s6 + $0x180] sm:$0xff] %v9425
  %9522 = vst [vmem:[%s6 + $0x188] sm:$0xff] %v9426
  %9523 = vst [vmem:[%s6 + $0x190] sm:$0xff] %v9427
  %9524 = vst [vmem:[%s6 + $0x198] sm:$0xff] %v9428
  %9525 = vst [vmem:[%s6 + $0x1a0] sm:$0xff] %v9429
  %9526 = vst [vmem:[%s6 + $0x1a8] sm:$0xff] %v9430
  %9527 = vst [vmem:[%s6 + $0x1b0] sm:$0xff] %v9431
  %9528 = vst [vmem:[%s6 + $0x1b8] sm:$0xff] %v9432
  %9529 = vst [vmem:[%s6 + $0x1c0] sm:$0xff] %v9433
  %9530 = vst [vmem:[%s6 + $0x1c8] sm:$0xff] %v9434
  %9531 = vst [vmem:[%s6 + $0x1d0] sm:$0xff] %v9435
  %9532 = vst [vmem:[%s6 + $0x1d8] sm:$0xff] %v9436
  %9533 = vst [vmem:[%s6 + $0x1e0] sm:$0xff] %v9437
  %9534 = vst [vmem:[%s6 + $0x1e8] sm:$0xff] %v9438
  %9535 = vst [vmem:[%s6 + $0x1f0] sm:$0xff] %v9439
  %9536 = vst [vmem:[%s6 + $0x1f8] sm:$0xff] %v9440
  %9537 = vst [vmem:[%s6 + $0x200] sm:$0xff] %v9441
  %9538 = vst [vmem:[%s6 + $0x208] sm:$0xff] %v9442
  %9539 = vst [vmem:[%s6 + $0x210] sm:$0xff] %v9443
  %9540 = vst [vmem:[%s6 + $0x218] sm:$0xff] %v9444
  %9541 = vst [vmem:[%s6 + $0x220] sm:$0xff] %v9445
  %9542 = vst [vmem:[%s6 + $0x228] sm:$0xff] %v9446
  %9543 = vst [vmem:[%s6 + $0x230] sm:$0xff] %v9447
  %9544 = vst [vmem:[%s6 + $0x238] sm:$0xff] %v9448
  %9545 = vst [vmem:[%s6 + $0x240] sm:$0xff] %v9449
  %9546 = vst [vmem:[%s6 + $0x248] sm:$0xff] %v9450
  %9547 = vst [vmem:[%s6 + $0x250] sm:$0xff] %v9451
  %9548 = vst [vmem:[%s6 + $0x258] sm:$0xff] %v9452
  %9549 = vst [vmem:[%s6 + $0x260] sm:$0xff] %v9453
  %9550 = vst [vmem:[%s6 + $0x268] sm:$0xff] %v9454
  %9551 = vst [vmem:[%s6 + $0x270] sm:$0xff] %v9455
  %9552 = vst [vmem:[%s6 + $0x278] sm:$0xff] %v9456
  %9553 = vst [vmem:[%s6 + $0x280] sm:$0xff] %v9457
  %9554 = vst [vmem:[%s6 + $0x288] sm:$0xff] %v9458
  %9555 = vst [vmem:[%s6 + $0x290] sm:$0xff] %v9459
  %9556 = vst [vmem:[%s6 + $0x298] sm:$0xff] %v9460
  %9557 = vst [vmem:[%s6 + $0x2a0] sm:$0xff] %v9461
  %9558 = vst [vmem:[%s6 + $0x2a8] sm:$0xff] %v9462
  %9559 = vst [vmem:[%s6 + $0x2b0] sm:$0xff] %v9463
  %9560 = vst [vmem:[%s6 + $0x2b8] sm:$0xff] %v9464
  %9561 = vst [vmem:[%s6 + $0x2c0] sm:$0xff] %v9465
  %9562 = vst [vmem:[%s6 + $0x2c8] sm:$0xff] %v9466
  %9563 = vst [vmem:[%s6 + $0x2d0] sm:$0xff] %v9467
  %9564 = vst [vmem:[%s6 + $0x2d8] sm:$0xff] %v9468
  %9565 = vst [vmem:[%s6 + $0x2e0] sm:$0xff] %v9469
  %9566 = vst [vmem:[%s6 + $0x2e8] sm:$0xff] %v9470
  %9567 = vst [vmem:[%s6 + $0x2f0] sm:$0xff] %v9471
  %9568 = vst [vmem:[%s6 + $0x2f8] sm:$0xff] %v9472
  // Predicated region
  $region26: #{feed_forward.1} parent=0 // pred_check
    _
  $region27: #{feed_forward.1} parent=0 // pred_check_branch
    %9570 = sbr.rel (0) target = $region29
  $region28: #{feed_forward.1} parent=0 // pred_region
    _
  $region29: #{feed_forward.1} parent=0 // pred_fallthru
    _
  // Predicated region
  $region30: #{feed_forward.1} parent=0 // pred_check
    _
  $region31: #{feed_forward.1} parent=0 // pred_check_branch
    %9572 = sbr.rel (0) target = $region33
  $region32: #{feed_forward.1} parent=0 // pred_region
    _
  $region33: #{feed_forward.1} parent=0 // pred_fallthru
    _

</llo_original>
